<compile_context>
chip_gen: v6e
topology: v6e:2x2x1
jax: 0.10.0
libtpu: 0.0.40
codegen_flags: <defaults>
</compile_context>

<pallas_src>
import functools

import jax
import jax.numpy as jnp
from jax.experimental import pallas as pl
from jax.experimental.pallas import tpu as pltpu

jax.config.update("jax_default_matmul_precision", "highest")

# ---- static configuration (consistent with the module) ----------------------
D = 32           # Xdim_flow (state dimension)
H = 64           # hidden width of the velocity MLP
NUM_E = 2        # number of Hutchinson probes (self.num_e)
SIGMA0 = 0.01    # args_yaml['training']['sigma0'] default
SIGMA = SIGMA0 / (D ** 0.5)

BM = 128         # batch rows per grid step -> stacked LHS = (NUM_E+1)*BM = 384
OUT_W = 128      # lane-dense output slab width (unmasked vector stores)

# Packed parameter slab layout: (R_TOTAL, H) f32.  Every matmul block starts at
# an 8-row (sublane-tile) aligned offset so static slices feed the MXU without
# sublane shuffles.  w3 / b3 are zero-padded from width D to width H.
R_W1X = 0                 # (D, H)  rows   0..31
R_W1T = D                 # (1, H)  row   32
R_B1 = D + 1              # (1, H)  row   33
R_W2 = 40                 # (H, H)  rows  40..103
R_B2 = R_W2 + H           # (1, H)  row  104
R_W3 = 112                # (H, H)  rows 112..175   (cols D: are zero)
R_B3 = R_W3 + H           # (1, H)  row  176        (cols D: are zero)
R_TOTAL = 184


# ---- shared in-kernel MLP ----------------------------------------------------
def _mlp(xs, t, w_ref):
    """3-layer tanh MLP on an (R, D) LHS using the packed weight slab."""
    w1x = w_ref[R_W1X:R_W1X + D, :]                               # (D, H)
    # Time-dependent first-layer bias, hoisted and computed once per step.
    b1_eff = t * w_ref[R_W1T:R_W1T + 1, :] + w_ref[R_B1:R_B1 + 1, :]
    w2 = w_ref[R_W2:R_W2 + H, :]                                  # (H, H)
    b2 = w_ref[R_B2:R_B2 + 1, :]
    w3 = w_ref[R_W3:R_W3 + H, :]                                  # (H, H), cols D: zero
    b3 = w_ref[R_B3:R_B3 + 1, :]

    h1 = jnp.tanh(jnp.dot(xs, w1x, preferred_element_type=jnp.float32) + b1_eff)
    h2 = jnp.tanh(jnp.dot(h1, w2, preferred_element_type=jnp.float32) + b2)
    return jnp.dot(h2, w3, preferred_element_type=jnp.float32) + b3   # (R, H)


# ---- kernels -----------------------------------------------------------------
def _odefunc_div_kernel(t_ref, x_ref, ep_ref, w_ref, out_ref):
    """out slab: cols [0:D] = model(x,t); col D = -divf (Hutchinson estimate)."""
    t = t_ref[0, 0]
    x = x_ref[...]                                   # (BM, D)
    ep = ep_ref[...]                                 # (NUM_E+1, BM, D); ep[0] == 0
    sigma = jnp.float32(SIGMA)

    # Stacked LHS: rows 0..BM-1 are the unperturbed x (zero first probe), then
    # NUM_E perturbed copies — one broadcasted add, one 3-layer MLP pass.
    xs = (x[None, :, :] + sigma * ep).reshape((NUM_E + 1) * BM, D)
    ys = _mlp(xs, t, w_ref)                          # ((NUM_E+1)*BM, H)

    out = ys[:BM]                                    # (BM, H), cols D: zero
    diffs = ys[BM:].reshape(NUM_E, BM, H) - out[None]

    # Hutchinson trace accumulation; the 1/sigma, 1/NUM_E scales and the minus
    # sign are fused into one final multiply.
    prod = diffs[:, :, :D] * ep[1:]                  # (NUM_E, BM, D)
    tr = jnp.sum(prod, axis=-1, keepdims=True)       # (NUM_E, BM, 1)
    tr = jnp.sum(tr, axis=0)                         # (BM, 1)
    negdiv = tr * jnp.float32(-1.0 / (SIGMA * NUM_E))

    # Lane-dense writeback: one (BM, 128) unmasked store.
    out128 = jnp.concatenate(
        [out, jnp.zeros((BM, OUT_W - H), jnp.float32)], axis=-1)
    lane = jax.lax.broadcasted_iota(jnp.int32, (BM, OUT_W), 1)
    out_ref[...] = jnp.where(lane == D, negdiv, out128)


def _odefunc_vel_kernel(t_ref, x_ref, w_ref, out_ref):
    """Velocity-only path: out slab cols [0:D] = model(x, t)."""
    t = t_ref[0, 0]
    ys = _mlp(x_ref[...], t, w_ref)                  # (BM, H), cols D: zero
    out_ref[...] = jnp.concatenate(
        [ys, jnp.zeros((BM, OUT_W - H), jnp.float32)], axis=-1)


# ---- wrapper -----------------------------------------------------------------
def pack_params(params):
    """Pack the 7 weight/bias arrays into one (R_TOTAL, H) f32 slab."""
    w1x, w1t, b1, w2, b2, w3, b3 = [jnp.asarray(p, jnp.float32) for p in params]
    w3p = jnp.pad(w3, ((0, 0), (0, H - D)))
    b3p = jnp.pad(b3, ((0, 0), (0, H - D)))
    zrows = lambda n: jnp.zeros((n, H), jnp.float32)
    slab = jnp.concatenate(
        [w1x, w1t, b1, zrows(R_W2 - R_B1 - 1),
         w2, b2, zrows(R_W3 - R_B2 - 1),
         w3p, b3p, zrows(R_TOTAL - R_B3 - 1)], axis=0)
    assert slab.shape == (R_TOTAL, H)
    return slab


@functools.partial(jax.jit, static_argnames=("velocity",))
def odefunc_forward(t, x, e_ls, w_slab, velocity=False):
    """Pallas implementation of ODEFunc.forward (logpx=True, div_bf=False).

    Returns (out, -divf, Jac_norm_out) with shapes (N, D), (N,), (N,).
    If velocity=True, returns only out = model(x, t).
    """
    x = jnp.asarray(x, jnp.float32)                  # x = x.float()
    N = x.shape[0]
    if N % BM != 0:
        raise ValueError(f"batch {N} must be a multiple of BM={BM}")
    grid = (N // BM,)
    t_arr = jnp.asarray(t, jnp.float32).reshape(1, 1)

    smem_spec = pl.BlockSpec((1, 1), lambda i: (0, 0),
                             memory_space=pltpu.MemorySpace.SMEM)
    x_spec = pl.BlockSpec((BM, D), lambda i: (i, 0))
    # Constant index_map -> parameters DMA'd once, resident in VMEM for the grid.
    w_spec = pl.BlockSpec((R_TOTAL, H), lambda i: (0, 0))
    out_spec = pl.BlockSpec((BM, OUT_W), lambda i: (i, 0))
    cparams = pltpu.CompilerParams(dimension_semantics=("parallel",))

    if velocity:
        slab = pl.pallas_call(
            _odefunc_vel_kernel,
            out_shape=jax.ShapeDtypeStruct((N, OUT_W), jnp.float32),
            grid=grid,
            in_specs=[smem_spec, x_spec, w_spec],
            out_specs=out_spec,
            compiler_params=cparams,
        )(t_arr, x, w_slab)
        return slab[:, :D]

    e_ls = jnp.asarray(e_ls, jnp.float32)
    # Pack [zero-probe, e_0, ..., e_{NUM_E-1}] so the kernel builds the stacked
    # LHS with one broadcasted add.
    ep = jnp.concatenate([jnp.zeros((1, N, D), jnp.float32), e_ls], axis=0)
    ep_spec = pl.BlockSpec((NUM_E + 1, BM, D), lambda i: (0, i, 0))

    slab = pl.pallas_call(
        _odefunc_div_kernel,
        out_shape=jax.ShapeDtypeStruct((N, OUT_W), jnp.float32),
        grid=grid,
        in_specs=[smem_spec, x_spec, ep_spec, w_spec],
        out_specs=out_spec,
        compiler_params=cparams,
    )(t_arr, x, ep, w_slab)

    out = slab[:, :D]
    neg_divf = slab[:, D]
    # Jac_norm_out is identically zero in the approximate-divergence branch.
    jac_norm = jnp.zeros((N,), jnp.float32)
    return out, neg_divf, jac_norm


# ---- deterministic parameter init (synthetic weights, no checkpoint) ---------
def init_params(key):
    ks = jax.random.split(key, 7)
    s1 = 1.0 / jnp.sqrt(jnp.float32(D + 1))
    s2 = 1.0 / jnp.sqrt(jnp.float32(H))
    w1x = jax.random.normal(ks[0], (D, H), jnp.float32) * s1
    w1t = jax.random.normal(ks[1], (1, H), jnp.float32) * s1
    b1 = jax.random.normal(ks[2], (1, H), jnp.float32) * 0.01
    w2 = jax.random.normal(ks[3], (H, H), jnp.float32) * s2
    b2 = jax.random.normal(ks[4], (1, H), jnp.float32) * 0.01
    w3 = jax.random.normal(ks[5], (H, D), jnp.float32) * s2
    b3 = jax.random.normal(ks[6], (1, D), jnp.float32) * 0.01
    return (w1x, w1t, b1, w2, b2, w3, b3)


# ---- pure-JAX reference (mirrors the torch module) ---------------------------
def _reference(t, x, e_ls, params):
    w1x, w1t, b1, w2, b2, w3, b3 = params

    def mlp(z):
        h1 = jnp.tanh(z @ w1x + t * w1t + b1)
        h2 = jnp.tanh(h1 @ w2 + b2)
        return h2 @ w3 + b3

    out = mlp(x)
    trs = []
    for i in range(NUM_E):
        e = e_ls[i]
        out_e = mlp(x + SIGMA * e)
        e_dzdx = (out_e - out) / SIGMA
        trs.append(jnp.sum(e_dzdx * e, axis=1, keepdims=True))
    divf = jnp.concatenate(trs, axis=1).mean(axis=1)
    return out, -divf, jnp.zeros_like(divf)


if __name__ == "__main__":
    key = jax.random.PRNGKey(0)
    k_params, k_x, k_e = jax.random.split(key, 3)

    N = 256                                   # total batch (2 grid steps of BM=128)
    params = init_params(k_params)
    w_slab = pack_params(params)
    x = jax.random.normal(k_x, (N, D), jnp.float32)
    # self.e_ls = get_e_ls(x, num_e): standard-normal probes, same shape as x
    e_ls = jax.random.normal(k_e, (NUM_E, N, D), jnp.float32)
    t = 0.5

    out, neg_divf, jac_norm = odefunc_forward(t, x, e_ls, w_slab)
    out_v = odefunc_forward(t, x, None, w_slab, velocity=True)
    jax.block_until_ready((out, neg_divf, jac_norm, out_v))

    out_r, neg_divf_r, jac_r = _reference(t, x, e_ls, params)
    assert out.shape == (N, D) and neg_divf.shape == (N,) and jac_norm.shape == (N,)
    assert jnp.allclose(out, out_r, atol=1e-4, rtol=1e-4)
    assert jnp.allclose(out_v, out_r, atol=1e-4, rtol=1e-4)
    # -divf is a finite-difference estimate amplified by 1/sigma; allow a
    # small absolute slack for summation-order / transcendental differences.
    assert jnp.allclose(neg_divf, neg_divf_r, atol=2e-2, rtol=1e-3)
    assert jnp.allclose(jac_norm, jac_r)

    print("KERNEL_OK")
</pallas_src>

<mosaic_0001>
module attributes {stable_mosaic.version = 11 : i64} {
  func.func @_odefunc_div_kernel(%arg0: i32, %arg1: memref<1x1xf32, #tpu.memory_space<smem>>, %arg2: memref<128x32xf32, #tpu.memory_space<vmem>>, %arg3: memref<3x128x32xf32, #tpu.memory_space<vmem>>, %arg4: memref<184x64xf32, #tpu.memory_space<vmem>>, %arg5: memref<128x128xf32, #tpu.memory_space<vmem>>) attributes {dimension_semantics = [#tpu.dimension_semantics<parallel>], iteration_bounds = array<i64: 2>, scalar_prefetch = 0 : i64, scratch_operands = 0 : i64, tpu.core_type = #tpu.core_type<tc>, window_params = [{transform_indices = @transform_0, window_bounds = array<i64: 1, 1>}, {transform_indices = @transform_1, window_bounds = array<i64: 128, 32>}, {transform_indices = @transform_2, window_bounds = array<i64: 3, 128, 32>}, {pipeline_mode = #tpu.pipeline_mode<synchronous>, transform_indices = @transform_3, window_bounds = array<i64: 184, 64>}, {transform_indices = @transform_4, window_bounds = array<i64: 128, 128>}]} {
    %c0 = arith.constant 0 : index
    %c0_0 = arith.constant 0 : index
    %0 = memref.load %arg1[%c0, %c0_0] : memref<1x1xf32, #tpu.memory_space<smem>>
    %c0_1 = arith.constant 0 : index
    %c0_2 = arith.constant 0 : index
    %1 = vector.load %arg2[%c0_1, %c0_2] : memref<128x32xf32, #tpu.memory_space<vmem>>, vector<128x32xf32>
    %c0_3 = arith.constant 0 : index
    %c0_4 = arith.constant 0 : index
    %c0_5 = arith.constant 0 : index
    %2 = vector.load %arg3[%c0_3, %c0_4, %c0_5] : memref<3x128x32xf32, #tpu.memory_space<vmem>>, vector<3x128x32xf32>
    %3 = vector.shape_cast %1 : vector<128x32xf32> to vector<1x128x32xf32>
    %cst = arith.constant 0.00176776689 : f32
    %4 = vector.broadcast %cst : f32 to vector<3x128x32xf32>
    %5 = arith.mulf %4, %2 : vector<3x128x32xf32>
    %6 = vector.broadcast %3 : vector<1x128x32xf32> to vector<3x128x32xf32>
    %7 = arith.addf %6, %5 : vector<3x128x32xf32>
    %8 = vector.shape_cast %7 : vector<3x128x32xf32> to vector<384x32xf32>
    %c0_6 = arith.constant 0 : index
    %c0_7 = arith.constant 0 : index
    %9 = vector.load %arg4[%c0_6, %c0_7] : memref<184x64xf32, #tpu.memory_space<vmem>>, vector<32x64xf32>
    %c32 = arith.constant 32 : index
    %c0_8 = arith.constant 0 : index
    %10 = vector.load %arg4[%c32, %c0_8] : memref<184x64xf32, #tpu.memory_space<vmem>>, vector<1x64xf32>
    %11 = vector.broadcast %0 : f32 to vector<1x64xf32>
    %12 = arith.mulf %11, %10 : vector<1x64xf32>
    %c33 = arith.constant 33 : index
    %c0_9 = arith.constant 0 : index
    %13 = vector.load %arg4[%c33, %c0_9] : memref<184x64xf32, #tpu.memory_space<vmem>>, vector<1x64xf32>
    %14 = arith.addf %12, %13 : vector<1x64xf32>
    %c40 = arith.constant 40 : index
    %c0_10 = arith.constant 0 : index
    %15 = vector.load %arg4[%c40, %c0_10] : memref<184x64xf32, #tpu.memory_space<vmem>>, vector<64x64xf32>
    %c104 = arith.constant 104 : index
    %c0_11 = arith.constant 0 : index
    %16 = vector.load %arg4[%c104, %c0_11] : memref<184x64xf32, #tpu.memory_space<vmem>>, vector<1x64xf32>
    %c112 = arith.constant 112 : index
    %c0_12 = arith.constant 0 : index
    %17 = vector.load %arg4[%c112, %c0_12] : memref<184x64xf32, #tpu.memory_space<vmem>>, vector<64x64xf32>
    %c176 = arith.constant 176 : index
    %c0_13 = arith.constant 0 : index
    %18 = vector.load %arg4[%c176, %c0_13] : memref<184x64xf32, #tpu.memory_space<vmem>>, vector<1x64xf32>
    %cst_14 = arith.constant dense<0.000000e+00> : vector<384x64xf32>
    %19 = tpu.matmul %8, %9, %cst_14 {dimension_numbers = #tpu.dot_dimension_numbers<[1], [0], [0], [1], [0, 0, 1, 1], [], []>, precision = #tpu.contract_precision<fp32>} : vector<384x32xf32>, vector<32x64xf32>, vector<384x64xf32> -> vector<384x64xf32>
    %20 = vector.broadcast %14 : vector<1x64xf32> to vector<384x64xf32>
    %21 = arith.addf %19, %20 : vector<384x64xf32>
    %22 = math.tanh %21 : vector<384x64xf32>
    %cst_15 = arith.constant dense<0.000000e+00> : vector<384x64xf32>
    %23 = tpu.matmul %22, %15, %cst_15 {dimension_numbers = #tpu.dot_dimension_numbers<[1], [0], [0], [1], [0, 0, 1, 1], [], []>, precision = #tpu.contract_precision<fp32>} : vector<384x64xf32>, vector<64x64xf32>, vector<384x64xf32> -> vector<384x64xf32>
    %24 = vector.broadcast %16 : vector<1x64xf32> to vector<384x64xf32>
    %25 = arith.addf %23, %24 : vector<384x64xf32>
    %26 = math.tanh %25 : vector<384x64xf32>
    %cst_16 = arith.constant dense<0.000000e+00> : vector<384x64xf32>
    %27 = tpu.matmul %26, %17, %cst_16 {dimension_numbers = #tpu.dot_dimension_numbers<[1], [0], [0], [1], [0, 0, 1, 1], [], []>, precision = #tpu.contract_precision<fp32>} : vector<384x64xf32>, vector<64x64xf32>, vector<384x64xf32> -> vector<384x64xf32>
    %28 = vector.broadcast %18 : vector<1x64xf32> to vector<384x64xf32>
    %29 = arith.addf %27, %28 : vector<384x64xf32>
    %30 = vector.extract_strided_slice %29 {offsets = [0, 0], sizes = [128, 64], strides = [1, 1]} : vector<384x64xf32> to vector<128x64xf32>
    %31 = vector.extract_strided_slice %29 {offsets = [128, 0], sizes = [256, 64], strides = [1, 1]} : vector<384x64xf32> to vector<256x64xf32>
    %32 = vector.shape_cast %31 : vector<256x64xf32> to vector<2x128x64xf32>
    %33 = vector.shape_cast %30 : vector<128x64xf32> to vector<1x128x64xf32>
    %34 = vector.broadcast %33 : vector<1x128x64xf32> to vector<2x128x64xf32>
    %35 = arith.subf %32, %34 : vector<2x128x64xf32>
    %36 = vector.extract_strided_slice %35 {offsets = [0, 0, 0], sizes = [2, 128, 32], strides = [1, 1, 1]} : vector<2x128x64xf32> to vector<2x128x32xf32>
    %37 = vector.extract_strided_slice %2 {offsets = [1, 0, 0], sizes = [2, 128, 32], strides = [1, 1, 1]} : vector<3x128x32xf32> to vector<2x128x32xf32>
    %38 = arith.mulf %36, %37 : vector<2x128x32xf32>
    %cst_17 = arith.constant dense<0.000000e+00> : vector<2x128xf32>
    %39 = vector.multi_reduction <add>, %38, %cst_17 [2] : vector<2x128x32xf32> to vector<2x128xf32>
    %40 = vector.shape_cast %39 : vector<2x128xf32> to vector<2x128x1xf32>
    %cst_18 = arith.constant dense<0.000000e+00> : vector<128x1xf32>
    %41 = vector.multi_reduction <add>, %40, %cst_18 [0] : vector<2x128x1xf32> to vector<128x1xf32>
    %cst_19 = arith.constant -282.842712 : f32
    %42 = vector.broadcast %cst_19 : f32 to vector<128x1xf32>
    %43 = arith.mulf %41, %42 : vector<128x1xf32>
    %cst_20 = arith.constant 0.000000e+00 : f32
    %44 = vector.broadcast %cst_20 : f32 to vector<128x64xf32>
    %45 = tpu.concatenate %30, %44 in 1 : vector<128x64xf32>, vector<128x64xf32> -> vector<128x128xf32>
    %46 = tpu.iota {dimensions = array<i32: 1>} : vector<128x128xi32>
    %c32_i32 = arith.constant 32 : i32
    %47 = vector.broadcast %c32_i32 : i32 to vector<128x128xi32>
    %48 = arith.cmpi eq, %46, %47 : vector<128x128xi32>
    %49 = vector.shape_cast %43 : vector<128x1xf32> to vector<128x1xf32>
    %50 = vector.broadcast %49 : vector<128x1xf32> to vector<128x128xf32>
    %51 = arith.select %48, %50, %45 : vector<128x128xi1>, vector<128x128xf32>
    %c0_21 = arith.constant 0 : index
    %c0_22 = arith.constant 0 : index
    %52 = vector.load %arg5[%c0_21, %c0_22] : memref<128x128xf32, #tpu.memory_space<vmem>>, vector<128x128xf32>
    tpu.vector_store %arg5[%c0_21, %c0_22], %51 {strides = array<i32>} : memref<128x128xf32, #tpu.memory_space<vmem>>, vector<128x128xf32>,
    return
  }
  func.func @transform_0(%arg0: i32) -> (i32, i32) {
    %c0_i32 = arith.constant 0 : i32
    %c0_i32_0 = arith.constant 0 : i32
    %c0_i32_1 = arith.constant 0 : i32
    return %c0_i32, %c0_i32_0 : i32, i32
  }
  func.func @transform_1(%arg0: i32) -> (i32, i32) {
    %c0_i32 = arith.constant 0 : i32
    %c0_i32_0 = arith.constant 0 : i32
    return %arg0, %c0_i32 : i32, i32
  }
  func.func @transform_2(%arg0: i32) -> (i32, i32, i32) {
    %c0_i32 = arith.constant 0 : i32
    %c0_i32_0 = arith.constant 0 : i32
    %c0_i32_1 = arith.constant 0 : i32
    return %c0_i32, %arg0, %c0_i32_0 : i32, i32, i32
  }
  func.func @transform_3(%arg0: i32) -> (i32, i32) {
    %c0_i32 = arith.constant 0 : i32
    %c0_i32_0 = arith.constant 0 : i32
    %c0_i32_1 = arith.constant 0 : i32
    return %c0_i32, %c0_i32_0 : i32, i32
  }
  func.func @transform_4(%arg0: i32) -> (i32, i32) {
    %c0_i32 = arith.constant 0 : i32
    %c0_i32_0 = arith.constant 0 : i32
    return %arg0, %c0_i32 : i32, i32
  }
}

</mosaic_0001>

<llo_original>
// kernel: odefunc_forward.1
$region0: #{odefunc_forward.1}
  #allocation0 [shape = 'u32[]', space=smem, size = 0x4, offset = 0x4, fixed_abs, tag = 'smem constant byte address 0x4 - core index']
  #allocation1 [shape = 'u32[144,128]{1,0:T(1,128)}', space=vmem, size = 0x12000, scoped, tag = 'internal scratch']
  #allocation2 [shape = 'f32[1,1]{1,0:T(1,128)S(6)}', space=smem, size = 0x200, scoped, tag = 'scoped memory for odefunc_forward.1']
  %s0 = inlined_call_operand.<no memory space> [shape: f32[1,1], index: 0, kind: input, shape index: {}]
  %s1 = inlined_call_operand.vmem [shape: f32[256,32], index: 1, kind: input, shape index: {}]
  %s2 = inlined_call_operand.vmem [shape: f32[3,256,32], index: 2, kind: input, shape index: {}]
  %s3 = inlined_call_operand.vmem [shape: f32[184,64], index: 3, kind: input, shape index: {}]
  %s4 = inlined_call_operand.vmem [shape: f32[256,128], index: 4, kind: output, shape index: {}]
  %s5 = sld [smem:[#allocation0]]
  $region87: #{odefunc_forward.1} parent=0
    _
  %s7 = ssub.s32 1, %s5
  %s8 = scalar_select 0, %s7, %s5
  %9 = sst [smem:[#allocation2]] %s0
  $region1: #{odefunc_forward.1} parent=0
    #allocation3 [shape = 'u8[393216]{0}', space=vmem, size = 0x60000, scoped, tag = 'input window, operand 2']
    loop: start=0, step=1, limit=4
    $region2: #{odefunc_forward.1} parent=1 // loop_pre_header
      _
    $region3: #{odefunc_forward.1} parent=1 // loop_header
      %s11 = sphi 0, %s15
      %p12 = scmp.ge.s32.totalorder %s11, 4
      %s19 = sphi 0, %s19
      %s21 = sphi 0, %s19
      %s22 = sphi 0, %s21
      %s36 = sphi 0, %s22
      %s42 = sphi 0, %s44
      %s45 = sphi 0, %s42
      %s46 = sphi 0, %s45
      %s62 = sphi 0, %s46
      %s68 = sphi 0, %s70
      %s71 = sphi 0, %s68
      %s72 = sphi 0, %s71
      %s88 = sphi 0, %s72
      %s92 = sphi 0, %s92
      %s94 = sphi 0, %s92
      %s95 = sphi 0, %s94
      %s109 = sphi 0, %s95
      %s115 = sphi 0, %s117
      %s118 = sphi 0, %s115
      %s119 = sphi 0, %s118
      %s135 = sphi 0, %s119
    $region4: #{odefunc_forward.1} parent=1 // loop_header_branch
      %14 = sbr.rel (%p12) target = $region8
    $region5: #{odefunc_forward.1} parent=1 // loop_body
      %s16 = ssub.s32 %s11, 1
      %s17 = ssub.s32 %s11, 2
      %s18 = sadd.s32 %s11, 1
      %s20 = sadd.s32 %s19, 1
      %p23 = scmp.eq.s32.totalorder %s11, 1
      %p24 = scmp.ne.s32.totalorder %s19, %s21
      %p25 = scmp.eq.s32.totalorder %s11, 0
      %p26 = por %p24, %p25
      %p27 = scmp.ne.s32.totalorder %s19, %s21
      %p28 = scmp.eq.s32.totalorder %s16, 1
      %p29 = por %p27, %p28
      %p30 = scmp.ne.s32.totalorder %s21, %s22
      %p31 = scmp.eq.s32.totalorder %s16, 0
      %p32 = por %p30, %p31
      %p33 = scmp.ne.s32.totalorder %s21, %s22
      %p34 = scmp.eq.s32.totalorder %s17, 1
      %p35 = por %p33, %p34
      %p37 = scmp.ne.s32.totalorder %s22, %s36
      %p38 = scmp.eq.s32.totalorder %s17, 0
      %p39 = por %p37, %p38
      %s40 = ssub.s32 %s11, %s18
      %p41 = scmp.eq.s32.totalorder %s40, 0
      %s43 = sadd.s32 %s42, 1
      %s44 = scalar_select %p41, %s42, %s43
      %p47 = pneg %p41
      %p48 = scmp.eq.s32.totalorder %s11, 1
      %p49 = por %p47, %p48
      %p50 = scmp.ne.s32.totalorder %s42, %s45
      %p51 = scmp.eq.s32.totalorder %s11, 0
      %p52 = por %p50, %p51
      %p53 = scmp.ne.s32.totalorder %s42, %s45
      %p54 = scmp.eq.s32.totalorder %s16, 1
      %p55 = por %p53, %p54
      %p56 = scmp.ne.s32.totalorder %s45, %s46
      %p57 = scmp.eq.s32.totalorder %s16, 0
      %p58 = por %p56, %p57
      %p59 = scmp.ne.s32.totalorder %s45, %s46
      %p60 = scmp.eq.s32.totalorder %s17, 1
      %p61 = por %p59, %p60
      %p63 = scmp.ne.s32.totalorder %s46, %s62
      %p64 = scmp.eq.s32.totalorder %s17, 0
      %p65 = por %p63, %p64
      %s66 = ssub.s32 %s11, %s18
      %p67 = scmp.eq.s32.totalorder %s66, 0
      %s69 = sadd.s32 %s68, 1
      %s70 = scalar_select %p67, %s68, %s69
      %p73 = pneg %p67
      %p74 = scmp.eq.s32.totalorder %s11, 1
      %p75 = por %p73, %p74
      %p76 = scmp.ne.s32.totalorder %s68, %s71
      %p77 = scmp.eq.s32.totalorder %s11, 0
      %p78 = por %p76, %p77
      %p79 = scmp.ne.s32.totalorder %s68, %s71
      %p80 = scmp.eq.s32.totalorder %s16, 1
      %p81 = por %p79, %p80
      %p82 = scmp.ne.s32.totalorder %s71, %s72
      %p83 = scmp.eq.s32.totalorder %s16, 0
      %p84 = por %p82, %p83
      %p85 = scmp.ne.s32.totalorder %s71, %s72
      %p86 = scmp.eq.s32.totalorder %s17, 1
      %p87 = por %p85, %p86
      %p89 = scmp.ne.s32.totalorder %s72, %s88
      %p90 = scmp.eq.s32.totalorder %s17, 0
      %p91 = por %p89, %p90
      %s93 = sadd.s32 %s92, 1
      %p96 = scmp.eq.s32.totalorder %s11, 1
      %p97 = scmp.ne.s32.totalorder %s92, %s94
      %p98 = scmp.eq.s32.totalorder %s11, 0
      %p99 = por %p97, %p98
      %p100 = scmp.ne.s32.totalorder %s92, %s94
      %p101 = scmp.eq.s32.totalorder %s16, 1
      %p102 = por %p100, %p101
      %p103 = scmp.ne.s32.totalorder %s94, %s95
      %p104 = scmp.eq.s32.totalorder %s16, 0
      %p105 = por %p103, %p104
      %p106 = scmp.ne.s32.totalorder %s94, %s95
      %p107 = scmp.eq.s32.totalorder %s17, 1
      %p108 = por %p106, %p107
      %p110 = scmp.ne.s32.totalorder %s95, %s109
      %p111 = scmp.eq.s32.totalorder %s17, 0
      %p112 = por %p110, %p111
      %s113 = ssub.s32 %s11, %s18
      %p114 = scmp.eq.s32.totalorder %s113, 0
      %s116 = sadd.s32 %s115, 1
      %s117 = scalar_select %p114, %s115, %s116
      %p120 = pneg %p114
      %p121 = scmp.eq.s32.totalorder %s11, 1
      %p122 = por %p120, %p121
      %p123 = scmp.ne.s32.totalorder %s115, %s118
      %p124 = scmp.eq.s32.totalorder %s11, 0
      %p125 = por %p123, %p124
      %p126 = scmp.ne.s32.totalorder %s115, %s118
      %p127 = scmp.eq.s32.totalorder %s16, 1
      %p128 = por %p126, %p127
      %p129 = scmp.ne.s32.totalorder %s118, %s119
      %p130 = scmp.eq.s32.totalorder %s16, 0
      %p131 = por %p129, %p130
      %p132 = scmp.ne.s32.totalorder %s118, %s119
      %p133 = scmp.eq.s32.totalorder %s17, 1
      %p134 = por %p132, %p133
      %p136 = scmp.ne.s32.totalorder %s119, %s135
      %p137 = scmp.eq.s32.totalorder %s17, 0
      %p138 = por %p136, %p137
      %p139 = scmp.le.s32.totalorder 1, %s11
      %p140 = scmp.lt.s32.totalorder %s11, 3
      %p141 = pnand %p139, %p140
      %p142 = pneg %p141
      // Predicated region
      $region9: #{odefunc_forward.1} parent=5 // pred_check
        _
      $region10: #{odefunc_forward.1} parent=5 // pred_check_branch
        %144 = sbr.rel (%p141) target = $region12
      $region11: #{odefunc_forward.1} parent=5 // pred_region
        %s145 = ssub.s32 %s11, 1
        // Predicated region
        $region13: #{odefunc_forward.1} parent=11 // pred_check
          %p146 = pneg %p32
        $region14: #{odefunc_forward.1} parent=11 // pred_check_branch
          %148 = sbr.rel (%p146) target = $region16
        $region15: #{odefunc_forward.1} parent=11 // pred_region
          _
        $region16: #{odefunc_forward.1} parent=11 // pred_fallthru
          _
        // Predicated region
        $region17: #{odefunc_forward.1} parent=11 // pred_check
          %p149 = pneg %p105
        $region18: #{odefunc_forward.1} parent=11 // pred_check_branch
          %151 = sbr.rel (%p149) target = $region20
        $region19: #{odefunc_forward.1} parent=11 // pred_region
          _
        $region20: #{odefunc_forward.1} parent=11 // pred_fallthru
          _
      $region12: #{odefunc_forward.1} parent=5 // pred_fallthru
        _
      %p152 = scmp.lt.s32.totalorder %s11, 2
      // Predicated region
      $region21: #{odefunc_forward.1} parent=5 // pred_check
        %p153 = pneg %p152
      $region22: #{odefunc_forward.1} parent=5 // pred_check_branch
        %155 = sbr.rel (%p153) target = $region24
      $region23: #{odefunc_forward.1} parent=5 // pred_region
        // Predicated region
        $region25: #{odefunc_forward.1} parent=23 // pred_check
          %p156 = pneg %p52
        $region26: #{odefunc_forward.1} parent=23 // pred_check_branch
          %158 = sbr.rel (%p156) target = $region28
        $region27: #{odefunc_forward.1} parent=23 // pred_region
          %s159 = smul.u32 16, %s11
          %p160 = scmp.lt.s32.totalorder %s159, 31
          %s161 = scalar_select %p160, %s159, 31
          %s162 = smul.addr %s161, 8
          %s163 = scalar_lea.vmem %s1, %s162
          %s164 = smul.u32 16, %s11
        $region28: #{odefunc_forward.1} parent=23 // pred_fallthru
          _
        // Predicated region
        $region29: #{odefunc_forward.1} parent=23 // pred_check
          %p165 = pneg %p78
        $region30: #{odefunc_forward.1} parent=23 // pred_check_branch
          %167 = sbr.rel (%p165) target = $region32
        $region31: #{odefunc_forward.1} parent=23 // pred_region
          %s168 = sand.u32 %s68, 1
          %s169 = sand.u32 %s68, 1
          %s170 = smul.addr %s169, 384
          %s171 = scalar_lea.vmem [#allocation3], %s170
          %s172 = smul.u32 16, %s11
          %s173 = smul.addr %s172, 8
          %s174 = scalar_lea.vmem %s2, %s173
          // Predicated region
          $region33: #{odefunc_forward.1} parent=31 // pred_check
            _
          $region34: #{odefunc_forward.1} parent=31 // pred_check_branch
            %176 = sbr.rel (0) target = $region36
          $region35: #{odefunc_forward.1} parent=31 // pred_region
            // Predicated region
            $region37: #{odefunc_forward.1} parent=35 // pred_check
              _
            $region38: #{odefunc_forward.1} parent=35 // pred_check_branch
              %178 = sbr.rel (0) target = $region40
            $region39: #{odefunc_forward.1} parent=35 // pred_region
              // Predicated region
              $region52: #{odefunc_forward.1} parent=39 // pred_check
                _
              $region53: #{odefunc_forward.1} parent=39 // pred_check_branch
                %288 = sbr.rel (0) target = $region55
              $region54: #{odefunc_forward.1} parent=39 // pred_region
                loop: start=0, step=1, limit=1
                $region56: #{odefunc_forward.1} parent=54 // loop_pre_header
                  _
                $region57: #{odefunc_forward.1} parent=54 // loop_header
                  %s290 = sphi 0, %s294
                  %p291 = scmp.ge.s32.totalorder %s290, 1
                  %s295 = sphi %s174, %s174
                  %s296 = sphi %s171, %s171
                $region58: #{odefunc_forward.1} parent=54 // loop_header_branch
                  %293 = sbr.rel (%p291) target = $region62
                $region59: #{odefunc_forward.1} parent=54 // loop_body
                  %v297 = vld [vmem:[%s295] sm:$0xff]
                  %298 = vst [vmem:[%s296] sm:$0xff] %v297
                  %v299 = vld [vmem:[%s295 + $0x8] sm:$0xff]
                  %300 = vst [vmem:[%s296 + $0x8] sm:$0xff] %v299
                  %v301 = vld [vmem:[%s295 + $0x10] sm:$0xff]
                  %302 = vst [vmem:[%s296 + $0x10] sm:$0xff] %v301
                  %v303 = vld [vmem:[%s295 + $0x18] sm:$0xff]
                  %304 = vst [vmem:[%s296 + $0x18] sm:$0xff] %v303
                  %v305 = vld [vmem:[%s295 + $0x20] sm:$0xff]
                  %306 = vst [vmem:[%s296 + $0x20] sm:$0xff] %v305
                  %v307 = vld [vmem:[%s295 + $0x28] sm:$0xff]
                  %308 = vst [vmem:[%s296 + $0x28] sm:$0xff] %v307
                  %v309 = vld [vmem:[%s295 + $0x30] sm:$0xff]
                  %310 = vst [vmem:[%s296 + $0x30] sm:$0xff] %v309
                  %v311 = vld [vmem:[%s295 + $0x38] sm:$0xff]
                  %312 = vst [vmem:[%s296 + $0x38] sm:$0xff] %v311
                  %v313 = vld [vmem:[%s295 + $0x40] sm:$0xff]
                  %314 = vst [vmem:[%s296 + $0x40] sm:$0xff] %v313
                  %v315 = vld [vmem:[%s295 + $0x48] sm:$0xff]
                  %316 = vst [vmem:[%s296 + $0x48] sm:$0xff] %v315
                  %v317 = vld [vmem:[%s295 + $0x50] sm:$0xff]
                  %318 = vst [vmem:[%s296 + $0x50] sm:$0xff] %v317
                  %v319 = vld [vmem:[%s295 + $0x58] sm:$0xff]
                  %320 = vst [vmem:[%s296 + $0x58] sm:$0xff] %v319
                  %v321 = vld [vmem:[%s295 + $0x60] sm:$0xff]
                  %322 = vst [vmem:[%s296 + $0x60] sm:$0xff] %v321
                  %v323 = vld [vmem:[%s295 + $0x68] sm:$0xff]
                  %324 = vst [vmem:[%s296 + $0x68] sm:$0xff] %v323
                  %v325 = vld [vmem:[%s295 + $0x70] sm:$0xff]
                  %326 = vst [vmem:[%s296 + $0x70] sm:$0xff] %v325
                  %v327 = vld [vmem:[%s295 + $0x78] sm:$0xff]
                  %328 = vst [vmem:[%s296 + $0x78] sm:$0xff] %v327
                  %v329 = vld [vmem:[%s295 + $0x100] sm:$0xff]
                  %330 = vst [vmem:[%s296 + $0x80] sm:$0xff] %v329
                  %v331 = vld [vmem:[%s295 + $0x108] sm:$0xff]
                  %332 = vst [vmem:[%s296 + $0x88] sm:$0xff] %v331
                  %v333 = vld [vmem:[%s295 + $0x110] sm:$0xff]
                  %334 = vst [vmem:[%s296 + $0x90] sm:$0xff] %v333
                  %v335 = vld [vmem:[%s295 + $0x118] sm:$0xff]
                  %336 = vst [vmem:[%s296 + $0x98] sm:$0xff] %v335
                  %v337 = vld [vmem:[%s295 + $0x120] sm:$0xff]
                  %338 = vst [vmem:[%s296 + $0xa0] sm:$0xff] %v337
                  %v339 = vld [vmem:[%s295 + $0x128] sm:$0xff]
                  %340 = vst [vmem:[%s296 + $0xa8] sm:$0xff] %v339
                  %v341 = vld [vmem:[%s295 + $0x130] sm:$0xff]
                  %342 = vst [vmem:[%s296 + $0xb0] sm:$0xff] %v341
                  %v343 = vld [vmem:[%s295 + $0x138] sm:$0xff]
                  %344 = vst [vmem:[%s296 + $0xb8] sm:$0xff] %v343
                  %v345 = vld [vmem:[%s295 + $0x140] sm:$0xff]
                  %346 = vst [vmem:[%s296 + $0xc0] sm:$0xff] %v345
                  %v347 = vld [vmem:[%s295 + $0x148] sm:$0xff]
                  %348 = vst [vmem:[%s296 + $0xc8] sm:$0xff] %v347
                  %v349 = vld [vmem:[%s295 + $0x150] sm:$0xff]
                  %350 = vst [vmem:[%s296 + $0xd0] sm:$0xff] %v349
                  %v351 = vld [vmem:[%s295 + $0x158] sm:$0xff]
                  %352 = vst [vmem:[%s296 + $0xd8] sm:$0xff] %v351
                  %v353 = vld [vmem:[%s295 + $0x160] sm:$0xff]
                  %354 = vst [vmem:[%s296 + $0xe0] sm:$0xff] %v353
                  %v355 = vld [vmem:[%s295 + $0x168] sm:$0xff]
                  %356 = vst [vmem:[%s296 + $0xe8] sm:$0xff] %v355
                  %v357 = vld [vmem:[%s295 + $0x170] sm:$0xff]
                  %358 = vst [vmem:[%s296 + $0xf0] sm:$0xff] %v357
                  %v359 = vld [vmem:[%s295 + $0x178] sm:$0xff]
                  %360 = vst [vmem:[%s296 + $0xf8] sm:$0xff] %v359
                  %v361 = vld [vmem:[%s295 + $0x200] sm:$0xff]
                  %362 = vst [vmem:[%s296 + $0x100] sm:$0xff] %v361
                  %v363 = vld [vmem:[%s295 + $0x208] sm:$0xff]
                  %364 = vst [vmem:[%s296 + $0x108] sm:$0xff] %v363
                  %v365 = vld [vmem:[%s295 + $0x210] sm:$0xff]
                  %366 = vst [vmem:[%s296 + $0x110] sm:$0xff] %v365
                  %v367 = vld [vmem:[%s295 + $0x218] sm:$0xff]
                  %368 = vst [vmem:[%s296 + $0x118] sm:$0xff] %v367
                  %v369 = vld [vmem:[%s295 + $0x220] sm:$0xff]
                  %370 = vst [vmem:[%s296 + $0x120] sm:$0xff] %v369
                  %v371 = vld [vmem:[%s295 + $0x228] sm:$0xff]
                  %372 = vst [vmem:[%s296 + $0x128] sm:$0xff] %v371
                  %v373 = vld [vmem:[%s295 + $0x230] sm:$0xff]
                  %374 = vst [vmem:[%s296 + $0x130] sm:$0xff] %v373
                  %v375 = vld [vmem:[%s295 + $0x238] sm:$0xff]
                  %376 = vst [vmem:[%s296 + $0x138] sm:$0xff] %v375
                  %v377 = vld [vmem:[%s295 + $0x240] sm:$0xff]
                  %378 = vst [vmem:[%s296 + $0x140] sm:$0xff] %v377
                  %v379 = vld [vmem:[%s295 + $0x248] sm:$0xff]
                  %380 = vst [vmem:[%s296 + $0x148] sm:$0xff] %v379
                  %v381 = vld [vmem:[%s295 + $0x250] sm:$0xff]
                  %382 = vst [vmem:[%s296 + $0x150] sm:$0xff] %v381
                  %v383 = vld [vmem:[%s295 + $0x258] sm:$0xff]
                  %384 = vst [vmem:[%s296 + $0x158] sm:$0xff] %v383
                  %v385 = vld [vmem:[%s295 + $0x260] sm:$0xff]
                  %386 = vst [vmem:[%s296 + $0x160] sm:$0xff] %v385
                  %v387 = vld [vmem:[%s295 + $0x268] sm:$0xff]
                  %388 = vst [vmem:[%s296 + $0x168] sm:$0xff] %v387
                  %v389 = vld [vmem:[%s295 + $0x270] sm:$0xff]
                  %390 = vst [vmem:[%s296 + $0x170] sm:$0xff] %v389
                  %v391 = vld [vmem:[%s295 + $0x278] sm:$0xff]
                  %392 = vst [vmem:[%s296 + $0x178] sm:$0xff] %v391
                $region60: #{odefunc_forward.1} parent=54 // loop_footer
                  %s294 = sadd.s32 1, %s290
                $region61: #{odefunc_forward.1} parent=54 // loop_footer_branch
                  %289 = sbr.rel target = $region57
                $region62: #{odefunc_forward.1} parent=54 // loop_exit
                  _
              $region55: #{odefunc_forward.1} parent=39 // pred_fallthru
                _
              // Predicated region
              $region63: #{odefunc_forward.1} parent=39 // pred_check
                _
              $region64: #{odefunc_forward.1} parent=39 // pred_check_branch
                %394 = sbr.rel target = $region66
              $region65: #{odefunc_forward.1} parent=39 // pred_region
                _
              $region66: #{odefunc_forward.1} parent=39 // pred_fallthru
                _
            $region40: #{odefunc_forward.1} parent=35 // pred_fallthru
              _
            // Predicated region
            $region41: #{odefunc_forward.1} parent=35 // pred_check
              _
            $region42: #{odefunc_forward.1} parent=35 // pred_check_branch
              %180 = sbr.rel target = $region44
            $region43: #{odefunc_forward.1} parent=35 // pred_region
              %s182 = ssub.s32 256, 1
              loop: start=0, step=1, limit=1
              $region45: #{odefunc_forward.1} parent=43 // loop_pre_header
                _
              $region46: #{odefunc_forward.1} parent=43 // loop_header
                %s184 = sphi 0, %s188
                %p185 = scmp.ge.s32.totalorder %s184, 1
                %s189 = sphi %s174, %s174
                %s190 = sphi %s171, %s171
              $region47: #{odefunc_forward.1} parent=43 // loop_header_branch
                %187 = sbr.rel (%p185) target = $region51
              $region48: #{odefunc_forward.1} parent=43 // loop_body
                %v191 = vld [vmem:[%s189] sm:%s182]
                %192 = vst [vmem:[%s190] sm:%s182] %v191
                %v193 = vld [vmem:[%s189 + $0x8] sm:%s182]
                %194 = vst [vmem:[%s190 + $0x8] sm:%s182] %v193
                %v195 = vld [vmem:[%s189 + $0x10] sm:%s182]
                %196 = vst [vmem:[%s190 + $0x10] sm:%s182] %v195
                %v197 = vld [vmem:[%s189 + $0x18] sm:%s182]
                %198 = vst [vmem:[%s190 + $0x18] sm:%s182] %v197
                %v199 = vld [vmem:[%s189 + $0x20] sm:%s182]
                %200 = vst [vmem:[%s190 + $0x20] sm:%s182] %v199
                %v201 = vld [vmem:[%s189 + $0x28] sm:%s182]
                %202 = vst [vmem:[%s190 + $0x28] sm:%s182] %v201
                %v203 = vld [vmem:[%s189 + $0x30] sm:%s182]
                %204 = vst [vmem:[%s190 + $0x30] sm:%s182] %v203
                %v205 = vld [vmem:[%s189 + $0x38] sm:%s182]
                %206 = vst [vmem:[%s190 + $0x38] sm:%s182] %v205
                %v207 = vld [vmem:[%s189 + $0x40] sm:%s182]
                %208 = vst [vmem:[%s190 + $0x40] sm:%s182] %v207
                %v209 = vld [vmem:[%s189 + $0x48] sm:%s182]
                %210 = vst [vmem:[%s190 + $0x48] sm:%s182] %v209
                %v211 = vld [vmem:[%s189 + $0x50] sm:%s182]
                %212 = vst [vmem:[%s190 + $0x50] sm:%s182] %v211
                %v213 = vld [vmem:[%s189 + $0x58] sm:%s182]
                %214 = vst [vmem:[%s190 + $0x58] sm:%s182] %v213
                %v215 = vld [vmem:[%s189 + $0x60] sm:%s182]
                %216 = vst [vmem:[%s190 + $0x60] sm:%s182] %v215
                %v217 = vld [vmem:[%s189 + $0x68] sm:%s182]
                %218 = vst [vmem:[%s190 + $0x68] sm:%s182] %v217
                %v219 = vld [vmem:[%s189 + $0x70] sm:%s182]
                %220 = vst [vmem:[%s190 + $0x70] sm:%s182] %v219
                %v221 = vld [vmem:[%s189 + $0x78] sm:%s182]
                %222 = vst [vmem:[%s190 + $0x78] sm:%s182] %v221
                %v223 = vld [vmem:[%s189 + $0x100] sm:%s182]
                %224 = vst [vmem:[%s190 + $0x80] sm:%s182] %v223
                %v225 = vld [vmem:[%s189 + $0x108] sm:%s182]
                %226 = vst [vmem:[%s190 + $0x88] sm:%s182] %v225
                %v227 = vld [vmem:[%s189 + $0x110] sm:%s182]
                %228 = vst [vmem:[%s190 + $0x90] sm:%s182] %v227
                %v229 = vld [vmem:[%s189 + $0x118] sm:%s182]
                %230 = vst [vmem:[%s190 + $0x98] sm:%s182] %v229
                %v231 = vld [vmem:[%s189 + $0x120] sm:%s182]
                %232 = vst [vmem:[%s190 + $0xa0] sm:%s182] %v231
                %v233 = vld [vmem:[%s189 + $0x128] sm:%s182]
                %234 = vst [vmem:[%s190 + $0xa8] sm:%s182] %v233
                %v235 = vld [vmem:[%s189 + $0x130] sm:%s182]
                %236 = vst [vmem:[%s190 + $0xb0] sm:%s182] %v235
                %v237 = vld [vmem:[%s189 + $0x138] sm:%s182]
                %238 = vst [vmem:[%s190 + $0xb8] sm:%s182] %v237
                %v239 = vld [vmem:[%s189 + $0x140] sm:%s182]
                %240 = vst [vmem:[%s190 + $0xc0] sm:%s182] %v239
                %v241 = vld [vmem:[%s189 + $0x148] sm:%s182]
                %242 = vst [vmem:[%s190 + $0xc8] sm:%s182] %v241
                %v243 = vld [vmem:[%s189 + $0x150] sm:%s182]
                %244 = vst [vmem:[%s190 + $0xd0] sm:%s182] %v243
                %v245 = vld [vmem:[%s189 + $0x158] sm:%s182]
                %246 = vst [vmem:[%s190 + $0xd8] sm:%s182] %v245
                %v247 = vld [vmem:[%s189 + $0x160] sm:%s182]
                %248 = vst [vmem:[%s190 + $0xe0] sm:%s182] %v247
                %v249 = vld [vmem:[%s189 + $0x168] sm:%s182]
                %250 = vst [vmem:[%s190 + $0xe8] sm:%s182] %v249
                %v251 = vld [vmem:[%s189 + $0x170] sm:%s182]
                %252 = vst [vmem:[%s190 + $0xf0] sm:%s182] %v251
                %v253 = vld [vmem:[%s189 + $0x178] sm:%s182]
                %254 = vst [vmem:[%s190 + $0xf8] sm:%s182] %v253
                %v255 = vld [vmem:[%s189 + $0x200] sm:%s182]
                %256 = vst [vmem:[%s190 + $0x100] sm:%s182] %v255
                %v257 = vld [vmem:[%s189 + $0x208] sm:%s182]
                %258 = vst [vmem:[%s190 + $0x108] sm:%s182] %v257
                %v259 = vld [vmem:[%s189 + $0x210] sm:%s182]
                %260 = vst [vmem:[%s190 + $0x110] sm:%s182] %v259
                %v261 = vld [vmem:[%s189 + $0x218] sm:%s182]
                %262 = vst [vmem:[%s190 + $0x118] sm:%s182] %v261
                %v263 = vld [vmem:[%s189 + $0x220] sm:%s182]
                %264 = vst [vmem:[%s190 + $0x120] sm:%s182] %v263
                %v265 = vld [vmem:[%s189 + $0x228] sm:%s182]
                %266 = vst [vmem:[%s190 + $0x128] sm:%s182] %v265
                %v267 = vld [vmem:[%s189 + $0x230] sm:%s182]
                %268 = vst [vmem:[%s190 + $0x130] sm:%s182] %v267
                %v269 = vld [vmem:[%s189 + $0x238] sm:%s182]
                %270 = vst [vmem:[%s190 + $0x138] sm:%s182] %v269
                %v271 = vld [vmem:[%s189 + $0x240] sm:%s182]
                %272 = vst [vmem:[%s190 + $0x140] sm:%s182] %v271
                %v273 = vld [vmem:[%s189 + $0x248] sm:%s182]
                %274 = vst [vmem:[%s190 + $0x148] sm:%s182] %v273
                %v275 = vld [vmem:[%s189 + $0x250] sm:%s182]
                %276 = vst [vmem:[%s190 + $0x150] sm:%s182] %v275
                %v277 = vld [vmem:[%s189 + $0x258] sm:%s182]
                %278 = vst [vmem:[%s190 + $0x158] sm:%s182] %v277
                %v279 = vld [vmem:[%s189 + $0x260] sm:%s182]
                %280 = vst [vmem:[%s190 + $0x160] sm:%s182] %v279
                %v281 = vld [vmem:[%s189 + $0x268] sm:%s182]
                %282 = vst [vmem:[%s190 + $0x168] sm:%s182] %v281
                %v283 = vld [vmem:[%s189 + $0x270] sm:%s182]
                %284 = vst [vmem:[%s190 + $0x170] sm:%s182] %v283
                %v285 = vld [vmem:[%s189 + $0x278] sm:%s182]
                %286 = vst [vmem:[%s190 + $0x178] sm:%s182] %v285
              $region49: #{odefunc_forward.1} parent=43 // loop_footer
                %s188 = sadd.s32 1, %s184
              $region50: #{odefunc_forward.1} parent=43 // loop_footer_branch
                %183 = sbr.rel target = $region46
              $region51: #{odefunc_forward.1} parent=43 // loop_exit
                _
            $region44: #{odefunc_forward.1} parent=35 // pred_fallthru
              _
          $region36: #{odefunc_forward.1} parent=31 // pred_fallthru
            _
          %395 = vnop
        $region32: #{odefunc_forward.1} parent=23 // pred_fallthru
          _
      $region24: #{odefunc_forward.1} parent=5 // pred_fallthru
        _
      %p396 = scmp.le.s32.totalorder 1, %s11
      %p397 = scmp.lt.s32.totalorder %s11, 3
      %p398 = pnand %p396, %p397
      %p399 = pneg %p398
      // Predicated region
      $region67: #{odefunc_forward.1} parent=5 // pred_check
        _
      $region68: #{odefunc_forward.1} parent=5 // pred_check_branch
        %401 = sbr.rel (%p398) target = $region70
      $region69: #{odefunc_forward.1} parent=5 // pred_region
        %s402 = ssub.s32 %s11, 1
        %s403 = sand.u32 %s71, 1
        %s404 = sand.u32 %s71, 1
        %s405 = smul.addr %s404, 384
        %s406 = scalar_lea.vmem [#allocation3], %s405
        // Predicated region
        $region71: #{odefunc_forward.1} parent=69 // pred_check
          %p407 = pneg %p84
        $region72: #{odefunc_forward.1} parent=69 // pred_check_branch
          %409 = sbr.rel (%p407) target = $region74
        $region73: #{odefunc_forward.1} parent=69 // pred_region
          _
        $region74: #{odefunc_forward.1} parent=69 // pred_fallthru
          _
        %p410 = pneg %p32
        %p411 = pneg %p29
        %s412 = smul.u32 16, %s16
        %p413 = scmp.lt.s32.totalorder %s412, 31
        %s414 = scalar_select %p413, %s412, 31
        %s415 = smul.addr %s414, 8
        %s416 = scalar_lea.vmem %s1, %s415
        %p417 = pneg %p58
        %p418 = pneg %p55
        %s419 = sand.u32 %s71, 1
        %s420 = sand.u32 %s71, 1
        %s421 = smul.addr %s420, 384
        %s422 = scalar_lea.vmem [#allocation3], %s421
        %p423 = pneg %p84
        %p424 = pneg %p81
        %p425 = pneg %p105
        %p426 = pneg %p102
        %p427 = pneg %p131
        %p428 = pneg %p128
        %s429 = smul.u32 16, %s16
        %p430 = scmp.lt.s32.totalorder %s429, 31
        %s431 = scalar_select %p430, %s429, 31
        %s432 = smul.addr %s431, 8
        %s433 = scalar_lea.vmem %s4, %s432
        %s434 = smul.u32 16, %s16
        %p435 = scmp.lt.s32.totalorder %s434, 31
        %s436 = scalar_select %p435, %s434, 31
        %s437 = smul.addr %s436, 8
        %s438 = scalar_lea.vmem %s1, %s437
        %s439 = smul.u32 16, %s16
        %s440 = smul.u32 16, %s16
        %s441 = smul.u32 16, %s16
        %p442 = scmp.lt.s32.totalorder %s441, 31
        %s443 = scalar_select %p442, %s441, 31
        %s444 = smul.addr %s443, 8
        %s445 = scalar_lea.vmem %s4, %s444
        %s446 = smul.u32 16, %s16
        %s447 = sld [smem:[#allocation2]]
        %v448 = vld [vmem:[%s438] sm:$0xff]
        %v449 = vld [vmem:[%s438 + $0x8] sm:$0xff]
        %v450 = vld [vmem:[%s438 + $0x10] sm:$0xff]
        %v451 = vld [vmem:[%s438 + $0x18] sm:$0xff]
        %v452 = vld [vmem:[%s438 + $0x20] sm:$0xff]
        %v453 = vld [vmem:[%s438 + $0x28] sm:$0xff]
        %v454 = vld [vmem:[%s438 + $0x30] sm:$0xff]
        %v455 = vld [vmem:[%s438 + $0x38] sm:$0xff]
        %v456 = vld [vmem:[%s438 + $0x40] sm:$0xff]
        %v457 = vld [vmem:[%s438 + $0x48] sm:$0xff]
        %v458 = vld [vmem:[%s438 + $0x50] sm:$0xff]
        %v459 = vld [vmem:[%s438 + $0x58] sm:$0xff]
        %v460 = vld [vmem:[%s438 + $0x60] sm:$0xff]
        %v461 = vld [vmem:[%s438 + $0x68] sm:$0xff]
        %v462 = vld [vmem:[%s438 + $0x70] sm:$0xff]
        %v463 = vld [vmem:[%s438 + $0x78] sm:$0xff]
        %v464 = vld [vmem:[%s406] sm:$0xff]
        %v465 = vld [vmem:[%s406 + $0x8] sm:$0xff]
        %v466 = vld [vmem:[%s406 + $0x10] sm:$0xff]
        %v467 = vld [vmem:[%s406 + $0x18] sm:$0xff]
        %v468 = vld [vmem:[%s406 + $0x20] sm:$0xff]
        %v469 = vld [vmem:[%s406 + $0x28] sm:$0xff]
        %v470 = vld [vmem:[%s406 + $0x30] sm:$0xff]
        %v471 = vld [vmem:[%s406 + $0x38] sm:$0xff]
        %v472 = vld [vmem:[%s406 + $0x40] sm:$0xff]
        %v473 = vld [vmem:[%s406 + $0x48] sm:$0xff]
        %v474 = vld [vmem:[%s406 + $0x50] sm:$0xff]
        %v475 = vld [vmem:[%s406 + $0x58] sm:$0xff]
        %v476 = vld [vmem:[%s406 + $0x60] sm:$0xff]
        %v477 = vld [vmem:[%s406 + $0x68] sm:$0xff]
        %v478 = vld [vmem:[%s406 + $0x70] sm:$0xff]
        %v479 = vld [vmem:[%s406 + $0x78] sm:$0xff]
        %v480 = vld [vmem:[%s406 + $0x80] sm:$0xff]
        %v481 = vld [vmem:[%s406 + $0x88] sm:$0xff]
        %v482 = vld [vmem:[%s406 + $0x90] sm:$0xff]
        %v483 = vld [vmem:[%s406 + $0x98] sm:$0xff]
        %v484 = vld [vmem:[%s406 + $0xa0] sm:$0xff]
        %v485 = vld [vmem:[%s406 + $0xa8] sm:$0xff]
        %v486 = vld [vmem:[%s406 + $0xb0] sm:$0xff]
        %v487 = vld [vmem:[%s406 + $0xb8] sm:$0xff]
        %v488 = vld [vmem:[%s406 + $0xc0] sm:$0xff]
        %v489 = vld [vmem:[%s406 + $0xc8] sm:$0xff]
        %v490 = vld [vmem:[%s406 + $0xd0] sm:$0xff]
        %v491 = vld [vmem:[%s406 + $0xd8] sm:$0xff]
        %v492 = vld [vmem:[%s406 + $0xe0] sm:$0xff]
        %v493 = vld [vmem:[%s406 + $0xe8] sm:$0xff]
        %v494 = vld [vmem:[%s406 + $0xf0] sm:$0xff]
        %v495 = vld [vmem:[%s406 + $0xf8] sm:$0xff]
        %v496 = vld [vmem:[%s406 + $0x100] sm:$0xff]
        %v497 = vld [vmem:[%s406 + $0x108] sm:$0xff]
        %v498 = vld [vmem:[%s406 + $0x110] sm:$0xff]
        %v499 = vld [vmem:[%s406 + $0x118] sm:$0xff]
        %v500 = vld [vmem:[%s406 + $0x120] sm:$0xff]
        %v501 = vld [vmem:[%s406 + $0x128] sm:$0xff]
        %v502 = vld [vmem:[%s406 + $0x130] sm:$0xff]
        %v503 = vld [vmem:[%s406 + $0x138] sm:$0xff]
        %v504 = vld [vmem:[%s406 + $0x140] sm:$0xff]
        %v505 = vld [vmem:[%s406 + $0x148] sm:$0xff]
        %v506 = vld [vmem:[%s406 + $0x150] sm:$0xff]
        %v507 = vld [vmem:[%s406 + $0x158] sm:$0xff]
        %v508 = vld [vmem:[%s406 + $0x160] sm:$0xff]
        %v509 = vld [vmem:[%s406 + $0x168] sm:$0xff]
        %v510 = vld [vmem:[%s406 + $0x170] sm:$0xff]
        %v511 = vld [vmem:[%s406 + $0x178] sm:$0xff]
        %v512 = vmul.f32 %v464, 0.0017677669
        %v513 = vmul.f32 %v465, 0.0017677669
        %v514 = vmul.f32 %v466, 0.0017677669
        %v515 = vmul.f32 %v467, 0.0017677669
        %v516 = vmul.f32 %v468, 0.0017677669
        %v517 = vmul.f32 %v469, 0.0017677669
        %v518 = vmul.f32 %v470, 0.0017677669
        %v519 = vmul.f32 %v471, 0.0017677669
        %v520 = vmul.f32 %v472, 0.0017677669
        %v521 = vmul.f32 %v473, 0.0017677669
        %v522 = vmul.f32 %v474, 0.0017677669
        %v523 = vmul.f32 %v475, 0.0017677669
        %v524 = vmul.f32 %v476, 0.0017677669
        %v525 = vmul.f32 %v477, 0.0017677669
        %v526 = vmul.f32 %v478, 0.0017677669
        %v527 = vmul.f32 %v479, 0.0017677669
        %v528 = vmul.f32 %v480, 0.0017677669
        %v529 = vmul.f32 %v481, 0.0017677669
        %v530 = vmul.f32 %v482, 0.0017677669
        %v531 = vmul.f32 %v483, 0.0017677669
        %v532 = vmul.f32 %v484, 0.0017677669
        %v533 = vmul.f32 %v485, 0.0017677669
        %v534 = vmul.f32 %v486, 0.0017677669
        %v535 = vmul.f32 %v487, 0.0017677669
        %v536 = vmul.f32 %v488, 0.0017677669
        %v537 = vmul.f32 %v489, 0.0017677669
        %v538 = vmul.f32 %v490, 0.0017677669
        %v539 = vmul.f32 %v491, 0.0017677669
        %v540 = vmul.f32 %v492, 0.0017677669
        %v541 = vmul.f32 %v493, 0.0017677669
        %v542 = vmul.f32 %v494, 0.0017677669
        %v543 = vmul.f32 %v495, 0.0017677669
        %v544 = vmul.f32 %v496, 0.0017677669
        %v545 = vmul.f32 %v497, 0.0017677669
        %v546 = vmul.f32 %v498, 0.0017677669
        %v547 = vmul.f32 %v499, 0.0017677669
        %v548 = vmul.f32 %v500, 0.0017677669
        %v549 = vmul.f32 %v501, 0.0017677669
        %v550 = vmul.f32 %v502, 0.0017677669
        %v551 = vmul.f32 %v503, 0.0017677669
        %v552 = vmul.f32 %v504, 0.0017677669
        %v553 = vmul.f32 %v505, 0.0017677669
        %v554 = vmul.f32 %v506, 0.0017677669
        %v555 = vmul.f32 %v507, 0.0017677669
        %v556 = vmul.f32 %v508, 0.0017677669
        %v557 = vmul.f32 %v509, 0.0017677669
        %v558 = vmul.f32 %v510, 0.0017677669
        %v559 = vmul.f32 %v511, 0.0017677669
        %v560 = vadd.f32 %v448, %v512
        %v561 = vadd.f32 %v449, %v513
        %v562 = vadd.f32 %v450, %v514
        %v563 = vadd.f32 %v451, %v515
        %v564 = vadd.f32 %v452, %v516
        %v565 = vadd.f32 %v453, %v517
        %v566 = vadd.f32 %v454, %v518
        %v567 = vadd.f32 %v455, %v519
        %v568 = vadd.f32 %v456, %v520
        %v569 = vadd.f32 %v457, %v521
        %v570 = vadd.f32 %v458, %v522
        %v571 = vadd.f32 %v459, %v523
        %v572 = vadd.f32 %v460, %v524
        %v573 = vadd.f32 %v461, %v525
        %v574 = vadd.f32 %v462, %v526
        %v575 = vadd.f32 %v463, %v527
        %v576 = vadd.f32 %v448, %v528
        %v577 = vadd.f32 %v449, %v529
        %v578 = vadd.f32 %v450, %v530
        %v579 = vadd.f32 %v451, %v531
        %v580 = vadd.f32 %v452, %v532
        %v581 = vadd.f32 %v453, %v533
        %v582 = vadd.f32 %v454, %v534
        %v583 = vadd.f32 %v455, %v535
        %v584 = vadd.f32 %v456, %v536
        %v585 = vadd.f32 %v457, %v537
        %v586 = vadd.f32 %v458, %v538
        %v587 = vadd.f32 %v459, %v539
        %v588 = vadd.f32 %v460, %v540
        %v589 = vadd.f32 %v461, %v541
        %v590 = vadd.f32 %v462, %v542
        %v591 = vadd.f32 %v463, %v543
        %v592 = vadd.f32 %v448, %v544
        %v593 = vadd.f32 %v449, %v545
        %v594 = vadd.f32 %v450, %v546
        %v595 = vadd.f32 %v451, %v547
        %v596 = vadd.f32 %v452, %v548
        %v597 = vadd.f32 %v453, %v549
        %v598 = vadd.f32 %v454, %v550
        %v599 = vadd.f32 %v455, %v551
        %v600 = vadd.f32 %v456, %v552
        %v601 = vadd.f32 %v457, %v553
        %v602 = vadd.f32 %v458, %v554
        %v603 = vadd.f32 %v459, %v555
        %v604 = vadd.f32 %v460, %v556
        %v605 = vadd.f32 %v461, %v557
        %v606 = vadd.f32 %v462, %v558
        %v607 = vadd.f32 %v463, %v559
        %v608 = vld [vmem:[%s3] sm:$0xff]
        %v609 = vld [vmem:[%s3 + $0x8] sm:$0xff]
        %v610 = vld [vmem:[%s3 + $0x10] sm:$0xff]
        %v611 = vld [vmem:[%s3 + $0x18] sm:$0xff]
        %v612 = vld [vmem:[%s3 + $0x20] sm:$0x1]
        %v613 = vstv %s447
        %v614 = vmul.f32 %v613, %v612
        %v615 = vld [vmem:[%s3 + $0x21] sm:$0x1]
        %v616 = vadd.f32 %v614, %v615
        %v617 = vld [vmem:[%s3 + $0x28] sm:$0xff]
        %v618 = vld [vmem:[%s3 + $0x30] sm:$0xff]
        %v619 = vld [vmem:[%s3 + $0x38] sm:$0xff]
        %v620 = vld [vmem:[%s3 + $0x40] sm:$0xff]
        %v621 = vld [vmem:[%s3 + $0x48] sm:$0xff]
        %v622 = vld [vmem:[%s3 + $0x50] sm:$0xff]
        %v623 = vld [vmem:[%s3 + $0x58] sm:$0xff]
        %v624 = vld [vmem:[%s3 + $0x60] sm:$0xff]
        %v625 = vld [vmem:[%s3 + $0x68] sm:$0x1]
        %v626 = vld [vmem:[%s3 + $0x70] sm:$0xff]
        %v627 = vld [vmem:[%s3 + $0x78] sm:$0xff]
        %v628 = vld [vmem:[%s3 + $0x80] sm:$0xff]
        %v629 = vld [vmem:[%s3 + $0x88] sm:$0xff]
        %v630 = vld [vmem:[%s3 + $0x90] sm:$0xff]
        %v631 = vld [vmem:[%s3 + $0x98] sm:$0xff]
        %v632 = vld [vmem:[%s3 + $0xa0] sm:$0xff]
        %v633 = vld [vmem:[%s3 + $0xa8] sm:$0xff]
        %v634 = vld [vmem:[%s3 + $0xb0] sm:$0x1]
        %v635 = vlaneseq
        %v636 = vshrl.u32 %v635, 7
        %v637 = vsub.s32 0, %v636
        %v638 = vrot.slane %v616, %v637
        %vm639 = vcmask 261120
        %v641 = vsel %vm639, %v560, 0
        %v644 = vsel %vm639, %v561, 0
        %v647 = vsel %vm639, %v562, 0
        %v650 = vsel %vm639, %v563, 0
        %v653 = vsel %vm639, %v564, 0
        %v656 = vsel %vm639, %v565, 0
        %v659 = vsel %vm639, %v566, 0
        %v662 = vsel %vm639, %v567, 0
        %v665 = vsel %vm639, %v568, 0
        %v668 = vsel %vm639, %v569, 0
        %v671 = vsel %vm639, %v570, 0
        %v674 = vsel %vm639, %v571, 0
        %v677 = vsel %vm639, %v572, 0
        %v680 = vsel %vm639, %v573, 0
        %v683 = vsel %vm639, %v574, 0
        %v686 = vsel %vm639, %v575, 0
        %v689 = vsel %vm639, %v576, 0
        %v692 = vsel %vm639, %v577, 0
        %v695 = vsel %vm639, %v578, 0
        %v698 = vsel %vm639, %v579, 0
        %v701 = vsel %vm639, %v580, 0
        %v704 = vsel %vm639, %v581, 0
        %v707 = vsel %vm639, %v582, 0
        %v710 = vsel %vm639, %v583, 0
        %v713 = vsel %vm639, %v584, 0
        %v716 = vsel %vm639, %v585, 0
        %v719 = vsel %vm639, %v586, 0
        %v722 = vsel %vm639, %v587, 0
        %v725 = vsel %vm639, %v588, 0
        %v728 = vsel %vm639, %v589, 0
        %v731 = vsel %vm639, %v590, 0
        %v734 = vsel %vm639, %v591, 0
        %v737 = vsel %vm639, %v592, 0
        %v740 = vsel %vm639, %v593, 0
        %v743 = vsel %vm639, %v594, 0
        %v746 = vsel %vm639, %v595, 0
        %v749 = vsel %vm639, %v596, 0
        %v752 = vsel %vm639, %v597, 0
        %v755 = vsel %vm639, %v598, 0
        %v758 = vsel %vm639, %v599, 0
        %v761 = vsel %vm639, %v600, 0
        %v764 = vsel %vm639, %v601, 0
        %v767 = vsel %vm639, %v602, 0
        %v770 = vsel %vm639, %v603, 0
        %v773 = vsel %vm639, %v604, 0
        %v776 = vsel %vm639, %v605, 0
        %v779 = vsel %vm639, %v606, 0
        %v782 = vsel %vm639, %v607, 0
        %784 = vmatprep.subr.mxu0 0.0
        %785 = vmatpush1.msra.mxu0 0.0
        %786 = vmatprep.subr.mxu0 0.0
        %787 = vmatpush1.msra.mxu0 0.0
        %788 = vmatprep.subr.mxu0 0.0
        %789 = vmatpush1.msra.mxu0 0.0
        %790 = vmatprep.subr.mxu0 0.0
        %791 = vmatpush1.msra.mxu0 0.0
        %792 = vmatprep.subr.mxu0 0.0
        %793 = vmatpush1.msra.mxu0 0.0
        %794 = vmatprep.subr.mxu0 0.0
        %795 = vmatpush1.msra.mxu0 0.0
        %796 = vmatprep.subr.mxu0 0.0
        %797 = vmatpush1.msra.mxu0 0.0
        %798 = vmatprep.subr.mxu0 0.0
        %799 = vmatpush1.msra.mxu0 0.0
        %800 = vmatprep.subr.mxu0 0.0
        %801 = vmatpush1.msra.mxu0 0.0
        %802 = vmatprep.subr.mxu0 0.0
        %803 = vmatpush1.msra.mxu0 0.0
        %804 = vmatprep.subr.mxu0 0.0
        %805 = vmatpush1.msra.mxu0 0.0
        %806 = vmatprep.subr.mxu0 0.0
        %807 = vmatpush1.msra.mxu0 0.0
        %808 = vmatprep.subr.mxu0 0.0
        %v809 = vand.u32 %v611, 4294901760
        %810 = vmatpush1.msra.mxu0 %v809
        %811 = vmatprep.subr.mxu0 0.0
        %v812 = vand.u32 %v610, 4294901760
        %813 = vmatpush1.msra.mxu0 %v812
        %814 = vmatprep.subr.mxu0 0.0
        %v815 = vand.u32 %v609, 4294901760
        %816 = vmatpush1.msra.mxu0 %v815
        %817 = vmatprep.subr.mxu0 0.0
        %v818 = vand.u32 %v608, 4294901760
        %819 = vmatpush1.msra.mxu0 %v818
        %820 = vmatprep.subr.mxu0 0.0
        %821 = vmatpush2.msra.mxu0 0.0
        %822 = vmatprep.subr.mxu0 0.0
        %823 = vmatpush2.msra.mxu0 0.0
        %824 = vmatprep.subr.mxu0 0.0
        %825 = vmatpush2.msra.mxu0 0.0
        %826 = vmatprep.subr.mxu0 0.0
        %827 = vmatpush2.msra.mxu0 0.0
        %828 = vmatprep.subr.mxu0 0.0
        %829 = vmatpush2.msra.mxu0 0.0
        %830 = vmatprep.subr.mxu0 0.0
        %831 = vmatpush2.msra.mxu0 0.0
        %832 = vmatprep.subr.mxu0 0.0
        %833 = vmatpush2.msra.mxu0 0.0
        %834 = vmatprep.subr.mxu0 0.0
        %835 = vmatpush2.msra.mxu0 0.0
        %836 = vmatprep.subr.mxu0 0.0
        %837 = vmatpush2.msra.mxu0 0.0
        %838 = vmatprep.subr.mxu0 0.0
        %839 = vmatpush2.msra.mxu0 0.0
        %840 = vmatprep.subr.mxu0 0.0
        %841 = vmatpush2.msra.mxu0 0.0
        %842 = vmatprep.subr.mxu0 0.0
        %843 = vmatpush2.msra.mxu0 0.0
        %844 = vmatprep.subr.mxu0 0.0
        %845 = vmatpush2.msra.mxu0 0.0
        %846 = vmatprep.subr.mxu0 0.0
        %847 = vmatpush2.msra.mxu0 0.0
        %848 = vmatprep.subr.mxu0 0.0
        %849 = vmatpush2.msra.mxu0 0.0
        %850 = vmatprep.subr.mxu0 0.0
        %851 = vmatpush2.msra.mxu0 0.0
        %852 = vmatprep.mubr.f32.mxu0 0.0
        %v853 = vand.u32 %v641, 4294901760
        %v854 = vsub.f32 %v641, %v853
        %v855 = vand.u32 %v854, 4294901760
        %v856 = vsub.f32 %v854, %v855
        %v857 = vand.u32 %v856, 4294901760
        %858 = vmatmul.mubr.f32.gmra.mxu0 %v857
        %v859 = vpop.f32.mrf.mxu0
        %v860 = vadd.f32 %v638, %v859
        %v861 = vpop.f32.mrf.mxu0
        %862 = vmatprep.mubr.f32.mxu0 0.0
        %v863 = vand.u32 %v644, 4294901760
        %v864 = vsub.f32 %v644, %v863
        %v865 = vand.u32 %v864, 4294901760
        %v866 = vsub.f32 %v864, %v865
        %v867 = vand.u32 %v866, 4294901760
        %868 = vmatmul.mubr.f32.gmra.mxu0 %v867
        %v869 = vpop.f32.mrf.mxu0
        %v870 = vadd.f32 %v638, %v869
        %v871 = vpop.f32.mrf.mxu0
        %872 = vmatprep.mubr.f32.mxu0 0.0
        %v873 = vand.u32 %v647, 4294901760
        %v874 = vsub.f32 %v647, %v873
        %v875 = vand.u32 %v874, 4294901760
        %v876 = vsub.f32 %v874, %v875
        %v877 = vand.u32 %v876, 4294901760
        %878 = vmatmul.mubr.f32.gmra.mxu0 %v877
        %v879 = vpop.f32.mrf.mxu0
        %v880 = vadd.f32 %v638, %v879
        %v881 = vpop.f32.mrf.mxu0
        %882 = vmatprep.mubr.f32.mxu0 0.0
        %v883 = vand.u32 %v650, 4294901760
        %v884 = vsub.f32 %v650, %v883
        %v885 = vand.u32 %v884, 4294901760
        %v886 = vsub.f32 %v884, %v885
        %v887 = vand.u32 %v886, 4294901760
        %888 = vmatmul.mubr.f32.gmra.mxu0 %v887
        %v889 = vpop.f32.mrf.mxu0
        %v890 = vadd.f32 %v638, %v889
        %v891 = vpop.f32.mrf.mxu0
        %892 = vmatprep.mubr.f32.mxu0 0.0
        %v893 = vand.u32 %v653, 4294901760
        %v894 = vsub.f32 %v653, %v893
        %v895 = vand.u32 %v894, 4294901760
        %v896 = vsub.f32 %v894, %v895
        %v897 = vand.u32 %v896, 4294901760
        %898 = vmatmul.mubr.f32.gmra.mxu0 %v897
        %v899 = vpop.f32.mrf.mxu0
        %v900 = vadd.f32 %v638, %v899
        %v901 = vpop.f32.mrf.mxu0
        %902 = vmatprep.mubr.f32.mxu0 0.0
        %v903 = vand.u32 %v656, 4294901760
        %v904 = vsub.f32 %v656, %v903
        %v905 = vand.u32 %v904, 4294901760
        %v906 = vsub.f32 %v904, %v905
        %v907 = vand.u32 %v906, 4294901760
        %908 = vmatmul.mubr.f32.gmra.mxu0 %v907
        %v909 = vpop.f32.mrf.mxu0
        %v910 = vadd.f32 %v638, %v909
        %v911 = vpop.f32.mrf.mxu0
        %912 = vmatprep.mubr.f32.mxu0 0.0
        %v913 = vand.u32 %v659, 4294901760
        %v914 = vsub.f32 %v659, %v913
        %v915 = vand.u32 %v914, 4294901760
        %v916 = vsub.f32 %v914, %v915
        %v917 = vand.u32 %v916, 4294901760
        %918 = vmatmul.mubr.f32.gmra.mxu0 %v917
        %v919 = vpop.f32.mrf.mxu0
        %v920 = vadd.f32 %v638, %v919
        %v921 = vpop.f32.mrf.mxu0
        %922 = vmatprep.mubr.f32.mxu0 0.0
        %v923 = vand.u32 %v662, 4294901760
        %v924 = vsub.f32 %v662, %v923
        %v925 = vand.u32 %v924, 4294901760
        %v926 = vsub.f32 %v924, %v925
        %v927 = vand.u32 %v926, 4294901760
        %928 = vmatmul.mubr.f32.gmra.mxu0 %v927
        %v929 = vpop.f32.mrf.mxu0
        %v930 = vadd.f32 %v638, %v929
        %v931 = vpop.f32.mrf.mxu0
        %932 = vmatprep.mubr.f32.mxu0 0.0
        %v933 = vand.u32 %v665, 4294901760
        %v934 = vsub.f32 %v665, %v933
        %v935 = vand.u32 %v934, 4294901760
        %v936 = vsub.f32 %v934, %v935
        %v937 = vand.u32 %v936, 4294901760
        %938 = vmatmul.mubr.f32.gmra.mxu0 %v937
        %v939 = vpop.f32.mrf.mxu0
        %v940 = vadd.f32 %v638, %v939
        %v941 = vpop.f32.mrf.mxu0
        %942 = vmatprep.mubr.f32.mxu0 0.0
        %v943 = vand.u32 %v668, 4294901760
        %v944 = vsub.f32 %v668, %v943
        %v945 = vand.u32 %v944, 4294901760
        %v946 = vsub.f32 %v944, %v945
        %v947 = vand.u32 %v946, 4294901760
        %948 = vmatmul.mubr.f32.gmra.mxu0 %v947
        %v949 = vpop.f32.mrf.mxu0
        %v950 = vadd.f32 %v638, %v949
        %v951 = vpop.f32.mrf.mxu0
        %952 = vmatprep.mubr.f32.mxu0 0.0
        %v953 = vand.u32 %v671, 4294901760
        %v954 = vsub.f32 %v671, %v953
        %v955 = vand.u32 %v954, 4294901760
        %v956 = vsub.f32 %v954, %v955
        %v957 = vand.u32 %v956, 4294901760
        %958 = vmatmul.mubr.f32.gmra.mxu0 %v957
        %v959 = vpop.f32.mrf.mxu0
        %v960 = vadd.f32 %v638, %v959
        %v961 = vpop.f32.mrf.mxu0
        %962 = vmatprep.mubr.f32.mxu0 0.0
        %v963 = vand.u32 %v674, 4294901760
        %v964 = vsub.f32 %v674, %v963
        %v965 = vand.u32 %v964, 4294901760
        %v966 = vsub.f32 %v964, %v965
        %v967 = vand.u32 %v966, 4294901760
        %968 = vmatmul.mubr.f32.gmra.mxu0 %v967
        %v969 = vpop.f32.mrf.mxu0
        %v970 = vadd.f32 %v638, %v969
        %v971 = vpop.f32.mrf.mxu0
        %972 = vmatprep.mubr.f32.mxu0 0.0
        %v973 = vand.u32 %v677, 4294901760
        %v974 = vsub.f32 %v677, %v973
        %v975 = vand.u32 %v974, 4294901760
        %v976 = vsub.f32 %v974, %v975
        %v977 = vand.u32 %v976, 4294901760
        %978 = vmatmul.mubr.f32.gmra.mxu0 %v977
        %v979 = vpop.f32.mrf.mxu0
        %v980 = vadd.f32 %v638, %v979
        %v981 = vpop.f32.mrf.mxu0
        %982 = vmatprep.mubr.f32.mxu0 0.0
        %v983 = vand.u32 %v680, 4294901760
        %v984 = vsub.f32 %v680, %v983
        %v985 = vand.u32 %v984, 4294901760
        %v986 = vsub.f32 %v984, %v985
        %v987 = vand.u32 %v986, 4294901760
        %988 = vmatmul.mubr.f32.gmra.mxu0 %v987
        %v989 = vpop.f32.mrf.mxu0
        %v990 = vadd.f32 %v638, %v989
        %v991 = vpop.f32.mrf.mxu0
        %992 = vmatprep.mubr.f32.mxu0 0.0
        %v993 = vand.u32 %v683, 4294901760
        %v994 = vsub.f32 %v683, %v993
        %v995 = vand.u32 %v994, 4294901760
        %v996 = vsub.f32 %v994, %v995
        %v997 = vand.u32 %v996, 4294901760
        %998 = vmatmul.mubr.f32.gmra.mxu0 %v997
        %v999 = vpop.f32.mrf.mxu0
        %v1000 = vadd.f32 %v638, %v999
        %v1001 = vpop.f32.mrf.mxu0
        %1002 = vmatprep.mubr.f32.mxu0 0.0
        %v1003 = vand.u32 %v686, 4294901760
        %v1004 = vsub.f32 %v686, %v1003
        %v1005 = vand.u32 %v1004, 4294901760
        %v1006 = vsub.f32 %v1004, %v1005
        %v1007 = vand.u32 %v1006, 4294901760
        %1008 = vmatmul.mubr.f32.gmra.mxu0 %v1007
        %v1009 = vpop.f32.mrf.mxu0
        %v1010 = vadd.f32 %v638, %v1009
        %v1011 = vpop.f32.mrf.mxu0
        %1012 = vmatprep.mubr.f32.mxu0 0.0
        %v1013 = vand.u32 %v689, 4294901760
        %v1014 = vsub.f32 %v689, %v1013
        %v1015 = vand.u32 %v1014, 4294901760
        %v1016 = vsub.f32 %v1014, %v1015
        %v1017 = vand.u32 %v1016, 4294901760
        %1018 = vmatmul.mubr.f32.gmra.mxu0 %v1017
        %v1019 = vpop.f32.mrf.mxu0
        %v1020 = vadd.f32 %v638, %v1019
        %v1021 = vpop.f32.mrf.mxu0
        %1022 = vmatprep.mubr.f32.mxu0 0.0
        %v1023 = vand.u32 %v692, 4294901760
        %v1024 = vsub.f32 %v692, %v1023
        %v1025 = vand.u32 %v1024, 4294901760
        %v1026 = vsub.f32 %v1024, %v1025
        %v1027 = vand.u32 %v1026, 4294901760
        %1028 = vmatmul.mubr.f32.gmra.mxu0 %v1027
        %v1029 = vpop.f32.mrf.mxu0
        %v1030 = vadd.f32 %v638, %v1029
        %v1031 = vpop.f32.mrf.mxu0
        %1032 = vmatprep.mubr.f32.mxu0 0.0
        %v1033 = vand.u32 %v695, 4294901760
        %v1034 = vsub.f32 %v695, %v1033
        %v1035 = vand.u32 %v1034, 4294901760
        %v1036 = vsub.f32 %v1034, %v1035
        %v1037 = vand.u32 %v1036, 4294901760
        %1038 = vmatmul.mubr.f32.gmra.mxu0 %v1037
        %v1039 = vpop.f32.mrf.mxu0
        %v1040 = vadd.f32 %v638, %v1039
        %v1041 = vpop.f32.mrf.mxu0
        %1042 = vmatprep.mubr.f32.mxu0 0.0
        %v1043 = vand.u32 %v698, 4294901760
        %v1044 = vsub.f32 %v698, %v1043
        %v1045 = vand.u32 %v1044, 4294901760
        %v1046 = vsub.f32 %v1044, %v1045
        %v1047 = vand.u32 %v1046, 4294901760
        %1048 = vmatmul.mubr.f32.gmra.mxu0 %v1047
        %v1049 = vpop.f32.mrf.mxu0
        %v1050 = vadd.f32 %v638, %v1049
        %v1051 = vpop.f32.mrf.mxu0
        %1052 = vmatprep.mubr.f32.mxu0 0.0
        %v1053 = vand.u32 %v701, 4294901760
        %v1054 = vsub.f32 %v701, %v1053
        %v1055 = vand.u32 %v1054, 4294901760
        %v1056 = vsub.f32 %v1054, %v1055
        %v1057 = vand.u32 %v1056, 4294901760
        %1058 = vmatmul.mubr.f32.gmra.mxu0 %v1057
        %v1059 = vpop.f32.mrf.mxu0
        %v1060 = vadd.f32 %v638, %v1059
        %v1061 = vpop.f32.mrf.mxu0
        %1062 = vmatprep.mubr.f32.mxu0 0.0
        %v1063 = vand.u32 %v704, 4294901760
        %v1064 = vsub.f32 %v704, %v1063
        %v1065 = vand.u32 %v1064, 4294901760
        %v1066 = vsub.f32 %v1064, %v1065
        %v1067 = vand.u32 %v1066, 4294901760
        %1068 = vmatmul.mubr.f32.gmra.mxu0 %v1067
        %v1069 = vpop.f32.mrf.mxu0
        %v1070 = vadd.f32 %v638, %v1069
        %v1071 = vpop.f32.mrf.mxu0
        %1072 = vmatprep.mubr.f32.mxu0 0.0
        %v1073 = vand.u32 %v707, 4294901760
        %v1074 = vsub.f32 %v707, %v1073
        %v1075 = vand.u32 %v1074, 4294901760
        %v1076 = vsub.f32 %v1074, %v1075
        %v1077 = vand.u32 %v1076, 4294901760
        %1078 = vmatmul.mubr.f32.gmra.mxu0 %v1077
        %v1079 = vpop.f32.mrf.mxu0
        %v1080 = vadd.f32 %v638, %v1079
        %v1081 = vpop.f32.mrf.mxu0
        %1082 = vmatprep.mubr.f32.mxu0 0.0
        %v1083 = vand.u32 %v710, 4294901760
        %v1084 = vsub.f32 %v710, %v1083
        %v1085 = vand.u32 %v1084, 4294901760
        %v1086 = vsub.f32 %v1084, %v1085
        %v1087 = vand.u32 %v1086, 4294901760
        %1088 = vmatmul.mubr.f32.gmra.mxu0 %v1087
        %v1089 = vpop.f32.mrf.mxu0
        %v1090 = vadd.f32 %v638, %v1089
        %v1091 = vpop.f32.mrf.mxu0
        %1092 = vmatprep.mubr.f32.mxu0 0.0
        %v1093 = vand.u32 %v713, 4294901760
        %v1094 = vsub.f32 %v713, %v1093
        %v1095 = vand.u32 %v1094, 4294901760
        %v1096 = vsub.f32 %v1094, %v1095
        %v1097 = vand.u32 %v1096, 4294901760
        %1098 = vmatmul.mubr.f32.gmra.mxu0 %v1097
        %v1099 = vpop.f32.mrf.mxu0
        %v1100 = vadd.f32 %v638, %v1099
        %v1101 = vpop.f32.mrf.mxu0
        %1102 = vmatprep.mubr.f32.mxu0 0.0
        %v1103 = vand.u32 %v716, 4294901760
        %v1104 = vsub.f32 %v716, %v1103
        %v1105 = vand.u32 %v1104, 4294901760
        %v1106 = vsub.f32 %v1104, %v1105
        %v1107 = vand.u32 %v1106, 4294901760
        %1108 = vmatmul.mubr.f32.gmra.mxu0 %v1107
        %v1109 = vpop.f32.mrf.mxu0
        %v1110 = vadd.f32 %v638, %v1109
        %v1111 = vpop.f32.mrf.mxu0
        %1112 = vmatprep.mubr.f32.mxu0 0.0
        %v1113 = vand.u32 %v719, 4294901760
        %v1114 = vsub.f32 %v719, %v1113
        %v1115 = vand.u32 %v1114, 4294901760
        %v1116 = vsub.f32 %v1114, %v1115
        %v1117 = vand.u32 %v1116, 4294901760
        %1118 = vmatmul.mubr.f32.gmra.mxu0 %v1117
        %v1119 = vpop.f32.mrf.mxu0
        %v1120 = vadd.f32 %v638, %v1119
        %v1121 = vpop.f32.mrf.mxu0
        %1122 = vmatprep.mubr.f32.mxu0 0.0
        %v1123 = vand.u32 %v722, 4294901760
        %v1124 = vsub.f32 %v722, %v1123
        %v1125 = vand.u32 %v1124, 4294901760
        %v1126 = vsub.f32 %v1124, %v1125
        %v1127 = vand.u32 %v1126, 4294901760
        %1128 = vmatmul.mubr.f32.gmra.mxu0 %v1127
        %v1129 = vpop.f32.mrf.mxu0
        %v1130 = vadd.f32 %v638, %v1129
        %v1131 = vpop.f32.mrf.mxu0
        %1132 = vmatprep.mubr.f32.mxu0 0.0
        %v1133 = vand.u32 %v725, 4294901760
        %v1134 = vsub.f32 %v725, %v1133
        %v1135 = vand.u32 %v1134, 4294901760
        %v1136 = vsub.f32 %v1134, %v1135
        %v1137 = vand.u32 %v1136, 4294901760
        %1138 = vmatmul.mubr.f32.gmra.mxu0 %v1137
        %v1139 = vpop.f32.mrf.mxu0
        %v1140 = vadd.f32 %v638, %v1139
        %v1141 = vpop.f32.mrf.mxu0
        %1142 = vmatprep.mubr.f32.mxu0 0.0
        %v1143 = vand.u32 %v728, 4294901760
        %v1144 = vsub.f32 %v728, %v1143
        %v1145 = vand.u32 %v1144, 4294901760
        %v1146 = vsub.f32 %v1144, %v1145
        %v1147 = vand.u32 %v1146, 4294901760
        %1148 = vmatmul.mubr.f32.gmra.mxu0 %v1147
        %v1149 = vpop.f32.mrf.mxu0
        %v1150 = vadd.f32 %v638, %v1149
        %v1151 = vpop.f32.mrf.mxu0
        %1152 = vmatprep.mubr.f32.mxu0 0.0
        %v1153 = vand.u32 %v731, 4294901760
        %v1154 = vsub.f32 %v731, %v1153
        %v1155 = vand.u32 %v1154, 4294901760
        %v1156 = vsub.f32 %v1154, %v1155
        %v1157 = vand.u32 %v1156, 4294901760
        %1158 = vmatmul.mubr.f32.gmra.mxu0 %v1157
        %v1159 = vpop.f32.mrf.mxu0
        %v1160 = vadd.f32 %v638, %v1159
        %v1161 = vpop.f32.mrf.mxu0
        %1162 = vmatprep.mubr.f32.mxu0 0.0
        %v1163 = vand.u32 %v734, 4294901760
        %v1164 = vsub.f32 %v734, %v1163
        %v1165 = vand.u32 %v1164, 4294901760
        %v1166 = vsub.f32 %v1164, %v1165
        %v1167 = vand.u32 %v1166, 4294901760
        %1168 = vmatmul.mubr.f32.gmra.mxu0 %v1167
        %v1169 = vpop.f32.mrf.mxu0
        %v1170 = vadd.f32 %v638, %v1169
        %v1171 = vpop.f32.mrf.mxu0
        %1172 = vmatprep.mubr.f32.mxu0 0.0
        %v1173 = vand.u32 %v737, 4294901760
        %v1174 = vsub.f32 %v737, %v1173
        %v1175 = vand.u32 %v1174, 4294901760
        %v1176 = vsub.f32 %v1174, %v1175
        %v1177 = vand.u32 %v1176, 4294901760
        %1178 = vmatmul.mubr.f32.gmra.mxu0 %v1177
        %v1179 = vpop.f32.mrf.mxu0
        %v1180 = vadd.f32 %v638, %v1179
        %v1181 = vpop.f32.mrf.mxu0
        %1182 = vmatprep.mubr.f32.mxu0 0.0
        %v1183 = vand.u32 %v740, 4294901760
        %v1184 = vsub.f32 %v740, %v1183
        %v1185 = vand.u32 %v1184, 4294901760
        %v1186 = vsub.f32 %v1184, %v1185
        %v1187 = vand.u32 %v1186, 4294901760
        %1188 = vmatmul.mubr.f32.gmra.mxu0 %v1187
        %v1189 = vpop.f32.mrf.mxu0
        %v1190 = vadd.f32 %v638, %v1189
        %v1191 = vpop.f32.mrf.mxu0
        %1192 = vmatprep.mubr.f32.mxu0 0.0
        %v1193 = vand.u32 %v743, 4294901760
        %v1194 = vsub.f32 %v743, %v1193
        %v1195 = vand.u32 %v1194, 4294901760
        %v1196 = vsub.f32 %v1194, %v1195
        %v1197 = vand.u32 %v1196, 4294901760
        %1198 = vmatmul.mubr.f32.gmra.mxu0 %v1197
        %v1199 = vpop.f32.mrf.mxu0
        %v1200 = vadd.f32 %v638, %v1199
        %v1201 = vpop.f32.mrf.mxu0
        %1202 = vmatprep.mubr.f32.mxu0 0.0
        %v1203 = vand.u32 %v746, 4294901760
        %v1204 = vsub.f32 %v746, %v1203
        %v1205 = vand.u32 %v1204, 4294901760
        %v1206 = vsub.f32 %v1204, %v1205
        %v1207 = vand.u32 %v1206, 4294901760
        %1208 = vmatmul.mubr.f32.gmra.mxu0 %v1207
        %v1209 = vpop.f32.mrf.mxu0
        %v1210 = vadd.f32 %v638, %v1209
        %v1211 = vpop.f32.mrf.mxu0
        %1212 = vmatprep.mubr.f32.mxu0 0.0
        %v1213 = vand.u32 %v749, 4294901760
        %v1214 = vsub.f32 %v749, %v1213
        %v1215 = vand.u32 %v1214, 4294901760
        %v1216 = vsub.f32 %v1214, %v1215
        %v1217 = vand.u32 %v1216, 4294901760
        %1218 = vmatmul.mubr.f32.gmra.mxu0 %v1217
        %v1219 = vpop.f32.mrf.mxu0
        %v1220 = vadd.f32 %v638, %v1219
        %v1221 = vpop.f32.mrf.mxu0
        %1222 = vmatprep.mubr.f32.mxu0 0.0
        %v1223 = vand.u32 %v752, 4294901760
        %v1224 = vsub.f32 %v752, %v1223
        %v1225 = vand.u32 %v1224, 4294901760
        %v1226 = vsub.f32 %v1224, %v1225
        %v1227 = vand.u32 %v1226, 4294901760
        %1228 = vmatmul.mubr.f32.gmra.mxu0 %v1227
        %v1229 = vpop.f32.mrf.mxu0
        %v1230 = vadd.f32 %v638, %v1229
        %v1231 = vpop.f32.mrf.mxu0
        %1232 = vmatprep.mubr.f32.mxu0 0.0
        %v1233 = vand.u32 %v755, 4294901760
        %v1234 = vsub.f32 %v755, %v1233
        %v1235 = vand.u32 %v1234, 4294901760
        %v1236 = vsub.f32 %v1234, %v1235
        %v1237 = vand.u32 %v1236, 4294901760
        %1238 = vmatmul.mubr.f32.gmra.mxu0 %v1237
        %v1239 = vpop.f32.mrf.mxu0
        %v1240 = vadd.f32 %v638, %v1239
        %v1241 = vpop.f32.mrf.mxu0
        %1242 = vmatprep.mubr.f32.mxu0 0.0
        %v1243 = vand.u32 %v758, 4294901760
        %v1244 = vsub.f32 %v758, %v1243
        %v1245 = vand.u32 %v1244, 4294901760
        %v1246 = vsub.f32 %v1244, %v1245
        %v1247 = vand.u32 %v1246, 4294901760
        %1248 = vmatmul.mubr.f32.gmra.mxu0 %v1247
        %v1249 = vpop.f32.mrf.mxu0
        %v1250 = vadd.f32 %v638, %v1249
        %v1251 = vpop.f32.mrf.mxu0
        %1252 = vmatprep.mubr.f32.mxu0 0.0
        %v1253 = vand.u32 %v761, 4294901760
        %v1254 = vsub.f32 %v761, %v1253
        %v1255 = vand.u32 %v1254, 4294901760
        %v1256 = vsub.f32 %v1254, %v1255
        %v1257 = vand.u32 %v1256, 4294901760
        %1258 = vmatmul.mubr.f32.gmra.mxu0 %v1257
        %v1259 = vpop.f32.mrf.mxu0
        %v1260 = vadd.f32 %v638, %v1259
        %v1261 = vpop.f32.mrf.mxu0
        %1262 = vmatprep.mubr.f32.mxu0 0.0
        %v1263 = vand.u32 %v764, 4294901760
        %v1264 = vsub.f32 %v764, %v1263
        %v1265 = vand.u32 %v1264, 4294901760
        %v1266 = vsub.f32 %v1264, %v1265
        %v1267 = vand.u32 %v1266, 4294901760
        %1268 = vmatmul.mubr.f32.gmra.mxu0 %v1267
        %v1269 = vpop.f32.mrf.mxu0
        %v1270 = vadd.f32 %v638, %v1269
        %v1271 = vpop.f32.mrf.mxu0
        %1272 = vmatprep.mubr.f32.mxu0 0.0
        %v1273 = vand.u32 %v767, 4294901760
        %v1274 = vsub.f32 %v767, %v1273
        %v1275 = vand.u32 %v1274, 4294901760
        %v1276 = vsub.f32 %v1274, %v1275
        %v1277 = vand.u32 %v1276, 4294901760
        %1278 = vmatmul.mubr.f32.gmra.mxu0 %v1277
        %v1279 = vpop.f32.mrf.mxu0
        %v1280 = vadd.f32 %v638, %v1279
        %v1281 = vpop.f32.mrf.mxu0
        %1282 = vmatprep.mubr.f32.mxu0 0.0
        %v1283 = vand.u32 %v770, 4294901760
        %v1284 = vsub.f32 %v770, %v1283
        %v1285 = vand.u32 %v1284, 4294901760
        %v1286 = vsub.f32 %v1284, %v1285
        %v1287 = vand.u32 %v1286, 4294901760
        %1288 = vmatmul.mubr.f32.gmra.mxu0 %v1287
        %v1289 = vpop.f32.mrf.mxu0
        %v1290 = vadd.f32 %v638, %v1289
        %v1291 = vpop.f32.mrf.mxu0
        %1292 = vmatprep.mubr.f32.mxu0 0.0
        %v1293 = vand.u32 %v773, 4294901760
        %v1294 = vsub.f32 %v773, %v1293
        %v1295 = vand.u32 %v1294, 4294901760
        %v1296 = vsub.f32 %v1294, %v1295
        %v1297 = vand.u32 %v1296, 4294901760
        %1298 = vmatmul.mubr.f32.gmra.mxu0 %v1297
        %v1299 = vpop.f32.mrf.mxu0
        %v1300 = vadd.f32 %v638, %v1299
        %v1301 = vpop.f32.mrf.mxu0
        %1302 = vmatprep.mubr.f32.mxu0 0.0
        %v1303 = vand.u32 %v776, 4294901760
        %v1304 = vsub.f32 %v776, %v1303
        %v1305 = vand.u32 %v1304, 4294901760
        %v1306 = vsub.f32 %v1304, %v1305
        %v1307 = vand.u32 %v1306, 4294901760
        %1308 = vmatmul.mubr.f32.gmra.mxu0 %v1307
        %v1309 = vpop.f32.mrf.mxu0
        %v1310 = vadd.f32 %v638, %v1309
        %v1311 = vpop.f32.mrf.mxu0
        %1312 = vmatprep.mubr.f32.mxu0 0.0
        %v1313 = vand.u32 %v779, 4294901760
        %v1314 = vsub.f32 %v779, %v1313
        %v1315 = vand.u32 %v1314, 4294901760
        %v1316 = vsub.f32 %v1314, %v1315
        %v1317 = vand.u32 %v1316, 4294901760
        %1318 = vmatmul.mubr.f32.gmra.mxu0 %v1317
        %v1319 = vpop.f32.mrf.mxu0
        %v1320 = vadd.f32 %v638, %v1319
        %v1321 = vpop.f32.mrf.mxu0
        %1322 = vmatprep.mubr.f32.mxu0 0.0
        %v1323 = vand.u32 %v782, 4294901760
        %v1324 = vsub.f32 %v782, %v1323
        %v1325 = vand.u32 %v1324, 4294901760
        %v1326 = vsub.f32 %v1324, %v1325
        %v1327 = vand.u32 %v1326, 4294901760
        %1328 = vmatmul.mubr.f32.gmra.mxu0 %v1327
        %v1329 = vpop.f32.mrf.mxu0
        %v1330 = vadd.f32 %v638, %v1329
        %v1331 = vpop.f32.mrf.mxu0
        %1332 = vdwg.mxu0
        %1333 = vmatprep.subr.mxu0 0.0
        %1334 = vmatpush1.msra.mxu0 0.0
        %1335 = vmatprep.subr.mxu0 0.0
        %1336 = vmatpush1.msra.mxu0 0.0
        %1337 = vmatprep.subr.mxu0 0.0
        %1338 = vmatpush1.msra.mxu0 0.0
        %1339 = vmatprep.subr.mxu0 0.0
        %1340 = vmatpush1.msra.mxu0 0.0
        %1341 = vmatprep.subr.mxu0 0.0
        %1342 = vmatpush1.msra.mxu0 0.0
        %1343 = vmatprep.subr.mxu0 0.0
        %1344 = vmatpush1.msra.mxu0 0.0
        %1345 = vmatprep.subr.mxu0 0.0
        %1346 = vmatpush1.msra.mxu0 0.0
        %1347 = vmatprep.subr.mxu0 0.0
        %1348 = vmatpush1.msra.mxu0 0.0
        %1349 = vmatprep.subr.mxu0 0.0
        %1350 = vmatpush1.msra.mxu0 0.0
        %1351 = vmatprep.subr.mxu0 0.0
        %1352 = vmatpush1.msra.mxu0 0.0
        %1353 = vmatprep.subr.mxu0 0.0
        %1354 = vmatpush1.msra.mxu0 0.0
        %1355 = vmatprep.subr.mxu0 0.0
        %1356 = vmatpush1.msra.mxu0 0.0
        %1357 = vmatprep.subr.mxu0 0.0
        %v1358 = vand.u32 %v611, 4294901760
        %v1359 = vsub.f32 %v611, %v1358
        %v1360 = vand.u32 %v1359, 4294901760
        %v1361 = vsub.f32 %v1359, %v1360
        %v1362 = vand.u32 %v1361, 4294901760
        %1363 = vmatpush1.msra.mxu0 %v1362
        %1364 = vmatprep.subr.mxu0 0.0
        %v1365 = vand.u32 %v610, 4294901760
        %v1366 = vsub.f32 %v610, %v1365
        %v1367 = vand.u32 %v1366, 4294901760
        %v1368 = vsub.f32 %v1366, %v1367
        %v1369 = vand.u32 %v1368, 4294901760
        %1370 = vmatpush1.msra.mxu0 %v1369
        %1371 = vmatprep.subr.mxu0 0.0
        %v1372 = vand.u32 %v609, 4294901760
        %v1373 = vsub.f32 %v609, %v1372
        %v1374 = vand.u32 %v1373, 4294901760
        %v1375 = vsub.f32 %v1373, %v1374
        %v1376 = vand.u32 %v1375, 4294901760
        %1377 = vmatpush1.msra.mxu0 %v1376
        %1378 = vmatprep.subr.mxu0 0.0
        %v1379 = vand.u32 %v608, 4294901760
        %v1380 = vsub.f32 %v608, %v1379
        %v1381 = vand.u32 %v1380, 4294901760
        %v1382 = vsub.f32 %v1380, %v1381
        %v1383 = vand.u32 %v1382, 4294901760
        %1384 = vmatpush1.msra.mxu0 %v1383
        %1385 = vmatprep.subr.mxu0 0.0
        %1386 = vmatpush2.msra.mxu0 0.0
        %1387 = vmatprep.subr.mxu0 0.0
        %1388 = vmatpush2.msra.mxu0 0.0
        %1389 = vmatprep.subr.mxu0 0.0
        %1390 = vmatpush2.msra.mxu0 0.0
        %1391 = vmatprep.subr.mxu0 0.0
        %1392 = vmatpush2.msra.mxu0 0.0
        %1393 = vmatprep.subr.mxu0 0.0
        %1394 = vmatpush2.msra.mxu0 0.0
        %1395 = vmatprep.subr.mxu0 0.0
        %1396 = vmatpush2.msra.mxu0 0.0
        %1397 = vmatprep.subr.mxu0 0.0
        %1398 = vmatpush2.msra.mxu0 0.0
        %1399 = vmatprep.subr.mxu0 0.0
        %1400 = vmatpush2.msra.mxu0 0.0
        %1401 = vmatprep.subr.mxu0 0.0
        %1402 = vmatpush2.msra.mxu0 0.0
        %1403 = vmatprep.subr.mxu0 0.0
        %1404 = vmatpush2.msra.mxu0 0.0
        %1405 = vmatprep.subr.mxu0 0.0
        %1406 = vmatpush2.msra.mxu0 0.0
        %1407 = vmatprep.subr.mxu0 0.0
        %1408 = vmatpush2.msra.mxu0 0.0
        %1409 = vmatprep.subr.mxu0 0.0
        %1410 = vmatpush2.msra.mxu0 0.0
        %1411 = vmatprep.subr.mxu0 0.0
        %1412 = vmatpush2.msra.mxu0 0.0
        %1413 = vmatprep.subr.mxu0 0.0
        %1414 = vmatpush2.msra.mxu0 0.0
        %1415 = vmatprep.subr.mxu0 0.0
        %1416 = vmatpush2.msra.mxu0 0.0
        %1417 = vmatprep.mubr.f32.mxu0 0.0
        %v1418 = vand.u32 %v641, 4294901760
        %1419 = vmatmul.mubr.f32.gmra.mxu0 %v1418
        %v1420 = vpop.f32.mrf.mxu0
        %v1421 = vadd.f32 %v860, %v1420
        %v1422 = vpop.f32.mrf.mxu0
        %1423 = vmatprep.mubr.f32.mxu0 0.0
        %v1424 = vand.u32 %v644, 4294901760
        %1425 = vmatmul.mubr.f32.gmra.mxu0 %v1424
        %v1426 = vpop.f32.mrf.mxu0
        %v1427 = vadd.f32 %v870, %v1426
        %v1428 = vpop.f32.mrf.mxu0
        %1429 = vmatprep.mubr.f32.mxu0 0.0
        %v1430 = vand.u32 %v647, 4294901760
        %1431 = vmatmul.mubr.f32.gmra.mxu0 %v1430
        %v1432 = vpop.f32.mrf.mxu0
        %v1433 = vadd.f32 %v880, %v1432
        %v1434 = vpop.f32.mrf.mxu0
        %1435 = vmatprep.mubr.f32.mxu0 0.0
        %v1436 = vand.u32 %v650, 4294901760
        %1437 = vmatmul.mubr.f32.gmra.mxu0 %v1436
        %v1438 = vpop.f32.mrf.mxu0
        %v1439 = vadd.f32 %v890, %v1438
        %v1440 = vpop.f32.mrf.mxu0
        %1441 = vmatprep.mubr.f32.mxu0 0.0
        %v1442 = vand.u32 %v653, 4294901760
        %1443 = vmatmul.mubr.f32.gmra.mxu0 %v1442
        %v1444 = vpop.f32.mrf.mxu0
        %v1445 = vadd.f32 %v900, %v1444
        %v1446 = vpop.f32.mrf.mxu0
        %1447 = vmatprep.mubr.f32.mxu0 0.0
        %v1448 = vand.u32 %v656, 4294901760
        %1449 = vmatmul.mubr.f32.gmra.mxu0 %v1448
        %v1450 = vpop.f32.mrf.mxu0
        %v1451 = vadd.f32 %v910, %v1450
        %v1452 = vpop.f32.mrf.mxu0
        %1453 = vmatprep.mubr.f32.mxu0 0.0
        %v1454 = vand.u32 %v659, 4294901760
        %1455 = vmatmul.mubr.f32.gmra.mxu0 %v1454
        %v1456 = vpop.f32.mrf.mxu0
        %v1457 = vadd.f32 %v920, %v1456
        %v1458 = vpop.f32.mrf.mxu0
        %1459 = vmatprep.mubr.f32.mxu0 0.0
        %v1460 = vand.u32 %v662, 4294901760
        %1461 = vmatmul.mubr.f32.gmra.mxu0 %v1460
        %v1462 = vpop.f32.mrf.mxu0
        %v1463 = vadd.f32 %v930, %v1462
        %v1464 = vpop.f32.mrf.mxu0
        %1465 = vmatprep.mubr.f32.mxu0 0.0
        %v1466 = vand.u32 %v665, 4294901760
        %1467 = vmatmul.mubr.f32.gmra.mxu0 %v1466
        %v1468 = vpop.f32.mrf.mxu0
        %v1469 = vadd.f32 %v940, %v1468
        %v1470 = vpop.f32.mrf.mxu0
        %1471 = vmatprep.mubr.f32.mxu0 0.0
        %v1472 = vand.u32 %v668, 4294901760
        %1473 = vmatmul.mubr.f32.gmra.mxu0 %v1472
        %v1474 = vpop.f32.mrf.mxu0
        %v1475 = vadd.f32 %v950, %v1474
        %v1476 = vpop.f32.mrf.mxu0
        %1477 = vmatprep.mubr.f32.mxu0 0.0
        %v1478 = vand.u32 %v671, 4294901760
        %1479 = vmatmul.mubr.f32.gmra.mxu0 %v1478
        %v1480 = vpop.f32.mrf.mxu0
        %v1481 = vadd.f32 %v960, %v1480
        %v1482 = vpop.f32.mrf.mxu0
        %1483 = vmatprep.mubr.f32.mxu0 0.0
        %v1484 = vand.u32 %v674, 4294901760
        %1485 = vmatmul.mubr.f32.gmra.mxu0 %v1484
        %v1486 = vpop.f32.mrf.mxu0
        %v1487 = vadd.f32 %v970, %v1486
        %v1488 = vpop.f32.mrf.mxu0
        %1489 = vmatprep.mubr.f32.mxu0 0.0
        %v1490 = vand.u32 %v677, 4294901760
        %1491 = vmatmul.mubr.f32.gmra.mxu0 %v1490
        %v1492 = vpop.f32.mrf.mxu0
        %v1493 = vadd.f32 %v980, %v1492
        %v1494 = vpop.f32.mrf.mxu0
        %1495 = vmatprep.mubr.f32.mxu0 0.0
        %v1496 = vand.u32 %v680, 4294901760
        %1497 = vmatmul.mubr.f32.gmra.mxu0 %v1496
        %v1498 = vpop.f32.mrf.mxu0
        %v1499 = vadd.f32 %v990, %v1498
        %v1500 = vpop.f32.mrf.mxu0
        %1501 = vmatprep.mubr.f32.mxu0 0.0
        %v1502 = vand.u32 %v683, 4294901760
        %1503 = vmatmul.mubr.f32.gmra.mxu0 %v1502
        %v1504 = vpop.f32.mrf.mxu0
        %v1505 = vadd.f32 %v1000, %v1504
        %v1506 = vpop.f32.mrf.mxu0
        %1507 = vmatprep.mubr.f32.mxu0 0.0
        %v1508 = vand.u32 %v686, 4294901760
        %1509 = vmatmul.mubr.f32.gmra.mxu0 %v1508
        %v1510 = vpop.f32.mrf.mxu0
        %v1511 = vadd.f32 %v1010, %v1510
        %v1512 = vpop.f32.mrf.mxu0
        %1513 = vmatprep.mubr.f32.mxu0 0.0
        %v1514 = vand.u32 %v689, 4294901760
        %1515 = vmatmul.mubr.f32.gmra.mxu0 %v1514
        %v1516 = vpop.f32.mrf.mxu0
        %v1517 = vadd.f32 %v1020, %v1516
        %v1518 = vpop.f32.mrf.mxu0
        %1519 = vmatprep.mubr.f32.mxu0 0.0
        %v1520 = vand.u32 %v692, 4294901760
        %1521 = vmatmul.mubr.f32.gmra.mxu0 %v1520
        %v1522 = vpop.f32.mrf.mxu0
        %v1523 = vadd.f32 %v1030, %v1522
        %v1524 = vpop.f32.mrf.mxu0
        %1525 = vmatprep.mubr.f32.mxu0 0.0
        %v1526 = vand.u32 %v695, 4294901760
        %1527 = vmatmul.mubr.f32.gmra.mxu0 %v1526
        %v1528 = vpop.f32.mrf.mxu0
        %v1529 = vadd.f32 %v1040, %v1528
        %v1530 = vpop.f32.mrf.mxu0
        %1531 = vmatprep.mubr.f32.mxu0 0.0
        %v1532 = vand.u32 %v698, 4294901760
        %1533 = vmatmul.mubr.f32.gmra.mxu0 %v1532
        %v1534 = vpop.f32.mrf.mxu0
        %v1535 = vadd.f32 %v1050, %v1534
        %v1536 = vpop.f32.mrf.mxu0
        %1537 = vmatprep.mubr.f32.mxu0 0.0
        %v1538 = vand.u32 %v701, 4294901760
        %1539 = vmatmul.mubr.f32.gmra.mxu0 %v1538
        %v1540 = vpop.f32.mrf.mxu0
        %v1541 = vadd.f32 %v1060, %v1540
        %v1542 = vpop.f32.mrf.mxu0
        %1543 = vmatprep.mubr.f32.mxu0 0.0
        %v1544 = vand.u32 %v704, 4294901760
        %1545 = vmatmul.mubr.f32.gmra.mxu0 %v1544
        %v1546 = vpop.f32.mrf.mxu0
        %v1547 = vadd.f32 %v1070, %v1546
        %v1548 = vpop.f32.mrf.mxu0
        %1549 = vmatprep.mubr.f32.mxu0 0.0
        %v1550 = vand.u32 %v707, 4294901760
        %1551 = vmatmul.mubr.f32.gmra.mxu0 %v1550
        %v1552 = vpop.f32.mrf.mxu0
        %v1553 = vadd.f32 %v1080, %v1552
        %v1554 = vpop.f32.mrf.mxu0
        %1555 = vmatprep.mubr.f32.mxu0 0.0
        %v1556 = vand.u32 %v710, 4294901760
        %1557 = vmatmul.mubr.f32.gmra.mxu0 %v1556
        %v1558 = vpop.f32.mrf.mxu0
        %v1559 = vadd.f32 %v1090, %v1558
        %v1560 = vpop.f32.mrf.mxu0
        %1561 = vmatprep.mubr.f32.mxu0 0.0
        %v1562 = vand.u32 %v713, 4294901760
        %1563 = vmatmul.mubr.f32.gmra.mxu0 %v1562
        %v1564 = vpop.f32.mrf.mxu0
        %v1565 = vadd.f32 %v1100, %v1564
        %v1566 = vpop.f32.mrf.mxu0
        %1567 = vmatprep.mubr.f32.mxu0 0.0
        %v1568 = vand.u32 %v716, 4294901760
        %1569 = vmatmul.mubr.f32.gmra.mxu0 %v1568
        %v1570 = vpop.f32.mrf.mxu0
        %v1571 = vadd.f32 %v1110, %v1570
        %v1572 = vpop.f32.mrf.mxu0
        %1573 = vmatprep.mubr.f32.mxu0 0.0
        %v1574 = vand.u32 %v719, 4294901760
        %1575 = vmatmul.mubr.f32.gmra.mxu0 %v1574
        %v1576 = vpop.f32.mrf.mxu0
        %v1577 = vadd.f32 %v1120, %v1576
        %v1578 = vpop.f32.mrf.mxu0
        %1579 = vmatprep.mubr.f32.mxu0 0.0
        %v1580 = vand.u32 %v722, 4294901760
        %1581 = vmatmul.mubr.f32.gmra.mxu0 %v1580
        %v1582 = vpop.f32.mrf.mxu0
        %v1583 = vadd.f32 %v1130, %v1582
        %v1584 = vpop.f32.mrf.mxu0
        %1585 = vmatprep.mubr.f32.mxu0 0.0
        %v1586 = vand.u32 %v725, 4294901760
        %1587 = vmatmul.mubr.f32.gmra.mxu0 %v1586
        %v1588 = vpop.f32.mrf.mxu0
        %v1589 = vadd.f32 %v1140, %v1588
        %v1590 = vpop.f32.mrf.mxu0
        %1591 = vmatprep.mubr.f32.mxu0 0.0
        %v1592 = vand.u32 %v728, 4294901760
        %1593 = vmatmul.mubr.f32.gmra.mxu0 %v1592
        %v1594 = vpop.f32.mrf.mxu0
        %v1595 = vadd.f32 %v1150, %v1594
        %v1596 = vpop.f32.mrf.mxu0
        %1597 = vmatprep.mubr.f32.mxu0 0.0
        %v1598 = vand.u32 %v731, 4294901760
        %1599 = vmatmul.mubr.f32.gmra.mxu0 %v1598
        %v1600 = vpop.f32.mrf.mxu0
        %v1601 = vadd.f32 %v1160, %v1600
        %v1602 = vpop.f32.mrf.mxu0
        %1603 = vmatprep.mubr.f32.mxu0 0.0
        %v1604 = vand.u32 %v734, 4294901760
        %1605 = vmatmul.mubr.f32.gmra.mxu0 %v1604
        %v1606 = vpop.f32.mrf.mxu0
        %v1607 = vadd.f32 %v1170, %v1606
        %v1608 = vpop.f32.mrf.mxu0
        %1609 = vmatprep.mubr.f32.mxu0 0.0
        %v1610 = vand.u32 %v737, 4294901760
        %1611 = vmatmul.mubr.f32.gmra.mxu0 %v1610
        %v1612 = vpop.f32.mrf.mxu0
        %v1613 = vadd.f32 %v1180, %v1612
        %v1614 = vpop.f32.mrf.mxu0
        %1615 = vmatprep.mubr.f32.mxu0 0.0
        %v1616 = vand.u32 %v740, 4294901760
        %1617 = vmatmul.mubr.f32.gmra.mxu0 %v1616
        %v1618 = vpop.f32.mrf.mxu0
        %v1619 = vadd.f32 %v1190, %v1618
        %v1620 = vpop.f32.mrf.mxu0
        %1621 = vmatprep.mubr.f32.mxu0 0.0
        %v1622 = vand.u32 %v743, 4294901760
        %1623 = vmatmul.mubr.f32.gmra.mxu0 %v1622
        %v1624 = vpop.f32.mrf.mxu0
        %v1625 = vadd.f32 %v1200, %v1624
        %v1626 = vpop.f32.mrf.mxu0
        %1627 = vmatprep.mubr.f32.mxu0 0.0
        %v1628 = vand.u32 %v746, 4294901760
        %1629 = vmatmul.mubr.f32.gmra.mxu0 %v1628
        %v1630 = vpop.f32.mrf.mxu0
        %v1631 = vadd.f32 %v1210, %v1630
        %v1632 = vpop.f32.mrf.mxu0
        %1633 = vmatprep.mubr.f32.mxu0 0.0
        %v1634 = vand.u32 %v749, 4294901760
        %1635 = vmatmul.mubr.f32.gmra.mxu0 %v1634
        %v1636 = vpop.f32.mrf.mxu0
        %v1637 = vadd.f32 %v1220, %v1636
        %v1638 = vpop.f32.mrf.mxu0
        %1639 = vmatprep.mubr.f32.mxu0 0.0
        %v1640 = vand.u32 %v752, 4294901760
        %1641 = vmatmul.mubr.f32.gmra.mxu0 %v1640
        %v1642 = vpop.f32.mrf.mxu0
        %v1643 = vadd.f32 %v1230, %v1642
        %v1644 = vpop.f32.mrf.mxu0
        %1645 = vmatprep.mubr.f32.mxu0 0.0
        %v1646 = vand.u32 %v755, 4294901760
        %1647 = vmatmul.mubr.f32.gmra.mxu0 %v1646
        %v1648 = vpop.f32.mrf.mxu0
        %v1649 = vadd.f32 %v1240, %v1648
        %v1650 = vpop.f32.mrf.mxu0
        %1651 = vmatprep.mubr.f32.mxu0 0.0
        %v1652 = vand.u32 %v758, 4294901760
        %1653 = vmatmul.mubr.f32.gmra.mxu0 %v1652
        %v1654 = vpop.f32.mrf.mxu0
        %v1655 = vadd.f32 %v1250, %v1654
        %v1656 = vpop.f32.mrf.mxu0
        %1657 = vmatprep.mubr.f32.mxu0 0.0
        %v1658 = vand.u32 %v761, 4294901760
        %1659 = vmatmul.mubr.f32.gmra.mxu0 %v1658
        %v1660 = vpop.f32.mrf.mxu0
        %v1661 = vadd.f32 %v1260, %v1660
        %v1662 = vpop.f32.mrf.mxu0
        %1663 = vmatprep.mubr.f32.mxu0 0.0
        %v1664 = vand.u32 %v764, 4294901760
        %1665 = vmatmul.mubr.f32.gmra.mxu0 %v1664
        %v1666 = vpop.f32.mrf.mxu0
        %v1667 = vadd.f32 %v1270, %v1666
        %v1668 = vpop.f32.mrf.mxu0
        %1669 = vmatprep.mubr.f32.mxu0 0.0
        %v1670 = vand.u32 %v767, 4294901760
        %1671 = vmatmul.mubr.f32.gmra.mxu0 %v1670
        %v1672 = vpop.f32.mrf.mxu0
        %v1673 = vadd.f32 %v1280, %v1672
        %v1674 = vpop.f32.mrf.mxu0
        %1675 = vmatprep.mubr.f32.mxu0 0.0
        %v1676 = vand.u32 %v770, 4294901760
        %1677 = vmatmul.mubr.f32.gmra.mxu0 %v1676
        %v1678 = vpop.f32.mrf.mxu0
        %v1679 = vadd.f32 %v1290, %v1678
        %v1680 = vpop.f32.mrf.mxu0
        %1681 = vmatprep.mubr.f32.mxu0 0.0
        %v1682 = vand.u32 %v773, 4294901760
        %1683 = vmatmul.mubr.f32.gmra.mxu0 %v1682
        %v1684 = vpop.f32.mrf.mxu0
        %v1685 = vadd.f32 %v1300, %v1684
        %v1686 = vpop.f32.mrf.mxu0
        %1687 = vmatprep.mubr.f32.mxu0 0.0
        %v1688 = vand.u32 %v776, 4294901760
        %1689 = vmatmul.mubr.f32.gmra.mxu0 %v1688
        %v1690 = vpop.f32.mrf.mxu0
        %v1691 = vadd.f32 %v1310, %v1690
        %v1692 = vpop.f32.mrf.mxu0
        %1693 = vmatprep.mubr.f32.mxu0 0.0
        %v1694 = vand.u32 %v779, 4294901760
        %1695 = vmatmul.mubr.f32.gmra.mxu0 %v1694
        %v1696 = vpop.f32.mrf.mxu0
        %v1697 = vadd.f32 %v1320, %v1696
        %v1698 = vpop.f32.mrf.mxu0
        %1699 = vmatprep.mubr.f32.mxu0 0.0
        %v1700 = vand.u32 %v782, 4294901760
        %1701 = vmatmul.mubr.f32.gmra.mxu0 %v1700
        %v1702 = vpop.f32.mrf.mxu0
        %v1703 = vadd.f32 %v1330, %v1702
        %v1704 = vpop.f32.mrf.mxu0
        %1705 = vdwg.mxu0
        %1706 = vmatprep.subr.mxu0 0.0
        %1707 = vmatpush1.msra.mxu0 0.0
        %1708 = vmatprep.subr.mxu0 0.0
        %1709 = vmatpush1.msra.mxu0 0.0
        %1710 = vmatprep.subr.mxu0 0.0
        %1711 = vmatpush1.msra.mxu0 0.0
        %1712 = vmatprep.subr.mxu0 0.0
        %1713 = vmatpush1.msra.mxu0 0.0
        %1714 = vmatprep.subr.mxu0 0.0
        %1715 = vmatpush1.msra.mxu0 0.0
        %1716 = vmatprep.subr.mxu0 0.0
        %1717 = vmatpush1.msra.mxu0 0.0
        %1718 = vmatprep.subr.mxu0 0.0
        %1719 = vmatpush1.msra.mxu0 0.0
        %1720 = vmatprep.subr.mxu0 0.0
        %1721 = vmatpush1.msra.mxu0 0.0
        %1722 = vmatprep.subr.mxu0 0.0
        %1723 = vmatpush1.msra.mxu0 0.0
        %1724 = vmatprep.subr.mxu0 0.0
        %1725 = vmatpush1.msra.mxu0 0.0
        %1726 = vmatprep.subr.mxu0 0.0
        %1727 = vmatpush1.msra.mxu0 0.0
        %1728 = vmatprep.subr.mxu0 0.0
        %1729 = vmatpush1.msra.mxu0 0.0
        %1730 = vmatprep.subr.mxu0 0.0
        %v1731 = vand.u32 %v611, 4294901760
        %v1732 = vsub.f32 %v611, %v1731
        %1733 = vmatpush1.msra.mxu0 %v1732
        %1734 = vmatprep.subr.mxu0 0.0
        %v1735 = vand.u32 %v610, 4294901760
        %v1736 = vsub.f32 %v610, %v1735
        %1737 = vmatpush1.msra.mxu0 %v1736
        %1738 = vmatprep.subr.mxu0 0.0
        %v1739 = vand.u32 %v609, 4294901760
        %v1740 = vsub.f32 %v609, %v1739
        %1741 = vmatpush1.msra.mxu0 %v1740
        %1742 = vmatprep.subr.mxu0 0.0
        %v1743 = vand.u32 %v608, 4294901760
        %v1744 = vsub.f32 %v608, %v1743
        %1745 = vmatpush1.msra.mxu0 %v1744
        %1746 = vmatprep.subr.mxu0 0.0
        %1747 = vmatpush2.msra.mxu0 0.0
        %1748 = vmatprep.subr.mxu0 0.0
        %1749 = vmatpush2.msra.mxu0 0.0
        %1750 = vmatprep.subr.mxu0 0.0
        %1751 = vmatpush2.msra.mxu0 0.0
        %1752 = vmatprep.subr.mxu0 0.0
        %1753 = vmatpush2.msra.mxu0 0.0
        %1754 = vmatprep.subr.mxu0 0.0
        %1755 = vmatpush2.msra.mxu0 0.0
        %1756 = vmatprep.subr.mxu0 0.0
        %1757 = vmatpush2.msra.mxu0 0.0
        %1758 = vmatprep.subr.mxu0 0.0
        %1759 = vmatpush2.msra.mxu0 0.0
        %1760 = vmatprep.subr.mxu0 0.0
        %1761 = vmatpush2.msra.mxu0 0.0
        %1762 = vmatprep.subr.mxu0 0.0
        %1763 = vmatpush2.msra.mxu0 0.0
        %1764 = vmatprep.subr.mxu0 0.0
        %1765 = vmatpush2.msra.mxu0 0.0
        %1766 = vmatprep.subr.mxu0 0.0
        %1767 = vmatpush2.msra.mxu0 0.0
        %1768 = vmatprep.subr.mxu0 0.0
        %1769 = vmatpush2.msra.mxu0 0.0
        %1770 = vmatprep.subr.mxu0 0.0
        %1771 = vmatpush2.msra.mxu0 0.0
        %1772 = vmatprep.subr.mxu0 0.0
        %1773 = vmatpush2.msra.mxu0 0.0
        %1774 = vmatprep.subr.mxu0 0.0
        %1775 = vmatpush2.msra.mxu0 0.0
        %1776 = vmatprep.subr.mxu0 0.0
        %1777 = vmatpush2.msra.mxu0 0.0
        %1778 = vmatprep.mubr.f32.mxu0 0.0
        %v1779 = vand.u32 %v641, 4294901760
        %v1780 = vsub.f32 %v641, %v1779
        %1781 = vmatmul.mubr.f32.gmra.mxu0 %v1780
        %v1782 = vpop.f32.mrf.mxu0
        %v1783 = vadd.f32 %v1421, %v1782
        %v1784 = vpop.f32.mrf.mxu0
        %1785 = vmatprep.mubr.f32.mxu0 0.0
        %v1786 = vand.u32 %v644, 4294901760
        %v1787 = vsub.f32 %v644, %v1786
        %1788 = vmatmul.mubr.f32.gmra.mxu0 %v1787
        %v1789 = vpop.f32.mrf.mxu0
        %v1790 = vadd.f32 %v1427, %v1789
        %v1791 = vpop.f32.mrf.mxu0
        %1792 = vmatprep.mubr.f32.mxu0 0.0
        %v1793 = vand.u32 %v647, 4294901760
        %v1794 = vsub.f32 %v647, %v1793
        %1795 = vmatmul.mubr.f32.gmra.mxu0 %v1794
        %v1796 = vpop.f32.mrf.mxu0
        %v1797 = vadd.f32 %v1433, %v1796
        %v1798 = vpop.f32.mrf.mxu0
        %1799 = vmatprep.mubr.f32.mxu0 0.0
        %v1800 = vand.u32 %v650, 4294901760
        %v1801 = vsub.f32 %v650, %v1800
        %1802 = vmatmul.mubr.f32.gmra.mxu0 %v1801
        %v1803 = vpop.f32.mrf.mxu0
        %v1804 = vadd.f32 %v1439, %v1803
        %v1805 = vpop.f32.mrf.mxu0
        %1806 = vmatprep.mubr.f32.mxu0 0.0
        %v1807 = vand.u32 %v653, 4294901760
        %v1808 = vsub.f32 %v653, %v1807
        %1809 = vmatmul.mubr.f32.gmra.mxu0 %v1808
        %v1810 = vpop.f32.mrf.mxu0
        %v1811 = vadd.f32 %v1445, %v1810
        %v1812 = vpop.f32.mrf.mxu0
        %1813 = vmatprep.mubr.f32.mxu0 0.0
        %v1814 = vand.u32 %v656, 4294901760
        %v1815 = vsub.f32 %v656, %v1814
        %1816 = vmatmul.mubr.f32.gmra.mxu0 %v1815
        %v1817 = vpop.f32.mrf.mxu0
        %v1818 = vadd.f32 %v1451, %v1817
        %v1819 = vpop.f32.mrf.mxu0
        %1820 = vmatprep.mubr.f32.mxu0 0.0
        %v1821 = vand.u32 %v659, 4294901760
        %v1822 = vsub.f32 %v659, %v1821
        %1823 = vmatmul.mubr.f32.gmra.mxu0 %v1822
        %v1824 = vpop.f32.mrf.mxu0
        %v1825 = vadd.f32 %v1457, %v1824
        %v1826 = vpop.f32.mrf.mxu0
        %1827 = vmatprep.mubr.f32.mxu0 0.0
        %v1828 = vand.u32 %v662, 4294901760
        %v1829 = vsub.f32 %v662, %v1828
        %1830 = vmatmul.mubr.f32.gmra.mxu0 %v1829
        %v1831 = vpop.f32.mrf.mxu0
        %v1832 = vadd.f32 %v1463, %v1831
        %v1833 = vpop.f32.mrf.mxu0
        %1834 = vmatprep.mubr.f32.mxu0 0.0
        %v1835 = vand.u32 %v665, 4294901760
        %v1836 = vsub.f32 %v665, %v1835
        %1837 = vmatmul.mubr.f32.gmra.mxu0 %v1836
        %v1838 = vpop.f32.mrf.mxu0
        %v1839 = vadd.f32 %v1469, %v1838
        %v1840 = vpop.f32.mrf.mxu0
        %1841 = vmatprep.mubr.f32.mxu0 0.0
        %v1842 = vand.u32 %v668, 4294901760
        %v1843 = vsub.f32 %v668, %v1842
        %1844 = vmatmul.mubr.f32.gmra.mxu0 %v1843
        %v1845 = vpop.f32.mrf.mxu0
        %v1846 = vadd.f32 %v1475, %v1845
        %v1847 = vpop.f32.mrf.mxu0
        %1848 = vmatprep.mubr.f32.mxu0 0.0
        %v1849 = vand.u32 %v671, 4294901760
        %v1850 = vsub.f32 %v671, %v1849
        %1851 = vmatmul.mubr.f32.gmra.mxu0 %v1850
        %v1852 = vpop.f32.mrf.mxu0
        %v1853 = vadd.f32 %v1481, %v1852
        %v1854 = vpop.f32.mrf.mxu0
        %1855 = vmatprep.mubr.f32.mxu0 0.0
        %v1856 = vand.u32 %v674, 4294901760
        %v1857 = vsub.f32 %v674, %v1856
        %1858 = vmatmul.mubr.f32.gmra.mxu0 %v1857
        %v1859 = vpop.f32.mrf.mxu0
        %v1860 = vadd.f32 %v1487, %v1859
        %v1861 = vpop.f32.mrf.mxu0
        %1862 = vmatprep.mubr.f32.mxu0 0.0
        %v1863 = vand.u32 %v677, 4294901760
        %v1864 = vsub.f32 %v677, %v1863
        %1865 = vmatmul.mubr.f32.gmra.mxu0 %v1864
        %v1866 = vpop.f32.mrf.mxu0
        %v1867 = vadd.f32 %v1493, %v1866
        %v1868 = vpop.f32.mrf.mxu0
        %1869 = vmatprep.mubr.f32.mxu0 0.0
        %v1870 = vand.u32 %v680, 4294901760
        %v1871 = vsub.f32 %v680, %v1870
        %1872 = vmatmul.mubr.f32.gmra.mxu0 %v1871
        %v1873 = vpop.f32.mrf.mxu0
        %v1874 = vadd.f32 %v1499, %v1873
        %v1875 = vpop.f32.mrf.mxu0
        %1876 = vmatprep.mubr.f32.mxu0 0.0
        %v1877 = vand.u32 %v683, 4294901760
        %v1878 = vsub.f32 %v683, %v1877
        %1879 = vmatmul.mubr.f32.gmra.mxu0 %v1878
        %v1880 = vpop.f32.mrf.mxu0
        %v1881 = vadd.f32 %v1505, %v1880
        %v1882 = vpop.f32.mrf.mxu0
        %1883 = vmatprep.mubr.f32.mxu0 0.0
        %v1884 = vand.u32 %v686, 4294901760
        %v1885 = vsub.f32 %v686, %v1884
        %1886 = vmatmul.mubr.f32.gmra.mxu0 %v1885
        %v1887 = vpop.f32.mrf.mxu0
        %v1888 = vadd.f32 %v1511, %v1887
        %v1889 = vpop.f32.mrf.mxu0
        %1890 = vmatprep.mubr.f32.mxu0 0.0
        %v1891 = vand.u32 %v689, 4294901760
        %v1892 = vsub.f32 %v689, %v1891
        %1893 = vmatmul.mubr.f32.gmra.mxu0 %v1892
        %v1894 = vpop.f32.mrf.mxu0
        %v1895 = vadd.f32 %v1517, %v1894
        %v1896 = vpop.f32.mrf.mxu0
        %1897 = vmatprep.mubr.f32.mxu0 0.0
        %v1898 = vand.u32 %v692, 4294901760
        %v1899 = vsub.f32 %v692, %v1898
        %1900 = vmatmul.mubr.f32.gmra.mxu0 %v1899
        %v1901 = vpop.f32.mrf.mxu0
        %v1902 = vadd.f32 %v1523, %v1901
        %v1903 = vpop.f32.mrf.mxu0
        %1904 = vmatprep.mubr.f32.mxu0 0.0
        %v1905 = vand.u32 %v695, 4294901760
        %v1906 = vsub.f32 %v695, %v1905
        %1907 = vmatmul.mubr.f32.gmra.mxu0 %v1906
        %v1908 = vpop.f32.mrf.mxu0
        %v1909 = vadd.f32 %v1529, %v1908
        %v1910 = vpop.f32.mrf.mxu0
        %1911 = vmatprep.mubr.f32.mxu0 0.0
        %v1912 = vand.u32 %v698, 4294901760
        %v1913 = vsub.f32 %v698, %v1912
        %1914 = vmatmul.mubr.f32.gmra.mxu0 %v1913
        %v1915 = vpop.f32.mrf.mxu0
        %v1916 = vadd.f32 %v1535, %v1915
        %v1917 = vpop.f32.mrf.mxu0
        %1918 = vmatprep.mubr.f32.mxu0 0.0
        %v1919 = vand.u32 %v701, 4294901760
        %v1920 = vsub.f32 %v701, %v1919
        %1921 = vmatmul.mubr.f32.gmra.mxu0 %v1920
        %v1922 = vpop.f32.mrf.mxu0
        %v1923 = vadd.f32 %v1541, %v1922
        %v1924 = vpop.f32.mrf.mxu0
        %1925 = vmatprep.mubr.f32.mxu0 0.0
        %v1926 = vand.u32 %v704, 4294901760
        %v1927 = vsub.f32 %v704, %v1926
        %1928 = vmatmul.mubr.f32.gmra.mxu0 %v1927
        %v1929 = vpop.f32.mrf.mxu0
        %v1930 = vadd.f32 %v1547, %v1929
        %v1931 = vpop.f32.mrf.mxu0
        %1932 = vmatprep.mubr.f32.mxu0 0.0
        %v1933 = vand.u32 %v707, 4294901760
        %v1934 = vsub.f32 %v707, %v1933
        %1935 = vmatmul.mubr.f32.gmra.mxu0 %v1934
        %v1936 = vpop.f32.mrf.mxu0
        %v1937 = vadd.f32 %v1553, %v1936
        %v1938 = vpop.f32.mrf.mxu0
        %1939 = vmatprep.mubr.f32.mxu0 0.0
        %v1940 = vand.u32 %v710, 4294901760
        %v1941 = vsub.f32 %v710, %v1940
        %1942 = vmatmul.mubr.f32.gmra.mxu0 %v1941
        %v1943 = vpop.f32.mrf.mxu0
        %v1944 = vadd.f32 %v1559, %v1943
        %v1945 = vpop.f32.mrf.mxu0
        %1946 = vmatprep.mubr.f32.mxu0 0.0
        %v1947 = vand.u32 %v713, 4294901760
        %v1948 = vsub.f32 %v713, %v1947
        %1949 = vmatmul.mubr.f32.gmra.mxu0 %v1948
        %v1950 = vpop.f32.mrf.mxu0
        %v1951 = vadd.f32 %v1565, %v1950
        %v1952 = vpop.f32.mrf.mxu0
        %1953 = vmatprep.mubr.f32.mxu0 0.0
        %v1954 = vand.u32 %v716, 4294901760
        %v1955 = vsub.f32 %v716, %v1954
        %1956 = vmatmul.mubr.f32.gmra.mxu0 %v1955
        %v1957 = vpop.f32.mrf.mxu0
        %v1958 = vadd.f32 %v1571, %v1957
        %v1959 = vpop.f32.mrf.mxu0
        %1960 = vmatprep.mubr.f32.mxu0 0.0
        %v1961 = vand.u32 %v719, 4294901760
        %v1962 = vsub.f32 %v719, %v1961
        %1963 = vmatmul.mubr.f32.gmra.mxu0 %v1962
        %v1964 = vpop.f32.mrf.mxu0
        %v1965 = vadd.f32 %v1577, %v1964
        %v1966 = vpop.f32.mrf.mxu0
        %1967 = vmatprep.mubr.f32.mxu0 0.0
        %v1968 = vand.u32 %v722, 4294901760
        %v1969 = vsub.f32 %v722, %v1968
        %1970 = vmatmul.mubr.f32.gmra.mxu0 %v1969
        %v1971 = vpop.f32.mrf.mxu0
        %v1972 = vadd.f32 %v1583, %v1971
        %v1973 = vpop.f32.mrf.mxu0
        %1974 = vmatprep.mubr.f32.mxu0 0.0
        %v1975 = vand.u32 %v725, 4294901760
        %v1976 = vsub.f32 %v725, %v1975
        %1977 = vmatmul.mubr.f32.gmra.mxu0 %v1976
        %v1978 = vpop.f32.mrf.mxu0
        %v1979 = vadd.f32 %v1589, %v1978
        %v1980 = vpop.f32.mrf.mxu0
        %1981 = vmatprep.mubr.f32.mxu0 0.0
        %v1982 = vand.u32 %v728, 4294901760
        %v1983 = vsub.f32 %v728, %v1982
        %1984 = vmatmul.mubr.f32.gmra.mxu0 %v1983
        %v1985 = vpop.f32.mrf.mxu0
        %v1986 = vadd.f32 %v1595, %v1985
        %v1987 = vpop.f32.mrf.mxu0
        %1988 = vmatprep.mubr.f32.mxu0 0.0
        %v1989 = vand.u32 %v731, 4294901760
        %v1990 = vsub.f32 %v731, %v1989
        %1991 = vmatmul.mubr.f32.gmra.mxu0 %v1990
        %v1992 = vpop.f32.mrf.mxu0
        %v1993 = vadd.f32 %v1601, %v1992
        %v1994 = vpop.f32.mrf.mxu0
        %1995 = vmatprep.mubr.f32.mxu0 0.0
        %v1996 = vand.u32 %v734, 4294901760
        %v1997 = vsub.f32 %v734, %v1996
        %1998 = vmatmul.mubr.f32.gmra.mxu0 %v1997
        %v1999 = vpop.f32.mrf.mxu0
        %v2000 = vadd.f32 %v1607, %v1999
        %v2001 = vpop.f32.mrf.mxu0
        %2002 = vmatprep.mubr.f32.mxu0 0.0
        %v2003 = vand.u32 %v737, 4294901760
        %v2004 = vsub.f32 %v737, %v2003
        %2005 = vmatmul.mubr.f32.gmra.mxu0 %v2004
        %v2006 = vpop.f32.mrf.mxu0
        %v2007 = vadd.f32 %v1613, %v2006
        %v2008 = vpop.f32.mrf.mxu0
        %2009 = vmatprep.mubr.f32.mxu0 0.0
        %v2010 = vand.u32 %v740, 4294901760
        %v2011 = vsub.f32 %v740, %v2010
        %2012 = vmatmul.mubr.f32.gmra.mxu0 %v2011
        %v2013 = vpop.f32.mrf.mxu0
        %v2014 = vadd.f32 %v1619, %v2013
        %v2015 = vpop.f32.mrf.mxu0
        %2016 = vmatprep.mubr.f32.mxu0 0.0
        %v2017 = vand.u32 %v743, 4294901760
        %v2018 = vsub.f32 %v743, %v2017
        %2019 = vmatmul.mubr.f32.gmra.mxu0 %v2018
        %v2020 = vpop.f32.mrf.mxu0
        %v2021 = vadd.f32 %v1625, %v2020
        %v2022 = vpop.f32.mrf.mxu0
        %2023 = vmatprep.mubr.f32.mxu0 0.0
        %v2024 = vand.u32 %v746, 4294901760
        %v2025 = vsub.f32 %v746, %v2024
        %2026 = vmatmul.mubr.f32.gmra.mxu0 %v2025
        %v2027 = vpop.f32.mrf.mxu0
        %v2028 = vadd.f32 %v1631, %v2027
        %v2029 = vpop.f32.mrf.mxu0
        %2030 = vmatprep.mubr.f32.mxu0 0.0
        %v2031 = vand.u32 %v749, 4294901760
        %v2032 = vsub.f32 %v749, %v2031
        %2033 = vmatmul.mubr.f32.gmra.mxu0 %v2032
        %v2034 = vpop.f32.mrf.mxu0
        %v2035 = vadd.f32 %v1637, %v2034
        %v2036 = vpop.f32.mrf.mxu0
        %2037 = vmatprep.mubr.f32.mxu0 0.0
        %v2038 = vand.u32 %v752, 4294901760
        %v2039 = vsub.f32 %v752, %v2038
        %2040 = vmatmul.mubr.f32.gmra.mxu0 %v2039
        %v2041 = vpop.f32.mrf.mxu0
        %v2042 = vadd.f32 %v1643, %v2041
        %v2043 = vpop.f32.mrf.mxu0
        %2044 = vmatprep.mubr.f32.mxu0 0.0
        %v2045 = vand.u32 %v755, 4294901760
        %v2046 = vsub.f32 %v755, %v2045
        %2047 = vmatmul.mubr.f32.gmra.mxu0 %v2046
        %v2048 = vpop.f32.mrf.mxu0
        %v2049 = vadd.f32 %v1649, %v2048
        %v2050 = vpop.f32.mrf.mxu0
        %2051 = vmatprep.mubr.f32.mxu0 0.0
        %v2052 = vand.u32 %v758, 4294901760
        %v2053 = vsub.f32 %v758, %v2052
        %2054 = vmatmul.mubr.f32.gmra.mxu0 %v2053
        %v2055 = vpop.f32.mrf.mxu0
        %v2056 = vadd.f32 %v1655, %v2055
        %v2057 = vpop.f32.mrf.mxu0
        %2058 = vmatprep.mubr.f32.mxu0 0.0
        %v2059 = vand.u32 %v761, 4294901760
        %v2060 = vsub.f32 %v761, %v2059
        %2061 = vmatmul.mubr.f32.gmra.mxu0 %v2060
        %v2062 = vpop.f32.mrf.mxu0
        %v2063 = vadd.f32 %v1661, %v2062
        %v2064 = vpop.f32.mrf.mxu0
        %2065 = vmatprep.mubr.f32.mxu0 0.0
        %v2066 = vand.u32 %v764, 4294901760
        %v2067 = vsub.f32 %v764, %v2066
        %2068 = vmatmul.mubr.f32.gmra.mxu0 %v2067
        %v2069 = vpop.f32.mrf.mxu0
        %v2070 = vadd.f32 %v1667, %v2069
        %v2071 = vpop.f32.mrf.mxu0
        %2072 = vmatprep.mubr.f32.mxu0 0.0
        %v2073 = vand.u32 %v767, 4294901760
        %v2074 = vsub.f32 %v767, %v2073
        %2075 = vmatmul.mubr.f32.gmra.mxu0 %v2074
        %v2076 = vpop.f32.mrf.mxu0
        %v2077 = vadd.f32 %v1673, %v2076
        %v2078 = vpop.f32.mrf.mxu0
        %2079 = vmatprep.mubr.f32.mxu0 0.0
        %v2080 = vand.u32 %v770, 4294901760
        %v2081 = vsub.f32 %v770, %v2080
        %2082 = vmatmul.mubr.f32.gmra.mxu0 %v2081
        %v2083 = vpop.f32.mrf.mxu0
        %v2084 = vadd.f32 %v1679, %v2083
        %v2085 = vpop.f32.mrf.mxu0
        %2086 = vmatprep.mubr.f32.mxu0 0.0
        %v2087 = vand.u32 %v773, 4294901760
        %v2088 = vsub.f32 %v773, %v2087
        %2089 = vmatmul.mubr.f32.gmra.mxu0 %v2088
        %v2090 = vpop.f32.mrf.mxu0
        %v2091 = vadd.f32 %v1685, %v2090
        %v2092 = vpop.f32.mrf.mxu0
        %2093 = vmatprep.mubr.f32.mxu0 0.0
        %v2094 = vand.u32 %v776, 4294901760
        %v2095 = vsub.f32 %v776, %v2094
        %2096 = vmatmul.mubr.f32.gmra.mxu0 %v2095
        %v2097 = vpop.f32.mrf.mxu0
        %v2098 = vadd.f32 %v1691, %v2097
        %v2099 = vpop.f32.mrf.mxu0
        %2100 = vmatprep.mubr.f32.mxu0 0.0
        %v2101 = vand.u32 %v779, 4294901760
        %v2102 = vsub.f32 %v779, %v2101
        %2103 = vmatmul.mubr.f32.gmra.mxu0 %v2102
        %v2104 = vpop.f32.mrf.mxu0
        %v2105 = vadd.f32 %v1697, %v2104
        %v2106 = vpop.f32.mrf.mxu0
        %2107 = vmatprep.mubr.f32.mxu0 0.0
        %v2108 = vand.u32 %v782, 4294901760
        %v2109 = vsub.f32 %v782, %v2108
        %2110 = vmatmul.mubr.f32.gmra.mxu0 %v2109
        %v2111 = vpop.f32.mrf.mxu0
        %v2112 = vadd.f32 %v1703, %v2111
        %v2113 = vpop.f32.mrf.mxu0
        %2114 = vdwg.mxu0
        %2115 = vmatprep.subr.mxu0 0.0
        %2116 = vmatpush1.msra.mxu0 0.0
        %2117 = vmatprep.subr.mxu0 0.0
        %2118 = vmatpush1.msra.mxu0 0.0
        %2119 = vmatprep.subr.mxu0 0.0
        %2120 = vmatpush1.msra.mxu0 0.0
        %2121 = vmatprep.subr.mxu0 0.0
        %2122 = vmatpush1.msra.mxu0 0.0
        %2123 = vmatprep.subr.mxu0 0.0
        %2124 = vmatpush1.msra.mxu0 0.0
        %2125 = vmatprep.subr.mxu0 0.0
        %2126 = vmatpush1.msra.mxu0 0.0
        %2127 = vmatprep.subr.mxu0 0.0
        %2128 = vmatpush1.msra.mxu0 0.0
        %2129 = vmatprep.subr.mxu0 0.0
        %2130 = vmatpush1.msra.mxu0 0.0
        %2131 = vmatprep.subr.mxu0 0.0
        %2132 = vmatpush1.msra.mxu0 0.0
        %2133 = vmatprep.subr.mxu0 0.0
        %2134 = vmatpush1.msra.mxu0 0.0
        %2135 = vmatprep.subr.mxu0 0.0
        %2136 = vmatpush1.msra.mxu0 0.0
        %2137 = vmatprep.subr.mxu0 0.0
        %2138 = vmatpush1.msra.mxu0 0.0
        %2139 = vmatprep.subr.mxu0 0.0
        %v2140 = vand.u32 %v611, 4294901760
        %2141 = vmatpush1.msra.mxu0 %v2140
        %2142 = vmatprep.subr.mxu0 0.0
        %v2143 = vand.u32 %v610, 4294901760
        %2144 = vmatpush1.msra.mxu0 %v2143
        %2145 = vmatprep.subr.mxu0 0.0
        %v2146 = vand.u32 %v609, 4294901760
        %2147 = vmatpush1.msra.mxu0 %v2146
        %2148 = vmatprep.subr.mxu0 0.0
        %v2149 = vand.u32 %v608, 4294901760
        %2150 = vmatpush1.msra.mxu0 %v2149
        %2151 = vmatprep.subr.mxu0 0.0
        %2152 = vmatpush2.msra.mxu0 0.0
        %2153 = vmatprep.subr.mxu0 0.0
        %2154 = vmatpush2.msra.mxu0 0.0
        %2155 = vmatprep.subr.mxu0 0.0
        %2156 = vmatpush2.msra.mxu0 0.0
        %2157 = vmatprep.subr.mxu0 0.0
        %2158 = vmatpush2.msra.mxu0 0.0
        %2159 = vmatprep.subr.mxu0 0.0
        %2160 = vmatpush2.msra.mxu0 0.0
        %2161 = vmatprep.subr.mxu0 0.0
        %2162 = vmatpush2.msra.mxu0 0.0
        %2163 = vmatprep.subr.mxu0 0.0
        %2164 = vmatpush2.msra.mxu0 0.0
        %2165 = vmatprep.subr.mxu0 0.0
        %2166 = vmatpush2.msra.mxu0 0.0
        %2167 = vmatprep.subr.mxu0 0.0
        %2168 = vmatpush2.msra.mxu0 0.0
        %2169 = vmatprep.subr.mxu0 0.0
        %2170 = vmatpush2.msra.mxu0 0.0
        %2171 = vmatprep.subr.mxu0 0.0
        %2172 = vmatpush2.msra.mxu0 0.0
        %2173 = vmatprep.subr.mxu0 0.0
        %2174 = vmatpush2.msra.mxu0 0.0
        %2175 = vmatprep.subr.mxu0 0.0
        %2176 = vmatpush2.msra.mxu0 0.0
        %2177 = vmatprep.subr.mxu0 0.0
        %2178 = vmatpush2.msra.mxu0 0.0
        %2179 = vmatprep.subr.mxu0 0.0
        %2180 = vmatpush2.msra.mxu0 0.0
        %2181 = vmatprep.subr.mxu0 0.0
        %2182 = vmatpush2.msra.mxu0 0.0
        %2183 = vmatprep.mubr.f32.mxu0 0.0
        %v2184 = vand.u32 %v641, 4294901760
        %v2185 = vsub.f32 %v641, %v2184
        %v2186 = vand.u32 %v2185, 4294901760
        %2187 = vmatmul.mubr.f32.gmra.mxu0 %v2186
        %v2188 = vpop.f32.mrf.mxu0
        %v2189 = vadd.f32 %v1783, %v2188
        %v2190 = vpop.f32.mrf.mxu0
        %2191 = vmatprep.mubr.f32.mxu0 0.0
        %v2192 = vand.u32 %v644, 4294901760
        %v2193 = vsub.f32 %v644, %v2192
        %v2194 = vand.u32 %v2193, 4294901760
        %2195 = vmatmul.mubr.f32.gmra.mxu0 %v2194
        %v2196 = vpop.f32.mrf.mxu0
        %v2197 = vadd.f32 %v1790, %v2196
        %v2198 = vpop.f32.mrf.mxu0
        %2199 = vmatprep.mubr.f32.mxu0 0.0
        %v2200 = vand.u32 %v647, 4294901760
        %v2201 = vsub.f32 %v647, %v2200
        %v2202 = vand.u32 %v2201, 4294901760
        %2203 = vmatmul.mubr.f32.gmra.mxu0 %v2202
        %v2204 = vpop.f32.mrf.mxu0
        %v2205 = vadd.f32 %v1797, %v2204
        %v2206 = vpop.f32.mrf.mxu0
        %2207 = vmatprep.mubr.f32.mxu0 0.0
        %v2208 = vand.u32 %v650, 4294901760
        %v2209 = vsub.f32 %v650, %v2208
        %v2210 = vand.u32 %v2209, 4294901760
        %2211 = vmatmul.mubr.f32.gmra.mxu0 %v2210
        %v2212 = vpop.f32.mrf.mxu0
        %v2213 = vadd.f32 %v1804, %v2212
        %v2214 = vpop.f32.mrf.mxu0
        %2215 = vmatprep.mubr.f32.mxu0 0.0
        %v2216 = vand.u32 %v653, 4294901760
        %v2217 = vsub.f32 %v653, %v2216
        %v2218 = vand.u32 %v2217, 4294901760
        %2219 = vmatmul.mubr.f32.gmra.mxu0 %v2218
        %v2220 = vpop.f32.mrf.mxu0
        %v2221 = vadd.f32 %v1811, %v2220
        %v2222 = vpop.f32.mrf.mxu0
        %2223 = vmatprep.mubr.f32.mxu0 0.0
        %v2224 = vand.u32 %v656, 4294901760
        %v2225 = vsub.f32 %v656, %v2224
        %v2226 = vand.u32 %v2225, 4294901760
        %2227 = vmatmul.mubr.f32.gmra.mxu0 %v2226
        %v2228 = vpop.f32.mrf.mxu0
        %v2229 = vadd.f32 %v1818, %v2228
        %v2230 = vpop.f32.mrf.mxu0
        %2231 = vmatprep.mubr.f32.mxu0 0.0
        %v2232 = vand.u32 %v659, 4294901760
        %v2233 = vsub.f32 %v659, %v2232
        %v2234 = vand.u32 %v2233, 4294901760
        %2235 = vmatmul.mubr.f32.gmra.mxu0 %v2234
        %v2236 = vpop.f32.mrf.mxu0
        %v2237 = vadd.f32 %v1825, %v2236
        %v2238 = vpop.f32.mrf.mxu0
        %2239 = vmatprep.mubr.f32.mxu0 0.0
        %v2240 = vand.u32 %v662, 4294901760
        %v2241 = vsub.f32 %v662, %v2240
        %v2242 = vand.u32 %v2241, 4294901760
        %2243 = vmatmul.mubr.f32.gmra.mxu0 %v2242
        %v2244 = vpop.f32.mrf.mxu0
        %v2245 = vadd.f32 %v1832, %v2244
        %v2246 = vpop.f32.mrf.mxu0
        %2247 = vmatprep.mubr.f32.mxu0 0.0
        %v2248 = vand.u32 %v665, 4294901760
        %v2249 = vsub.f32 %v665, %v2248
        %v2250 = vand.u32 %v2249, 4294901760
        %2251 = vmatmul.mubr.f32.gmra.mxu0 %v2250
        %v2252 = vpop.f32.mrf.mxu0
        %v2253 = vadd.f32 %v1839, %v2252
        %v2254 = vpop.f32.mrf.mxu0
        %2255 = vmatprep.mubr.f32.mxu0 0.0
        %v2256 = vand.u32 %v668, 4294901760
        %v2257 = vsub.f32 %v668, %v2256
        %v2258 = vand.u32 %v2257, 4294901760
        %2259 = vmatmul.mubr.f32.gmra.mxu0 %v2258
        %v2260 = vpop.f32.mrf.mxu0
        %v2261 = vadd.f32 %v1846, %v2260
        %v2262 = vpop.f32.mrf.mxu0
        %2263 = vmatprep.mubr.f32.mxu0 0.0
        %v2264 = vand.u32 %v671, 4294901760
        %v2265 = vsub.f32 %v671, %v2264
        %v2266 = vand.u32 %v2265, 4294901760
        %2267 = vmatmul.mubr.f32.gmra.mxu0 %v2266
        %v2268 = vpop.f32.mrf.mxu0
        %v2269 = vadd.f32 %v1853, %v2268
        %v2270 = vpop.f32.mrf.mxu0
        %2271 = vmatprep.mubr.f32.mxu0 0.0
        %v2272 = vand.u32 %v674, 4294901760
        %v2273 = vsub.f32 %v674, %v2272
        %v2274 = vand.u32 %v2273, 4294901760
        %2275 = vmatmul.mubr.f32.gmra.mxu0 %v2274
        %v2276 = vpop.f32.mrf.mxu0
        %v2277 = vadd.f32 %v1860, %v2276
        %v2278 = vpop.f32.mrf.mxu0
        %2279 = vmatprep.mubr.f32.mxu0 0.0
        %v2280 = vand.u32 %v677, 4294901760
        %v2281 = vsub.f32 %v677, %v2280
        %v2282 = vand.u32 %v2281, 4294901760
        %2283 = vmatmul.mubr.f32.gmra.mxu0 %v2282
        %v2284 = vpop.f32.mrf.mxu0
        %v2285 = vadd.f32 %v1867, %v2284
        %v2286 = vpop.f32.mrf.mxu0
        %2287 = vmatprep.mubr.f32.mxu0 0.0
        %v2288 = vand.u32 %v680, 4294901760
        %v2289 = vsub.f32 %v680, %v2288
        %v2290 = vand.u32 %v2289, 4294901760
        %2291 = vmatmul.mubr.f32.gmra.mxu0 %v2290
        %v2292 = vpop.f32.mrf.mxu0
        %v2293 = vadd.f32 %v1874, %v2292
        %v2294 = vpop.f32.mrf.mxu0
        %2295 = vmatprep.mubr.f32.mxu0 0.0
        %v2296 = vand.u32 %v683, 4294901760
        %v2297 = vsub.f32 %v683, %v2296
        %v2298 = vand.u32 %v2297, 4294901760
        %2299 = vmatmul.mubr.f32.gmra.mxu0 %v2298
        %v2300 = vpop.f32.mrf.mxu0
        %v2301 = vadd.f32 %v1881, %v2300
        %v2302 = vpop.f32.mrf.mxu0
        %2303 = vmatprep.mubr.f32.mxu0 0.0
        %v2304 = vand.u32 %v686, 4294901760
        %v2305 = vsub.f32 %v686, %v2304
        %v2306 = vand.u32 %v2305, 4294901760
        %2307 = vmatmul.mubr.f32.gmra.mxu0 %v2306
        %v2308 = vpop.f32.mrf.mxu0
        %v2309 = vadd.f32 %v1888, %v2308
        %v2310 = vpop.f32.mrf.mxu0
        %2311 = vmatprep.mubr.f32.mxu0 0.0
        %v2312 = vand.u32 %v689, 4294901760
        %v2313 = vsub.f32 %v689, %v2312
        %v2314 = vand.u32 %v2313, 4294901760
        %2315 = vmatmul.mubr.f32.gmra.mxu0 %v2314
        %v2316 = vpop.f32.mrf.mxu0
        %v2317 = vadd.f32 %v1895, %v2316
        %v2318 = vpop.f32.mrf.mxu0
        %2319 = vmatprep.mubr.f32.mxu0 0.0
        %v2320 = vand.u32 %v692, 4294901760
        %v2321 = vsub.f32 %v692, %v2320
        %v2322 = vand.u32 %v2321, 4294901760
        %2323 = vmatmul.mubr.f32.gmra.mxu0 %v2322
        %v2324 = vpop.f32.mrf.mxu0
        %v2325 = vadd.f32 %v1902, %v2324
        %v2326 = vpop.f32.mrf.mxu0
        %2327 = vmatprep.mubr.f32.mxu0 0.0
        %v2328 = vand.u32 %v695, 4294901760
        %v2329 = vsub.f32 %v695, %v2328
        %v2330 = vand.u32 %v2329, 4294901760
        %2331 = vmatmul.mubr.f32.gmra.mxu0 %v2330
        %v2332 = vpop.f32.mrf.mxu0
        %v2333 = vadd.f32 %v1909, %v2332
        %v2334 = vpop.f32.mrf.mxu0
        %2335 = vmatprep.mubr.f32.mxu0 0.0
        %v2336 = vand.u32 %v698, 4294901760
        %v2337 = vsub.f32 %v698, %v2336
        %v2338 = vand.u32 %v2337, 4294901760
        %2339 = vmatmul.mubr.f32.gmra.mxu0 %v2338
        %v2340 = vpop.f32.mrf.mxu0
        %v2341 = vadd.f32 %v1916, %v2340
        %v2342 = vpop.f32.mrf.mxu0
        %2343 = vmatprep.mubr.f32.mxu0 0.0
        %v2344 = vand.u32 %v701, 4294901760
        %v2345 = vsub.f32 %v701, %v2344
        %v2346 = vand.u32 %v2345, 4294901760
        %2347 = vmatmul.mubr.f32.gmra.mxu0 %v2346
        %v2348 = vpop.f32.mrf.mxu0
        %v2349 = vadd.f32 %v1923, %v2348
        %v2350 = vpop.f32.mrf.mxu0
        %2351 = vmatprep.mubr.f32.mxu0 0.0
        %v2352 = vand.u32 %v704, 4294901760
        %v2353 = vsub.f32 %v704, %v2352
        %v2354 = vand.u32 %v2353, 4294901760
        %2355 = vmatmul.mubr.f32.gmra.mxu0 %v2354
        %v2356 = vpop.f32.mrf.mxu0
        %v2357 = vadd.f32 %v1930, %v2356
        %v2358 = vpop.f32.mrf.mxu0
        %2359 = vmatprep.mubr.f32.mxu0 0.0
        %v2360 = vand.u32 %v707, 4294901760
        %v2361 = vsub.f32 %v707, %v2360
        %v2362 = vand.u32 %v2361, 4294901760
        %2363 = vmatmul.mubr.f32.gmra.mxu0 %v2362
        %v2364 = vpop.f32.mrf.mxu0
        %v2365 = vadd.f32 %v1937, %v2364
        %v2366 = vpop.f32.mrf.mxu0
        %2367 = vmatprep.mubr.f32.mxu0 0.0
        %v2368 = vand.u32 %v710, 4294901760
        %v2369 = vsub.f32 %v710, %v2368
        %v2370 = vand.u32 %v2369, 4294901760
        %2371 = vmatmul.mubr.f32.gmra.mxu0 %v2370
        %v2372 = vpop.f32.mrf.mxu0
        %v2373 = vadd.f32 %v1944, %v2372
        %v2374 = vpop.f32.mrf.mxu0
        %2375 = vmatprep.mubr.f32.mxu0 0.0
        %v2376 = vand.u32 %v713, 4294901760
        %v2377 = vsub.f32 %v713, %v2376
        %v2378 = vand.u32 %v2377, 4294901760
        %2379 = vmatmul.mubr.f32.gmra.mxu0 %v2378
        %v2380 = vpop.f32.mrf.mxu0
        %v2381 = vadd.f32 %v1951, %v2380
        %v2382 = vpop.f32.mrf.mxu0
        %2383 = vmatprep.mubr.f32.mxu0 0.0
        %v2384 = vand.u32 %v716, 4294901760
        %v2385 = vsub.f32 %v716, %v2384
        %v2386 = vand.u32 %v2385, 4294901760
        %2387 = vmatmul.mubr.f32.gmra.mxu0 %v2386
        %v2388 = vpop.f32.mrf.mxu0
        %v2389 = vadd.f32 %v1958, %v2388
        %v2390 = vpop.f32.mrf.mxu0
        %2391 = vmatprep.mubr.f32.mxu0 0.0
        %v2392 = vand.u32 %v719, 4294901760
        %v2393 = vsub.f32 %v719, %v2392
        %v2394 = vand.u32 %v2393, 4294901760
        %2395 = vmatmul.mubr.f32.gmra.mxu0 %v2394
        %v2396 = vpop.f32.mrf.mxu0
        %v2397 = vadd.f32 %v1965, %v2396
        %v2398 = vpop.f32.mrf.mxu0
        %2399 = vmatprep.mubr.f32.mxu0 0.0
        %v2400 = vand.u32 %v722, 4294901760
        %v2401 = vsub.f32 %v722, %v2400
        %v2402 = vand.u32 %v2401, 4294901760
        %2403 = vmatmul.mubr.f32.gmra.mxu0 %v2402
        %v2404 = vpop.f32.mrf.mxu0
        %v2405 = vadd.f32 %v1972, %v2404
        %v2406 = vpop.f32.mrf.mxu0
        %2407 = vmatprep.mubr.f32.mxu0 0.0
        %v2408 = vand.u32 %v725, 4294901760
        %v2409 = vsub.f32 %v725, %v2408
        %v2410 = vand.u32 %v2409, 4294901760
        %2411 = vmatmul.mubr.f32.gmra.mxu0 %v2410
        %v2412 = vpop.f32.mrf.mxu0
        %v2413 = vadd.f32 %v1979, %v2412
        %v2414 = vpop.f32.mrf.mxu0
        %2415 = vmatprep.mubr.f32.mxu0 0.0
        %v2416 = vand.u32 %v728, 4294901760
        %v2417 = vsub.f32 %v728, %v2416
        %v2418 = vand.u32 %v2417, 4294901760
        %2419 = vmatmul.mubr.f32.gmra.mxu0 %v2418
        %v2420 = vpop.f32.mrf.mxu0
        %v2421 = vadd.f32 %v1986, %v2420
        %v2422 = vpop.f32.mrf.mxu0
        %2423 = vmatprep.mubr.f32.mxu0 0.0
        %v2424 = vand.u32 %v731, 4294901760
        %v2425 = vsub.f32 %v731, %v2424
        %v2426 = vand.u32 %v2425, 4294901760
        %2427 = vmatmul.mubr.f32.gmra.mxu0 %v2426
        %v2428 = vpop.f32.mrf.mxu0
        %v2429 = vadd.f32 %v1993, %v2428
        %v2430 = vpop.f32.mrf.mxu0
        %2431 = vmatprep.mubr.f32.mxu0 0.0
        %v2432 = vand.u32 %v734, 4294901760
        %v2433 = vsub.f32 %v734, %v2432
        %v2434 = vand.u32 %v2433, 4294901760
        %2435 = vmatmul.mubr.f32.gmra.mxu0 %v2434
        %v2436 = vpop.f32.mrf.mxu0
        %v2437 = vadd.f32 %v2000, %v2436
        %v2438 = vpop.f32.mrf.mxu0
        %2439 = vmatprep.mubr.f32.mxu0 0.0
        %v2440 = vand.u32 %v737, 4294901760
        %v2441 = vsub.f32 %v737, %v2440
        %v2442 = vand.u32 %v2441, 4294901760
        %2443 = vmatmul.mubr.f32.gmra.mxu0 %v2442
        %v2444 = vpop.f32.mrf.mxu0
        %v2445 = vadd.f32 %v2007, %v2444
        %v2446 = vpop.f32.mrf.mxu0
        %2447 = vmatprep.mubr.f32.mxu0 0.0
        %v2448 = vand.u32 %v740, 4294901760
        %v2449 = vsub.f32 %v740, %v2448
        %v2450 = vand.u32 %v2449, 4294901760
        %2451 = vmatmul.mubr.f32.gmra.mxu0 %v2450
        %v2452 = vpop.f32.mrf.mxu0
        %v2453 = vadd.f32 %v2014, %v2452
        %v2454 = vpop.f32.mrf.mxu0
        %2455 = vmatprep.mubr.f32.mxu0 0.0
        %v2456 = vand.u32 %v743, 4294901760
        %v2457 = vsub.f32 %v743, %v2456
        %v2458 = vand.u32 %v2457, 4294901760
        %2459 = vmatmul.mubr.f32.gmra.mxu0 %v2458
        %v2460 = vpop.f32.mrf.mxu0
        %v2461 = vadd.f32 %v2021, %v2460
        %v2462 = vpop.f32.mrf.mxu0
        %2463 = vmatprep.mubr.f32.mxu0 0.0
        %v2464 = vand.u32 %v746, 4294901760
        %v2465 = vsub.f32 %v746, %v2464
        %v2466 = vand.u32 %v2465, 4294901760
        %2467 = vmatmul.mubr.f32.gmra.mxu0 %v2466
        %v2468 = vpop.f32.mrf.mxu0
        %v2469 = vadd.f32 %v2028, %v2468
        %v2470 = vpop.f32.mrf.mxu0
        %2471 = vmatprep.mubr.f32.mxu0 0.0
        %v2472 = vand.u32 %v749, 4294901760
        %v2473 = vsub.f32 %v749, %v2472
        %v2474 = vand.u32 %v2473, 4294901760
        %2475 = vmatmul.mubr.f32.gmra.mxu0 %v2474
        %v2476 = vpop.f32.mrf.mxu0
        %v2477 = vadd.f32 %v2035, %v2476
        %v2478 = vpop.f32.mrf.mxu0
        %2479 = vmatprep.mubr.f32.mxu0 0.0
        %v2480 = vand.u32 %v752, 4294901760
        %v2481 = vsub.f32 %v752, %v2480
        %v2482 = vand.u32 %v2481, 4294901760
        %2483 = vmatmul.mubr.f32.gmra.mxu0 %v2482
        %v2484 = vpop.f32.mrf.mxu0
        %v2485 = vadd.f32 %v2042, %v2484
        %v2486 = vpop.f32.mrf.mxu0
        %2487 = vmatprep.mubr.f32.mxu0 0.0
        %v2488 = vand.u32 %v755, 4294901760
        %v2489 = vsub.f32 %v755, %v2488
        %v2490 = vand.u32 %v2489, 4294901760
        %2491 = vmatmul.mubr.f32.gmra.mxu0 %v2490
        %v2492 = vpop.f32.mrf.mxu0
        %v2493 = vadd.f32 %v2049, %v2492
        %v2494 = vpop.f32.mrf.mxu0
        %2495 = vmatprep.mubr.f32.mxu0 0.0
        %v2496 = vand.u32 %v758, 4294901760
        %v2497 = vsub.f32 %v758, %v2496
        %v2498 = vand.u32 %v2497, 4294901760
        %2499 = vmatmul.mubr.f32.gmra.mxu0 %v2498
        %v2500 = vpop.f32.mrf.mxu0
        %v2501 = vadd.f32 %v2056, %v2500
        %v2502 = vpop.f32.mrf.mxu0
        %2503 = vmatprep.mubr.f32.mxu0 0.0
        %v2504 = vand.u32 %v761, 4294901760
        %v2505 = vsub.f32 %v761, %v2504
        %v2506 = vand.u32 %v2505, 4294901760
        %2507 = vmatmul.mubr.f32.gmra.mxu0 %v2506
        %v2508 = vpop.f32.mrf.mxu0
        %v2509 = vadd.f32 %v2063, %v2508
        %v2510 = vpop.f32.mrf.mxu0
        %2511 = vmatprep.mubr.f32.mxu0 0.0
        %v2512 = vand.u32 %v764, 4294901760
        %v2513 = vsub.f32 %v764, %v2512
        %v2514 = vand.u32 %v2513, 4294901760
        %2515 = vmatmul.mubr.f32.gmra.mxu0 %v2514
        %v2516 = vpop.f32.mrf.mxu0
        %v2517 = vadd.f32 %v2070, %v2516
        %v2518 = vpop.f32.mrf.mxu0
        %2519 = vmatprep.mubr.f32.mxu0 0.0
        %v2520 = vand.u32 %v767, 4294901760
        %v2521 = vsub.f32 %v767, %v2520
        %v2522 = vand.u32 %v2521, 4294901760
        %2523 = vmatmul.mubr.f32.gmra.mxu0 %v2522
        %v2524 = vpop.f32.mrf.mxu0
        %v2525 = vadd.f32 %v2077, %v2524
        %v2526 = vpop.f32.mrf.mxu0
        %2527 = vmatprep.mubr.f32.mxu0 0.0
        %v2528 = vand.u32 %v770, 4294901760
        %v2529 = vsub.f32 %v770, %v2528
        %v2530 = vand.u32 %v2529, 4294901760
        %2531 = vmatmul.mubr.f32.gmra.mxu0 %v2530
        %v2532 = vpop.f32.mrf.mxu0
        %v2533 = vadd.f32 %v2084, %v2532
        %v2534 = vpop.f32.mrf.mxu0
        %2535 = vmatprep.mubr.f32.mxu0 0.0
        %v2536 = vand.u32 %v773, 4294901760
        %v2537 = vsub.f32 %v773, %v2536
        %v2538 = vand.u32 %v2537, 4294901760
        %2539 = vmatmul.mubr.f32.gmra.mxu0 %v2538
        %v2540 = vpop.f32.mrf.mxu0
        %v2541 = vadd.f32 %v2091, %v2540
        %v2542 = vpop.f32.mrf.mxu0
        %2543 = vmatprep.mubr.f32.mxu0 0.0
        %v2544 = vand.u32 %v776, 4294901760
        %v2545 = vsub.f32 %v776, %v2544
        %v2546 = vand.u32 %v2545, 4294901760
        %2547 = vmatmul.mubr.f32.gmra.mxu0 %v2546
        %v2548 = vpop.f32.mrf.mxu0
        %v2549 = vadd.f32 %v2098, %v2548
        %v2550 = vpop.f32.mrf.mxu0
        %2551 = vmatprep.mubr.f32.mxu0 0.0
        %v2552 = vand.u32 %v779, 4294901760
        %v2553 = vsub.f32 %v779, %v2552
        %v2554 = vand.u32 %v2553, 4294901760
        %2555 = vmatmul.mubr.f32.gmra.mxu0 %v2554
        %v2556 = vpop.f32.mrf.mxu0
        %v2557 = vadd.f32 %v2105, %v2556
        %v2558 = vpop.f32.mrf.mxu0
        %2559 = vmatprep.mubr.f32.mxu0 0.0
        %v2560 = vand.u32 %v782, 4294901760
        %v2561 = vsub.f32 %v782, %v2560
        %v2562 = vand.u32 %v2561, 4294901760
        %2563 = vmatmul.mubr.f32.gmra.mxu0 %v2562
        %v2564 = vpop.f32.mrf.mxu0
        %v2565 = vadd.f32 %v2112, %v2564
        %v2566 = vpop.f32.mrf.mxu0
        %2567 = vdwg.mxu0
        %2568 = vmatprep.subr.mxu0 0.0
        %2569 = vmatpush1.msra.mxu0 0.0
        %2570 = vmatprep.subr.mxu0 0.0
        %2571 = vmatpush1.msra.mxu0 0.0
        %2572 = vmatprep.subr.mxu0 0.0
        %2573 = vmatpush1.msra.mxu0 0.0
        %2574 = vmatprep.subr.mxu0 0.0
        %2575 = vmatpush1.msra.mxu0 0.0
        %2576 = vmatprep.subr.mxu0 0.0
        %2577 = vmatpush1.msra.mxu0 0.0
        %2578 = vmatprep.subr.mxu0 0.0
        %2579 = vmatpush1.msra.mxu0 0.0
        %2580 = vmatprep.subr.mxu0 0.0
        %2581 = vmatpush1.msra.mxu0 0.0
        %2582 = vmatprep.subr.mxu0 0.0
        %2583 = vmatpush1.msra.mxu0 0.0
        %2584 = vmatprep.subr.mxu0 0.0
        %2585 = vmatpush1.msra.mxu0 0.0
        %2586 = vmatprep.subr.mxu0 0.0
        %2587 = vmatpush1.msra.mxu0 0.0
        %2588 = vmatprep.subr.mxu0 0.0
        %2589 = vmatpush1.msra.mxu0 0.0
        %2590 = vmatprep.subr.mxu0 0.0
        %2591 = vmatpush1.msra.mxu0 0.0
        %2592 = vmatprep.subr.mxu0 0.0
        %v2593 = vand.u32 %v611, 4294901760
        %v2594 = vsub.f32 %v611, %v2593
        %v2595 = vand.u32 %v2594, 4294901760
        %2596 = vmatpush1.msra.mxu0 %v2595
        %2597 = vmatprep.subr.mxu0 0.0
        %v2598 = vand.u32 %v610, 4294901760
        %v2599 = vsub.f32 %v610, %v2598
        %v2600 = vand.u32 %v2599, 4294901760
        %2601 = vmatpush1.msra.mxu0 %v2600
        %2602 = vmatprep.subr.mxu0 0.0
        %v2603 = vand.u32 %v609, 4294901760
        %v2604 = vsub.f32 %v609, %v2603
        %v2605 = vand.u32 %v2604, 4294901760
        %2606 = vmatpush1.msra.mxu0 %v2605
        %2607 = vmatprep.subr.mxu0 0.0
        %v2608 = vand.u32 %v608, 4294901760
        %v2609 = vsub.f32 %v608, %v2608
        %v2610 = vand.u32 %v2609, 4294901760
        %2611 = vmatpush1.msra.mxu0 %v2610
        %2612 = vmatprep.subr.mxu0 0.0
        %2613 = vmatpush2.msra.mxu0 0.0
        %2614 = vmatprep.subr.mxu0 0.0
        %2615 = vmatpush2.msra.mxu0 0.0
        %2616 = vmatprep.subr.mxu0 0.0
        %2617 = vmatpush2.msra.mxu0 0.0
        %2618 = vmatprep.subr.mxu0 0.0
        %2619 = vmatpush2.msra.mxu0 0.0
        %2620 = vmatprep.subr.mxu0 0.0
        %2621 = vmatpush2.msra.mxu0 0.0
        %2622 = vmatprep.subr.mxu0 0.0
        %2623 = vmatpush2.msra.mxu0 0.0
        %2624 = vmatprep.subr.mxu0 0.0
        %2625 = vmatpush2.msra.mxu0 0.0
        %2626 = vmatprep.subr.mxu0 0.0
        %2627 = vmatpush2.msra.mxu0 0.0
        %2628 = vmatprep.subr.mxu0 0.0
        %2629 = vmatpush2.msra.mxu0 0.0
        %2630 = vmatprep.subr.mxu0 0.0
        %2631 = vmatpush2.msra.mxu0 0.0
        %2632 = vmatprep.subr.mxu0 0.0
        %2633 = vmatpush2.msra.mxu0 0.0
        %2634 = vmatprep.subr.mxu0 0.0
        %2635 = vmatpush2.msra.mxu0 0.0
        %2636 = vmatprep.subr.mxu0 0.0
        %2637 = vmatpush2.msra.mxu0 0.0
        %2638 = vmatprep.subr.mxu0 0.0
        %2639 = vmatpush2.msra.mxu0 0.0
        %2640 = vmatprep.subr.mxu0 0.0
        %2641 = vmatpush2.msra.mxu0 0.0
        %2642 = vmatprep.subr.mxu0 0.0
        %2643 = vmatpush2.msra.mxu0 0.0
        %2644 = vmatprep.mubr.f32.mxu0 0.0
        %v2645 = vand.u32 %v641, 4294901760
        %2646 = vmatmul.mubr.f32.gmra.mxu0 %v2645
        %v2647 = vpop.f32.mrf.mxu0
        %v2648 = vadd.f32 %v2189, %v2647
        %v2649 = vpop.f32.mrf.mxu0
        %2650 = vmatprep.mubr.f32.mxu0 0.0
        %v2651 = vand.u32 %v644, 4294901760
        %2652 = vmatmul.mubr.f32.gmra.mxu0 %v2651
        %v2653 = vpop.f32.mrf.mxu0
        %v2654 = vadd.f32 %v2197, %v2653
        %v2655 = vpop.f32.mrf.mxu0
        %2656 = vmatprep.mubr.f32.mxu0 0.0
        %v2657 = vand.u32 %v647, 4294901760
        %2658 = vmatmul.mubr.f32.gmra.mxu0 %v2657
        %v2659 = vpop.f32.mrf.mxu0
        %v2660 = vadd.f32 %v2205, %v2659
        %v2661 = vpop.f32.mrf.mxu0
        %2662 = vmatprep.mubr.f32.mxu0 0.0
        %v2663 = vand.u32 %v650, 4294901760
        %2664 = vmatmul.mubr.f32.gmra.mxu0 %v2663
        %v2665 = vpop.f32.mrf.mxu0
        %v2666 = vadd.f32 %v2213, %v2665
        %v2667 = vpop.f32.mrf.mxu0
        %2668 = vmatprep.mubr.f32.mxu0 0.0
        %v2669 = vand.u32 %v653, 4294901760
        %2670 = vmatmul.mubr.f32.gmra.mxu0 %v2669
        %v2671 = vpop.f32.mrf.mxu0
        %v2672 = vadd.f32 %v2221, %v2671
        %v2673 = vpop.f32.mrf.mxu0
        %2674 = vmatprep.mubr.f32.mxu0 0.0
        %v2675 = vand.u32 %v656, 4294901760
        %2676 = vmatmul.mubr.f32.gmra.mxu0 %v2675
        %v2677 = vpop.f32.mrf.mxu0
        %v2678 = vadd.f32 %v2229, %v2677
        %v2679 = vpop.f32.mrf.mxu0
        %2680 = vmatprep.mubr.f32.mxu0 0.0
        %v2681 = vand.u32 %v659, 4294901760
        %2682 = vmatmul.mubr.f32.gmra.mxu0 %v2681
        %v2683 = vpop.f32.mrf.mxu0
        %v2684 = vadd.f32 %v2237, %v2683
        %v2685 = vpop.f32.mrf.mxu0
        %2686 = vmatprep.mubr.f32.mxu0 0.0
        %v2687 = vand.u32 %v662, 4294901760
        %2688 = vmatmul.mubr.f32.gmra.mxu0 %v2687
        %v2689 = vpop.f32.mrf.mxu0
        %v2690 = vadd.f32 %v2245, %v2689
        %v2691 = vpop.f32.mrf.mxu0
        %2692 = vmatprep.mubr.f32.mxu0 0.0
        %v2693 = vand.u32 %v665, 4294901760
        %2694 = vmatmul.mubr.f32.gmra.mxu0 %v2693
        %v2695 = vpop.f32.mrf.mxu0
        %v2696 = vadd.f32 %v2253, %v2695
        %v2697 = vpop.f32.mrf.mxu0
        %2698 = vmatprep.mubr.f32.mxu0 0.0
        %v2699 = vand.u32 %v668, 4294901760
        %2700 = vmatmul.mubr.f32.gmra.mxu0 %v2699
        %v2701 = vpop.f32.mrf.mxu0
        %v2702 = vadd.f32 %v2261, %v2701
        %v2703 = vpop.f32.mrf.mxu0
        %2704 = vmatprep.mubr.f32.mxu0 0.0
        %v2705 = vand.u32 %v671, 4294901760
        %2706 = vmatmul.mubr.f32.gmra.mxu0 %v2705
        %v2707 = vpop.f32.mrf.mxu0
        %v2708 = vadd.f32 %v2269, %v2707
        %v2709 = vpop.f32.mrf.mxu0
        %2710 = vmatprep.mubr.f32.mxu0 0.0
        %v2711 = vand.u32 %v674, 4294901760
        %2712 = vmatmul.mubr.f32.gmra.mxu0 %v2711
        %v2713 = vpop.f32.mrf.mxu0
        %v2714 = vadd.f32 %v2277, %v2713
        %v2715 = vpop.f32.mrf.mxu0
        %2716 = vmatprep.mubr.f32.mxu0 0.0
        %v2717 = vand.u32 %v677, 4294901760
        %2718 = vmatmul.mubr.f32.gmra.mxu0 %v2717
        %v2719 = vpop.f32.mrf.mxu0
        %v2720 = vadd.f32 %v2285, %v2719
        %v2721 = vpop.f32.mrf.mxu0
        %2722 = vmatprep.mubr.f32.mxu0 0.0
        %v2723 = vand.u32 %v680, 4294901760
        %2724 = vmatmul.mubr.f32.gmra.mxu0 %v2723
        %v2725 = vpop.f32.mrf.mxu0
        %v2726 = vadd.f32 %v2293, %v2725
        %v2727 = vpop.f32.mrf.mxu0
        %2728 = vmatprep.mubr.f32.mxu0 0.0
        %v2729 = vand.u32 %v683, 4294901760
        %2730 = vmatmul.mubr.f32.gmra.mxu0 %v2729
        %v2731 = vpop.f32.mrf.mxu0
        %v2732 = vadd.f32 %v2301, %v2731
        %v2733 = vpop.f32.mrf.mxu0
        %2734 = vmatprep.mubr.f32.mxu0 0.0
        %v2735 = vand.u32 %v686, 4294901760
        %2736 = vmatmul.mubr.f32.gmra.mxu0 %v2735
        %v2737 = vpop.f32.mrf.mxu0
        %v2738 = vadd.f32 %v2309, %v2737
        %v2739 = vpop.f32.mrf.mxu0
        %2740 = vmatprep.mubr.f32.mxu0 0.0
        %v2741 = vand.u32 %v689, 4294901760
        %2742 = vmatmul.mubr.f32.gmra.mxu0 %v2741
        %v2743 = vpop.f32.mrf.mxu0
        %v2744 = vadd.f32 %v2317, %v2743
        %v2745 = vpop.f32.mrf.mxu0
        %2746 = vmatprep.mubr.f32.mxu0 0.0
        %v2747 = vand.u32 %v692, 4294901760
        %2748 = vmatmul.mubr.f32.gmra.mxu0 %v2747
        %v2749 = vpop.f32.mrf.mxu0
        %v2750 = vadd.f32 %v2325, %v2749
        %v2751 = vpop.f32.mrf.mxu0
        %2752 = vmatprep.mubr.f32.mxu0 0.0
        %v2753 = vand.u32 %v695, 4294901760
        %2754 = vmatmul.mubr.f32.gmra.mxu0 %v2753
        %v2755 = vpop.f32.mrf.mxu0
        %v2756 = vadd.f32 %v2333, %v2755
        %v2757 = vpop.f32.mrf.mxu0
        %2758 = vmatprep.mubr.f32.mxu0 0.0
        %v2759 = vand.u32 %v698, 4294901760
        %2760 = vmatmul.mubr.f32.gmra.mxu0 %v2759
        %v2761 = vpop.f32.mrf.mxu0
        %v2762 = vadd.f32 %v2341, %v2761
        %v2763 = vpop.f32.mrf.mxu0
        %2764 = vmatprep.mubr.f32.mxu0 0.0
        %v2765 = vand.u32 %v701, 4294901760
        %2766 = vmatmul.mubr.f32.gmra.mxu0 %v2765
        %v2767 = vpop.f32.mrf.mxu0
        %v2768 = vadd.f32 %v2349, %v2767
        %v2769 = vpop.f32.mrf.mxu0
        %2770 = vmatprep.mubr.f32.mxu0 0.0
        %v2771 = vand.u32 %v704, 4294901760
        %2772 = vmatmul.mubr.f32.gmra.mxu0 %v2771
        %v2773 = vpop.f32.mrf.mxu0
        %v2774 = vadd.f32 %v2357, %v2773
        %v2775 = vpop.f32.mrf.mxu0
        %2776 = vmatprep.mubr.f32.mxu0 0.0
        %v2777 = vand.u32 %v707, 4294901760
        %2778 = vmatmul.mubr.f32.gmra.mxu0 %v2777
        %v2779 = vpop.f32.mrf.mxu0
        %v2780 = vadd.f32 %v2365, %v2779
        %v2781 = vpop.f32.mrf.mxu0
        %2782 = vmatprep.mubr.f32.mxu0 0.0
        %v2783 = vand.u32 %v710, 4294901760
        %2784 = vmatmul.mubr.f32.gmra.mxu0 %v2783
        %v2785 = vpop.f32.mrf.mxu0
        %v2786 = vadd.f32 %v2373, %v2785
        %v2787 = vpop.f32.mrf.mxu0
        %2788 = vmatprep.mubr.f32.mxu0 0.0
        %v2789 = vand.u32 %v713, 4294901760
        %2790 = vmatmul.mubr.f32.gmra.mxu0 %v2789
        %v2791 = vpop.f32.mrf.mxu0
        %v2792 = vadd.f32 %v2381, %v2791
        %v2793 = vpop.f32.mrf.mxu0
        %2794 = vmatprep.mubr.f32.mxu0 0.0
        %v2795 = vand.u32 %v716, 4294901760
        %2796 = vmatmul.mubr.f32.gmra.mxu0 %v2795
        %v2797 = vpop.f32.mrf.mxu0
        %v2798 = vadd.f32 %v2389, %v2797
        %v2799 = vpop.f32.mrf.mxu0
        %2800 = vmatprep.mubr.f32.mxu0 0.0
        %v2801 = vand.u32 %v719, 4294901760
        %2802 = vmatmul.mubr.f32.gmra.mxu0 %v2801
        %v2803 = vpop.f32.mrf.mxu0
        %v2804 = vadd.f32 %v2397, %v2803
        %v2805 = vpop.f32.mrf.mxu0
        %2806 = vmatprep.mubr.f32.mxu0 0.0
        %v2807 = vand.u32 %v722, 4294901760
        %2808 = vmatmul.mubr.f32.gmra.mxu0 %v2807
        %v2809 = vpop.f32.mrf.mxu0
        %v2810 = vadd.f32 %v2405, %v2809
        %v2811 = vpop.f32.mrf.mxu0
        %2812 = vmatprep.mubr.f32.mxu0 0.0
        %v2813 = vand.u32 %v725, 4294901760
        %2814 = vmatmul.mubr.f32.gmra.mxu0 %v2813
        %v2815 = vpop.f32.mrf.mxu0
        %v2816 = vadd.f32 %v2413, %v2815
        %v2817 = vpop.f32.mrf.mxu0
        %2818 = vmatprep.mubr.f32.mxu0 0.0
        %v2819 = vand.u32 %v728, 4294901760
        %2820 = vmatmul.mubr.f32.gmra.mxu0 %v2819
        %v2821 = vpop.f32.mrf.mxu0
        %v2822 = vadd.f32 %v2421, %v2821
        %v2823 = vpop.f32.mrf.mxu0
        %2824 = vmatprep.mubr.f32.mxu0 0.0
        %v2825 = vand.u32 %v731, 4294901760
        %2826 = vmatmul.mubr.f32.gmra.mxu0 %v2825
        %v2827 = vpop.f32.mrf.mxu0
        %v2828 = vadd.f32 %v2429, %v2827
        %v2829 = vpop.f32.mrf.mxu0
        %2830 = vmatprep.mubr.f32.mxu0 0.0
        %v2831 = vand.u32 %v734, 4294901760
        %2832 = vmatmul.mubr.f32.gmra.mxu0 %v2831
        %v2833 = vpop.f32.mrf.mxu0
        %v2834 = vadd.f32 %v2437, %v2833
        %v2835 = vpop.f32.mrf.mxu0
        %2836 = vmatprep.mubr.f32.mxu0 0.0
        %v2837 = vand.u32 %v737, 4294901760
        %2838 = vmatmul.mubr.f32.gmra.mxu0 %v2837
        %v2839 = vpop.f32.mrf.mxu0
        %v2840 = vadd.f32 %v2445, %v2839
        %v2841 = vpop.f32.mrf.mxu0
        %2842 = vmatprep.mubr.f32.mxu0 0.0
        %v2843 = vand.u32 %v740, 4294901760
        %2844 = vmatmul.mubr.f32.gmra.mxu0 %v2843
        %v2845 = vpop.f32.mrf.mxu0
        %v2846 = vadd.f32 %v2453, %v2845
        %v2847 = vpop.f32.mrf.mxu0
        %2848 = vmatprep.mubr.f32.mxu0 0.0
        %v2849 = vand.u32 %v743, 4294901760
        %2850 = vmatmul.mubr.f32.gmra.mxu0 %v2849
        %v2851 = vpop.f32.mrf.mxu0
        %v2852 = vadd.f32 %v2461, %v2851
        %v2853 = vpop.f32.mrf.mxu0
        %2854 = vmatprep.mubr.f32.mxu0 0.0
        %v2855 = vand.u32 %v746, 4294901760
        %2856 = vmatmul.mubr.f32.gmra.mxu0 %v2855
        %v2857 = vpop.f32.mrf.mxu0
        %v2858 = vadd.f32 %v2469, %v2857
        %v2859 = vpop.f32.mrf.mxu0
        %2860 = vmatprep.mubr.f32.mxu0 0.0
        %v2861 = vand.u32 %v749, 4294901760
        %2862 = vmatmul.mubr.f32.gmra.mxu0 %v2861
        %v2863 = vpop.f32.mrf.mxu0
        %v2864 = vadd.f32 %v2477, %v2863
        %v2865 = vpop.f32.mrf.mxu0
        %2866 = vmatprep.mubr.f32.mxu0 0.0
        %v2867 = vand.u32 %v752, 4294901760
        %2868 = vmatmul.mubr.f32.gmra.mxu0 %v2867
        %v2869 = vpop.f32.mrf.mxu0
        %v2870 = vadd.f32 %v2485, %v2869
        %v2871 = vpop.f32.mrf.mxu0
        %2872 = vmatprep.mubr.f32.mxu0 0.0
        %v2873 = vand.u32 %v755, 4294901760
        %2874 = vmatmul.mubr.f32.gmra.mxu0 %v2873
        %v2875 = vpop.f32.mrf.mxu0
        %v2876 = vadd.f32 %v2493, %v2875
        %v2877 = vpop.f32.mrf.mxu0
        %2878 = vmatprep.mubr.f32.mxu0 0.0
        %v2879 = vand.u32 %v758, 4294901760
        %2880 = vmatmul.mubr.f32.gmra.mxu0 %v2879
        %v2881 = vpop.f32.mrf.mxu0
        %v2882 = vadd.f32 %v2501, %v2881
        %v2883 = vpop.f32.mrf.mxu0
        %2884 = vmatprep.mubr.f32.mxu0 0.0
        %v2885 = vand.u32 %v761, 4294901760
        %2886 = vmatmul.mubr.f32.gmra.mxu0 %v2885
        %v2887 = vpop.f32.mrf.mxu0
        %v2888 = vadd.f32 %v2509, %v2887
        %v2889 = vpop.f32.mrf.mxu0
        %2890 = vmatprep.mubr.f32.mxu0 0.0
        %v2891 = vand.u32 %v764, 4294901760
        %2892 = vmatmul.mubr.f32.gmra.mxu0 %v2891
        %v2893 = vpop.f32.mrf.mxu0
        %v2894 = vadd.f32 %v2517, %v2893
        %v2895 = vpop.f32.mrf.mxu0
        %2896 = vmatprep.mubr.f32.mxu0 0.0
        %v2897 = vand.u32 %v767, 4294901760
        %2898 = vmatmul.mubr.f32.gmra.mxu0 %v2897
        %v2899 = vpop.f32.mrf.mxu0
        %v2900 = vadd.f32 %v2525, %v2899
        %v2901 = vpop.f32.mrf.mxu0
        %2902 = vmatprep.mubr.f32.mxu0 0.0
        %v2903 = vand.u32 %v770, 4294901760
        %2904 = vmatmul.mubr.f32.gmra.mxu0 %v2903
        %v2905 = vpop.f32.mrf.mxu0
        %v2906 = vadd.f32 %v2533, %v2905
        %v2907 = vpop.f32.mrf.mxu0
        %2908 = vmatprep.mubr.f32.mxu0 0.0
        %v2909 = vand.u32 %v773, 4294901760
        %2910 = vmatmul.mubr.f32.gmra.mxu0 %v2909
        %v2911 = vpop.f32.mrf.mxu0
        %v2912 = vadd.f32 %v2541, %v2911
        %v2913 = vpop.f32.mrf.mxu0
        %2914 = vmatprep.mubr.f32.mxu0 0.0
        %v2915 = vand.u32 %v776, 4294901760
        %2916 = vmatmul.mubr.f32.gmra.mxu0 %v2915
        %v2917 = vpop.f32.mrf.mxu0
        %v2918 = vadd.f32 %v2549, %v2917
        %v2919 = vpop.f32.mrf.mxu0
        %2920 = vmatprep.mubr.f32.mxu0 0.0
        %v2921 = vand.u32 %v779, 4294901760
        %2922 = vmatmul.mubr.f32.gmra.mxu0 %v2921
        %v2923 = vpop.f32.mrf.mxu0
        %v2924 = vadd.f32 %v2557, %v2923
        %v2925 = vpop.f32.mrf.mxu0
        %2926 = vmatprep.mubr.f32.mxu0 0.0
        %v2927 = vand.u32 %v782, 4294901760
        %2928 = vmatmul.mubr.f32.gmra.mxu0 %v2927
        %v2929 = vpop.f32.mrf.mxu0
        %v2930 = vadd.f32 %v2565, %v2929
        %v2931 = vpop.f32.mrf.mxu0
        %2932 = vdwg.mxu0
        %2933 = vmatprep.subr.mxu0 0.0
        %2934 = vmatpush1.msra.mxu0 0.0
        %2935 = vmatprep.subr.mxu0 0.0
        %2936 = vmatpush1.msra.mxu0 0.0
        %2937 = vmatprep.subr.mxu0 0.0
        %2938 = vmatpush1.msra.mxu0 0.0
        %2939 = vmatprep.subr.mxu0 0.0
        %2940 = vmatpush1.msra.mxu0 0.0
        %2941 = vmatprep.subr.mxu0 0.0
        %2942 = vmatpush1.msra.mxu0 0.0
        %2943 = vmatprep.subr.mxu0 0.0
        %2944 = vmatpush1.msra.mxu0 0.0
        %2945 = vmatprep.subr.mxu0 0.0
        %2946 = vmatpush1.msra.mxu0 0.0
        %2947 = vmatprep.subr.mxu0 0.0
        %2948 = vmatpush1.msra.mxu0 0.0
        %2949 = vmatprep.subr.mxu0 0.0
        %2950 = vmatpush1.msra.mxu0 0.0
        %2951 = vmatprep.subr.mxu0 0.0
        %2952 = vmatpush1.msra.mxu0 0.0
        %2953 = vmatprep.subr.mxu0 0.0
        %2954 = vmatpush1.msra.mxu0 0.0
        %2955 = vmatprep.subr.mxu0 0.0
        %2956 = vmatpush1.msra.mxu0 0.0
        %2957 = vmatprep.subr.mxu0 0.0
        %v2958 = vand.u32 %v611, 4294901760
        %2959 = vmatpush1.msra.mxu0 %v2958
        %2960 = vmatprep.subr.mxu0 0.0
        %v2961 = vand.u32 %v610, 4294901760
        %2962 = vmatpush1.msra.mxu0 %v2961
        %2963 = vmatprep.subr.mxu0 0.0
        %v2964 = vand.u32 %v609, 4294901760
        %2965 = vmatpush1.msra.mxu0 %v2964
        %2966 = vmatprep.subr.mxu0 0.0
        %v2967 = vand.u32 %v608, 4294901760
        %2968 = vmatpush1.msra.mxu0 %v2967
        %2969 = vmatprep.subr.mxu0 0.0
        %2970 = vmatpush2.msra.mxu0 0.0
        %2971 = vmatprep.subr.mxu0 0.0
        %2972 = vmatpush2.msra.mxu0 0.0
        %2973 = vmatprep.subr.mxu0 0.0
        %2974 = vmatpush2.msra.mxu0 0.0
        %2975 = vmatprep.subr.mxu0 0.0
        %2976 = vmatpush2.msra.mxu0 0.0
        %2977 = vmatprep.subr.mxu0 0.0
        %2978 = vmatpush2.msra.mxu0 0.0
        %2979 = vmatprep.subr.mxu0 0.0
        %2980 = vmatpush2.msra.mxu0 0.0
        %2981 = vmatprep.subr.mxu0 0.0
        %2982 = vmatpush2.msra.mxu0 0.0
        %2983 = vmatprep.subr.mxu0 0.0
        %2984 = vmatpush2.msra.mxu0 0.0
        %2985 = vmatprep.subr.mxu0 0.0
        %2986 = vmatpush2.msra.mxu0 0.0
        %2987 = vmatprep.subr.mxu0 0.0
        %2988 = vmatpush2.msra.mxu0 0.0
        %2989 = vmatprep.subr.mxu0 0.0
        %2990 = vmatpush2.msra.mxu0 0.0
        %2991 = vmatprep.subr.mxu0 0.0
        %2992 = vmatpush2.msra.mxu0 0.0
        %2993 = vmatprep.subr.mxu0 0.0
        %2994 = vmatpush2.msra.mxu0 0.0
        %2995 = vmatprep.subr.mxu0 0.0
        %2996 = vmatpush2.msra.mxu0 0.0
        %2997 = vmatprep.subr.mxu0 0.0
        %2998 = vmatpush2.msra.mxu0 0.0
        %2999 = vmatprep.subr.mxu0 0.0
        %3000 = vmatpush2.msra.mxu0 0.0
        %3001 = vmatprep.mubr.f32.mxu0 0.0
        %v3002 = vand.u32 %v641, 4294901760
        %3003 = vmatmul.mubr.f32.gmra.mxu0 %v3002
        %v3004 = vpop.f32.mrf.mxu0
        %v3005 = vadd.f32 %v2648, %v3004
        %v3006 = vpop.f32.mrf.mxu0
        %3007 = vmatprep.mubr.f32.mxu0 0.0
        %v3008 = vand.u32 %v644, 4294901760
        %3009 = vmatmul.mubr.f32.gmra.mxu0 %v3008
        %v3010 = vpop.f32.mrf.mxu0
        %v3011 = vadd.f32 %v2654, %v3010
        %v3012 = vpop.f32.mrf.mxu0
        %3013 = vmatprep.mubr.f32.mxu0 0.0
        %v3014 = vand.u32 %v647, 4294901760
        %3015 = vmatmul.mubr.f32.gmra.mxu0 %v3014
        %v3016 = vpop.f32.mrf.mxu0
        %v3017 = vadd.f32 %v2660, %v3016
        %v3018 = vpop.f32.mrf.mxu0
        %3019 = vmatprep.mubr.f32.mxu0 0.0
        %v3020 = vand.u32 %v650, 4294901760
        %3021 = vmatmul.mubr.f32.gmra.mxu0 %v3020
        %v3022 = vpop.f32.mrf.mxu0
        %v3023 = vadd.f32 %v2666, %v3022
        %v3024 = vpop.f32.mrf.mxu0
        %3025 = vmatprep.mubr.f32.mxu0 0.0
        %v3026 = vand.u32 %v653, 4294901760
        %3027 = vmatmul.mubr.f32.gmra.mxu0 %v3026
        %v3028 = vpop.f32.mrf.mxu0
        %v3029 = vadd.f32 %v2672, %v3028
        %v3030 = vpop.f32.mrf.mxu0
        %3031 = vmatprep.mubr.f32.mxu0 0.0
        %v3032 = vand.u32 %v656, 4294901760
        %3033 = vmatmul.mubr.f32.gmra.mxu0 %v3032
        %v3034 = vpop.f32.mrf.mxu0
        %v3035 = vadd.f32 %v2678, %v3034
        %v3036 = vpop.f32.mrf.mxu0
        %3037 = vmatprep.mubr.f32.mxu0 0.0
        %v3038 = vand.u32 %v659, 4294901760
        %3039 = vmatmul.mubr.f32.gmra.mxu0 %v3038
        %v3040 = vpop.f32.mrf.mxu0
        %v3041 = vadd.f32 %v2684, %v3040
        %v3042 = vpop.f32.mrf.mxu0
        %3043 = vmatprep.mubr.f32.mxu0 0.0
        %v3044 = vand.u32 %v662, 4294901760
        %3045 = vmatmul.mubr.f32.gmra.mxu0 %v3044
        %v3046 = vpop.f32.mrf.mxu0
        %v3047 = vadd.f32 %v2690, %v3046
        %v3048 = vpop.f32.mrf.mxu0
        %3049 = vmatprep.mubr.f32.mxu0 0.0
        %v3050 = vand.u32 %v665, 4294901760
        %3051 = vmatmul.mubr.f32.gmra.mxu0 %v3050
        %v3052 = vpop.f32.mrf.mxu0
        %v3053 = vadd.f32 %v2696, %v3052
        %v3054 = vpop.f32.mrf.mxu0
        %3055 = vmatprep.mubr.f32.mxu0 0.0
        %v3056 = vand.u32 %v668, 4294901760
        %3057 = vmatmul.mubr.f32.gmra.mxu0 %v3056
        %v3058 = vpop.f32.mrf.mxu0
        %v3059 = vadd.f32 %v2702, %v3058
        %v3060 = vpop.f32.mrf.mxu0
        %3061 = vmatprep.mubr.f32.mxu0 0.0
        %v3062 = vand.u32 %v671, 4294901760
        %3063 = vmatmul.mubr.f32.gmra.mxu0 %v3062
        %v3064 = vpop.f32.mrf.mxu0
        %v3065 = vadd.f32 %v2708, %v3064
        %v3066 = vpop.f32.mrf.mxu0
        %3067 = vmatprep.mubr.f32.mxu0 0.0
        %v3068 = vand.u32 %v674, 4294901760
        %3069 = vmatmul.mubr.f32.gmra.mxu0 %v3068
        %v3070 = vpop.f32.mrf.mxu0
        %v3071 = vadd.f32 %v2714, %v3070
        %v3072 = vpop.f32.mrf.mxu0
        %3073 = vmatprep.mubr.f32.mxu0 0.0
        %v3074 = vand.u32 %v677, 4294901760
        %3075 = vmatmul.mubr.f32.gmra.mxu0 %v3074
        %v3076 = vpop.f32.mrf.mxu0
        %v3077 = vadd.f32 %v2720, %v3076
        %v3078 = vpop.f32.mrf.mxu0
        %3079 = vmatprep.mubr.f32.mxu0 0.0
        %v3080 = vand.u32 %v680, 4294901760
        %3081 = vmatmul.mubr.f32.gmra.mxu0 %v3080
        %v3082 = vpop.f32.mrf.mxu0
        %v3083 = vadd.f32 %v2726, %v3082
        %v3084 = vpop.f32.mrf.mxu0
        %3085 = vmatprep.mubr.f32.mxu0 0.0
        %v3086 = vand.u32 %v683, 4294901760
        %3087 = vmatmul.mubr.f32.gmra.mxu0 %v3086
        %v3088 = vpop.f32.mrf.mxu0
        %v3089 = vadd.f32 %v2732, %v3088
        %v3090 = vpop.f32.mrf.mxu0
        %3091 = vmatprep.mubr.f32.mxu0 0.0
        %v3092 = vand.u32 %v686, 4294901760
        %3093 = vmatmul.mubr.f32.gmra.mxu0 %v3092
        %v3094 = vpop.f32.mrf.mxu0
        %v3095 = vadd.f32 %v2738, %v3094
        %v3096 = vpop.f32.mrf.mxu0
        %3097 = vmatprep.mubr.f32.mxu0 0.0
        %v3098 = vand.u32 %v689, 4294901760
        %3099 = vmatmul.mubr.f32.gmra.mxu0 %v3098
        %v3100 = vpop.f32.mrf.mxu0
        %v3101 = vadd.f32 %v2744, %v3100
        %v3102 = vpop.f32.mrf.mxu0
        %3103 = vmatprep.mubr.f32.mxu0 0.0
        %v3104 = vand.u32 %v692, 4294901760
        %3105 = vmatmul.mubr.f32.gmra.mxu0 %v3104
        %v3106 = vpop.f32.mrf.mxu0
        %v3107 = vadd.f32 %v2750, %v3106
        %v3108 = vpop.f32.mrf.mxu0
        %3109 = vmatprep.mubr.f32.mxu0 0.0
        %v3110 = vand.u32 %v695, 4294901760
        %3111 = vmatmul.mubr.f32.gmra.mxu0 %v3110
        %v3112 = vpop.f32.mrf.mxu0
        %v3113 = vadd.f32 %v2756, %v3112
        %v3114 = vpop.f32.mrf.mxu0
        %3115 = vmatprep.mubr.f32.mxu0 0.0
        %v3116 = vand.u32 %v698, 4294901760
        %3117 = vmatmul.mubr.f32.gmra.mxu0 %v3116
        %v3118 = vpop.f32.mrf.mxu0
        %v3119 = vadd.f32 %v2762, %v3118
        %v3120 = vpop.f32.mrf.mxu0
        %3121 = vmatprep.mubr.f32.mxu0 0.0
        %v3122 = vand.u32 %v701, 4294901760
        %3123 = vmatmul.mubr.f32.gmra.mxu0 %v3122
        %v3124 = vpop.f32.mrf.mxu0
        %v3125 = vadd.f32 %v2768, %v3124
        %v3126 = vpop.f32.mrf.mxu0
        %3127 = vmatprep.mubr.f32.mxu0 0.0
        %v3128 = vand.u32 %v704, 4294901760
        %3129 = vmatmul.mubr.f32.gmra.mxu0 %v3128
        %v3130 = vpop.f32.mrf.mxu0
        %v3131 = vadd.f32 %v2774, %v3130
        %v3132 = vpop.f32.mrf.mxu0
        %3133 = vmatprep.mubr.f32.mxu0 0.0
        %v3134 = vand.u32 %v707, 4294901760
        %3135 = vmatmul.mubr.f32.gmra.mxu0 %v3134
        %v3136 = vpop.f32.mrf.mxu0
        %v3137 = vadd.f32 %v2780, %v3136
        %v3138 = vpop.f32.mrf.mxu0
        %3139 = vmatprep.mubr.f32.mxu0 0.0
        %v3140 = vand.u32 %v710, 4294901760
        %3141 = vmatmul.mubr.f32.gmra.mxu0 %v3140
        %v3142 = vpop.f32.mrf.mxu0
        %v3143 = vadd.f32 %v2786, %v3142
        %v3144 = vpop.f32.mrf.mxu0
        %3145 = vmatprep.mubr.f32.mxu0 0.0
        %v3146 = vand.u32 %v713, 4294901760
        %3147 = vmatmul.mubr.f32.gmra.mxu0 %v3146
        %v3148 = vpop.f32.mrf.mxu0
        %v3149 = vadd.f32 %v2792, %v3148
        %v3150 = vpop.f32.mrf.mxu0
        %3151 = vmatprep.mubr.f32.mxu0 0.0
        %v3152 = vand.u32 %v716, 4294901760
        %3153 = vmatmul.mubr.f32.gmra.mxu0 %v3152
        %v3154 = vpop.f32.mrf.mxu0
        %v3155 = vadd.f32 %v2798, %v3154
        %v3156 = vpop.f32.mrf.mxu0
        %3157 = vmatprep.mubr.f32.mxu0 0.0
        %v3158 = vand.u32 %v719, 4294901760
        %3159 = vmatmul.mubr.f32.gmra.mxu0 %v3158
        %v3160 = vpop.f32.mrf.mxu0
        %v3161 = vadd.f32 %v2804, %v3160
        %v3162 = vpop.f32.mrf.mxu0
        %3163 = vmatprep.mubr.f32.mxu0 0.0
        %v3164 = vand.u32 %v722, 4294901760
        %3165 = vmatmul.mubr.f32.gmra.mxu0 %v3164
        %v3166 = vpop.f32.mrf.mxu0
        %v3167 = vadd.f32 %v2810, %v3166
        %v3168 = vpop.f32.mrf.mxu0
        %3169 = vmatprep.mubr.f32.mxu0 0.0
        %v3170 = vand.u32 %v725, 4294901760
        %3171 = vmatmul.mubr.f32.gmra.mxu0 %v3170
        %v3172 = vpop.f32.mrf.mxu0
        %v3173 = vadd.f32 %v2816, %v3172
        %v3174 = vpop.f32.mrf.mxu0
        %3175 = vmatprep.mubr.f32.mxu0 0.0
        %v3176 = vand.u32 %v728, 4294901760
        %3177 = vmatmul.mubr.f32.gmra.mxu0 %v3176
        %v3178 = vpop.f32.mrf.mxu0
        %v3179 = vadd.f32 %v2822, %v3178
        %v3180 = vpop.f32.mrf.mxu0
        %3181 = vmatprep.mubr.f32.mxu0 0.0
        %v3182 = vand.u32 %v731, 4294901760
        %3183 = vmatmul.mubr.f32.gmra.mxu0 %v3182
        %v3184 = vpop.f32.mrf.mxu0
        %v3185 = vadd.f32 %v2828, %v3184
        %v3186 = vpop.f32.mrf.mxu0
        %3187 = vmatprep.mubr.f32.mxu0 0.0
        %v3188 = vand.u32 %v734, 4294901760
        %3189 = vmatmul.mubr.f32.gmra.mxu0 %v3188
        %v3190 = vpop.f32.mrf.mxu0
        %v3191 = vadd.f32 %v2834, %v3190
        %v3192 = vpop.f32.mrf.mxu0
        %3193 = vmatprep.mubr.f32.mxu0 0.0
        %v3194 = vand.u32 %v737, 4294901760
        %3195 = vmatmul.mubr.f32.gmra.mxu0 %v3194
        %v3196 = vpop.f32.mrf.mxu0
        %v3197 = vadd.f32 %v2840, %v3196
        %v3198 = vpop.f32.mrf.mxu0
        %3199 = vmatprep.mubr.f32.mxu0 0.0
        %v3200 = vand.u32 %v740, 4294901760
        %3201 = vmatmul.mubr.f32.gmra.mxu0 %v3200
        %v3202 = vpop.f32.mrf.mxu0
        %v3203 = vadd.f32 %v2846, %v3202
        %v3204 = vpop.f32.mrf.mxu0
        %3205 = vmatprep.mubr.f32.mxu0 0.0
        %v3206 = vand.u32 %v743, 4294901760
        %3207 = vmatmul.mubr.f32.gmra.mxu0 %v3206
        %v3208 = vpop.f32.mrf.mxu0
        %v3209 = vadd.f32 %v2852, %v3208
        %v3210 = vpop.f32.mrf.mxu0
        %3211 = vmatprep.mubr.f32.mxu0 0.0
        %v3212 = vand.u32 %v746, 4294901760
        %3213 = vmatmul.mubr.f32.gmra.mxu0 %v3212
        %v3214 = vpop.f32.mrf.mxu0
        %v3215 = vadd.f32 %v2858, %v3214
        %v3216 = vpop.f32.mrf.mxu0
        %3217 = vmatprep.mubr.f32.mxu0 0.0
        %v3218 = vand.u32 %v749, 4294901760
        %3219 = vmatmul.mubr.f32.gmra.mxu0 %v3218
        %v3220 = vpop.f32.mrf.mxu0
        %v3221 = vadd.f32 %v2864, %v3220
        %v3222 = vpop.f32.mrf.mxu0
        %3223 = vmatprep.mubr.f32.mxu0 0.0
        %v3224 = vand.u32 %v752, 4294901760
        %3225 = vmatmul.mubr.f32.gmra.mxu0 %v3224
        %v3226 = vpop.f32.mrf.mxu0
        %v3227 = vadd.f32 %v2870, %v3226
        %v3228 = vpop.f32.mrf.mxu0
        %3229 = vmatprep.mubr.f32.mxu0 0.0
        %v3230 = vand.u32 %v755, 4294901760
        %3231 = vmatmul.mubr.f32.gmra.mxu0 %v3230
        %v3232 = vpop.f32.mrf.mxu0
        %v3233 = vadd.f32 %v2876, %v3232
        %v3234 = vpop.f32.mrf.mxu0
        %3235 = vmatprep.mubr.f32.mxu0 0.0
        %v3236 = vand.u32 %v758, 4294901760
        %3237 = vmatmul.mubr.f32.gmra.mxu0 %v3236
        %v3238 = vpop.f32.mrf.mxu0
        %v3239 = vadd.f32 %v2882, %v3238
        %v3240 = vpop.f32.mrf.mxu0
        %3241 = vmatprep.mubr.f32.mxu0 0.0
        %v3242 = vand.u32 %v761, 4294901760
        %3243 = vmatmul.mubr.f32.gmra.mxu0 %v3242
        %v3244 = vpop.f32.mrf.mxu0
        %v3245 = vadd.f32 %v2888, %v3244
        %v3246 = vpop.f32.mrf.mxu0
        %3247 = vmatprep.mubr.f32.mxu0 0.0
        %v3248 = vand.u32 %v764, 4294901760
        %3249 = vmatmul.mubr.f32.gmra.mxu0 %v3248
        %v3250 = vpop.f32.mrf.mxu0
        %v3251 = vadd.f32 %v2894, %v3250
        %v3252 = vpop.f32.mrf.mxu0
        %3253 = vmatprep.mubr.f32.mxu0 0.0
        %v3254 = vand.u32 %v767, 4294901760
        %3255 = vmatmul.mubr.f32.gmra.mxu0 %v3254
        %v3256 = vpop.f32.mrf.mxu0
        %v3257 = vadd.f32 %v2900, %v3256
        %v3258 = vpop.f32.mrf.mxu0
        %3259 = vmatprep.mubr.f32.mxu0 0.0
        %v3260 = vand.u32 %v770, 4294901760
        %3261 = vmatmul.mubr.f32.gmra.mxu0 %v3260
        %v3262 = vpop.f32.mrf.mxu0
        %v3263 = vadd.f32 %v2906, %v3262
        %v3264 = vpop.f32.mrf.mxu0
        %3265 = vmatprep.mubr.f32.mxu0 0.0
        %v3266 = vand.u32 %v773, 4294901760
        %3267 = vmatmul.mubr.f32.gmra.mxu0 %v3266
        %v3268 = vpop.f32.mrf.mxu0
        %v3269 = vadd.f32 %v2912, %v3268
        %v3270 = vpop.f32.mrf.mxu0
        %3271 = vmatprep.mubr.f32.mxu0 0.0
        %v3272 = vand.u32 %v776, 4294901760
        %3273 = vmatmul.mubr.f32.gmra.mxu0 %v3272
        %v3274 = vpop.f32.mrf.mxu0
        %v3275 = vadd.f32 %v2918, %v3274
        %v3276 = vpop.f32.mrf.mxu0
        %3277 = vmatprep.mubr.f32.mxu0 0.0
        %v3278 = vand.u32 %v779, 4294901760
        %3279 = vmatmul.mubr.f32.gmra.mxu0 %v3278
        %v3280 = vpop.f32.mrf.mxu0
        %v3281 = vadd.f32 %v2924, %v3280
        %v3282 = vpop.f32.mrf.mxu0
        %3283 = vmatprep.mubr.f32.mxu0 0.0
        %v3284 = vand.u32 %v782, 4294901760
        %3285 = vmatmul.mubr.f32.gmra.mxu0 %v3284
        %v3286 = vpop.f32.mrf.mxu0
        %v3287 = vadd.f32 %v2930, %v3286
        %v3288 = vpop.f32.mrf.mxu0
        %3289 = vdwg.mxu0
        %v3290 = vtanh.pop %v3005
        %v3291 = vtanh.pop %v3011
        %v3292 = vtanh.pop %v3017
        %v3293 = vtanh.pop %v3023
        %v3294 = vtanh.pop %v3029
        %v3295 = vtanh.pop %v3035
        %v3296 = vtanh.pop %v3041
        %v3297 = vtanh.pop %v3047
        %v3298 = vtanh.pop %v3053
        %v3299 = vtanh.pop %v3059
        %v3300 = vtanh.pop %v3065
        %v3301 = vtanh.pop %v3071
        %v3302 = vtanh.pop %v3077
        %v3303 = vtanh.pop %v3083
        %v3304 = vtanh.pop %v3089
        %v3305 = vtanh.pop %v3095
        %v3306 = vtanh.pop %v3101
        %v3307 = vtanh.pop %v3107
        %v3308 = vtanh.pop %v3113
        %v3309 = vtanh.pop %v3119
        %v3310 = vtanh.pop %v3125
        %v3311 = vtanh.pop %v3131
        %v3312 = vtanh.pop %v3137
        %v3313 = vtanh.pop %v3143
        %v3314 = vtanh.pop %v3149
        %v3315 = vtanh.pop %v3155
        %v3316 = vtanh.pop %v3161
        %v3317 = vtanh.pop %v3167
        %v3318 = vtanh.pop %v3173
        %v3319 = vtanh.pop %v3179
        %v3320 = vtanh.pop %v3185
        %v3321 = vtanh.pop %v3191
        %v3322 = vtanh.pop %v3197
        %v3323 = vtanh.pop %v3203
        %v3324 = vtanh.pop %v3209
        %v3325 = vtanh.pop %v3215
        %v3326 = vtanh.pop %v3221
        %v3327 = vtanh.pop %v3227
        %v3328 = vtanh.pop %v3233
        %v3329 = vtanh.pop %v3239
        %v3330 = vtanh.pop %v3245
        %v3331 = vtanh.pop %v3251
        %v3332 = vtanh.pop %v3257
        %v3333 = vtanh.pop %v3263
        %v3334 = vtanh.pop %v3269
        %v3335 = vtanh.pop %v3275
        %v3336 = vtanh.pop %v3281
        %v3337 = vtanh.pop %v3287
        %v3338 = vlaneseq
        %v3339 = vshrl.u32 %v3338, 7
        %v3340 = vsub.s32 0, %v3339
        %v3341 = vrot.slane %v625, %v3340
        %vm3342 = vcmask 523264
        %v3344 = vsel %vm3342, %v3290, 0
        %v3347 = vsel %vm3342, %v3291, 0
        %v3350 = vsel %vm3342, %v3292, 0
        %v3353 = vsel %vm3342, %v3293, 0
        %v3356 = vsel %vm3342, %v3294, 0
        %v3359 = vsel %vm3342, %v3295, 0
        %v3362 = vsel %vm3342, %v3296, 0
        %v3365 = vsel %vm3342, %v3297, 0
        %v3368 = vsel %vm3342, %v3298, 0
        %v3371 = vsel %vm3342, %v3299, 0
        %v3374 = vsel %vm3342, %v3300, 0
        %v3377 = vsel %vm3342, %v3301, 0
        %v3380 = vsel %vm3342, %v3302, 0
        %v3383 = vsel %vm3342, %v3303, 0
        %v3386 = vsel %vm3342, %v3304, 0
        %v3389 = vsel %vm3342, %v3305, 0
        %v3392 = vsel %vm3342, %v3306, 0
        %v3395 = vsel %vm3342, %v3307, 0
        %v3398 = vsel %vm3342, %v3308, 0
        %v3401 = vsel %vm3342, %v3309, 0
        %v3404 = vsel %vm3342, %v3310, 0
        %v3407 = vsel %vm3342, %v3311, 0
        %v3410 = vsel %vm3342, %v3312, 0
        %v3413 = vsel %vm3342, %v3313, 0
        %v3416 = vsel %vm3342, %v3314, 0
        %v3419 = vsel %vm3342, %v3315, 0
        %v3422 = vsel %vm3342, %v3316, 0
        %v3425 = vsel %vm3342, %v3317, 0
        %v3428 = vsel %vm3342, %v3318, 0
        %v3431 = vsel %vm3342, %v3319, 0
        %v3434 = vsel %vm3342, %v3320, 0
        %v3437 = vsel %vm3342, %v3321, 0
        %v3440 = vsel %vm3342, %v3322, 0
        %v3443 = vsel %vm3342, %v3323, 0
        %v3446 = vsel %vm3342, %v3324, 0
        %v3449 = vsel %vm3342, %v3325, 0
        %v3452 = vsel %vm3342, %v3326, 0
        %v3455 = vsel %vm3342, %v3327, 0
        %v3458 = vsel %vm3342, %v3328, 0
        %v3461 = vsel %vm3342, %v3329, 0
        %v3464 = vsel %vm3342, %v3330, 0
        %v3467 = vsel %vm3342, %v3331, 0
        %v3470 = vsel %vm3342, %v3332, 0
        %v3473 = vsel %vm3342, %v3333, 0
        %v3476 = vsel %vm3342, %v3334, 0
        %v3479 = vsel %vm3342, %v3335, 0
        %v3482 = vsel %vm3342, %v3336, 0
        %v3485 = vsel %vm3342, %v3337, 0
        %3487 = vmatprep.subr.mxu0 0.0
        %3488 = vmatpush1.msra.mxu0 0.0
        %3489 = vmatprep.subr.mxu0 0.0
        %3490 = vmatpush1.msra.mxu0 0.0
        %3491 = vmatprep.subr.mxu0 0.0
        %3492 = vmatpush1.msra.mxu0 0.0
        %3493 = vmatprep.subr.mxu0 0.0
        %3494 = vmatpush1.msra.mxu0 0.0
        %3495 = vmatprep.subr.mxu0 0.0
        %3496 = vmatpush1.msra.mxu0 0.0
        %3497 = vmatprep.subr.mxu0 0.0
        %3498 = vmatpush1.msra.mxu0 0.0
        %3499 = vmatprep.subr.mxu0 0.0
        %3500 = vmatpush1.msra.mxu0 0.0
        %3501 = vmatprep.subr.mxu0 0.0
        %3502 = vmatpush1.msra.mxu0 0.0
        %3503 = vmatprep.subr.mxu0 0.0
        %v3504 = vand.u32 %v624, 4294901760
        %3505 = vmatpush1.msra.mxu0 %v3504
        %3506 = vmatprep.subr.mxu0 0.0
        %v3507 = vand.u32 %v623, 4294901760
        %3508 = vmatpush1.msra.mxu0 %v3507
        %3509 = vmatprep.subr.mxu0 0.0
        %v3510 = vand.u32 %v622, 4294901760
        %3511 = vmatpush1.msra.mxu0 %v3510
        %3512 = vmatprep.subr.mxu0 0.0
        %v3513 = vand.u32 %v621, 4294901760
        %3514 = vmatpush1.msra.mxu0 %v3513
        %3515 = vmatprep.subr.mxu0 0.0
        %v3516 = vand.u32 %v620, 4294901760
        %3517 = vmatpush1.msra.mxu0 %v3516
        %3518 = vmatprep.subr.mxu0 0.0
        %v3519 = vand.u32 %v619, 4294901760
        %3520 = vmatpush1.msra.mxu0 %v3519
        %3521 = vmatprep.subr.mxu0 0.0
        %v3522 = vand.u32 %v618, 4294901760
        %3523 = vmatpush1.msra.mxu0 %v3522
        %3524 = vmatprep.subr.mxu0 0.0
        %v3525 = vand.u32 %v617, 4294901760
        %3526 = vmatpush1.msra.mxu0 %v3525
        %3527 = vmatprep.subr.mxu0 0.0
        %3528 = vmatpush2.msra.mxu0 0.0
        %3529 = vmatprep.subr.mxu0 0.0
        %3530 = vmatpush2.msra.mxu0 0.0
        %3531 = vmatprep.subr.mxu0 0.0
        %3532 = vmatpush2.msra.mxu0 0.0
        %3533 = vmatprep.subr.mxu0 0.0
        %3534 = vmatpush2.msra.mxu0 0.0
        %3535 = vmatprep.subr.mxu0 0.0
        %3536 = vmatpush2.msra.mxu0 0.0
        %3537 = vmatprep.subr.mxu0 0.0
        %3538 = vmatpush2.msra.mxu0 0.0
        %3539 = vmatprep.subr.mxu0 0.0
        %3540 = vmatpush2.msra.mxu0 0.0
        %3541 = vmatprep.subr.mxu0 0.0
        %3542 = vmatpush2.msra.mxu0 0.0
        %3543 = vmatprep.subr.mxu0 0.0
        %3544 = vmatpush2.msra.mxu0 0.0
        %3545 = vmatprep.subr.mxu0 0.0
        %3546 = vmatpush2.msra.mxu0 0.0
        %3547 = vmatprep.subr.mxu0 0.0
        %3548 = vmatpush2.msra.mxu0 0.0
        %3549 = vmatprep.subr.mxu0 0.0
        %3550 = vmatpush2.msra.mxu0 0.0
        %3551 = vmatprep.subr.mxu0 0.0
        %3552 = vmatpush2.msra.mxu0 0.0
        %3553 = vmatprep.subr.mxu0 0.0
        %3554 = vmatpush2.msra.mxu0 0.0
        %3555 = vmatprep.subr.mxu0 0.0
        %3556 = vmatpush2.msra.mxu0 0.0
        %3557 = vmatprep.subr.mxu0 0.0
        %3558 = vmatpush2.msra.mxu0 0.0
        %3559 = vmatprep.mubr.f32.mxu0 0.0
        %v3560 = vand.u32 %v3344, 4294901760
        %v3561 = vsub.f32 %v3344, %v3560
        %v3562 = vand.u32 %v3561, 4294901760
        %v3563 = vsub.f32 %v3561, %v3562
        %v3564 = vand.u32 %v3563, 4294901760
        %3565 = vmatmul.mubr.f32.gmra.mxu0 %v3564
        %v3566 = vpop.f32.mrf.mxu0
        %v3567 = vadd.f32 %v3341, %v3566
        %v3568 = vpop.f32.mrf.mxu0
        %3569 = vmatprep.mubr.f32.mxu0 0.0
        %v3570 = vand.u32 %v3347, 4294901760
        %v3571 = vsub.f32 %v3347, %v3570
        %v3572 = vand.u32 %v3571, 4294901760
        %v3573 = vsub.f32 %v3571, %v3572
        %v3574 = vand.u32 %v3573, 4294901760
        %3575 = vmatmul.mubr.f32.gmra.mxu0 %v3574
        %v3576 = vpop.f32.mrf.mxu0
        %v3577 = vadd.f32 %v3341, %v3576
        %v3578 = vpop.f32.mrf.mxu0
        %3579 = vmatprep.mubr.f32.mxu0 0.0
        %v3580 = vand.u32 %v3350, 4294901760
        %v3581 = vsub.f32 %v3350, %v3580
        %v3582 = vand.u32 %v3581, 4294901760
        %v3583 = vsub.f32 %v3581, %v3582
        %v3584 = vand.u32 %v3583, 4294901760
        %3585 = vmatmul.mubr.f32.gmra.mxu0 %v3584
        %v3586 = vpop.f32.mrf.mxu0
        %v3587 = vadd.f32 %v3341, %v3586
        %v3588 = vpop.f32.mrf.mxu0
        %3589 = vmatprep.mubr.f32.mxu0 0.0
        %v3590 = vand.u32 %v3353, 4294901760
        %v3591 = vsub.f32 %v3353, %v3590
        %v3592 = vand.u32 %v3591, 4294901760
        %v3593 = vsub.f32 %v3591, %v3592
        %v3594 = vand.u32 %v3593, 4294901760
        %3595 = vmatmul.mubr.f32.gmra.mxu0 %v3594
        %v3596 = vpop.f32.mrf.mxu0
        %v3597 = vadd.f32 %v3341, %v3596
        %v3598 = vpop.f32.mrf.mxu0
        %3599 = vmatprep.mubr.f32.mxu0 0.0
        %v3600 = vand.u32 %v3356, 4294901760
        %v3601 = vsub.f32 %v3356, %v3600
        %v3602 = vand.u32 %v3601, 4294901760
        %v3603 = vsub.f32 %v3601, %v3602
        %v3604 = vand.u32 %v3603, 4294901760
        %3605 = vmatmul.mubr.f32.gmra.mxu0 %v3604
        %v3606 = vpop.f32.mrf.mxu0
        %v3607 = vadd.f32 %v3341, %v3606
        %v3608 = vpop.f32.mrf.mxu0
        %3609 = vmatprep.mubr.f32.mxu0 0.0
        %v3610 = vand.u32 %v3359, 4294901760
        %v3611 = vsub.f32 %v3359, %v3610
        %v3612 = vand.u32 %v3611, 4294901760
        %v3613 = vsub.f32 %v3611, %v3612
        %v3614 = vand.u32 %v3613, 4294901760
        %3615 = vmatmul.mubr.f32.gmra.mxu0 %v3614
        %v3616 = vpop.f32.mrf.mxu0
        %v3617 = vadd.f32 %v3341, %v3616
        %v3618 = vpop.f32.mrf.mxu0
        %3619 = vmatprep.mubr.f32.mxu0 0.0
        %v3620 = vand.u32 %v3362, 4294901760
        %v3621 = vsub.f32 %v3362, %v3620
        %v3622 = vand.u32 %v3621, 4294901760
        %v3623 = vsub.f32 %v3621, %v3622
        %v3624 = vand.u32 %v3623, 4294901760
        %3625 = vmatmul.mubr.f32.gmra.mxu0 %v3624
        %v3626 = vpop.f32.mrf.mxu0
        %v3627 = vadd.f32 %v3341, %v3626
        %v3628 = vpop.f32.mrf.mxu0
        %3629 = vmatprep.mubr.f32.mxu0 0.0
        %v3630 = vand.u32 %v3365, 4294901760
        %v3631 = vsub.f32 %v3365, %v3630
        %v3632 = vand.u32 %v3631, 4294901760
        %v3633 = vsub.f32 %v3631, %v3632
        %v3634 = vand.u32 %v3633, 4294901760
        %3635 = vmatmul.mubr.f32.gmra.mxu0 %v3634
        %v3636 = vpop.f32.mrf.mxu0
        %v3637 = vadd.f32 %v3341, %v3636
        %v3638 = vpop.f32.mrf.mxu0
        %3639 = vmatprep.mubr.f32.mxu0 0.0
        %v3640 = vand.u32 %v3368, 4294901760
        %v3641 = vsub.f32 %v3368, %v3640
        %v3642 = vand.u32 %v3641, 4294901760
        %v3643 = vsub.f32 %v3641, %v3642
        %v3644 = vand.u32 %v3643, 4294901760
        %3645 = vmatmul.mubr.f32.gmra.mxu0 %v3644
        %v3646 = vpop.f32.mrf.mxu0
        %v3647 = vadd.f32 %v3341, %v3646
        %v3648 = vpop.f32.mrf.mxu0
        %3649 = vmatprep.mubr.f32.mxu0 0.0
        %v3650 = vand.u32 %v3371, 4294901760
        %v3651 = vsub.f32 %v3371, %v3650
        %v3652 = vand.u32 %v3651, 4294901760
        %v3653 = vsub.f32 %v3651, %v3652
        %v3654 = vand.u32 %v3653, 4294901760
        %3655 = vmatmul.mubr.f32.gmra.mxu0 %v3654
        %v3656 = vpop.f32.mrf.mxu0
        %v3657 = vadd.f32 %v3341, %v3656
        %v3658 = vpop.f32.mrf.mxu0
        %3659 = vmatprep.mubr.f32.mxu0 0.0
        %v3660 = vand.u32 %v3374, 4294901760
        %v3661 = vsub.f32 %v3374, %v3660
        %v3662 = vand.u32 %v3661, 4294901760
        %v3663 = vsub.f32 %v3661, %v3662
        %v3664 = vand.u32 %v3663, 4294901760
        %3665 = vmatmul.mubr.f32.gmra.mxu0 %v3664
        %v3666 = vpop.f32.mrf.mxu0
        %v3667 = vadd.f32 %v3341, %v3666
        %v3668 = vpop.f32.mrf.mxu0
        %3669 = vmatprep.mubr.f32.mxu0 0.0
        %v3670 = vand.u32 %v3377, 4294901760
        %v3671 = vsub.f32 %v3377, %v3670
        %v3672 = vand.u32 %v3671, 4294901760
        %v3673 = vsub.f32 %v3671, %v3672
        %v3674 = vand.u32 %v3673, 4294901760
        %3675 = vmatmul.mubr.f32.gmra.mxu0 %v3674
        %v3676 = vpop.f32.mrf.mxu0
        %v3677 = vadd.f32 %v3341, %v3676
        %v3678 = vpop.f32.mrf.mxu0
        %3679 = vmatprep.mubr.f32.mxu0 0.0
        %v3680 = vand.u32 %v3380, 4294901760
        %v3681 = vsub.f32 %v3380, %v3680
        %v3682 = vand.u32 %v3681, 4294901760
        %v3683 = vsub.f32 %v3681, %v3682
        %v3684 = vand.u32 %v3683, 4294901760
        %3685 = vmatmul.mubr.f32.gmra.mxu0 %v3684
        %v3686 = vpop.f32.mrf.mxu0
        %v3687 = vadd.f32 %v3341, %v3686
        %v3688 = vpop.f32.mrf.mxu0
        %3689 = vmatprep.mubr.f32.mxu0 0.0
        %v3690 = vand.u32 %v3383, 4294901760
        %v3691 = vsub.f32 %v3383, %v3690
        %v3692 = vand.u32 %v3691, 4294901760
        %v3693 = vsub.f32 %v3691, %v3692
        %v3694 = vand.u32 %v3693, 4294901760
        %3695 = vmatmul.mubr.f32.gmra.mxu0 %v3694
        %v3696 = vpop.f32.mrf.mxu0
        %v3697 = vadd.f32 %v3341, %v3696
        %v3698 = vpop.f32.mrf.mxu0
        %3699 = vmatprep.mubr.f32.mxu0 0.0
        %v3700 = vand.u32 %v3386, 4294901760
        %v3701 = vsub.f32 %v3386, %v3700
        %v3702 = vand.u32 %v3701, 4294901760
        %v3703 = vsub.f32 %v3701, %v3702
        %v3704 = vand.u32 %v3703, 4294901760
        %3705 = vmatmul.mubr.f32.gmra.mxu0 %v3704
        %v3706 = vpop.f32.mrf.mxu0
        %v3707 = vadd.f32 %v3341, %v3706
        %v3708 = vpop.f32.mrf.mxu0
        %3709 = vmatprep.mubr.f32.mxu0 0.0
        %v3710 = vand.u32 %v3389, 4294901760
        %v3711 = vsub.f32 %v3389, %v3710
        %v3712 = vand.u32 %v3711, 4294901760
        %v3713 = vsub.f32 %v3711, %v3712
        %v3714 = vand.u32 %v3713, 4294901760
        %3715 = vmatmul.mubr.f32.gmra.mxu0 %v3714
        %v3716 = vpop.f32.mrf.mxu0
        %v3717 = vadd.f32 %v3341, %v3716
        %v3718 = vpop.f32.mrf.mxu0
        %3719 = vmatprep.mubr.f32.mxu0 0.0
        %v3720 = vand.u32 %v3392, 4294901760
        %v3721 = vsub.f32 %v3392, %v3720
        %v3722 = vand.u32 %v3721, 4294901760
        %v3723 = vsub.f32 %v3721, %v3722
        %v3724 = vand.u32 %v3723, 4294901760
        %3725 = vmatmul.mubr.f32.gmra.mxu0 %v3724
        %v3726 = vpop.f32.mrf.mxu0
        %v3727 = vadd.f32 %v3341, %v3726
        %v3728 = vpop.f32.mrf.mxu0
        %3729 = vmatprep.mubr.f32.mxu0 0.0
        %v3730 = vand.u32 %v3395, 4294901760
        %v3731 = vsub.f32 %v3395, %v3730
        %v3732 = vand.u32 %v3731, 4294901760
        %v3733 = vsub.f32 %v3731, %v3732
        %v3734 = vand.u32 %v3733, 4294901760
        %3735 = vmatmul.mubr.f32.gmra.mxu0 %v3734
        %v3736 = vpop.f32.mrf.mxu0
        %v3737 = vadd.f32 %v3341, %v3736
        %v3738 = vpop.f32.mrf.mxu0
        %3739 = vmatprep.mubr.f32.mxu0 0.0
        %v3740 = vand.u32 %v3398, 4294901760
        %v3741 = vsub.f32 %v3398, %v3740
        %v3742 = vand.u32 %v3741, 4294901760
        %v3743 = vsub.f32 %v3741, %v3742
        %v3744 = vand.u32 %v3743, 4294901760
        %3745 = vmatmul.mubr.f32.gmra.mxu0 %v3744
        %v3746 = vpop.f32.mrf.mxu0
        %v3747 = vadd.f32 %v3341, %v3746
        %v3748 = vpop.f32.mrf.mxu0
        %3749 = vmatprep.mubr.f32.mxu0 0.0
        %v3750 = vand.u32 %v3401, 4294901760
        %v3751 = vsub.f32 %v3401, %v3750
        %v3752 = vand.u32 %v3751, 4294901760
        %v3753 = vsub.f32 %v3751, %v3752
        %v3754 = vand.u32 %v3753, 4294901760
        %3755 = vmatmul.mubr.f32.gmra.mxu0 %v3754
        %v3756 = vpop.f32.mrf.mxu0
        %v3757 = vadd.f32 %v3341, %v3756
        %v3758 = vpop.f32.mrf.mxu0
        %3759 = vmatprep.mubr.f32.mxu0 0.0
        %v3760 = vand.u32 %v3404, 4294901760
        %v3761 = vsub.f32 %v3404, %v3760
        %v3762 = vand.u32 %v3761, 4294901760
        %v3763 = vsub.f32 %v3761, %v3762
        %v3764 = vand.u32 %v3763, 4294901760
        %3765 = vmatmul.mubr.f32.gmra.mxu0 %v3764
        %v3766 = vpop.f32.mrf.mxu0
        %v3767 = vadd.f32 %v3341, %v3766
        %v3768 = vpop.f32.mrf.mxu0
        %3769 = vmatprep.mubr.f32.mxu0 0.0
        %v3770 = vand.u32 %v3407, 4294901760
        %v3771 = vsub.f32 %v3407, %v3770
        %v3772 = vand.u32 %v3771, 4294901760
        %v3773 = vsub.f32 %v3771, %v3772
        %v3774 = vand.u32 %v3773, 4294901760
        %3775 = vmatmul.mubr.f32.gmra.mxu0 %v3774
        %v3776 = vpop.f32.mrf.mxu0
        %v3777 = vadd.f32 %v3341, %v3776
        %v3778 = vpop.f32.mrf.mxu0
        %3779 = vmatprep.mubr.f32.mxu0 0.0
        %v3780 = vand.u32 %v3410, 4294901760
        %v3781 = vsub.f32 %v3410, %v3780
        %v3782 = vand.u32 %v3781, 4294901760
        %v3783 = vsub.f32 %v3781, %v3782
        %v3784 = vand.u32 %v3783, 4294901760
        %3785 = vmatmul.mubr.f32.gmra.mxu0 %v3784
        %v3786 = vpop.f32.mrf.mxu0
        %v3787 = vadd.f32 %v3341, %v3786
        %v3788 = vpop.f32.mrf.mxu0
        %3789 = vmatprep.mubr.f32.mxu0 0.0
        %v3790 = vand.u32 %v3413, 4294901760
        %v3791 = vsub.f32 %v3413, %v3790
        %v3792 = vand.u32 %v3791, 4294901760
        %v3793 = vsub.f32 %v3791, %v3792
        %v3794 = vand.u32 %v3793, 4294901760
        %3795 = vmatmul.mubr.f32.gmra.mxu0 %v3794
        %v3796 = vpop.f32.mrf.mxu0
        %v3797 = vadd.f32 %v3341, %v3796
        %v3798 = vpop.f32.mrf.mxu0
        %3799 = vmatprep.mubr.f32.mxu0 0.0
        %v3800 = vand.u32 %v3416, 4294901760
        %v3801 = vsub.f32 %v3416, %v3800
        %v3802 = vand.u32 %v3801, 4294901760
        %v3803 = vsub.f32 %v3801, %v3802
        %v3804 = vand.u32 %v3803, 4294901760
        %3805 = vmatmul.mubr.f32.gmra.mxu0 %v3804
        %v3806 = vpop.f32.mrf.mxu0
        %v3807 = vadd.f32 %v3341, %v3806
        %v3808 = vpop.f32.mrf.mxu0
        %3809 = vmatprep.mubr.f32.mxu0 0.0
        %v3810 = vand.u32 %v3419, 4294901760
        %v3811 = vsub.f32 %v3419, %v3810
        %v3812 = vand.u32 %v3811, 4294901760
        %v3813 = vsub.f32 %v3811, %v3812
        %v3814 = vand.u32 %v3813, 4294901760
        %3815 = vmatmul.mubr.f32.gmra.mxu0 %v3814
        %v3816 = vpop.f32.mrf.mxu0
        %v3817 = vadd.f32 %v3341, %v3816
        %v3818 = vpop.f32.mrf.mxu0
        %3819 = vmatprep.mubr.f32.mxu0 0.0
        %v3820 = vand.u32 %v3422, 4294901760
        %v3821 = vsub.f32 %v3422, %v3820
        %v3822 = vand.u32 %v3821, 4294901760
        %v3823 = vsub.f32 %v3821, %v3822
        %v3824 = vand.u32 %v3823, 4294901760
        %3825 = vmatmul.mubr.f32.gmra.mxu0 %v3824
        %v3826 = vpop.f32.mrf.mxu0
        %v3827 = vadd.f32 %v3341, %v3826
        %v3828 = vpop.f32.mrf.mxu0
        %3829 = vmatprep.mubr.f32.mxu0 0.0
        %v3830 = vand.u32 %v3425, 4294901760
        %v3831 = vsub.f32 %v3425, %v3830
        %v3832 = vand.u32 %v3831, 4294901760
        %v3833 = vsub.f32 %v3831, %v3832
        %v3834 = vand.u32 %v3833, 4294901760
        %3835 = vmatmul.mubr.f32.gmra.mxu0 %v3834
        %v3836 = vpop.f32.mrf.mxu0
        %v3837 = vadd.f32 %v3341, %v3836
        %v3838 = vpop.f32.mrf.mxu0
        %3839 = vmatprep.mubr.f32.mxu0 0.0
        %v3840 = vand.u32 %v3428, 4294901760
        %v3841 = vsub.f32 %v3428, %v3840
        %v3842 = vand.u32 %v3841, 4294901760
        %v3843 = vsub.f32 %v3841, %v3842
        %v3844 = vand.u32 %v3843, 4294901760
        %3845 = vmatmul.mubr.f32.gmra.mxu0 %v3844
        %v3846 = vpop.f32.mrf.mxu0
        %v3847 = vadd.f32 %v3341, %v3846
        %v3848 = vpop.f32.mrf.mxu0
        %3849 = vmatprep.mubr.f32.mxu0 0.0
        %v3850 = vand.u32 %v3431, 4294901760
        %v3851 = vsub.f32 %v3431, %v3850
        %v3852 = vand.u32 %v3851, 4294901760
        %v3853 = vsub.f32 %v3851, %v3852
        %v3854 = vand.u32 %v3853, 4294901760
        %3855 = vmatmul.mubr.f32.gmra.mxu0 %v3854
        %v3856 = vpop.f32.mrf.mxu0
        %v3857 = vadd.f32 %v3341, %v3856
        %v3858 = vpop.f32.mrf.mxu0
        %3859 = vmatprep.mubr.f32.mxu0 0.0
        %v3860 = vand.u32 %v3434, 4294901760
        %v3861 = vsub.f32 %v3434, %v3860
        %v3862 = vand.u32 %v3861, 4294901760
        %v3863 = vsub.f32 %v3861, %v3862
        %v3864 = vand.u32 %v3863, 4294901760
        %3865 = vmatmul.mubr.f32.gmra.mxu0 %v3864
        %v3866 = vpop.f32.mrf.mxu0
        %v3867 = vadd.f32 %v3341, %v3866
        %v3868 = vpop.f32.mrf.mxu0
        %3869 = vmatprep.mubr.f32.mxu0 0.0
        %v3870 = vand.u32 %v3437, 4294901760
        %v3871 = vsub.f32 %v3437, %v3870
        %v3872 = vand.u32 %v3871, 4294901760
        %v3873 = vsub.f32 %v3871, %v3872
        %v3874 = vand.u32 %v3873, 4294901760
        %3875 = vmatmul.mubr.f32.gmra.mxu0 %v3874
        %v3876 = vpop.f32.mrf.mxu0
        %v3877 = vadd.f32 %v3341, %v3876
        %v3878 = vpop.f32.mrf.mxu0
        %3879 = vmatprep.mubr.f32.mxu0 0.0
        %v3880 = vand.u32 %v3440, 4294901760
        %v3881 = vsub.f32 %v3440, %v3880
        %v3882 = vand.u32 %v3881, 4294901760
        %v3883 = vsub.f32 %v3881, %v3882
        %v3884 = vand.u32 %v3883, 4294901760
        %3885 = vmatmul.mubr.f32.gmra.mxu0 %v3884
        %v3886 = vpop.f32.mrf.mxu0
        %v3887 = vadd.f32 %v3341, %v3886
        %v3888 = vpop.f32.mrf.mxu0
        %3889 = vmatprep.mubr.f32.mxu0 0.0
        %v3890 = vand.u32 %v3443, 4294901760
        %v3891 = vsub.f32 %v3443, %v3890
        %v3892 = vand.u32 %v3891, 4294901760
        %v3893 = vsub.f32 %v3891, %v3892
        %v3894 = vand.u32 %v3893, 4294901760
        %3895 = vmatmul.mubr.f32.gmra.mxu0 %v3894
        %v3896 = vpop.f32.mrf.mxu0
        %v3897 = vadd.f32 %v3341, %v3896
        %v3898 = vpop.f32.mrf.mxu0
        %3899 = vmatprep.mubr.f32.mxu0 0.0
        %v3900 = vand.u32 %v3446, 4294901760
        %v3901 = vsub.f32 %v3446, %v3900
        %v3902 = vand.u32 %v3901, 4294901760
        %v3903 = vsub.f32 %v3901, %v3902
        %v3904 = vand.u32 %v3903, 4294901760
        %3905 = vmatmul.mubr.f32.gmra.mxu0 %v3904
        %v3906 = vpop.f32.mrf.mxu0
        %v3907 = vadd.f32 %v3341, %v3906
        %v3908 = vpop.f32.mrf.mxu0
        %3909 = vmatprep.mubr.f32.mxu0 0.0
        %v3910 = vand.u32 %v3449, 4294901760
        %v3911 = vsub.f32 %v3449, %v3910
        %v3912 = vand.u32 %v3911, 4294901760
        %v3913 = vsub.f32 %v3911, %v3912
        %v3914 = vand.u32 %v3913, 4294901760
        %3915 = vmatmul.mubr.f32.gmra.mxu0 %v3914
        %v3916 = vpop.f32.mrf.mxu0
        %v3917 = vadd.f32 %v3341, %v3916
        %v3918 = vpop.f32.mrf.mxu0
        %3919 = vmatprep.mubr.f32.mxu0 0.0
        %v3920 = vand.u32 %v3452, 4294901760
        %v3921 = vsub.f32 %v3452, %v3920
        %v3922 = vand.u32 %v3921, 4294901760
        %v3923 = vsub.f32 %v3921, %v3922
        %v3924 = vand.u32 %v3923, 4294901760
        %3925 = vmatmul.mubr.f32.gmra.mxu0 %v3924
        %v3926 = vpop.f32.mrf.mxu0
        %v3927 = vadd.f32 %v3341, %v3926
        %v3928 = vpop.f32.mrf.mxu0
        %3929 = vmatprep.mubr.f32.mxu0 0.0
        %v3930 = vand.u32 %v3455, 4294901760
        %v3931 = vsub.f32 %v3455, %v3930
        %v3932 = vand.u32 %v3931, 4294901760
        %v3933 = vsub.f32 %v3931, %v3932
        %v3934 = vand.u32 %v3933, 4294901760
        %3935 = vmatmul.mubr.f32.gmra.mxu0 %v3934
        %v3936 = vpop.f32.mrf.mxu0
        %v3937 = vadd.f32 %v3341, %v3936
        %v3938 = vpop.f32.mrf.mxu0
        %3939 = vmatprep.mubr.f32.mxu0 0.0
        %v3940 = vand.u32 %v3458, 4294901760
        %v3941 = vsub.f32 %v3458, %v3940
        %v3942 = vand.u32 %v3941, 4294901760
        %v3943 = vsub.f32 %v3941, %v3942
        %v3944 = vand.u32 %v3943, 4294901760
        %3945 = vmatmul.mubr.f32.gmra.mxu0 %v3944
        %v3946 = vpop.f32.mrf.mxu0
        %v3947 = vadd.f32 %v3341, %v3946
        %v3948 = vpop.f32.mrf.mxu0
        %3949 = vmatprep.mubr.f32.mxu0 0.0
        %v3950 = vand.u32 %v3461, 4294901760
        %v3951 = vsub.f32 %v3461, %v3950
        %v3952 = vand.u32 %v3951, 4294901760
        %v3953 = vsub.f32 %v3951, %v3952
        %v3954 = vand.u32 %v3953, 4294901760
        %3955 = vmatmul.mubr.f32.gmra.mxu0 %v3954
        %v3956 = vpop.f32.mrf.mxu0
        %v3957 = vadd.f32 %v3341, %v3956
        %v3958 = vpop.f32.mrf.mxu0
        %3959 = vmatprep.mubr.f32.mxu0 0.0
        %v3960 = vand.u32 %v3464, 4294901760
        %v3961 = vsub.f32 %v3464, %v3960
        %v3962 = vand.u32 %v3961, 4294901760
        %v3963 = vsub.f32 %v3961, %v3962
        %v3964 = vand.u32 %v3963, 4294901760
        %3965 = vmatmul.mubr.f32.gmra.mxu0 %v3964
        %v3966 = vpop.f32.mrf.mxu0
        %v3967 = vadd.f32 %v3341, %v3966
        %v3968 = vpop.f32.mrf.mxu0
        %3969 = vmatprep.mubr.f32.mxu0 0.0
        %v3970 = vand.u32 %v3467, 4294901760
        %v3971 = vsub.f32 %v3467, %v3970
        %v3972 = vand.u32 %v3971, 4294901760
        %v3973 = vsub.f32 %v3971, %v3972
        %v3974 = vand.u32 %v3973, 4294901760
        %3975 = vmatmul.mubr.f32.gmra.mxu0 %v3974
        %v3976 = vpop.f32.mrf.mxu0
        %v3977 = vadd.f32 %v3341, %v3976
        %v3978 = vpop.f32.mrf.mxu0
        %3979 = vmatprep.mubr.f32.mxu0 0.0
        %v3980 = vand.u32 %v3470, 4294901760
        %v3981 = vsub.f32 %v3470, %v3980
        %v3982 = vand.u32 %v3981, 4294901760
        %v3983 = vsub.f32 %v3981, %v3982
        %v3984 = vand.u32 %v3983, 4294901760
        %3985 = vmatmul.mubr.f32.gmra.mxu0 %v3984
        %v3986 = vpop.f32.mrf.mxu0
        %v3987 = vadd.f32 %v3341, %v3986
        %v3988 = vpop.f32.mrf.mxu0
        %3989 = vmatprep.mubr.f32.mxu0 0.0
        %v3990 = vand.u32 %v3473, 4294901760
        %v3991 = vsub.f32 %v3473, %v3990
        %v3992 = vand.u32 %v3991, 4294901760
        %v3993 = vsub.f32 %v3991, %v3992
        %v3994 = vand.u32 %v3993, 4294901760
        %3995 = vmatmul.mubr.f32.gmra.mxu0 %v3994
        %v3996 = vpop.f32.mrf.mxu0
        %v3997 = vadd.f32 %v3341, %v3996
        %v3998 = vpop.f32.mrf.mxu0
        %3999 = vmatprep.mubr.f32.mxu0 0.0
        %v4000 = vand.u32 %v3476, 4294901760
        %v4001 = vsub.f32 %v3476, %v4000
        %v4002 = vand.u32 %v4001, 4294901760
        %v4003 = vsub.f32 %v4001, %v4002
        %v4004 = vand.u32 %v4003, 4294901760
        %4005 = vmatmul.mubr.f32.gmra.mxu0 %v4004
        %v4006 = vpop.f32.mrf.mxu0
        %v4007 = vadd.f32 %v3341, %v4006
        %v4008 = vpop.f32.mrf.mxu0
        %4009 = vmatprep.mubr.f32.mxu0 0.0
        %v4010 = vand.u32 %v3479, 4294901760
        %v4011 = vsub.f32 %v3479, %v4010
        %v4012 = vand.u32 %v4011, 4294901760
        %v4013 = vsub.f32 %v4011, %v4012
        %v4014 = vand.u32 %v4013, 4294901760
        %4015 = vmatmul.mubr.f32.gmra.mxu0 %v4014
        %v4016 = vpop.f32.mrf.mxu0
        %v4017 = vadd.f32 %v3341, %v4016
        %v4018 = vpop.f32.mrf.mxu0
        %4019 = vmatprep.mubr.f32.mxu0 0.0
        %v4020 = vand.u32 %v3482, 4294901760
        %v4021 = vsub.f32 %v3482, %v4020
        %v4022 = vand.u32 %v4021, 4294901760
        %v4023 = vsub.f32 %v4021, %v4022
        %v4024 = vand.u32 %v4023, 4294901760
        %4025 = vmatmul.mubr.f32.gmra.mxu0 %v4024
        %v4026 = vpop.f32.mrf.mxu0
        %v4027 = vadd.f32 %v3341, %v4026
        %v4028 = vpop.f32.mrf.mxu0
        %4029 = vmatprep.mubr.f32.mxu0 0.0
        %v4030 = vand.u32 %v3485, 4294901760
        %v4031 = vsub.f32 %v3485, %v4030
        %v4032 = vand.u32 %v4031, 4294901760
        %v4033 = vsub.f32 %v4031, %v4032
        %v4034 = vand.u32 %v4033, 4294901760
        %4035 = vmatmul.mubr.f32.gmra.mxu0 %v4034
        %v4036 = vpop.f32.mrf.mxu0
        %v4037 = vadd.f32 %v3341, %v4036
        %v4038 = vpop.f32.mrf.mxu0
        %4039 = vdwg.mxu0
        %4040 = vmatprep.subr.mxu0 0.0
        %4041 = vmatpush1.msra.mxu0 0.0
        %4042 = vmatprep.subr.mxu0 0.0
        %4043 = vmatpush1.msra.mxu0 0.0
        %4044 = vmatprep.subr.mxu0 0.0
        %4045 = vmatpush1.msra.mxu0 0.0
        %4046 = vmatprep.subr.mxu0 0.0
        %4047 = vmatpush1.msra.mxu0 0.0
        %4048 = vmatprep.subr.mxu0 0.0
        %4049 = vmatpush1.msra.mxu0 0.0
        %4050 = vmatprep.subr.mxu0 0.0
        %4051 = vmatpush1.msra.mxu0 0.0
        %4052 = vmatprep.subr.mxu0 0.0
        %4053 = vmatpush1.msra.mxu0 0.0
        %4054 = vmatprep.subr.mxu0 0.0
        %4055 = vmatpush1.msra.mxu0 0.0
        %4056 = vmatprep.subr.mxu0 0.0
        %v4057 = vand.u32 %v624, 4294901760
        %v4058 = vsub.f32 %v624, %v4057
        %v4059 = vand.u32 %v4058, 4294901760
        %v4060 = vsub.f32 %v4058, %v4059
        %v4061 = vand.u32 %v4060, 4294901760
        %4062 = vmatpush1.msra.mxu0 %v4061
        %4063 = vmatprep.subr.mxu0 0.0
        %v4064 = vand.u32 %v623, 4294901760
        %v4065 = vsub.f32 %v623, %v4064
        %v4066 = vand.u32 %v4065, 4294901760
        %v4067 = vsub.f32 %v4065, %v4066
        %v4068 = vand.u32 %v4067, 4294901760
        %4069 = vmatpush1.msra.mxu0 %v4068
        %4070 = vmatprep.subr.mxu0 0.0
        %v4071 = vand.u32 %v622, 4294901760
        %v4072 = vsub.f32 %v622, %v4071
        %v4073 = vand.u32 %v4072, 4294901760
        %v4074 = vsub.f32 %v4072, %v4073
        %v4075 = vand.u32 %v4074, 4294901760
        %4076 = vmatpush1.msra.mxu0 %v4075
        %4077 = vmatprep.subr.mxu0 0.0
        %v4078 = vand.u32 %v621, 4294901760
        %v4079 = vsub.f32 %v621, %v4078
        %v4080 = vand.u32 %v4079, 4294901760
        %v4081 = vsub.f32 %v4079, %v4080
        %v4082 = vand.u32 %v4081, 4294901760
        %4083 = vmatpush1.msra.mxu0 %v4082
        %4084 = vmatprep.subr.mxu0 0.0
        %v4085 = vand.u32 %v620, 4294901760
        %v4086 = vsub.f32 %v620, %v4085
        %v4087 = vand.u32 %v4086, 4294901760
        %v4088 = vsub.f32 %v4086, %v4087
        %v4089 = vand.u32 %v4088, 4294901760
        %4090 = vmatpush1.msra.mxu0 %v4089
        %4091 = vmatprep.subr.mxu0 0.0
        %v4092 = vand.u32 %v619, 4294901760
        %v4093 = vsub.f32 %v619, %v4092
        %v4094 = vand.u32 %v4093, 4294901760
        %v4095 = vsub.f32 %v4093, %v4094
        %v4096 = vand.u32 %v4095, 4294901760
        %4097 = vmatpush1.msra.mxu0 %v4096
        %4098 = vmatprep.subr.mxu0 0.0
        %v4099 = vand.u32 %v618, 4294901760
        %v4100 = vsub.f32 %v618, %v4099
        %v4101 = vand.u32 %v4100, 4294901760
        %v4102 = vsub.f32 %v4100, %v4101
        %v4103 = vand.u32 %v4102, 4294901760
        %4104 = vmatpush1.msra.mxu0 %v4103
        %4105 = vmatprep.subr.mxu0 0.0
        %v4106 = vand.u32 %v617, 4294901760
        %v4107 = vsub.f32 %v617, %v4106
        %v4108 = vand.u32 %v4107, 4294901760
        %v4109 = vsub.f32 %v4107, %v4108
        %v4110 = vand.u32 %v4109, 4294901760
        %4111 = vmatpush1.msra.mxu0 %v4110
        %4112 = vmatprep.subr.mxu0 0.0
        %4113 = vmatpush2.msra.mxu0 0.0
        %4114 = vmatprep.subr.mxu0 0.0
        %4115 = vmatpush2.msra.mxu0 0.0
        %4116 = vmatprep.subr.mxu0 0.0
        %4117 = vmatpush2.msra.mxu0 0.0
        %4118 = vmatprep.subr.mxu0 0.0
        %4119 = vmatpush2.msra.mxu0 0.0
        %4120 = vmatprep.subr.mxu0 0.0
        %4121 = vmatpush2.msra.mxu0 0.0
        %4122 = vmatprep.subr.mxu0 0.0
        %4123 = vmatpush2.msra.mxu0 0.0
        %4124 = vmatprep.subr.mxu0 0.0
        %4125 = vmatpush2.msra.mxu0 0.0
        %4126 = vmatprep.subr.mxu0 0.0
        %4127 = vmatpush2.msra.mxu0 0.0
        %4128 = vmatprep.subr.mxu0 0.0
        %4129 = vmatpush2.msra.mxu0 0.0
        %4130 = vmatprep.subr.mxu0 0.0
        %4131 = vmatpush2.msra.mxu0 0.0
        %4132 = vmatprep.subr.mxu0 0.0
        %4133 = vmatpush2.msra.mxu0 0.0
        %4134 = vmatprep.subr.mxu0 0.0
        %4135 = vmatpush2.msra.mxu0 0.0
        %4136 = vmatprep.subr.mxu0 0.0
        %4137 = vmatpush2.msra.mxu0 0.0
        %4138 = vmatprep.subr.mxu0 0.0
        %4139 = vmatpush2.msra.mxu0 0.0
        %4140 = vmatprep.subr.mxu0 0.0
        %4141 = vmatpush2.msra.mxu0 0.0
        %4142 = vmatprep.subr.mxu0 0.0
        %4143 = vmatpush2.msra.mxu0 0.0
        %4144 = vmatprep.mubr.f32.mxu0 0.0
        %v4145 = vand.u32 %v3344, 4294901760
        %4146 = vmatmul.mubr.f32.gmra.mxu0 %v4145
        %v4147 = vpop.f32.mrf.mxu0
        %v4148 = vadd.f32 %v3567, %v4147
        %v4149 = vpop.f32.mrf.mxu0
        %4150 = vmatprep.mubr.f32.mxu0 0.0
        %v4151 = vand.u32 %v3347, 4294901760
        %4152 = vmatmul.mubr.f32.gmra.mxu0 %v4151
        %v4153 = vpop.f32.mrf.mxu0
        %v4154 = vadd.f32 %v3577, %v4153
        %v4155 = vpop.f32.mrf.mxu0
        %4156 = vmatprep.mubr.f32.mxu0 0.0
        %v4157 = vand.u32 %v3350, 4294901760
        %4158 = vmatmul.mubr.f32.gmra.mxu0 %v4157
        %v4159 = vpop.f32.mrf.mxu0
        %v4160 = vadd.f32 %v3587, %v4159
        %v4161 = vpop.f32.mrf.mxu0
        %4162 = vmatprep.mubr.f32.mxu0 0.0
        %v4163 = vand.u32 %v3353, 4294901760
        %4164 = vmatmul.mubr.f32.gmra.mxu0 %v4163
        %v4165 = vpop.f32.mrf.mxu0
        %v4166 = vadd.f32 %v3597, %v4165
        %v4167 = vpop.f32.mrf.mxu0
        %4168 = vmatprep.mubr.f32.mxu0 0.0
        %v4169 = vand.u32 %v3356, 4294901760
        %4170 = vmatmul.mubr.f32.gmra.mxu0 %v4169
        %v4171 = vpop.f32.mrf.mxu0
        %v4172 = vadd.f32 %v3607, %v4171
        %v4173 = vpop.f32.mrf.mxu0
        %4174 = vmatprep.mubr.f32.mxu0 0.0
        %v4175 = vand.u32 %v3359, 4294901760
        %4176 = vmatmul.mubr.f32.gmra.mxu0 %v4175
        %v4177 = vpop.f32.mrf.mxu0
        %v4178 = vadd.f32 %v3617, %v4177
        %v4179 = vpop.f32.mrf.mxu0
        %4180 = vmatprep.mubr.f32.mxu0 0.0
        %v4181 = vand.u32 %v3362, 4294901760
        %4182 = vmatmul.mubr.f32.gmra.mxu0 %v4181
        %v4183 = vpop.f32.mrf.mxu0
        %v4184 = vadd.f32 %v3627, %v4183
        %v4185 = vpop.f32.mrf.mxu0
        %4186 = vmatprep.mubr.f32.mxu0 0.0
        %v4187 = vand.u32 %v3365, 4294901760
        %4188 = vmatmul.mubr.f32.gmra.mxu0 %v4187
        %v4189 = vpop.f32.mrf.mxu0
        %v4190 = vadd.f32 %v3637, %v4189
        %v4191 = vpop.f32.mrf.mxu0
        %4192 = vmatprep.mubr.f32.mxu0 0.0
        %v4193 = vand.u32 %v3368, 4294901760
        %4194 = vmatmul.mubr.f32.gmra.mxu0 %v4193
        %v4195 = vpop.f32.mrf.mxu0
        %v4196 = vadd.f32 %v3647, %v4195
        %v4197 = vpop.f32.mrf.mxu0
        %4198 = vmatprep.mubr.f32.mxu0 0.0
        %v4199 = vand.u32 %v3371, 4294901760
        %4200 = vmatmul.mubr.f32.gmra.mxu0 %v4199
        %v4201 = vpop.f32.mrf.mxu0
        %v4202 = vadd.f32 %v3657, %v4201
        %v4203 = vpop.f32.mrf.mxu0
        %4204 = vmatprep.mubr.f32.mxu0 0.0
        %v4205 = vand.u32 %v3374, 4294901760
        %4206 = vmatmul.mubr.f32.gmra.mxu0 %v4205
        %v4207 = vpop.f32.mrf.mxu0
        %v4208 = vadd.f32 %v3667, %v4207
        %v4209 = vpop.f32.mrf.mxu0
        %4210 = vmatprep.mubr.f32.mxu0 0.0
        %v4211 = vand.u32 %v3377, 4294901760
        %4212 = vmatmul.mubr.f32.gmra.mxu0 %v4211
        %v4213 = vpop.f32.mrf.mxu0
        %v4214 = vadd.f32 %v3677, %v4213
        %v4215 = vpop.f32.mrf.mxu0
        %4216 = vmatprep.mubr.f32.mxu0 0.0
        %v4217 = vand.u32 %v3380, 4294901760
        %4218 = vmatmul.mubr.f32.gmra.mxu0 %v4217
        %v4219 = vpop.f32.mrf.mxu0
        %v4220 = vadd.f32 %v3687, %v4219
        %v4221 = vpop.f32.mrf.mxu0
        %4222 = vmatprep.mubr.f32.mxu0 0.0
        %v4223 = vand.u32 %v3383, 4294901760
        %4224 = vmatmul.mubr.f32.gmra.mxu0 %v4223
        %v4225 = vpop.f32.mrf.mxu0
        %v4226 = vadd.f32 %v3697, %v4225
        %v4227 = vpop.f32.mrf.mxu0
        %4228 = vmatprep.mubr.f32.mxu0 0.0
        %v4229 = vand.u32 %v3386, 4294901760
        %4230 = vmatmul.mubr.f32.gmra.mxu0 %v4229
        %v4231 = vpop.f32.mrf.mxu0
        %v4232 = vadd.f32 %v3707, %v4231
        %v4233 = vpop.f32.mrf.mxu0
        %4234 = vmatprep.mubr.f32.mxu0 0.0
        %v4235 = vand.u32 %v3389, 4294901760
        %4236 = vmatmul.mubr.f32.gmra.mxu0 %v4235
        %v4237 = vpop.f32.mrf.mxu0
        %v4238 = vadd.f32 %v3717, %v4237
        %v4239 = vpop.f32.mrf.mxu0
        %4240 = vmatprep.mubr.f32.mxu0 0.0
        %v4241 = vand.u32 %v3392, 4294901760
        %4242 = vmatmul.mubr.f32.gmra.mxu0 %v4241
        %v4243 = vpop.f32.mrf.mxu0
        %v4244 = vadd.f32 %v3727, %v4243
        %v4245 = vpop.f32.mrf.mxu0
        %4246 = vmatprep.mubr.f32.mxu0 0.0
        %v4247 = vand.u32 %v3395, 4294901760
        %4248 = vmatmul.mubr.f32.gmra.mxu0 %v4247
        %v4249 = vpop.f32.mrf.mxu0
        %v4250 = vadd.f32 %v3737, %v4249
        %v4251 = vpop.f32.mrf.mxu0
        %4252 = vmatprep.mubr.f32.mxu0 0.0
        %v4253 = vand.u32 %v3398, 4294901760
        %4254 = vmatmul.mubr.f32.gmra.mxu0 %v4253
        %v4255 = vpop.f32.mrf.mxu0
        %v4256 = vadd.f32 %v3747, %v4255
        %v4257 = vpop.f32.mrf.mxu0
        %4258 = vmatprep.mubr.f32.mxu0 0.0
        %v4259 = vand.u32 %v3401, 4294901760
        %4260 = vmatmul.mubr.f32.gmra.mxu0 %v4259
        %v4261 = vpop.f32.mrf.mxu0
        %v4262 = vadd.f32 %v3757, %v4261
        %v4263 = vpop.f32.mrf.mxu0
        %4264 = vmatprep.mubr.f32.mxu0 0.0
        %v4265 = vand.u32 %v3404, 4294901760
        %4266 = vmatmul.mubr.f32.gmra.mxu0 %v4265
        %v4267 = vpop.f32.mrf.mxu0
        %v4268 = vadd.f32 %v3767, %v4267
        %v4269 = vpop.f32.mrf.mxu0
        %4270 = vmatprep.mubr.f32.mxu0 0.0
        %v4271 = vand.u32 %v3407, 4294901760
        %4272 = vmatmul.mubr.f32.gmra.mxu0 %v4271
        %v4273 = vpop.f32.mrf.mxu0
        %v4274 = vadd.f32 %v3777, %v4273
        %v4275 = vpop.f32.mrf.mxu0
        %4276 = vmatprep.mubr.f32.mxu0 0.0
        %v4277 = vand.u32 %v3410, 4294901760
        %4278 = vmatmul.mubr.f32.gmra.mxu0 %v4277
        %v4279 = vpop.f32.mrf.mxu0
        %v4280 = vadd.f32 %v3787, %v4279
        %v4281 = vpop.f32.mrf.mxu0
        %4282 = vmatprep.mubr.f32.mxu0 0.0
        %v4283 = vand.u32 %v3413, 4294901760
        %4284 = vmatmul.mubr.f32.gmra.mxu0 %v4283
        %v4285 = vpop.f32.mrf.mxu0
        %v4286 = vadd.f32 %v3797, %v4285
        %v4287 = vpop.f32.mrf.mxu0
        %4288 = vmatprep.mubr.f32.mxu0 0.0
        %v4289 = vand.u32 %v3416, 4294901760
        %4290 = vmatmul.mubr.f32.gmra.mxu0 %v4289
        %v4291 = vpop.f32.mrf.mxu0
        %v4292 = vadd.f32 %v3807, %v4291
        %v4293 = vpop.f32.mrf.mxu0
        %4294 = vmatprep.mubr.f32.mxu0 0.0
        %v4295 = vand.u32 %v3419, 4294901760
        %4296 = vmatmul.mubr.f32.gmra.mxu0 %v4295
        %v4297 = vpop.f32.mrf.mxu0
        %v4298 = vadd.f32 %v3817, %v4297
        %v4299 = vpop.f32.mrf.mxu0
        %4300 = vmatprep.mubr.f32.mxu0 0.0
        %v4301 = vand.u32 %v3422, 4294901760
        %4302 = vmatmul.mubr.f32.gmra.mxu0 %v4301
        %v4303 = vpop.f32.mrf.mxu0
        %v4304 = vadd.f32 %v3827, %v4303
        %v4305 = vpop.f32.mrf.mxu0
        %4306 = vmatprep.mubr.f32.mxu0 0.0
        %v4307 = vand.u32 %v3425, 4294901760
        %4308 = vmatmul.mubr.f32.gmra.mxu0 %v4307
        %v4309 = vpop.f32.mrf.mxu0
        %v4310 = vadd.f32 %v3837, %v4309
        %v4311 = vpop.f32.mrf.mxu0
        %4312 = vmatprep.mubr.f32.mxu0 0.0
        %v4313 = vand.u32 %v3428, 4294901760
        %4314 = vmatmul.mubr.f32.gmra.mxu0 %v4313
        %v4315 = vpop.f32.mrf.mxu0
        %v4316 = vadd.f32 %v3847, %v4315
        %v4317 = vpop.f32.mrf.mxu0
        %4318 = vmatprep.mubr.f32.mxu0 0.0
        %v4319 = vand.u32 %v3431, 4294901760
        %4320 = vmatmul.mubr.f32.gmra.mxu0 %v4319
        %v4321 = vpop.f32.mrf.mxu0
        %v4322 = vadd.f32 %v3857, %v4321
        %v4323 = vpop.f32.mrf.mxu0
        %4324 = vmatprep.mubr.f32.mxu0 0.0
        %v4325 = vand.u32 %v3434, 4294901760
        %4326 = vmatmul.mubr.f32.gmra.mxu0 %v4325
        %v4327 = vpop.f32.mrf.mxu0
        %v4328 = vadd.f32 %v3867, %v4327
        %v4329 = vpop.f32.mrf.mxu0
        %4330 = vmatprep.mubr.f32.mxu0 0.0
        %v4331 = vand.u32 %v3437, 4294901760
        %4332 = vmatmul.mubr.f32.gmra.mxu0 %v4331
        %v4333 = vpop.f32.mrf.mxu0
        %v4334 = vadd.f32 %v3877, %v4333
        %v4335 = vpop.f32.mrf.mxu0
        %4336 = vmatprep.mubr.f32.mxu0 0.0
        %v4337 = vand.u32 %v3440, 4294901760
        %4338 = vmatmul.mubr.f32.gmra.mxu0 %v4337
        %v4339 = vpop.f32.mrf.mxu0
        %v4340 = vadd.f32 %v3887, %v4339
        %v4341 = vpop.f32.mrf.mxu0
        %4342 = vmatprep.mubr.f32.mxu0 0.0
        %v4343 = vand.u32 %v3443, 4294901760
        %4344 = vmatmul.mubr.f32.gmra.mxu0 %v4343
        %v4345 = vpop.f32.mrf.mxu0
        %v4346 = vadd.f32 %v3897, %v4345
        %v4347 = vpop.f32.mrf.mxu0
        %4348 = vmatprep.mubr.f32.mxu0 0.0
        %v4349 = vand.u32 %v3446, 4294901760
        %4350 = vmatmul.mubr.f32.gmra.mxu0 %v4349
        %v4351 = vpop.f32.mrf.mxu0
        %v4352 = vadd.f32 %v3907, %v4351
        %v4353 = vpop.f32.mrf.mxu0
        %4354 = vmatprep.mubr.f32.mxu0 0.0
        %v4355 = vand.u32 %v3449, 4294901760
        %4356 = vmatmul.mubr.f32.gmra.mxu0 %v4355
        %v4357 = vpop.f32.mrf.mxu0
        %v4358 = vadd.f32 %v3917, %v4357
        %v4359 = vpop.f32.mrf.mxu0
        %4360 = vmatprep.mubr.f32.mxu0 0.0
        %v4361 = vand.u32 %v3452, 4294901760
        %4362 = vmatmul.mubr.f32.gmra.mxu0 %v4361
        %v4363 = vpop.f32.mrf.mxu0
        %v4364 = vadd.f32 %v3927, %v4363
        %v4365 = vpop.f32.mrf.mxu0
        %4366 = vmatprep.mubr.f32.mxu0 0.0
        %v4367 = vand.u32 %v3455, 4294901760
        %4368 = vmatmul.mubr.f32.gmra.mxu0 %v4367
        %v4369 = vpop.f32.mrf.mxu0
        %v4370 = vadd.f32 %v3937, %v4369
        %v4371 = vpop.f32.mrf.mxu0
        %4372 = vmatprep.mubr.f32.mxu0 0.0
        %v4373 = vand.u32 %v3458, 4294901760
        %4374 = vmatmul.mubr.f32.gmra.mxu0 %v4373
        %v4375 = vpop.f32.mrf.mxu0
        %v4376 = vadd.f32 %v3947, %v4375
        %v4377 = vpop.f32.mrf.mxu0
        %4378 = vmatprep.mubr.f32.mxu0 0.0
        %v4379 = vand.u32 %v3461, 4294901760
        %4380 = vmatmul.mubr.f32.gmra.mxu0 %v4379
        %v4381 = vpop.f32.mrf.mxu0
        %v4382 = vadd.f32 %v3957, %v4381
        %v4383 = vpop.f32.mrf.mxu0
        %4384 = vmatprep.mubr.f32.mxu0 0.0
        %v4385 = vand.u32 %v3464, 4294901760
        %4386 = vmatmul.mubr.f32.gmra.mxu0 %v4385
        %v4387 = vpop.f32.mrf.mxu0
        %v4388 = vadd.f32 %v3967, %v4387
        %v4389 = vpop.f32.mrf.mxu0
        %4390 = vmatprep.mubr.f32.mxu0 0.0
        %v4391 = vand.u32 %v3467, 4294901760
        %4392 = vmatmul.mubr.f32.gmra.mxu0 %v4391
        %v4393 = vpop.f32.mrf.mxu0
        %v4394 = vadd.f32 %v3977, %v4393
        %v4395 = vpop.f32.mrf.mxu0
        %4396 = vmatprep.mubr.f32.mxu0 0.0
        %v4397 = vand.u32 %v3470, 4294901760
        %4398 = vmatmul.mubr.f32.gmra.mxu0 %v4397
        %v4399 = vpop.f32.mrf.mxu0
        %v4400 = vadd.f32 %v3987, %v4399
        %v4401 = vpop.f32.mrf.mxu0
        %4402 = vmatprep.mubr.f32.mxu0 0.0
        %v4403 = vand.u32 %v3473, 4294901760
        %4404 = vmatmul.mubr.f32.gmra.mxu0 %v4403
        %v4405 = vpop.f32.mrf.mxu0
        %v4406 = vadd.f32 %v3997, %v4405
        %v4407 = vpop.f32.mrf.mxu0
        %4408 = vmatprep.mubr.f32.mxu0 0.0
        %v4409 = vand.u32 %v3476, 4294901760
        %4410 = vmatmul.mubr.f32.gmra.mxu0 %v4409
        %v4411 = vpop.f32.mrf.mxu0
        %v4412 = vadd.f32 %v4007, %v4411
        %v4413 = vpop.f32.mrf.mxu0
        %4414 = vmatprep.mubr.f32.mxu0 0.0
        %v4415 = vand.u32 %v3479, 4294901760
        %4416 = vmatmul.mubr.f32.gmra.mxu0 %v4415
        %v4417 = vpop.f32.mrf.mxu0
        %v4418 = vadd.f32 %v4017, %v4417
        %v4419 = vpop.f32.mrf.mxu0
        %4420 = vmatprep.mubr.f32.mxu0 0.0
        %v4421 = vand.u32 %v3482, 4294901760
        %4422 = vmatmul.mubr.f32.gmra.mxu0 %v4421
        %v4423 = vpop.f32.mrf.mxu0
        %v4424 = vadd.f32 %v4027, %v4423
        %v4425 = vpop.f32.mrf.mxu0
        %4426 = vmatprep.mubr.f32.mxu0 0.0
        %v4427 = vand.u32 %v3485, 4294901760
        %4428 = vmatmul.mubr.f32.gmra.mxu0 %v4427
        %v4429 = vpop.f32.mrf.mxu0
        %v4430 = vadd.f32 %v4037, %v4429
        %v4431 = vpop.f32.mrf.mxu0
        %4432 = vdwg.mxu0
        %4433 = vmatprep.subr.mxu0 0.0
        %4434 = vmatpush1.msra.mxu0 0.0
        %4435 = vmatprep.subr.mxu0 0.0
        %4436 = vmatpush1.msra.mxu0 0.0
        %4437 = vmatprep.subr.mxu0 0.0
        %4438 = vmatpush1.msra.mxu0 0.0
        %4439 = vmatprep.subr.mxu0 0.0
        %4440 = vmatpush1.msra.mxu0 0.0
        %4441 = vmatprep.subr.mxu0 0.0
        %4442 = vmatpush1.msra.mxu0 0.0
        %4443 = vmatprep.subr.mxu0 0.0
        %4444 = vmatpush1.msra.mxu0 0.0
        %4445 = vmatprep.subr.mxu0 0.0
        %4446 = vmatpush1.msra.mxu0 0.0
        %4447 = vmatprep.subr.mxu0 0.0
        %4448 = vmatpush1.msra.mxu0 0.0
        %4449 = vmatprep.subr.mxu0 0.0
        %v4450 = vand.u32 %v624, 4294901760
        %v4451 = vsub.f32 %v624, %v4450
        %4452 = vmatpush1.msra.mxu0 %v4451
        %4453 = vmatprep.subr.mxu0 0.0
        %v4454 = vand.u32 %v623, 4294901760
        %v4455 = vsub.f32 %v623, %v4454
        %4456 = vmatpush1.msra.mxu0 %v4455
        %4457 = vmatprep.subr.mxu0 0.0
        %v4458 = vand.u32 %v622, 4294901760
        %v4459 = vsub.f32 %v622, %v4458
        %4460 = vmatpush1.msra.mxu0 %v4459
        %4461 = vmatprep.subr.mxu0 0.0
        %v4462 = vand.u32 %v621, 4294901760
        %v4463 = vsub.f32 %v621, %v4462
        %4464 = vmatpush1.msra.mxu0 %v4463
        %4465 = vmatprep.subr.mxu0 0.0
        %v4466 = vand.u32 %v620, 4294901760
        %v4467 = vsub.f32 %v620, %v4466
        %4468 = vmatpush1.msra.mxu0 %v4467
        %4469 = vmatprep.subr.mxu0 0.0
        %v4470 = vand.u32 %v619, 4294901760
        %v4471 = vsub.f32 %v619, %v4470
        %4472 = vmatpush1.msra.mxu0 %v4471
        %4473 = vmatprep.subr.mxu0 0.0
        %v4474 = vand.u32 %v618, 4294901760
        %v4475 = vsub.f32 %v618, %v4474
        %4476 = vmatpush1.msra.mxu0 %v4475
        %4477 = vmatprep.subr.mxu0 0.0
        %v4478 = vand.u32 %v617, 4294901760
        %v4479 = vsub.f32 %v617, %v4478
        %4480 = vmatpush1.msra.mxu0 %v4479
        %4481 = vmatprep.subr.mxu0 0.0
        %4482 = vmatpush2.msra.mxu0 0.0
        %4483 = vmatprep.subr.mxu0 0.0
        %4484 = vmatpush2.msra.mxu0 0.0
        %4485 = vmatprep.subr.mxu0 0.0
        %4486 = vmatpush2.msra.mxu0 0.0
        %4487 = vmatprep.subr.mxu0 0.0
        %4488 = vmatpush2.msra.mxu0 0.0
        %4489 = vmatprep.subr.mxu0 0.0
        %4490 = vmatpush2.msra.mxu0 0.0
        %4491 = vmatprep.subr.mxu0 0.0
        %4492 = vmatpush2.msra.mxu0 0.0
        %4493 = vmatprep.subr.mxu0 0.0
        %4494 = vmatpush2.msra.mxu0 0.0
        %4495 = vmatprep.subr.mxu0 0.0
        %4496 = vmatpush2.msra.mxu0 0.0
        %4497 = vmatprep.subr.mxu0 0.0
        %4498 = vmatpush2.msra.mxu0 0.0
        %4499 = vmatprep.subr.mxu0 0.0
        %4500 = vmatpush2.msra.mxu0 0.0
        %4501 = vmatprep.subr.mxu0 0.0
        %4502 = vmatpush2.msra.mxu0 0.0
        %4503 = vmatprep.subr.mxu0 0.0
        %4504 = vmatpush2.msra.mxu0 0.0
        %4505 = vmatprep.subr.mxu0 0.0
        %4506 = vmatpush2.msra.mxu0 0.0
        %4507 = vmatprep.subr.mxu0 0.0
        %4508 = vmatpush2.msra.mxu0 0.0
        %4509 = vmatprep.subr.mxu0 0.0
        %4510 = vmatpush2.msra.mxu0 0.0
        %4511 = vmatprep.subr.mxu0 0.0
        %4512 = vmatpush2.msra.mxu0 0.0
        %4513 = vmatprep.mubr.f32.mxu0 0.0
        %v4514 = vand.u32 %v3344, 4294901760
        %v4515 = vsub.f32 %v3344, %v4514
        %4516 = vmatmul.mubr.f32.gmra.mxu0 %v4515
        %v4517 = vpop.f32.mrf.mxu0
        %v4518 = vadd.f32 %v4148, %v4517
        %v4519 = vpop.f32.mrf.mxu0
        %4520 = vmatprep.mubr.f32.mxu0 0.0
        %v4521 = vand.u32 %v3347, 4294901760
        %v4522 = vsub.f32 %v3347, %v4521
        %4523 = vmatmul.mubr.f32.gmra.mxu0 %v4522
        %v4524 = vpop.f32.mrf.mxu0
        %v4525 = vadd.f32 %v4154, %v4524
        %v4526 = vpop.f32.mrf.mxu0
        %4527 = vmatprep.mubr.f32.mxu0 0.0
        %v4528 = vand.u32 %v3350, 4294901760
        %v4529 = vsub.f32 %v3350, %v4528
        %4530 = vmatmul.mubr.f32.gmra.mxu0 %v4529
        %v4531 = vpop.f32.mrf.mxu0
        %v4532 = vadd.f32 %v4160, %v4531
        %v4533 = vpop.f32.mrf.mxu0
        %4534 = vmatprep.mubr.f32.mxu0 0.0
        %v4535 = vand.u32 %v3353, 4294901760
        %v4536 = vsub.f32 %v3353, %v4535
        %4537 = vmatmul.mubr.f32.gmra.mxu0 %v4536
        %v4538 = vpop.f32.mrf.mxu0
        %v4539 = vadd.f32 %v4166, %v4538
        %v4540 = vpop.f32.mrf.mxu0
        %4541 = vmatprep.mubr.f32.mxu0 0.0
        %v4542 = vand.u32 %v3356, 4294901760
        %v4543 = vsub.f32 %v3356, %v4542
        %4544 = vmatmul.mubr.f32.gmra.mxu0 %v4543
        %v4545 = vpop.f32.mrf.mxu0
        %v4546 = vadd.f32 %v4172, %v4545
        %v4547 = vpop.f32.mrf.mxu0
        %4548 = vmatprep.mubr.f32.mxu0 0.0
        %v4549 = vand.u32 %v3359, 4294901760
        %v4550 = vsub.f32 %v3359, %v4549
        %4551 = vmatmul.mubr.f32.gmra.mxu0 %v4550
        %v4552 = vpop.f32.mrf.mxu0
        %v4553 = vadd.f32 %v4178, %v4552
        %v4554 = vpop.f32.mrf.mxu0
        %4555 = vmatprep.mubr.f32.mxu0 0.0
        %v4556 = vand.u32 %v3362, 4294901760
        %v4557 = vsub.f32 %v3362, %v4556
        %4558 = vmatmul.mubr.f32.gmra.mxu0 %v4557
        %v4559 = vpop.f32.mrf.mxu0
        %v4560 = vadd.f32 %v4184, %v4559
        %v4561 = vpop.f32.mrf.mxu0
        %4562 = vmatprep.mubr.f32.mxu0 0.0
        %v4563 = vand.u32 %v3365, 4294901760
        %v4564 = vsub.f32 %v3365, %v4563
        %4565 = vmatmul.mubr.f32.gmra.mxu0 %v4564
        %v4566 = vpop.f32.mrf.mxu0
        %v4567 = vadd.f32 %v4190, %v4566
        %v4568 = vpop.f32.mrf.mxu0
        %4569 = vmatprep.mubr.f32.mxu0 0.0
        %v4570 = vand.u32 %v3368, 4294901760
        %v4571 = vsub.f32 %v3368, %v4570
        %4572 = vmatmul.mubr.f32.gmra.mxu0 %v4571
        %v4573 = vpop.f32.mrf.mxu0
        %v4574 = vadd.f32 %v4196, %v4573
        %v4575 = vpop.f32.mrf.mxu0
        %4576 = vmatprep.mubr.f32.mxu0 0.0
        %v4577 = vand.u32 %v3371, 4294901760
        %v4578 = vsub.f32 %v3371, %v4577
        %4579 = vmatmul.mubr.f32.gmra.mxu0 %v4578
        %v4580 = vpop.f32.mrf.mxu0
        %v4581 = vadd.f32 %v4202, %v4580
        %v4582 = vpop.f32.mrf.mxu0
        %4583 = vmatprep.mubr.f32.mxu0 0.0
        %v4584 = vand.u32 %v3374, 4294901760
        %v4585 = vsub.f32 %v3374, %v4584
        %4586 = vmatmul.mubr.f32.gmra.mxu0 %v4585
        %v4587 = vpop.f32.mrf.mxu0
        %v4588 = vadd.f32 %v4208, %v4587
        %v4589 = vpop.f32.mrf.mxu0
        %4590 = vmatprep.mubr.f32.mxu0 0.0
        %v4591 = vand.u32 %v3377, 4294901760
        %v4592 = vsub.f32 %v3377, %v4591
        %4593 = vmatmul.mubr.f32.gmra.mxu0 %v4592
        %v4594 = vpop.f32.mrf.mxu0
        %v4595 = vadd.f32 %v4214, %v4594
        %v4596 = vpop.f32.mrf.mxu0
        %4597 = vmatprep.mubr.f32.mxu0 0.0
        %v4598 = vand.u32 %v3380, 4294901760
        %v4599 = vsub.f32 %v3380, %v4598
        %4600 = vmatmul.mubr.f32.gmra.mxu0 %v4599
        %v4601 = vpop.f32.mrf.mxu0
        %v4602 = vadd.f32 %v4220, %v4601
        %v4603 = vpop.f32.mrf.mxu0
        %4604 = vmatprep.mubr.f32.mxu0 0.0
        %v4605 = vand.u32 %v3383, 4294901760
        %v4606 = vsub.f32 %v3383, %v4605
        %4607 = vmatmul.mubr.f32.gmra.mxu0 %v4606
        %v4608 = vpop.f32.mrf.mxu0
        %v4609 = vadd.f32 %v4226, %v4608
        %v4610 = vpop.f32.mrf.mxu0
        %4611 = vmatprep.mubr.f32.mxu0 0.0
        %v4612 = vand.u32 %v3386, 4294901760
        %v4613 = vsub.f32 %v3386, %v4612
        %4614 = vmatmul.mubr.f32.gmra.mxu0 %v4613
        %v4615 = vpop.f32.mrf.mxu0
        %v4616 = vadd.f32 %v4232, %v4615
        %v4617 = vpop.f32.mrf.mxu0
        %4618 = vmatprep.mubr.f32.mxu0 0.0
        %v4619 = vand.u32 %v3389, 4294901760
        %v4620 = vsub.f32 %v3389, %v4619
        %4621 = vmatmul.mubr.f32.gmra.mxu0 %v4620
        %v4622 = vpop.f32.mrf.mxu0
        %v4623 = vadd.f32 %v4238, %v4622
        %v4624 = vpop.f32.mrf.mxu0
        %4625 = vmatprep.mubr.f32.mxu0 0.0
        %v4626 = vand.u32 %v3392, 4294901760
        %v4627 = vsub.f32 %v3392, %v4626
        %4628 = vmatmul.mubr.f32.gmra.mxu0 %v4627
        %v4629 = vpop.f32.mrf.mxu0
        %v4630 = vadd.f32 %v4244, %v4629
        %v4631 = vpop.f32.mrf.mxu0
        %4632 = vmatprep.mubr.f32.mxu0 0.0
        %v4633 = vand.u32 %v3395, 4294901760
        %v4634 = vsub.f32 %v3395, %v4633
        %4635 = vmatmul.mubr.f32.gmra.mxu0 %v4634
        %v4636 = vpop.f32.mrf.mxu0
        %v4637 = vadd.f32 %v4250, %v4636
        %v4638 = vpop.f32.mrf.mxu0
        %4639 = vmatprep.mubr.f32.mxu0 0.0
        %v4640 = vand.u32 %v3398, 4294901760
        %v4641 = vsub.f32 %v3398, %v4640
        %4642 = vmatmul.mubr.f32.gmra.mxu0 %v4641
        %v4643 = vpop.f32.mrf.mxu0
        %v4644 = vadd.f32 %v4256, %v4643
        %v4645 = vpop.f32.mrf.mxu0
        %4646 = vmatprep.mubr.f32.mxu0 0.0
        %v4647 = vand.u32 %v3401, 4294901760
        %v4648 = vsub.f32 %v3401, %v4647
        %4649 = vmatmul.mubr.f32.gmra.mxu0 %v4648
        %v4650 = vpop.f32.mrf.mxu0
        %v4651 = vadd.f32 %v4262, %v4650
        %v4652 = vpop.f32.mrf.mxu0
        %4653 = vmatprep.mubr.f32.mxu0 0.0
        %v4654 = vand.u32 %v3404, 4294901760
        %v4655 = vsub.f32 %v3404, %v4654
        %4656 = vmatmul.mubr.f32.gmra.mxu0 %v4655
        %v4657 = vpop.f32.mrf.mxu0
        %v4658 = vadd.f32 %v4268, %v4657
        %v4659 = vpop.f32.mrf.mxu0
        %4660 = vmatprep.mubr.f32.mxu0 0.0
        %v4661 = vand.u32 %v3407, 4294901760
        %v4662 = vsub.f32 %v3407, %v4661
        %4663 = vmatmul.mubr.f32.gmra.mxu0 %v4662
        %v4664 = vpop.f32.mrf.mxu0
        %v4665 = vadd.f32 %v4274, %v4664
        %v4666 = vpop.f32.mrf.mxu0
        %4667 = vmatprep.mubr.f32.mxu0 0.0
        %v4668 = vand.u32 %v3410, 4294901760
        %v4669 = vsub.f32 %v3410, %v4668
        %4670 = vmatmul.mubr.f32.gmra.mxu0 %v4669
        %v4671 = vpop.f32.mrf.mxu0
        %v4672 = vadd.f32 %v4280, %v4671
        %v4673 = vpop.f32.mrf.mxu0
        %4674 = vmatprep.mubr.f32.mxu0 0.0
        %v4675 = vand.u32 %v3413, 4294901760
        %v4676 = vsub.f32 %v3413, %v4675
        %4677 = vmatmul.mubr.f32.gmra.mxu0 %v4676
        %v4678 = vpop.f32.mrf.mxu0
        %v4679 = vadd.f32 %v4286, %v4678
        %v4680 = vpop.f32.mrf.mxu0
        %4681 = vmatprep.mubr.f32.mxu0 0.0
        %v4682 = vand.u32 %v3416, 4294901760
        %v4683 = vsub.f32 %v3416, %v4682
        %4684 = vmatmul.mubr.f32.gmra.mxu0 %v4683
        %v4685 = vpop.f32.mrf.mxu0
        %v4686 = vadd.f32 %v4292, %v4685
        %v4687 = vpop.f32.mrf.mxu0
        %4688 = vmatprep.mubr.f32.mxu0 0.0
        %v4689 = vand.u32 %v3419, 4294901760
        %v4690 = vsub.f32 %v3419, %v4689
        %4691 = vmatmul.mubr.f32.gmra.mxu0 %v4690
        %v4692 = vpop.f32.mrf.mxu0
        %v4693 = vadd.f32 %v4298, %v4692
        %v4694 = vpop.f32.mrf.mxu0
        %4695 = vmatprep.mubr.f32.mxu0 0.0
        %v4696 = vand.u32 %v3422, 4294901760
        %v4697 = vsub.f32 %v3422, %v4696
        %4698 = vmatmul.mubr.f32.gmra.mxu0 %v4697
        %v4699 = vpop.f32.mrf.mxu0
        %v4700 = vadd.f32 %v4304, %v4699
        %v4701 = vpop.f32.mrf.mxu0
        %4702 = vmatprep.mubr.f32.mxu0 0.0
        %v4703 = vand.u32 %v3425, 4294901760
        %v4704 = vsub.f32 %v3425, %v4703
        %4705 = vmatmul.mubr.f32.gmra.mxu0 %v4704
        %v4706 = vpop.f32.mrf.mxu0
        %v4707 = vadd.f32 %v4310, %v4706
        %v4708 = vpop.f32.mrf.mxu0
        %4709 = vmatprep.mubr.f32.mxu0 0.0
        %v4710 = vand.u32 %v3428, 4294901760
        %v4711 = vsub.f32 %v3428, %v4710
        %4712 = vmatmul.mubr.f32.gmra.mxu0 %v4711
        %v4713 = vpop.f32.mrf.mxu0
        %v4714 = vadd.f32 %v4316, %v4713
        %v4715 = vpop.f32.mrf.mxu0
        %4716 = vmatprep.mubr.f32.mxu0 0.0
        %v4717 = vand.u32 %v3431, 4294901760
        %v4718 = vsub.f32 %v3431, %v4717
        %4719 = vmatmul.mubr.f32.gmra.mxu0 %v4718
        %v4720 = vpop.f32.mrf.mxu0
        %v4721 = vadd.f32 %v4322, %v4720
        %v4722 = vpop.f32.mrf.mxu0
        %4723 = vmatprep.mubr.f32.mxu0 0.0
        %v4724 = vand.u32 %v3434, 4294901760
        %v4725 = vsub.f32 %v3434, %v4724
        %4726 = vmatmul.mubr.f32.gmra.mxu0 %v4725
        %v4727 = vpop.f32.mrf.mxu0
        %v4728 = vadd.f32 %v4328, %v4727
        %v4729 = vpop.f32.mrf.mxu0
        %4730 = vmatprep.mubr.f32.mxu0 0.0
        %v4731 = vand.u32 %v3437, 4294901760
        %v4732 = vsub.f32 %v3437, %v4731
        %4733 = vmatmul.mubr.f32.gmra.mxu0 %v4732
        %v4734 = vpop.f32.mrf.mxu0
        %v4735 = vadd.f32 %v4334, %v4734
        %v4736 = vpop.f32.mrf.mxu0
        %4737 = vmatprep.mubr.f32.mxu0 0.0
        %v4738 = vand.u32 %v3440, 4294901760
        %v4739 = vsub.f32 %v3440, %v4738
        %4740 = vmatmul.mubr.f32.gmra.mxu0 %v4739
        %v4741 = vpop.f32.mrf.mxu0
        %v4742 = vadd.f32 %v4340, %v4741
        %v4743 = vpop.f32.mrf.mxu0
        %4744 = vmatprep.mubr.f32.mxu0 0.0
        %v4745 = vand.u32 %v3443, 4294901760
        %v4746 = vsub.f32 %v3443, %v4745
        %4747 = vmatmul.mubr.f32.gmra.mxu0 %v4746
        %v4748 = vpop.f32.mrf.mxu0
        %v4749 = vadd.f32 %v4346, %v4748
        %v4750 = vpop.f32.mrf.mxu0
        %4751 = vmatprep.mubr.f32.mxu0 0.0
        %v4752 = vand.u32 %v3446, 4294901760
        %v4753 = vsub.f32 %v3446, %v4752
        %4754 = vmatmul.mubr.f32.gmra.mxu0 %v4753
        %v4755 = vpop.f32.mrf.mxu0
        %v4756 = vadd.f32 %v4352, %v4755
        %v4757 = vpop.f32.mrf.mxu0
        %4758 = vmatprep.mubr.f32.mxu0 0.0
        %v4759 = vand.u32 %v3449, 4294901760
        %v4760 = vsub.f32 %v3449, %v4759
        %4761 = vmatmul.mubr.f32.gmra.mxu0 %v4760
        %v4762 = vpop.f32.mrf.mxu0
        %v4763 = vadd.f32 %v4358, %v4762
        %v4764 = vpop.f32.mrf.mxu0
        %4765 = vmatprep.mubr.f32.mxu0 0.0
        %v4766 = vand.u32 %v3452, 4294901760
        %v4767 = vsub.f32 %v3452, %v4766
        %4768 = vmatmul.mubr.f32.gmra.mxu0 %v4767
        %v4769 = vpop.f32.mrf.mxu0
        %v4770 = vadd.f32 %v4364, %v4769
        %v4771 = vpop.f32.mrf.mxu0
        %4772 = vmatprep.mubr.f32.mxu0 0.0
        %v4773 = vand.u32 %v3455, 4294901760
        %v4774 = vsub.f32 %v3455, %v4773
        %4775 = vmatmul.mubr.f32.gmra.mxu0 %v4774
        %v4776 = vpop.f32.mrf.mxu0
        %v4777 = vadd.f32 %v4370, %v4776
        %v4778 = vpop.f32.mrf.mxu0
        %4779 = vmatprep.mubr.f32.mxu0 0.0
        %v4780 = vand.u32 %v3458, 4294901760
        %v4781 = vsub.f32 %v3458, %v4780
        %4782 = vmatmul.mubr.f32.gmra.mxu0 %v4781
        %v4783 = vpop.f32.mrf.mxu0
        %v4784 = vadd.f32 %v4376, %v4783
        %v4785 = vpop.f32.mrf.mxu0
        %4786 = vmatprep.mubr.f32.mxu0 0.0
        %v4787 = vand.u32 %v3461, 4294901760
        %v4788 = vsub.f32 %v3461, %v4787
        %4789 = vmatmul.mubr.f32.gmra.mxu0 %v4788
        %v4790 = vpop.f32.mrf.mxu0
        %v4791 = vadd.f32 %v4382, %v4790
        %v4792 = vpop.f32.mrf.mxu0
        %4793 = vmatprep.mubr.f32.mxu0 0.0
        %v4794 = vand.u32 %v3464, 4294901760
        %v4795 = vsub.f32 %v3464, %v4794
        %4796 = vmatmul.mubr.f32.gmra.mxu0 %v4795
        %v4797 = vpop.f32.mrf.mxu0
        %v4798 = vadd.f32 %v4388, %v4797
        %v4799 = vpop.f32.mrf.mxu0
        %4800 = vmatprep.mubr.f32.mxu0 0.0
        %v4801 = vand.u32 %v3467, 4294901760
        %v4802 = vsub.f32 %v3467, %v4801
        %4803 = vmatmul.mubr.f32.gmra.mxu0 %v4802
        %v4804 = vpop.f32.mrf.mxu0
        %v4805 = vadd.f32 %v4394, %v4804
        %v4806 = vpop.f32.mrf.mxu0
        %4807 = vmatprep.mubr.f32.mxu0 0.0
        %v4808 = vand.u32 %v3470, 4294901760
        %v4809 = vsub.f32 %v3470, %v4808
        %4810 = vmatmul.mubr.f32.gmra.mxu0 %v4809
        %v4811 = vpop.f32.mrf.mxu0
        %v4812 = vadd.f32 %v4400, %v4811
        %v4813 = vpop.f32.mrf.mxu0
        %4814 = vmatprep.mubr.f32.mxu0 0.0
        %v4815 = vand.u32 %v3473, 4294901760
        %v4816 = vsub.f32 %v3473, %v4815
        %4817 = vmatmul.mubr.f32.gmra.mxu0 %v4816
        %v4818 = vpop.f32.mrf.mxu0
        %v4819 = vadd.f32 %v4406, %v4818
        %v4820 = vpop.f32.mrf.mxu0
        %4821 = vmatprep.mubr.f32.mxu0 0.0
        %v4822 = vand.u32 %v3476, 4294901760
        %v4823 = vsub.f32 %v3476, %v4822
        %4824 = vmatmul.mubr.f32.gmra.mxu0 %v4823
        %v4825 = vpop.f32.mrf.mxu0
        %v4826 = vadd.f32 %v4412, %v4825
        %v4827 = vpop.f32.mrf.mxu0
        %4828 = vmatprep.mubr.f32.mxu0 0.0
        %v4829 = vand.u32 %v3479, 4294901760
        %v4830 = vsub.f32 %v3479, %v4829
        %4831 = vmatmul.mubr.f32.gmra.mxu0 %v4830
        %v4832 = vpop.f32.mrf.mxu0
        %v4833 = vadd.f32 %v4418, %v4832
        %v4834 = vpop.f32.mrf.mxu0
        %4835 = vmatprep.mubr.f32.mxu0 0.0
        %v4836 = vand.u32 %v3482, 4294901760
        %v4837 = vsub.f32 %v3482, %v4836
        %4838 = vmatmul.mubr.f32.gmra.mxu0 %v4837
        %v4839 = vpop.f32.mrf.mxu0
        %v4840 = vadd.f32 %v4424, %v4839
        %v4841 = vpop.f32.mrf.mxu0
        %4842 = vmatprep.mubr.f32.mxu0 0.0
        %v4843 = vand.u32 %v3485, 4294901760
        %v4844 = vsub.f32 %v3485, %v4843
        %4845 = vmatmul.mubr.f32.gmra.mxu0 %v4844
        %v4846 = vpop.f32.mrf.mxu0
        %v4847 = vadd.f32 %v4430, %v4846
        %v4848 = vpop.f32.mrf.mxu0
        %4849 = vdwg.mxu0
        %4850 = vmatprep.subr.mxu0 0.0
        %4851 = vmatpush1.msra.mxu0 0.0
        %4852 = vmatprep.subr.mxu0 0.0
        %4853 = vmatpush1.msra.mxu0 0.0
        %4854 = vmatprep.subr.mxu0 0.0
        %4855 = vmatpush1.msra.mxu0 0.0
        %4856 = vmatprep.subr.mxu0 0.0
        %4857 = vmatpush1.msra.mxu0 0.0
        %4858 = vmatprep.subr.mxu0 0.0
        %4859 = vmatpush1.msra.mxu0 0.0
        %4860 = vmatprep.subr.mxu0 0.0
        %4861 = vmatpush1.msra.mxu0 0.0
        %4862 = vmatprep.subr.mxu0 0.0
        %4863 = vmatpush1.msra.mxu0 0.0
        %4864 = vmatprep.subr.mxu0 0.0
        %4865 = vmatpush1.msra.mxu0 0.0
        %4866 = vmatprep.subr.mxu0 0.0
        %v4867 = vand.u32 %v624, 4294901760
        %4868 = vmatpush1.msra.mxu0 %v4867
        %4869 = vmatprep.subr.mxu0 0.0
        %v4870 = vand.u32 %v623, 4294901760
        %4871 = vmatpush1.msra.mxu0 %v4870
        %4872 = vmatprep.subr.mxu0 0.0
        %v4873 = vand.u32 %v622, 4294901760
        %4874 = vmatpush1.msra.mxu0 %v4873
        %4875 = vmatprep.subr.mxu0 0.0
        %v4876 = vand.u32 %v621, 4294901760
        %4877 = vmatpush1.msra.mxu0 %v4876
        %4878 = vmatprep.subr.mxu0 0.0
        %v4879 = vand.u32 %v620, 4294901760
        %4880 = vmatpush1.msra.mxu0 %v4879
        %4881 = vmatprep.subr.mxu0 0.0
        %v4882 = vand.u32 %v619, 4294901760
        %4883 = vmatpush1.msra.mxu0 %v4882
        %4884 = vmatprep.subr.mxu0 0.0
        %v4885 = vand.u32 %v618, 4294901760
        %4886 = vmatpush1.msra.mxu0 %v4885
        %4887 = vmatprep.subr.mxu0 0.0
        %v4888 = vand.u32 %v617, 4294901760
        %4889 = vmatpush1.msra.mxu0 %v4888
        %4890 = vmatprep.subr.mxu0 0.0
        %4891 = vmatpush2.msra.mxu0 0.0
        %4892 = vmatprep.subr.mxu0 0.0
        %4893 = vmatpush2.msra.mxu0 0.0
        %4894 = vmatprep.subr.mxu0 0.0
        %4895 = vmatpush2.msra.mxu0 0.0
        %4896 = vmatprep.subr.mxu0 0.0
        %4897 = vmatpush2.msra.mxu0 0.0
        %4898 = vmatprep.subr.mxu0 0.0
        %4899 = vmatpush2.msra.mxu0 0.0
        %4900 = vmatprep.subr.mxu0 0.0
        %4901 = vmatpush2.msra.mxu0 0.0
        %4902 = vmatprep.subr.mxu0 0.0
        %4903 = vmatpush2.msra.mxu0 0.0
        %4904 = vmatprep.subr.mxu0 0.0
        %4905 = vmatpush2.msra.mxu0 0.0
        %4906 = vmatprep.subr.mxu0 0.0
        %4907 = vmatpush2.msra.mxu0 0.0
        %4908 = vmatprep.subr.mxu0 0.0
        %4909 = vmatpush2.msra.mxu0 0.0
        %4910 = vmatprep.subr.mxu0 0.0
        %4911 = vmatpush2.msra.mxu0 0.0
        %4912 = vmatprep.subr.mxu0 0.0
        %4913 = vmatpush2.msra.mxu0 0.0
        %4914 = vmatprep.subr.mxu0 0.0
        %4915 = vmatpush2.msra.mxu0 0.0
        %4916 = vmatprep.subr.mxu0 0.0
        %4917 = vmatpush2.msra.mxu0 0.0
        %4918 = vmatprep.subr.mxu0 0.0
        %4919 = vmatpush2.msra.mxu0 0.0
        %4920 = vmatprep.subr.mxu0 0.0
        %4921 = vmatpush2.msra.mxu0 0.0
        %4922 = vmatprep.mubr.f32.mxu0 0.0
        %v4923 = vand.u32 %v3344, 4294901760
        %v4924 = vsub.f32 %v3344, %v4923
        %v4925 = vand.u32 %v4924, 4294901760
        %4926 = vmatmul.mubr.f32.gmra.mxu0 %v4925
        %v4927 = vpop.f32.mrf.mxu0
        %v4928 = vadd.f32 %v4518, %v4927
        %v4929 = vpop.f32.mrf.mxu0
        %4930 = vmatprep.mubr.f32.mxu0 0.0
        %v4931 = vand.u32 %v3347, 4294901760
        %v4932 = vsub.f32 %v3347, %v4931
        %v4933 = vand.u32 %v4932, 4294901760
        %4934 = vmatmul.mubr.f32.gmra.mxu0 %v4933
        %v4935 = vpop.f32.mrf.mxu0
        %v4936 = vadd.f32 %v4525, %v4935
        %v4937 = vpop.f32.mrf.mxu0
        %4938 = vmatprep.mubr.f32.mxu0 0.0
        %v4939 = vand.u32 %v3350, 4294901760
        %v4940 = vsub.f32 %v3350, %v4939
        %v4941 = vand.u32 %v4940, 4294901760
        %4942 = vmatmul.mubr.f32.gmra.mxu0 %v4941
        %v4943 = vpop.f32.mrf.mxu0
        %v4944 = vadd.f32 %v4532, %v4943
        %v4945 = vpop.f32.mrf.mxu0
        %4946 = vmatprep.mubr.f32.mxu0 0.0
        %v4947 = vand.u32 %v3353, 4294901760
        %v4948 = vsub.f32 %v3353, %v4947
        %v4949 = vand.u32 %v4948, 4294901760
        %4950 = vmatmul.mubr.f32.gmra.mxu0 %v4949
        %v4951 = vpop.f32.mrf.mxu0
        %v4952 = vadd.f32 %v4539, %v4951
        %v4953 = vpop.f32.mrf.mxu0
        %4954 = vmatprep.mubr.f32.mxu0 0.0
        %v4955 = vand.u32 %v3356, 4294901760
        %v4956 = vsub.f32 %v3356, %v4955
        %v4957 = vand.u32 %v4956, 4294901760
        %4958 = vmatmul.mubr.f32.gmra.mxu0 %v4957
        %v4959 = vpop.f32.mrf.mxu0
        %v4960 = vadd.f32 %v4546, %v4959
        %v4961 = vpop.f32.mrf.mxu0
        %4962 = vmatprep.mubr.f32.mxu0 0.0
        %v4963 = vand.u32 %v3359, 4294901760
        %v4964 = vsub.f32 %v3359, %v4963
        %v4965 = vand.u32 %v4964, 4294901760
        %4966 = vmatmul.mubr.f32.gmra.mxu0 %v4965
        %v4967 = vpop.f32.mrf.mxu0
        %v4968 = vadd.f32 %v4553, %v4967
        %v4969 = vpop.f32.mrf.mxu0
        %4970 = vmatprep.mubr.f32.mxu0 0.0
        %v4971 = vand.u32 %v3362, 4294901760
        %v4972 = vsub.f32 %v3362, %v4971
        %v4973 = vand.u32 %v4972, 4294901760
        %4974 = vmatmul.mubr.f32.gmra.mxu0 %v4973
        %v4975 = vpop.f32.mrf.mxu0
        %v4976 = vadd.f32 %v4560, %v4975
        %v4977 = vpop.f32.mrf.mxu0
        %4978 = vmatprep.mubr.f32.mxu0 0.0
        %v4979 = vand.u32 %v3365, 4294901760
        %v4980 = vsub.f32 %v3365, %v4979
        %v4981 = vand.u32 %v4980, 4294901760
        %4982 = vmatmul.mubr.f32.gmra.mxu0 %v4981
        %v4983 = vpop.f32.mrf.mxu0
        %v4984 = vadd.f32 %v4567, %v4983
        %v4985 = vpop.f32.mrf.mxu0
        %4986 = vmatprep.mubr.f32.mxu0 0.0
        %v4987 = vand.u32 %v3368, 4294901760
        %v4988 = vsub.f32 %v3368, %v4987
        %v4989 = vand.u32 %v4988, 4294901760
        %4990 = vmatmul.mubr.f32.gmra.mxu0 %v4989
        %v4991 = vpop.f32.mrf.mxu0
        %v4992 = vadd.f32 %v4574, %v4991
        %v4993 = vpop.f32.mrf.mxu0
        %4994 = vmatprep.mubr.f32.mxu0 0.0
        %v4995 = vand.u32 %v3371, 4294901760
        %v4996 = vsub.f32 %v3371, %v4995
        %v4997 = vand.u32 %v4996, 4294901760
        %4998 = vmatmul.mubr.f32.gmra.mxu0 %v4997
        %v4999 = vpop.f32.mrf.mxu0
        %v5000 = vadd.f32 %v4581, %v4999
        %v5001 = vpop.f32.mrf.mxu0
        %5002 = vmatprep.mubr.f32.mxu0 0.0
        %v5003 = vand.u32 %v3374, 4294901760
        %v5004 = vsub.f32 %v3374, %v5003
        %v5005 = vand.u32 %v5004, 4294901760
        %5006 = vmatmul.mubr.f32.gmra.mxu0 %v5005
        %v5007 = vpop.f32.mrf.mxu0
        %v5008 = vadd.f32 %v4588, %v5007
        %v5009 = vpop.f32.mrf.mxu0
        %5010 = vmatprep.mubr.f32.mxu0 0.0
        %v5011 = vand.u32 %v3377, 4294901760
        %v5012 = vsub.f32 %v3377, %v5011
        %v5013 = vand.u32 %v5012, 4294901760
        %5014 = vmatmul.mubr.f32.gmra.mxu0 %v5013
        %v5015 = vpop.f32.mrf.mxu0
        %v5016 = vadd.f32 %v4595, %v5015
        %v5017 = vpop.f32.mrf.mxu0
        %5018 = vmatprep.mubr.f32.mxu0 0.0
        %v5019 = vand.u32 %v3380, 4294901760
        %v5020 = vsub.f32 %v3380, %v5019
        %v5021 = vand.u32 %v5020, 4294901760
        %5022 = vmatmul.mubr.f32.gmra.mxu0 %v5021
        %v5023 = vpop.f32.mrf.mxu0
        %v5024 = vadd.f32 %v4602, %v5023
        %v5025 = vpop.f32.mrf.mxu0
        %5026 = vmatprep.mubr.f32.mxu0 0.0
        %v5027 = vand.u32 %v3383, 4294901760
        %v5028 = vsub.f32 %v3383, %v5027
        %v5029 = vand.u32 %v5028, 4294901760
        %5030 = vmatmul.mubr.f32.gmra.mxu0 %v5029
        %v5031 = vpop.f32.mrf.mxu0
        %v5032 = vadd.f32 %v4609, %v5031
        %v5033 = vpop.f32.mrf.mxu0
        %5034 = vmatprep.mubr.f32.mxu0 0.0
        %v5035 = vand.u32 %v3386, 4294901760
        %v5036 = vsub.f32 %v3386, %v5035
        %v5037 = vand.u32 %v5036, 4294901760
        %5038 = vmatmul.mubr.f32.gmra.mxu0 %v5037
        %v5039 = vpop.f32.mrf.mxu0
        %v5040 = vadd.f32 %v4616, %v5039
        %v5041 = vpop.f32.mrf.mxu0
        %5042 = vmatprep.mubr.f32.mxu0 0.0
        %v5043 = vand.u32 %v3389, 4294901760
        %v5044 = vsub.f32 %v3389, %v5043
        %v5045 = vand.u32 %v5044, 4294901760
        %5046 = vmatmul.mubr.f32.gmra.mxu0 %v5045
        %v5047 = vpop.f32.mrf.mxu0
        %v5048 = vadd.f32 %v4623, %v5047
        %v5049 = vpop.f32.mrf.mxu0
        %5050 = vmatprep.mubr.f32.mxu0 0.0
        %v5051 = vand.u32 %v3392, 4294901760
        %v5052 = vsub.f32 %v3392, %v5051
        %v5053 = vand.u32 %v5052, 4294901760
        %5054 = vmatmul.mubr.f32.gmra.mxu0 %v5053
        %v5055 = vpop.f32.mrf.mxu0
        %v5056 = vadd.f32 %v4630, %v5055
        %v5057 = vpop.f32.mrf.mxu0
        %5058 = vmatprep.mubr.f32.mxu0 0.0
        %v5059 = vand.u32 %v3395, 4294901760
        %v5060 = vsub.f32 %v3395, %v5059
        %v5061 = vand.u32 %v5060, 4294901760
        %5062 = vmatmul.mubr.f32.gmra.mxu0 %v5061
        %v5063 = vpop.f32.mrf.mxu0
        %v5064 = vadd.f32 %v4637, %v5063
        %v5065 = vpop.f32.mrf.mxu0
        %5066 = vmatprep.mubr.f32.mxu0 0.0
        %v5067 = vand.u32 %v3398, 4294901760
        %v5068 = vsub.f32 %v3398, %v5067
        %v5069 = vand.u32 %v5068, 4294901760
        %5070 = vmatmul.mubr.f32.gmra.mxu0 %v5069
        %v5071 = vpop.f32.mrf.mxu0
        %v5072 = vadd.f32 %v4644, %v5071
        %v5073 = vpop.f32.mrf.mxu0
        %5074 = vmatprep.mubr.f32.mxu0 0.0
        %v5075 = vand.u32 %v3401, 4294901760
        %v5076 = vsub.f32 %v3401, %v5075
        %v5077 = vand.u32 %v5076, 4294901760
        %5078 = vmatmul.mubr.f32.gmra.mxu0 %v5077
        %v5079 = vpop.f32.mrf.mxu0
        %v5080 = vadd.f32 %v4651, %v5079
        %v5081 = vpop.f32.mrf.mxu0
        %5082 = vmatprep.mubr.f32.mxu0 0.0
        %v5083 = vand.u32 %v3404, 4294901760
        %v5084 = vsub.f32 %v3404, %v5083
        %v5085 = vand.u32 %v5084, 4294901760
        %5086 = vmatmul.mubr.f32.gmra.mxu0 %v5085
        %v5087 = vpop.f32.mrf.mxu0
        %v5088 = vadd.f32 %v4658, %v5087
        %v5089 = vpop.f32.mrf.mxu0
        %5090 = vmatprep.mubr.f32.mxu0 0.0
        %v5091 = vand.u32 %v3407, 4294901760
        %v5092 = vsub.f32 %v3407, %v5091
        %v5093 = vand.u32 %v5092, 4294901760
        %5094 = vmatmul.mubr.f32.gmra.mxu0 %v5093
        %v5095 = vpop.f32.mrf.mxu0
        %v5096 = vadd.f32 %v4665, %v5095
        %v5097 = vpop.f32.mrf.mxu0
        %5098 = vmatprep.mubr.f32.mxu0 0.0
        %v5099 = vand.u32 %v3410, 4294901760
        %v5100 = vsub.f32 %v3410, %v5099
        %v5101 = vand.u32 %v5100, 4294901760
        %5102 = vmatmul.mubr.f32.gmra.mxu0 %v5101
        %v5103 = vpop.f32.mrf.mxu0
        %v5104 = vadd.f32 %v4672, %v5103
        %v5105 = vpop.f32.mrf.mxu0
        %5106 = vmatprep.mubr.f32.mxu0 0.0
        %v5107 = vand.u32 %v3413, 4294901760
        %v5108 = vsub.f32 %v3413, %v5107
        %v5109 = vand.u32 %v5108, 4294901760
        %5110 = vmatmul.mubr.f32.gmra.mxu0 %v5109
        %v5111 = vpop.f32.mrf.mxu0
        %v5112 = vadd.f32 %v4679, %v5111
        %v5113 = vpop.f32.mrf.mxu0
        %5114 = vmatprep.mubr.f32.mxu0 0.0
        %v5115 = vand.u32 %v3416, 4294901760
        %v5116 = vsub.f32 %v3416, %v5115
        %v5117 = vand.u32 %v5116, 4294901760
        %5118 = vmatmul.mubr.f32.gmra.mxu0 %v5117
        %v5119 = vpop.f32.mrf.mxu0
        %v5120 = vadd.f32 %v4686, %v5119
        %v5121 = vpop.f32.mrf.mxu0
        %5122 = vmatprep.mubr.f32.mxu0 0.0
        %v5123 = vand.u32 %v3419, 4294901760
        %v5124 = vsub.f32 %v3419, %v5123
        %v5125 = vand.u32 %v5124, 4294901760
        %5126 = vmatmul.mubr.f32.gmra.mxu0 %v5125
        %v5127 = vpop.f32.mrf.mxu0
        %v5128 = vadd.f32 %v4693, %v5127
        %v5129 = vpop.f32.mrf.mxu0
        %5130 = vmatprep.mubr.f32.mxu0 0.0
        %v5131 = vand.u32 %v3422, 4294901760
        %v5132 = vsub.f32 %v3422, %v5131
        %v5133 = vand.u32 %v5132, 4294901760
        %5134 = vmatmul.mubr.f32.gmra.mxu0 %v5133
        %v5135 = vpop.f32.mrf.mxu0
        %v5136 = vadd.f32 %v4700, %v5135
        %v5137 = vpop.f32.mrf.mxu0
        %5138 = vmatprep.mubr.f32.mxu0 0.0
        %v5139 = vand.u32 %v3425, 4294901760
        %v5140 = vsub.f32 %v3425, %v5139
        %v5141 = vand.u32 %v5140, 4294901760
        %5142 = vmatmul.mubr.f32.gmra.mxu0 %v5141
        %v5143 = vpop.f32.mrf.mxu0
        %v5144 = vadd.f32 %v4707, %v5143
        %v5145 = vpop.f32.mrf.mxu0
        %5146 = vmatprep.mubr.f32.mxu0 0.0
        %v5147 = vand.u32 %v3428, 4294901760
        %v5148 = vsub.f32 %v3428, %v5147
        %v5149 = vand.u32 %v5148, 4294901760
        %5150 = vmatmul.mubr.f32.gmra.mxu0 %v5149
        %v5151 = vpop.f32.mrf.mxu0
        %v5152 = vadd.f32 %v4714, %v5151
        %v5153 = vpop.f32.mrf.mxu0
        %5154 = vmatprep.mubr.f32.mxu0 0.0
        %v5155 = vand.u32 %v3431, 4294901760
        %v5156 = vsub.f32 %v3431, %v5155
        %v5157 = vand.u32 %v5156, 4294901760
        %5158 = vmatmul.mubr.f32.gmra.mxu0 %v5157
        %v5159 = vpop.f32.mrf.mxu0
        %v5160 = vadd.f32 %v4721, %v5159
        %v5161 = vpop.f32.mrf.mxu0
        %5162 = vmatprep.mubr.f32.mxu0 0.0
        %v5163 = vand.u32 %v3434, 4294901760
        %v5164 = vsub.f32 %v3434, %v5163
        %v5165 = vand.u32 %v5164, 4294901760
        %5166 = vmatmul.mubr.f32.gmra.mxu0 %v5165
        %v5167 = vpop.f32.mrf.mxu0
        %v5168 = vadd.f32 %v4728, %v5167
        %v5169 = vpop.f32.mrf.mxu0
        %5170 = vmatprep.mubr.f32.mxu0 0.0
        %v5171 = vand.u32 %v3437, 4294901760
        %v5172 = vsub.f32 %v3437, %v5171
        %v5173 = vand.u32 %v5172, 4294901760
        %5174 = vmatmul.mubr.f32.gmra.mxu0 %v5173
        %v5175 = vpop.f32.mrf.mxu0
        %v5176 = vadd.f32 %v4735, %v5175
        %v5177 = vpop.f32.mrf.mxu0
        %5178 = vmatprep.mubr.f32.mxu0 0.0
        %v5179 = vand.u32 %v3440, 4294901760
        %v5180 = vsub.f32 %v3440, %v5179
        %v5181 = vand.u32 %v5180, 4294901760
        %5182 = vmatmul.mubr.f32.gmra.mxu0 %v5181
        %v5183 = vpop.f32.mrf.mxu0
        %v5184 = vadd.f32 %v4742, %v5183
        %v5185 = vpop.f32.mrf.mxu0
        %5186 = vmatprep.mubr.f32.mxu0 0.0
        %v5187 = vand.u32 %v3443, 4294901760
        %v5188 = vsub.f32 %v3443, %v5187
        %v5189 = vand.u32 %v5188, 4294901760
        %5190 = vmatmul.mubr.f32.gmra.mxu0 %v5189
        %v5191 = vpop.f32.mrf.mxu0
        %v5192 = vadd.f32 %v4749, %v5191
        %v5193 = vpop.f32.mrf.mxu0
        %5194 = vmatprep.mubr.f32.mxu0 0.0
        %v5195 = vand.u32 %v3446, 4294901760
        %v5196 = vsub.f32 %v3446, %v5195
        %v5197 = vand.u32 %v5196, 4294901760
        %5198 = vmatmul.mubr.f32.gmra.mxu0 %v5197
        %v5199 = vpop.f32.mrf.mxu0
        %v5200 = vadd.f32 %v4756, %v5199
        %v5201 = vpop.f32.mrf.mxu0
        %5202 = vmatprep.mubr.f32.mxu0 0.0
        %v5203 = vand.u32 %v3449, 4294901760
        %v5204 = vsub.f32 %v3449, %v5203
        %v5205 = vand.u32 %v5204, 4294901760
        %5206 = vmatmul.mubr.f32.gmra.mxu0 %v5205
        %v5207 = vpop.f32.mrf.mxu0
        %v5208 = vadd.f32 %v4763, %v5207
        %v5209 = vpop.f32.mrf.mxu0
        %5210 = vmatprep.mubr.f32.mxu0 0.0
        %v5211 = vand.u32 %v3452, 4294901760
        %v5212 = vsub.f32 %v3452, %v5211
        %v5213 = vand.u32 %v5212, 4294901760
        %5214 = vmatmul.mubr.f32.gmra.mxu0 %v5213
        %v5215 = vpop.f32.mrf.mxu0
        %v5216 = vadd.f32 %v4770, %v5215
        %v5217 = vpop.f32.mrf.mxu0
        %5218 = vmatprep.mubr.f32.mxu0 0.0
        %v5219 = vand.u32 %v3455, 4294901760
        %v5220 = vsub.f32 %v3455, %v5219
        %v5221 = vand.u32 %v5220, 4294901760
        %5222 = vmatmul.mubr.f32.gmra.mxu0 %v5221
        %v5223 = vpop.f32.mrf.mxu0
        %v5224 = vadd.f32 %v4777, %v5223
        %v5225 = vpop.f32.mrf.mxu0
        %5226 = vmatprep.mubr.f32.mxu0 0.0
        %v5227 = vand.u32 %v3458, 4294901760
        %v5228 = vsub.f32 %v3458, %v5227
        %v5229 = vand.u32 %v5228, 4294901760
        %5230 = vmatmul.mubr.f32.gmra.mxu0 %v5229
        %v5231 = vpop.f32.mrf.mxu0
        %v5232 = vadd.f32 %v4784, %v5231
        %v5233 = vpop.f32.mrf.mxu0
        %5234 = vmatprep.mubr.f32.mxu0 0.0
        %v5235 = vand.u32 %v3461, 4294901760
        %v5236 = vsub.f32 %v3461, %v5235
        %v5237 = vand.u32 %v5236, 4294901760
        %5238 = vmatmul.mubr.f32.gmra.mxu0 %v5237
        %v5239 = vpop.f32.mrf.mxu0
        %v5240 = vadd.f32 %v4791, %v5239
        %v5241 = vpop.f32.mrf.mxu0
        %5242 = vmatprep.mubr.f32.mxu0 0.0
        %v5243 = vand.u32 %v3464, 4294901760
        %v5244 = vsub.f32 %v3464, %v5243
        %v5245 = vand.u32 %v5244, 4294901760
        %5246 = vmatmul.mubr.f32.gmra.mxu0 %v5245
        %v5247 = vpop.f32.mrf.mxu0
        %v5248 = vadd.f32 %v4798, %v5247
        %v5249 = vpop.f32.mrf.mxu0
        %5250 = vmatprep.mubr.f32.mxu0 0.0
        %v5251 = vand.u32 %v3467, 4294901760
        %v5252 = vsub.f32 %v3467, %v5251
        %v5253 = vand.u32 %v5252, 4294901760
        %5254 = vmatmul.mubr.f32.gmra.mxu0 %v5253
        %v5255 = vpop.f32.mrf.mxu0
        %v5256 = vadd.f32 %v4805, %v5255
        %v5257 = vpop.f32.mrf.mxu0
        %5258 = vmatprep.mubr.f32.mxu0 0.0
        %v5259 = vand.u32 %v3470, 4294901760
        %v5260 = vsub.f32 %v3470, %v5259
        %v5261 = vand.u32 %v5260, 4294901760
        %5262 = vmatmul.mubr.f32.gmra.mxu0 %v5261
        %v5263 = vpop.f32.mrf.mxu0
        %v5264 = vadd.f32 %v4812, %v5263
        %v5265 = vpop.f32.mrf.mxu0
        %5266 = vmatprep.mubr.f32.mxu0 0.0
        %v5267 = vand.u32 %v3473, 4294901760
        %v5268 = vsub.f32 %v3473, %v5267
        %v5269 = vand.u32 %v5268, 4294901760
        %5270 = vmatmul.mubr.f32.gmra.mxu0 %v5269
        %v5271 = vpop.f32.mrf.mxu0
        %v5272 = vadd.f32 %v4819, %v5271
        %v5273 = vpop.f32.mrf.mxu0
        %5274 = vmatprep.mubr.f32.mxu0 0.0
        %v5275 = vand.u32 %v3476, 4294901760
        %v5276 = vsub.f32 %v3476, %v5275
        %v5277 = vand.u32 %v5276, 4294901760
        %5278 = vmatmul.mubr.f32.gmra.mxu0 %v5277
        %v5279 = vpop.f32.mrf.mxu0
        %v5280 = vadd.f32 %v4826, %v5279
        %v5281 = vpop.f32.mrf.mxu0
        %5282 = vmatprep.mubr.f32.mxu0 0.0
        %v5283 = vand.u32 %v3479, 4294901760
        %v5284 = vsub.f32 %v3479, %v5283
        %v5285 = vand.u32 %v5284, 4294901760
        %5286 = vmatmul.mubr.f32.gmra.mxu0 %v5285
        %v5287 = vpop.f32.mrf.mxu0
        %v5288 = vadd.f32 %v4833, %v5287
        %v5289 = vpop.f32.mrf.mxu0
        %5290 = vmatprep.mubr.f32.mxu0 0.0
        %v5291 = vand.u32 %v3482, 4294901760
        %v5292 = vsub.f32 %v3482, %v5291
        %v5293 = vand.u32 %v5292, 4294901760
        %5294 = vmatmul.mubr.f32.gmra.mxu0 %v5293
        %v5295 = vpop.f32.mrf.mxu0
        %v5296 = vadd.f32 %v4840, %v5295
        %v5297 = vpop.f32.mrf.mxu0
        %5298 = vmatprep.mubr.f32.mxu0 0.0
        %v5299 = vand.u32 %v3485, 4294901760
        %v5300 = vsub.f32 %v3485, %v5299
        %v5301 = vand.u32 %v5300, 4294901760
        %5302 = vmatmul.mubr.f32.gmra.mxu0 %v5301
        %v5303 = vpop.f32.mrf.mxu0
        %v5304 = vadd.f32 %v4847, %v5303
        %v5305 = vpop.f32.mrf.mxu0
        %5306 = vdwg.mxu0
        %5307 = vmatprep.subr.mxu0 0.0
        %5308 = vmatpush1.msra.mxu0 0.0
        %5309 = vmatprep.subr.mxu0 0.0
        %5310 = vmatpush1.msra.mxu0 0.0
        %5311 = vmatprep.subr.mxu0 0.0
        %5312 = vmatpush1.msra.mxu0 0.0
        %5313 = vmatprep.subr.mxu0 0.0
        %5314 = vmatpush1.msra.mxu0 0.0
        %5315 = vmatprep.subr.mxu0 0.0
        %5316 = vmatpush1.msra.mxu0 0.0
        %5317 = vmatprep.subr.mxu0 0.0
        %5318 = vmatpush1.msra.mxu0 0.0
        %5319 = vmatprep.subr.mxu0 0.0
        %5320 = vmatpush1.msra.mxu0 0.0
        %5321 = vmatprep.subr.mxu0 0.0
        %5322 = vmatpush1.msra.mxu0 0.0
        %5323 = vmatprep.subr.mxu0 0.0
        %v5324 = vand.u32 %v624, 4294901760
        %v5325 = vsub.f32 %v624, %v5324
        %v5326 = vand.u32 %v5325, 4294901760
        %5327 = vmatpush1.msra.mxu0 %v5326
        %5328 = vmatprep.subr.mxu0 0.0
        %v5329 = vand.u32 %v623, 4294901760
        %v5330 = vsub.f32 %v623, %v5329
        %v5331 = vand.u32 %v5330, 4294901760
        %5332 = vmatpush1.msra.mxu0 %v5331
        %5333 = vmatprep.subr.mxu0 0.0
        %v5334 = vand.u32 %v622, 4294901760
        %v5335 = vsub.f32 %v622, %v5334
        %v5336 = vand.u32 %v5335, 4294901760
        %5337 = vmatpush1.msra.mxu0 %v5336
        %5338 = vmatprep.subr.mxu0 0.0
        %v5339 = vand.u32 %v621, 4294901760
        %v5340 = vsub.f32 %v621, %v5339
        %v5341 = vand.u32 %v5340, 4294901760
        %5342 = vmatpush1.msra.mxu0 %v5341
        %5343 = vmatprep.subr.mxu0 0.0
        %v5344 = vand.u32 %v620, 4294901760
        %v5345 = vsub.f32 %v620, %v5344
        %v5346 = vand.u32 %v5345, 4294901760
        %5347 = vmatpush1.msra.mxu0 %v5346
        %5348 = vmatprep.subr.mxu0 0.0
        %v5349 = vand.u32 %v619, 4294901760
        %v5350 = vsub.f32 %v619, %v5349
        %v5351 = vand.u32 %v5350, 4294901760
        %5352 = vmatpush1.msra.mxu0 %v5351
        %5353 = vmatprep.subr.mxu0 0.0
        %v5354 = vand.u32 %v618, 4294901760
        %v5355 = vsub.f32 %v618, %v5354
        %v5356 = vand.u32 %v5355, 4294901760
        %5357 = vmatpush1.msra.mxu0 %v5356
        %5358 = vmatprep.subr.mxu0 0.0
        %v5359 = vand.u32 %v617, 4294901760
        %v5360 = vsub.f32 %v617, %v5359
        %v5361 = vand.u32 %v5360, 4294901760
        %5362 = vmatpush1.msra.mxu0 %v5361
        %5363 = vmatprep.subr.mxu0 0.0
        %5364 = vmatpush2.msra.mxu0 0.0
        %5365 = vmatprep.subr.mxu0 0.0
        %5366 = vmatpush2.msra.mxu0 0.0
        %5367 = vmatprep.subr.mxu0 0.0
        %5368 = vmatpush2.msra.mxu0 0.0
        %5369 = vmatprep.subr.mxu0 0.0
        %5370 = vmatpush2.msra.mxu0 0.0
        %5371 = vmatprep.subr.mxu0 0.0
        %5372 = vmatpush2.msra.mxu0 0.0
        %5373 = vmatprep.subr.mxu0 0.0
        %5374 = vmatpush2.msra.mxu0 0.0
        %5375 = vmatprep.subr.mxu0 0.0
        %5376 = vmatpush2.msra.mxu0 0.0
        %5377 = vmatprep.subr.mxu0 0.0
        %5378 = vmatpush2.msra.mxu0 0.0
        %5379 = vmatprep.subr.mxu0 0.0
        %5380 = vmatpush2.msra.mxu0 0.0
        %5381 = vmatprep.subr.mxu0 0.0
        %5382 = vmatpush2.msra.mxu0 0.0
        %5383 = vmatprep.subr.mxu0 0.0
        %5384 = vmatpush2.msra.mxu0 0.0
        %5385 = vmatprep.subr.mxu0 0.0
        %5386 = vmatpush2.msra.mxu0 0.0
        %5387 = vmatprep.subr.mxu0 0.0
        %5388 = vmatpush2.msra.mxu0 0.0
        %5389 = vmatprep.subr.mxu0 0.0
        %5390 = vmatpush2.msra.mxu0 0.0
        %5391 = vmatprep.subr.mxu0 0.0
        %5392 = vmatpush2.msra.mxu0 0.0
        %5393 = vmatprep.subr.mxu0 0.0
        %5394 = vmatpush2.msra.mxu0 0.0
        %5395 = vmatprep.mubr.f32.mxu0 0.0
        %v5396 = vand.u32 %v3344, 4294901760
        %5397 = vmatmul.mubr.f32.gmra.mxu0 %v5396
        %v5398 = vpop.f32.mrf.mxu0
        %v5399 = vadd.f32 %v4928, %v5398
        %v5400 = vpop.f32.mrf.mxu0
        %5401 = vmatprep.mubr.f32.mxu0 0.0
        %v5402 = vand.u32 %v3347, 4294901760
        %5403 = vmatmul.mubr.f32.gmra.mxu0 %v5402
        %v5404 = vpop.f32.mrf.mxu0
        %v5405 = vadd.f32 %v4936, %v5404
        %v5406 = vpop.f32.mrf.mxu0
        %5407 = vmatprep.mubr.f32.mxu0 0.0
        %v5408 = vand.u32 %v3350, 4294901760
        %5409 = vmatmul.mubr.f32.gmra.mxu0 %v5408
        %v5410 = vpop.f32.mrf.mxu0
        %v5411 = vadd.f32 %v4944, %v5410
        %v5412 = vpop.f32.mrf.mxu0
        %5413 = vmatprep.mubr.f32.mxu0 0.0
        %v5414 = vand.u32 %v3353, 4294901760
        %5415 = vmatmul.mubr.f32.gmra.mxu0 %v5414
        %v5416 = vpop.f32.mrf.mxu0
        %v5417 = vadd.f32 %v4952, %v5416
        %v5418 = vpop.f32.mrf.mxu0
        %5419 = vmatprep.mubr.f32.mxu0 0.0
        %v5420 = vand.u32 %v3356, 4294901760
        %5421 = vmatmul.mubr.f32.gmra.mxu0 %v5420
        %v5422 = vpop.f32.mrf.mxu0
        %v5423 = vadd.f32 %v4960, %v5422
        %v5424 = vpop.f32.mrf.mxu0
        %5425 = vmatprep.mubr.f32.mxu0 0.0
        %v5426 = vand.u32 %v3359, 4294901760
        %5427 = vmatmul.mubr.f32.gmra.mxu0 %v5426
        %v5428 = vpop.f32.mrf.mxu0
        %v5429 = vadd.f32 %v4968, %v5428
        %v5430 = vpop.f32.mrf.mxu0
        %5431 = vmatprep.mubr.f32.mxu0 0.0
        %v5432 = vand.u32 %v3362, 4294901760
        %5433 = vmatmul.mubr.f32.gmra.mxu0 %v5432
        %v5434 = vpop.f32.mrf.mxu0
        %v5435 = vadd.f32 %v4976, %v5434
        %v5436 = vpop.f32.mrf.mxu0
        %5437 = vmatprep.mubr.f32.mxu0 0.0
        %v5438 = vand.u32 %v3365, 4294901760
        %5439 = vmatmul.mubr.f32.gmra.mxu0 %v5438
        %v5440 = vpop.f32.mrf.mxu0
        %v5441 = vadd.f32 %v4984, %v5440
        %v5442 = vpop.f32.mrf.mxu0
        %5443 = vmatprep.mubr.f32.mxu0 0.0
        %v5444 = vand.u32 %v3368, 4294901760
        %5445 = vmatmul.mubr.f32.gmra.mxu0 %v5444
        %v5446 = vpop.f32.mrf.mxu0
        %v5447 = vadd.f32 %v4992, %v5446
        %v5448 = vpop.f32.mrf.mxu0
        %5449 = vmatprep.mubr.f32.mxu0 0.0
        %v5450 = vand.u32 %v3371, 4294901760
        %5451 = vmatmul.mubr.f32.gmra.mxu0 %v5450
        %v5452 = vpop.f32.mrf.mxu0
        %v5453 = vadd.f32 %v5000, %v5452
        %v5454 = vpop.f32.mrf.mxu0
        %5455 = vmatprep.mubr.f32.mxu0 0.0
        %v5456 = vand.u32 %v3374, 4294901760
        %5457 = vmatmul.mubr.f32.gmra.mxu0 %v5456
        %v5458 = vpop.f32.mrf.mxu0
        %v5459 = vadd.f32 %v5008, %v5458
        %v5460 = vpop.f32.mrf.mxu0
        %5461 = vmatprep.mubr.f32.mxu0 0.0
        %v5462 = vand.u32 %v3377, 4294901760
        %5463 = vmatmul.mubr.f32.gmra.mxu0 %v5462
        %v5464 = vpop.f32.mrf.mxu0
        %v5465 = vadd.f32 %v5016, %v5464
        %v5466 = vpop.f32.mrf.mxu0
        %5467 = vmatprep.mubr.f32.mxu0 0.0
        %v5468 = vand.u32 %v3380, 4294901760
        %5469 = vmatmul.mubr.f32.gmra.mxu0 %v5468
        %v5470 = vpop.f32.mrf.mxu0
        %v5471 = vadd.f32 %v5024, %v5470
        %v5472 = vpop.f32.mrf.mxu0
        %5473 = vmatprep.mubr.f32.mxu0 0.0
        %v5474 = vand.u32 %v3383, 4294901760
        %5475 = vmatmul.mubr.f32.gmra.mxu0 %v5474
        %v5476 = vpop.f32.mrf.mxu0
        %v5477 = vadd.f32 %v5032, %v5476
        %v5478 = vpop.f32.mrf.mxu0
        %5479 = vmatprep.mubr.f32.mxu0 0.0
        %v5480 = vand.u32 %v3386, 4294901760
        %5481 = vmatmul.mubr.f32.gmra.mxu0 %v5480
        %v5482 = vpop.f32.mrf.mxu0
        %v5483 = vadd.f32 %v5040, %v5482
        %v5484 = vpop.f32.mrf.mxu0
        %5485 = vmatprep.mubr.f32.mxu0 0.0
        %v5486 = vand.u32 %v3389, 4294901760
        %5487 = vmatmul.mubr.f32.gmra.mxu0 %v5486
        %v5488 = vpop.f32.mrf.mxu0
        %v5489 = vadd.f32 %v5048, %v5488
        %v5490 = vpop.f32.mrf.mxu0
        %5491 = vmatprep.mubr.f32.mxu0 0.0
        %v5492 = vand.u32 %v3392, 4294901760
        %5493 = vmatmul.mubr.f32.gmra.mxu0 %v5492
        %v5494 = vpop.f32.mrf.mxu0
        %v5495 = vadd.f32 %v5056, %v5494
        %v5496 = vpop.f32.mrf.mxu0
        %5497 = vmatprep.mubr.f32.mxu0 0.0
        %v5498 = vand.u32 %v3395, 4294901760
        %5499 = vmatmul.mubr.f32.gmra.mxu0 %v5498
        %v5500 = vpop.f32.mrf.mxu0
        %v5501 = vadd.f32 %v5064, %v5500
        %v5502 = vpop.f32.mrf.mxu0
        %5503 = vmatprep.mubr.f32.mxu0 0.0
        %v5504 = vand.u32 %v3398, 4294901760
        %5505 = vmatmul.mubr.f32.gmra.mxu0 %v5504
        %v5506 = vpop.f32.mrf.mxu0
        %v5507 = vadd.f32 %v5072, %v5506
        %v5508 = vpop.f32.mrf.mxu0
        %5509 = vmatprep.mubr.f32.mxu0 0.0
        %v5510 = vand.u32 %v3401, 4294901760
        %5511 = vmatmul.mubr.f32.gmra.mxu0 %v5510
        %v5512 = vpop.f32.mrf.mxu0
        %v5513 = vadd.f32 %v5080, %v5512
        %v5514 = vpop.f32.mrf.mxu0
        %5515 = vmatprep.mubr.f32.mxu0 0.0
        %v5516 = vand.u32 %v3404, 4294901760
        %5517 = vmatmul.mubr.f32.gmra.mxu0 %v5516
        %v5518 = vpop.f32.mrf.mxu0
        %v5519 = vadd.f32 %v5088, %v5518
        %v5520 = vpop.f32.mrf.mxu0
        %5521 = vmatprep.mubr.f32.mxu0 0.0
        %v5522 = vand.u32 %v3407, 4294901760
        %5523 = vmatmul.mubr.f32.gmra.mxu0 %v5522
        %v5524 = vpop.f32.mrf.mxu0
        %v5525 = vadd.f32 %v5096, %v5524
        %v5526 = vpop.f32.mrf.mxu0
        %5527 = vmatprep.mubr.f32.mxu0 0.0
        %v5528 = vand.u32 %v3410, 4294901760
        %5529 = vmatmul.mubr.f32.gmra.mxu0 %v5528
        %v5530 = vpop.f32.mrf.mxu0
        %v5531 = vadd.f32 %v5104, %v5530
        %v5532 = vpop.f32.mrf.mxu0
        %5533 = vmatprep.mubr.f32.mxu0 0.0
        %v5534 = vand.u32 %v3413, 4294901760
        %5535 = vmatmul.mubr.f32.gmra.mxu0 %v5534
        %v5536 = vpop.f32.mrf.mxu0
        %v5537 = vadd.f32 %v5112, %v5536
        %v5538 = vpop.f32.mrf.mxu0
        %5539 = vmatprep.mubr.f32.mxu0 0.0
        %v5540 = vand.u32 %v3416, 4294901760
        %5541 = vmatmul.mubr.f32.gmra.mxu0 %v5540
        %v5542 = vpop.f32.mrf.mxu0
        %v5543 = vadd.f32 %v5120, %v5542
        %v5544 = vpop.f32.mrf.mxu0
        %5545 = vmatprep.mubr.f32.mxu0 0.0
        %v5546 = vand.u32 %v3419, 4294901760
        %5547 = vmatmul.mubr.f32.gmra.mxu0 %v5546
        %v5548 = vpop.f32.mrf.mxu0
        %v5549 = vadd.f32 %v5128, %v5548
        %v5550 = vpop.f32.mrf.mxu0
        %5551 = vmatprep.mubr.f32.mxu0 0.0
        %v5552 = vand.u32 %v3422, 4294901760
        %5553 = vmatmul.mubr.f32.gmra.mxu0 %v5552
        %v5554 = vpop.f32.mrf.mxu0
        %v5555 = vadd.f32 %v5136, %v5554
        %v5556 = vpop.f32.mrf.mxu0
        %5557 = vmatprep.mubr.f32.mxu0 0.0
        %v5558 = vand.u32 %v3425, 4294901760
        %5559 = vmatmul.mubr.f32.gmra.mxu0 %v5558
        %v5560 = vpop.f32.mrf.mxu0
        %v5561 = vadd.f32 %v5144, %v5560
        %v5562 = vpop.f32.mrf.mxu0
        %5563 = vmatprep.mubr.f32.mxu0 0.0
        %v5564 = vand.u32 %v3428, 4294901760
        %5565 = vmatmul.mubr.f32.gmra.mxu0 %v5564
        %v5566 = vpop.f32.mrf.mxu0
        %v5567 = vadd.f32 %v5152, %v5566
        %v5568 = vpop.f32.mrf.mxu0
        %5569 = vmatprep.mubr.f32.mxu0 0.0
        %v5570 = vand.u32 %v3431, 4294901760
        %5571 = vmatmul.mubr.f32.gmra.mxu0 %v5570
        %v5572 = vpop.f32.mrf.mxu0
        %v5573 = vadd.f32 %v5160, %v5572
        %v5574 = vpop.f32.mrf.mxu0
        %5575 = vmatprep.mubr.f32.mxu0 0.0
        %v5576 = vand.u32 %v3434, 4294901760
        %5577 = vmatmul.mubr.f32.gmra.mxu0 %v5576
        %v5578 = vpop.f32.mrf.mxu0
        %v5579 = vadd.f32 %v5168, %v5578
        %v5580 = vpop.f32.mrf.mxu0
        %5581 = vmatprep.mubr.f32.mxu0 0.0
        %v5582 = vand.u32 %v3437, 4294901760
        %5583 = vmatmul.mubr.f32.gmra.mxu0 %v5582
        %v5584 = vpop.f32.mrf.mxu0
        %v5585 = vadd.f32 %v5176, %v5584
        %v5586 = vpop.f32.mrf.mxu0
        %5587 = vmatprep.mubr.f32.mxu0 0.0
        %v5588 = vand.u32 %v3440, 4294901760
        %5589 = vmatmul.mubr.f32.gmra.mxu0 %v5588
        %v5590 = vpop.f32.mrf.mxu0
        %v5591 = vadd.f32 %v5184, %v5590
        %v5592 = vpop.f32.mrf.mxu0
        %5593 = vmatprep.mubr.f32.mxu0 0.0
        %v5594 = vand.u32 %v3443, 4294901760
        %5595 = vmatmul.mubr.f32.gmra.mxu0 %v5594
        %v5596 = vpop.f32.mrf.mxu0
        %v5597 = vadd.f32 %v5192, %v5596
        %v5598 = vpop.f32.mrf.mxu0
        %5599 = vmatprep.mubr.f32.mxu0 0.0
        %v5600 = vand.u32 %v3446, 4294901760
        %5601 = vmatmul.mubr.f32.gmra.mxu0 %v5600
        %v5602 = vpop.f32.mrf.mxu0
        %v5603 = vadd.f32 %v5200, %v5602
        %v5604 = vpop.f32.mrf.mxu0
        %5605 = vmatprep.mubr.f32.mxu0 0.0
        %v5606 = vand.u32 %v3449, 4294901760
        %5607 = vmatmul.mubr.f32.gmra.mxu0 %v5606
        %v5608 = vpop.f32.mrf.mxu0
        %v5609 = vadd.f32 %v5208, %v5608
        %v5610 = vpop.f32.mrf.mxu0
        %5611 = vmatprep.mubr.f32.mxu0 0.0
        %v5612 = vand.u32 %v3452, 4294901760
        %5613 = vmatmul.mubr.f32.gmra.mxu0 %v5612
        %v5614 = vpop.f32.mrf.mxu0
        %v5615 = vadd.f32 %v5216, %v5614
        %v5616 = vpop.f32.mrf.mxu0
        %5617 = vmatprep.mubr.f32.mxu0 0.0
        %v5618 = vand.u32 %v3455, 4294901760
        %5619 = vmatmul.mubr.f32.gmra.mxu0 %v5618
        %v5620 = vpop.f32.mrf.mxu0
        %v5621 = vadd.f32 %v5224, %v5620
        %v5622 = vpop.f32.mrf.mxu0
        %5623 = vmatprep.mubr.f32.mxu0 0.0
        %v5624 = vand.u32 %v3458, 4294901760
        %5625 = vmatmul.mubr.f32.gmra.mxu0 %v5624
        %v5626 = vpop.f32.mrf.mxu0
        %v5627 = vadd.f32 %v5232, %v5626
        %v5628 = vpop.f32.mrf.mxu0
        %5629 = vmatprep.mubr.f32.mxu0 0.0
        %v5630 = vand.u32 %v3461, 4294901760
        %5631 = vmatmul.mubr.f32.gmra.mxu0 %v5630
        %v5632 = vpop.f32.mrf.mxu0
        %v5633 = vadd.f32 %v5240, %v5632
        %v5634 = vpop.f32.mrf.mxu0
        %5635 = vmatprep.mubr.f32.mxu0 0.0
        %v5636 = vand.u32 %v3464, 4294901760
        %5637 = vmatmul.mubr.f32.gmra.mxu0 %v5636
        %v5638 = vpop.f32.mrf.mxu0
        %v5639 = vadd.f32 %v5248, %v5638
        %v5640 = vpop.f32.mrf.mxu0
        %5641 = vmatprep.mubr.f32.mxu0 0.0
        %v5642 = vand.u32 %v3467, 4294901760
        %5643 = vmatmul.mubr.f32.gmra.mxu0 %v5642
        %v5644 = vpop.f32.mrf.mxu0
        %v5645 = vadd.f32 %v5256, %v5644
        %v5646 = vpop.f32.mrf.mxu0
        %5647 = vmatprep.mubr.f32.mxu0 0.0
        %v5648 = vand.u32 %v3470, 4294901760
        %5649 = vmatmul.mubr.f32.gmra.mxu0 %v5648
        %v5650 = vpop.f32.mrf.mxu0
        %v5651 = vadd.f32 %v5264, %v5650
        %v5652 = vpop.f32.mrf.mxu0
        %5653 = vmatprep.mubr.f32.mxu0 0.0
        %v5654 = vand.u32 %v3473, 4294901760
        %5655 = vmatmul.mubr.f32.gmra.mxu0 %v5654
        %v5656 = vpop.f32.mrf.mxu0
        %v5657 = vadd.f32 %v5272, %v5656
        %v5658 = vpop.f32.mrf.mxu0
        %5659 = vmatprep.mubr.f32.mxu0 0.0
        %v5660 = vand.u32 %v3476, 4294901760
        %5661 = vmatmul.mubr.f32.gmra.mxu0 %v5660
        %v5662 = vpop.f32.mrf.mxu0
        %v5663 = vadd.f32 %v5280, %v5662
        %v5664 = vpop.f32.mrf.mxu0
        %5665 = vmatprep.mubr.f32.mxu0 0.0
        %v5666 = vand.u32 %v3479, 4294901760
        %5667 = vmatmul.mubr.f32.gmra.mxu0 %v5666
        %v5668 = vpop.f32.mrf.mxu0
        %v5669 = vadd.f32 %v5288, %v5668
        %v5670 = vpop.f32.mrf.mxu0
        %5671 = vmatprep.mubr.f32.mxu0 0.0
        %v5672 = vand.u32 %v3482, 4294901760
        %5673 = vmatmul.mubr.f32.gmra.mxu0 %v5672
        %v5674 = vpop.f32.mrf.mxu0
        %v5675 = vadd.f32 %v5296, %v5674
        %v5676 = vpop.f32.mrf.mxu0
        %5677 = vmatprep.mubr.f32.mxu0 0.0
        %v5678 = vand.u32 %v3485, 4294901760
        %5679 = vmatmul.mubr.f32.gmra.mxu0 %v5678
        %v5680 = vpop.f32.mrf.mxu0
        %v5681 = vadd.f32 %v5304, %v5680
        %v5682 = vpop.f32.mrf.mxu0
        %5683 = vdwg.mxu0
        %5684 = vmatprep.subr.mxu0 0.0
        %5685 = vmatpush1.msra.mxu0 0.0
        %5686 = vmatprep.subr.mxu0 0.0
        %5687 = vmatpush1.msra.mxu0 0.0
        %5688 = vmatprep.subr.mxu0 0.0
        %5689 = vmatpush1.msra.mxu0 0.0
        %5690 = vmatprep.subr.mxu0 0.0
        %5691 = vmatpush1.msra.mxu0 0.0
        %5692 = vmatprep.subr.mxu0 0.0
        %5693 = vmatpush1.msra.mxu0 0.0
        %5694 = vmatprep.subr.mxu0 0.0
        %5695 = vmatpush1.msra.mxu0 0.0
        %5696 = vmatprep.subr.mxu0 0.0
        %5697 = vmatpush1.msra.mxu0 0.0
        %5698 = vmatprep.subr.mxu0 0.0
        %5699 = vmatpush1.msra.mxu0 0.0
        %5700 = vmatprep.subr.mxu0 0.0
        %v5701 = vand.u32 %v624, 4294901760
        %5702 = vmatpush1.msra.mxu0 %v5701
        %5703 = vmatprep.subr.mxu0 0.0
        %v5704 = vand.u32 %v623, 4294901760
        %5705 = vmatpush1.msra.mxu0 %v5704
        %5706 = vmatprep.subr.mxu0 0.0
        %v5707 = vand.u32 %v622, 4294901760
        %5708 = vmatpush1.msra.mxu0 %v5707
        %5709 = vmatprep.subr.mxu0 0.0
        %v5710 = vand.u32 %v621, 4294901760
        %5711 = vmatpush1.msra.mxu0 %v5710
        %5712 = vmatprep.subr.mxu0 0.0
        %v5713 = vand.u32 %v620, 4294901760
        %5714 = vmatpush1.msra.mxu0 %v5713
        %5715 = vmatprep.subr.mxu0 0.0
        %v5716 = vand.u32 %v619, 4294901760
        %5717 = vmatpush1.msra.mxu0 %v5716
        %5718 = vmatprep.subr.mxu0 0.0
        %v5719 = vand.u32 %v618, 4294901760
        %5720 = vmatpush1.msra.mxu0 %v5719
        %5721 = vmatprep.subr.mxu0 0.0
        %v5722 = vand.u32 %v617, 4294901760
        %5723 = vmatpush1.msra.mxu0 %v5722
        %5724 = vmatprep.subr.mxu0 0.0
        %5725 = vmatpush2.msra.mxu0 0.0
        %5726 = vmatprep.subr.mxu0 0.0
        %5727 = vmatpush2.msra.mxu0 0.0
        %5728 = vmatprep.subr.mxu0 0.0
        %5729 = vmatpush2.msra.mxu0 0.0
        %5730 = vmatprep.subr.mxu0 0.0
        %5731 = vmatpush2.msra.mxu0 0.0
        %5732 = vmatprep.subr.mxu0 0.0
        %5733 = vmatpush2.msra.mxu0 0.0
        %5734 = vmatprep.subr.mxu0 0.0
        %5735 = vmatpush2.msra.mxu0 0.0
        %5736 = vmatprep.subr.mxu0 0.0
        %5737 = vmatpush2.msra.mxu0 0.0
        %5738 = vmatprep.subr.mxu0 0.0
        %5739 = vmatpush2.msra.mxu0 0.0
        %5740 = vmatprep.subr.mxu0 0.0
        %5741 = vmatpush2.msra.mxu0 0.0
        %5742 = vmatprep.subr.mxu0 0.0
        %5743 = vmatpush2.msra.mxu0 0.0
        %5744 = vmatprep.subr.mxu0 0.0
        %5745 = vmatpush2.msra.mxu0 0.0
        %5746 = vmatprep.subr.mxu0 0.0
        %5747 = vmatpush2.msra.mxu0 0.0
        %5748 = vmatprep.subr.mxu0 0.0
        %5749 = vmatpush2.msra.mxu0 0.0
        %5750 = vmatprep.subr.mxu0 0.0
        %5751 = vmatpush2.msra.mxu0 0.0
        %5752 = vmatprep.subr.mxu0 0.0
        %5753 = vmatpush2.msra.mxu0 0.0
        %5754 = vmatprep.subr.mxu0 0.0
        %5755 = vmatpush2.msra.mxu0 0.0
        %5756 = vmatprep.mubr.f32.mxu0 0.0
        %v5757 = vand.u32 %v3344, 4294901760
        %5758 = vmatmul.mubr.f32.gmra.mxu0 %v5757
        %v5759 = vpop.f32.mrf.mxu0
        %v5760 = vadd.f32 %v5399, %v5759
        %v5761 = vpop.f32.mrf.mxu0
        %5762 = vmatprep.mubr.f32.mxu0 0.0
        %v5763 = vand.u32 %v3347, 4294901760
        %5764 = vmatmul.mubr.f32.gmra.mxu0 %v5763
        %v5765 = vpop.f32.mrf.mxu0
        %v5766 = vadd.f32 %v5405, %v5765
        %v5767 = vpop.f32.mrf.mxu0
        %5768 = vmatprep.mubr.f32.mxu0 0.0
        %v5769 = vand.u32 %v3350, 4294901760
        %5770 = vmatmul.mubr.f32.gmra.mxu0 %v5769
        %v5771 = vpop.f32.mrf.mxu0
        %v5772 = vadd.f32 %v5411, %v5771
        %v5773 = vpop.f32.mrf.mxu0
        %5774 = vmatprep.mubr.f32.mxu0 0.0
        %v5775 = vand.u32 %v3353, 4294901760
        %5776 = vmatmul.mubr.f32.gmra.mxu0 %v5775
        %v5777 = vpop.f32.mrf.mxu0
        %v5778 = vadd.f32 %v5417, %v5777
        %v5779 = vpop.f32.mrf.mxu0
        %5780 = vmatprep.mubr.f32.mxu0 0.0
        %v5781 = vand.u32 %v3356, 4294901760
        %5782 = vmatmul.mubr.f32.gmra.mxu0 %v5781
        %v5783 = vpop.f32.mrf.mxu0
        %v5784 = vadd.f32 %v5423, %v5783
        %v5785 = vpop.f32.mrf.mxu0
        %5786 = vmatprep.mubr.f32.mxu0 0.0
        %v5787 = vand.u32 %v3359, 4294901760
        %5788 = vmatmul.mubr.f32.gmra.mxu0 %v5787
        %v5789 = vpop.f32.mrf.mxu0
        %v5790 = vadd.f32 %v5429, %v5789
        %v5791 = vpop.f32.mrf.mxu0
        %5792 = vmatprep.mubr.f32.mxu0 0.0
        %v5793 = vand.u32 %v3362, 4294901760
        %5794 = vmatmul.mubr.f32.gmra.mxu0 %v5793
        %v5795 = vpop.f32.mrf.mxu0
        %v5796 = vadd.f32 %v5435, %v5795
        %v5797 = vpop.f32.mrf.mxu0
        %5798 = vmatprep.mubr.f32.mxu0 0.0
        %v5799 = vand.u32 %v3365, 4294901760
        %5800 = vmatmul.mubr.f32.gmra.mxu0 %v5799
        %v5801 = vpop.f32.mrf.mxu0
        %v5802 = vadd.f32 %v5441, %v5801
        %v5803 = vpop.f32.mrf.mxu0
        %5804 = vmatprep.mubr.f32.mxu0 0.0
        %v5805 = vand.u32 %v3368, 4294901760
        %5806 = vmatmul.mubr.f32.gmra.mxu0 %v5805
        %v5807 = vpop.f32.mrf.mxu0
        %v5808 = vadd.f32 %v5447, %v5807
        %v5809 = vpop.f32.mrf.mxu0
        %5810 = vmatprep.mubr.f32.mxu0 0.0
        %v5811 = vand.u32 %v3371, 4294901760
        %5812 = vmatmul.mubr.f32.gmra.mxu0 %v5811
        %v5813 = vpop.f32.mrf.mxu0
        %v5814 = vadd.f32 %v5453, %v5813
        %v5815 = vpop.f32.mrf.mxu0
        %5816 = vmatprep.mubr.f32.mxu0 0.0
        %v5817 = vand.u32 %v3374, 4294901760
        %5818 = vmatmul.mubr.f32.gmra.mxu0 %v5817
        %v5819 = vpop.f32.mrf.mxu0
        %v5820 = vadd.f32 %v5459, %v5819
        %v5821 = vpop.f32.mrf.mxu0
        %5822 = vmatprep.mubr.f32.mxu0 0.0
        %v5823 = vand.u32 %v3377, 4294901760
        %5824 = vmatmul.mubr.f32.gmra.mxu0 %v5823
        %v5825 = vpop.f32.mrf.mxu0
        %v5826 = vadd.f32 %v5465, %v5825
        %v5827 = vpop.f32.mrf.mxu0
        %5828 = vmatprep.mubr.f32.mxu0 0.0
        %v5829 = vand.u32 %v3380, 4294901760
        %5830 = vmatmul.mubr.f32.gmra.mxu0 %v5829
        %v5831 = vpop.f32.mrf.mxu0
        %v5832 = vadd.f32 %v5471, %v5831
        %v5833 = vpop.f32.mrf.mxu0
        %5834 = vmatprep.mubr.f32.mxu0 0.0
        %v5835 = vand.u32 %v3383, 4294901760
        %5836 = vmatmul.mubr.f32.gmra.mxu0 %v5835
        %v5837 = vpop.f32.mrf.mxu0
        %v5838 = vadd.f32 %v5477, %v5837
        %v5839 = vpop.f32.mrf.mxu0
        %5840 = vmatprep.mubr.f32.mxu0 0.0
        %v5841 = vand.u32 %v3386, 4294901760
        %5842 = vmatmul.mubr.f32.gmra.mxu0 %v5841
        %v5843 = vpop.f32.mrf.mxu0
        %v5844 = vadd.f32 %v5483, %v5843
        %v5845 = vpop.f32.mrf.mxu0
        %5846 = vmatprep.mubr.f32.mxu0 0.0
        %v5847 = vand.u32 %v3389, 4294901760
        %5848 = vmatmul.mubr.f32.gmra.mxu0 %v5847
        %v5849 = vpop.f32.mrf.mxu0
        %v5850 = vadd.f32 %v5489, %v5849
        %v5851 = vpop.f32.mrf.mxu0
        %5852 = vmatprep.mubr.f32.mxu0 0.0
        %v5853 = vand.u32 %v3392, 4294901760
        %5854 = vmatmul.mubr.f32.gmra.mxu0 %v5853
        %v5855 = vpop.f32.mrf.mxu0
        %v5856 = vadd.f32 %v5495, %v5855
        %v5857 = vpop.f32.mrf.mxu0
        %5858 = vmatprep.mubr.f32.mxu0 0.0
        %v5859 = vand.u32 %v3395, 4294901760
        %5860 = vmatmul.mubr.f32.gmra.mxu0 %v5859
        %v5861 = vpop.f32.mrf.mxu0
        %v5862 = vadd.f32 %v5501, %v5861
        %v5863 = vpop.f32.mrf.mxu0
        %5864 = vmatprep.mubr.f32.mxu0 0.0
        %v5865 = vand.u32 %v3398, 4294901760
        %5866 = vmatmul.mubr.f32.gmra.mxu0 %v5865
        %v5867 = vpop.f32.mrf.mxu0
        %v5868 = vadd.f32 %v5507, %v5867
        %v5869 = vpop.f32.mrf.mxu0
        %5870 = vmatprep.mubr.f32.mxu0 0.0
        %v5871 = vand.u32 %v3401, 4294901760
        %5872 = vmatmul.mubr.f32.gmra.mxu0 %v5871
        %v5873 = vpop.f32.mrf.mxu0
        %v5874 = vadd.f32 %v5513, %v5873
        %v5875 = vpop.f32.mrf.mxu0
        %5876 = vmatprep.mubr.f32.mxu0 0.0
        %v5877 = vand.u32 %v3404, 4294901760
        %5878 = vmatmul.mubr.f32.gmra.mxu0 %v5877
        %v5879 = vpop.f32.mrf.mxu0
        %v5880 = vadd.f32 %v5519, %v5879
        %v5881 = vpop.f32.mrf.mxu0
        %5882 = vmatprep.mubr.f32.mxu0 0.0
        %v5883 = vand.u32 %v3407, 4294901760
        %5884 = vmatmul.mubr.f32.gmra.mxu0 %v5883
        %v5885 = vpop.f32.mrf.mxu0
        %v5886 = vadd.f32 %v5525, %v5885
        %v5887 = vpop.f32.mrf.mxu0
        %5888 = vmatprep.mubr.f32.mxu0 0.0
        %v5889 = vand.u32 %v3410, 4294901760
        %5890 = vmatmul.mubr.f32.gmra.mxu0 %v5889
        %v5891 = vpop.f32.mrf.mxu0
        %v5892 = vadd.f32 %v5531, %v5891
        %v5893 = vpop.f32.mrf.mxu0
        %5894 = vmatprep.mubr.f32.mxu0 0.0
        %v5895 = vand.u32 %v3413, 4294901760
        %5896 = vmatmul.mubr.f32.gmra.mxu0 %v5895
        %v5897 = vpop.f32.mrf.mxu0
        %v5898 = vadd.f32 %v5537, %v5897
        %v5899 = vpop.f32.mrf.mxu0
        %5900 = vmatprep.mubr.f32.mxu0 0.0
        %v5901 = vand.u32 %v3416, 4294901760
        %5902 = vmatmul.mubr.f32.gmra.mxu0 %v5901
        %v5903 = vpop.f32.mrf.mxu0
        %v5904 = vadd.f32 %v5543, %v5903
        %v5905 = vpop.f32.mrf.mxu0
        %5906 = vmatprep.mubr.f32.mxu0 0.0
        %v5907 = vand.u32 %v3419, 4294901760
        %5908 = vmatmul.mubr.f32.gmra.mxu0 %v5907
        %v5909 = vpop.f32.mrf.mxu0
        %v5910 = vadd.f32 %v5549, %v5909
        %v5911 = vpop.f32.mrf.mxu0
        %5912 = vmatprep.mubr.f32.mxu0 0.0
        %v5913 = vand.u32 %v3422, 4294901760
        %5914 = vmatmul.mubr.f32.gmra.mxu0 %v5913
        %v5915 = vpop.f32.mrf.mxu0
        %v5916 = vadd.f32 %v5555, %v5915
        %v5917 = vpop.f32.mrf.mxu0
        %5918 = vmatprep.mubr.f32.mxu0 0.0
        %v5919 = vand.u32 %v3425, 4294901760
        %5920 = vmatmul.mubr.f32.gmra.mxu0 %v5919
        %v5921 = vpop.f32.mrf.mxu0
        %v5922 = vadd.f32 %v5561, %v5921
        %v5923 = vpop.f32.mrf.mxu0
        %5924 = vmatprep.mubr.f32.mxu0 0.0
        %v5925 = vand.u32 %v3428, 4294901760
        %5926 = vmatmul.mubr.f32.gmra.mxu0 %v5925
        %v5927 = vpop.f32.mrf.mxu0
        %v5928 = vadd.f32 %v5567, %v5927
        %v5929 = vpop.f32.mrf.mxu0
        %5930 = vmatprep.mubr.f32.mxu0 0.0
        %v5931 = vand.u32 %v3431, 4294901760
        %5932 = vmatmul.mubr.f32.gmra.mxu0 %v5931
        %v5933 = vpop.f32.mrf.mxu0
        %v5934 = vadd.f32 %v5573, %v5933
        %v5935 = vpop.f32.mrf.mxu0
        %5936 = vmatprep.mubr.f32.mxu0 0.0
        %v5937 = vand.u32 %v3434, 4294901760
        %5938 = vmatmul.mubr.f32.gmra.mxu0 %v5937
        %v5939 = vpop.f32.mrf.mxu0
        %v5940 = vadd.f32 %v5579, %v5939
        %v5941 = vpop.f32.mrf.mxu0
        %5942 = vmatprep.mubr.f32.mxu0 0.0
        %v5943 = vand.u32 %v3437, 4294901760
        %5944 = vmatmul.mubr.f32.gmra.mxu0 %v5943
        %v5945 = vpop.f32.mrf.mxu0
        %v5946 = vadd.f32 %v5585, %v5945
        %v5947 = vpop.f32.mrf.mxu0
        %5948 = vmatprep.mubr.f32.mxu0 0.0
        %v5949 = vand.u32 %v3440, 4294901760
        %5950 = vmatmul.mubr.f32.gmra.mxu0 %v5949
        %v5951 = vpop.f32.mrf.mxu0
        %v5952 = vadd.f32 %v5591, %v5951
        %v5953 = vpop.f32.mrf.mxu0
        %5954 = vmatprep.mubr.f32.mxu0 0.0
        %v5955 = vand.u32 %v3443, 4294901760
        %5956 = vmatmul.mubr.f32.gmra.mxu0 %v5955
        %v5957 = vpop.f32.mrf.mxu0
        %v5958 = vadd.f32 %v5597, %v5957
        %v5959 = vpop.f32.mrf.mxu0
        %5960 = vmatprep.mubr.f32.mxu0 0.0
        %v5961 = vand.u32 %v3446, 4294901760
        %5962 = vmatmul.mubr.f32.gmra.mxu0 %v5961
        %v5963 = vpop.f32.mrf.mxu0
        %v5964 = vadd.f32 %v5603, %v5963
        %v5965 = vpop.f32.mrf.mxu0
        %5966 = vmatprep.mubr.f32.mxu0 0.0
        %v5967 = vand.u32 %v3449, 4294901760
        %5968 = vmatmul.mubr.f32.gmra.mxu0 %v5967
        %v5969 = vpop.f32.mrf.mxu0
        %v5970 = vadd.f32 %v5609, %v5969
        %v5971 = vpop.f32.mrf.mxu0
        %5972 = vmatprep.mubr.f32.mxu0 0.0
        %v5973 = vand.u32 %v3452, 4294901760
        %5974 = vmatmul.mubr.f32.gmra.mxu0 %v5973
        %v5975 = vpop.f32.mrf.mxu0
        %v5976 = vadd.f32 %v5615, %v5975
        %v5977 = vpop.f32.mrf.mxu0
        %5978 = vmatprep.mubr.f32.mxu0 0.0
        %v5979 = vand.u32 %v3455, 4294901760
        %5980 = vmatmul.mubr.f32.gmra.mxu0 %v5979
        %v5981 = vpop.f32.mrf.mxu0
        %v5982 = vadd.f32 %v5621, %v5981
        %v5983 = vpop.f32.mrf.mxu0
        %5984 = vmatprep.mubr.f32.mxu0 0.0
        %v5985 = vand.u32 %v3458, 4294901760
        %5986 = vmatmul.mubr.f32.gmra.mxu0 %v5985
        %v5987 = vpop.f32.mrf.mxu0
        %v5988 = vadd.f32 %v5627, %v5987
        %v5989 = vpop.f32.mrf.mxu0
        %5990 = vmatprep.mubr.f32.mxu0 0.0
        %v5991 = vand.u32 %v3461, 4294901760
        %5992 = vmatmul.mubr.f32.gmra.mxu0 %v5991
        %v5993 = vpop.f32.mrf.mxu0
        %v5994 = vadd.f32 %v5633, %v5993
        %v5995 = vpop.f32.mrf.mxu0
        %5996 = vmatprep.mubr.f32.mxu0 0.0
        %v5997 = vand.u32 %v3464, 4294901760
        %5998 = vmatmul.mubr.f32.gmra.mxu0 %v5997
        %v5999 = vpop.f32.mrf.mxu0
        %v6000 = vadd.f32 %v5639, %v5999
        %v6001 = vpop.f32.mrf.mxu0
        %6002 = vmatprep.mubr.f32.mxu0 0.0
        %v6003 = vand.u32 %v3467, 4294901760
        %6004 = vmatmul.mubr.f32.gmra.mxu0 %v6003
        %v6005 = vpop.f32.mrf.mxu0
        %v6006 = vadd.f32 %v5645, %v6005
        %v6007 = vpop.f32.mrf.mxu0
        %6008 = vmatprep.mubr.f32.mxu0 0.0
        %v6009 = vand.u32 %v3470, 4294901760
        %6010 = vmatmul.mubr.f32.gmra.mxu0 %v6009
        %v6011 = vpop.f32.mrf.mxu0
        %v6012 = vadd.f32 %v5651, %v6011
        %v6013 = vpop.f32.mrf.mxu0
        %6014 = vmatprep.mubr.f32.mxu0 0.0
        %v6015 = vand.u32 %v3473, 4294901760
        %6016 = vmatmul.mubr.f32.gmra.mxu0 %v6015
        %v6017 = vpop.f32.mrf.mxu0
        %v6018 = vadd.f32 %v5657, %v6017
        %v6019 = vpop.f32.mrf.mxu0
        %6020 = vmatprep.mubr.f32.mxu0 0.0
        %v6021 = vand.u32 %v3476, 4294901760
        %6022 = vmatmul.mubr.f32.gmra.mxu0 %v6021
        %v6023 = vpop.f32.mrf.mxu0
        %v6024 = vadd.f32 %v5663, %v6023
        %v6025 = vpop.f32.mrf.mxu0
        %6026 = vmatprep.mubr.f32.mxu0 0.0
        %v6027 = vand.u32 %v3479, 4294901760
        %6028 = vmatmul.mubr.f32.gmra.mxu0 %v6027
        %v6029 = vpop.f32.mrf.mxu0
        %v6030 = vadd.f32 %v5669, %v6029
        %v6031 = vpop.f32.mrf.mxu0
        %6032 = vmatprep.mubr.f32.mxu0 0.0
        %v6033 = vand.u32 %v3482, 4294901760
        %6034 = vmatmul.mubr.f32.gmra.mxu0 %v6033
        %v6035 = vpop.f32.mrf.mxu0
        %v6036 = vadd.f32 %v5675, %v6035
        %v6037 = vpop.f32.mrf.mxu0
        %6038 = vmatprep.mubr.f32.mxu0 0.0
        %v6039 = vand.u32 %v3485, 4294901760
        %6040 = vmatmul.mubr.f32.gmra.mxu0 %v6039
        %v6041 = vpop.f32.mrf.mxu0
        %v6042 = vadd.f32 %v5681, %v6041
        %v6043 = vpop.f32.mrf.mxu0
        %6044 = vdwg.mxu0
        %v6045 = vtanh.pop %v5760
        %v6046 = vtanh.pop %v5766
        %v6047 = vtanh.pop %v5772
        %v6048 = vtanh.pop %v5778
        %v6049 = vtanh.pop %v5784
        %v6050 = vtanh.pop %v5790
        %v6051 = vtanh.pop %v5796
        %v6052 = vtanh.pop %v5802
        %v6053 = vtanh.pop %v5808
        %v6054 = vtanh.pop %v5814
        %v6055 = vtanh.pop %v5820
        %v6056 = vtanh.pop %v5826
        %v6057 = vtanh.pop %v5832
        %v6058 = vtanh.pop %v5838
        %v6059 = vtanh.pop %v5844
        %v6060 = vtanh.pop %v5850
        %v6061 = vtanh.pop %v5856
        %v6062 = vtanh.pop %v5862
        %v6063 = vtanh.pop %v5868
        %v6064 = vtanh.pop %v5874
        %v6065 = vtanh.pop %v5880
        %v6066 = vtanh.pop %v5886
        %v6067 = vtanh.pop %v5892
        %v6068 = vtanh.pop %v5898
        %v6069 = vtanh.pop %v5904
        %v6070 = vtanh.pop %v5910
        %v6071 = vtanh.pop %v5916
        %v6072 = vtanh.pop %v5922
        %v6073 = vtanh.pop %v5928
        %v6074 = vtanh.pop %v5934
        %v6075 = vtanh.pop %v5940
        %v6076 = vtanh.pop %v5946
        %v6077 = vtanh.pop %v5952
        %v6078 = vtanh.pop %v5958
        %v6079 = vtanh.pop %v5964
        %v6080 = vtanh.pop %v5970
        %v6081 = vtanh.pop %v5976
        %v6082 = vtanh.pop %v5982
        %v6083 = vtanh.pop %v5988
        %v6084 = vtanh.pop %v5994
        %v6085 = vtanh.pop %v6000
        %v6086 = vtanh.pop %v6006
        %v6087 = vtanh.pop %v6012
        %v6088 = vtanh.pop %v6018
        %v6089 = vtanh.pop %v6024
        %v6090 = vtanh.pop %v6030
        %v6091 = vtanh.pop %v6036
        %v6092 = vtanh.pop %v6042
        %v6093 = vlaneseq
        %v6094 = vshrl.u32 %v6093, 7
        %v6095 = vsub.s32 0, %v6094
        %v6096 = vrot.slane %v634, %v6095
        %v6098 = vsel %vm3342, %v6045, 0
        %v6101 = vsel %vm3342, %v6046, 0
        %v6104 = vsel %vm3342, %v6047, 0
        %v6107 = vsel %vm3342, %v6048, 0
        %v6110 = vsel %vm3342, %v6049, 0
        %v6113 = vsel %vm3342, %v6050, 0
        %v6116 = vsel %vm3342, %v6051, 0
        %v6119 = vsel %vm3342, %v6052, 0
        %v6122 = vsel %vm3342, %v6053, 0
        %v6125 = vsel %vm3342, %v6054, 0
        %v6128 = vsel %vm3342, %v6055, 0
        %v6131 = vsel %vm3342, %v6056, 0
        %v6134 = vsel %vm3342, %v6057, 0
        %v6137 = vsel %vm3342, %v6058, 0
        %v6140 = vsel %vm3342, %v6059, 0
        %v6143 = vsel %vm3342, %v6060, 0
        %v6146 = vsel %vm3342, %v6061, 0
        %v6149 = vsel %vm3342, %v6062, 0
        %v6152 = vsel %vm3342, %v6063, 0
        %v6155 = vsel %vm3342, %v6064, 0
        %v6158 = vsel %vm3342, %v6065, 0
        %v6161 = vsel %vm3342, %v6066, 0
        %v6164 = vsel %vm3342, %v6067, 0
        %v6167 = vsel %vm3342, %v6068, 0
        %v6170 = vsel %vm3342, %v6069, 0
        %v6173 = vsel %vm3342, %v6070, 0
        %v6176 = vsel %vm3342, %v6071, 0
        %v6179 = vsel %vm3342, %v6072, 0
        %v6182 = vsel %vm3342, %v6073, 0
        %v6185 = vsel %vm3342, %v6074, 0
        %v6188 = vsel %vm3342, %v6075, 0
        %v6191 = vsel %vm3342, %v6076, 0
        %v6194 = vsel %vm3342, %v6077, 0
        %v6197 = vsel %vm3342, %v6078, 0
        %v6200 = vsel %vm3342, %v6079, 0
        %v6203 = vsel %vm3342, %v6080, 0
        %v6206 = vsel %vm3342, %v6081, 0
        %v6209 = vsel %vm3342, %v6082, 0
        %v6212 = vsel %vm3342, %v6083, 0
        %v6215 = vsel %vm3342, %v6084, 0
        %v6218 = vsel %vm3342, %v6085, 0
        %v6221 = vsel %vm3342, %v6086, 0
        %v6224 = vsel %vm3342, %v6087, 0
        %v6227 = vsel %vm3342, %v6088, 0
        %v6230 = vsel %vm3342, %v6089, 0
        %v6233 = vsel %vm3342, %v6090, 0
        %v6236 = vsel %vm3342, %v6091, 0
        %v6239 = vsel %vm3342, %v6092, 0
        %6241 = vmatprep.subr.mxu0 0.0
        %6242 = vmatpush1.msra.mxu0 0.0
        %6243 = vmatprep.subr.mxu0 0.0
        %6244 = vmatpush1.msra.mxu0 0.0
        %6245 = vmatprep.subr.mxu0 0.0
        %6246 = vmatpush1.msra.mxu0 0.0
        %6247 = vmatprep.subr.mxu0 0.0
        %6248 = vmatpush1.msra.mxu0 0.0
        %6249 = vmatprep.subr.mxu0 0.0
        %6250 = vmatpush1.msra.mxu0 0.0
        %6251 = vmatprep.subr.mxu0 0.0
        %6252 = vmatpush1.msra.mxu0 0.0
        %6253 = vmatprep.subr.mxu0 0.0
        %6254 = vmatpush1.msra.mxu0 0.0
        %6255 = vmatprep.subr.mxu0 0.0
        %6256 = vmatpush1.msra.mxu0 0.0
        %6257 = vmatprep.subr.mxu0 0.0
        %v6258 = vand.u32 %v633, 4294901760
        %6259 = vmatpush1.msra.mxu0 %v6258
        %6260 = vmatprep.subr.mxu0 0.0
        %v6261 = vand.u32 %v632, 4294901760
        %6262 = vmatpush1.msra.mxu0 %v6261
        %6263 = vmatprep.subr.mxu0 0.0
        %v6264 = vand.u32 %v631, 4294901760
        %6265 = vmatpush1.msra.mxu0 %v6264
        %6266 = vmatprep.subr.mxu0 0.0
        %v6267 = vand.u32 %v630, 4294901760
        %6268 = vmatpush1.msra.mxu0 %v6267
        %6269 = vmatprep.subr.mxu0 0.0
        %v6270 = vand.u32 %v629, 4294901760
        %6271 = vmatpush1.msra.mxu0 %v6270
        %6272 = vmatprep.subr.mxu0 0.0
        %v6273 = vand.u32 %v628, 4294901760
        %6274 = vmatpush1.msra.mxu0 %v6273
        %6275 = vmatprep.subr.mxu0 0.0
        %v6276 = vand.u32 %v627, 4294901760
        %6277 = vmatpush1.msra.mxu0 %v6276
        %6278 = vmatprep.subr.mxu0 0.0
        %v6279 = vand.u32 %v626, 4294901760
        %6280 = vmatpush1.msra.mxu0 %v6279
        %6281 = vmatprep.subr.mxu0 0.0
        %6282 = vmatpush2.msra.mxu0 0.0
        %6283 = vmatprep.subr.mxu0 0.0
        %6284 = vmatpush2.msra.mxu0 0.0
        %6285 = vmatprep.subr.mxu0 0.0
        %6286 = vmatpush2.msra.mxu0 0.0
        %6287 = vmatprep.subr.mxu0 0.0
        %6288 = vmatpush2.msra.mxu0 0.0
        %6289 = vmatprep.subr.mxu0 0.0
        %6290 = vmatpush2.msra.mxu0 0.0
        %6291 = vmatprep.subr.mxu0 0.0
        %6292 = vmatpush2.msra.mxu0 0.0
        %6293 = vmatprep.subr.mxu0 0.0
        %6294 = vmatpush2.msra.mxu0 0.0
        %6295 = vmatprep.subr.mxu0 0.0
        %6296 = vmatpush2.msra.mxu0 0.0
        %6297 = vmatprep.subr.mxu0 0.0
        %6298 = vmatpush2.msra.mxu0 0.0
        %6299 = vmatprep.subr.mxu0 0.0
        %6300 = vmatpush2.msra.mxu0 0.0
        %6301 = vmatprep.subr.mxu0 0.0
        %6302 = vmatpush2.msra.mxu0 0.0
        %6303 = vmatprep.subr.mxu0 0.0
        %6304 = vmatpush2.msra.mxu0 0.0
        %6305 = vmatprep.subr.mxu0 0.0
        %6306 = vmatpush2.msra.mxu0 0.0
        %6307 = vmatprep.subr.mxu0 0.0
        %6308 = vmatpush2.msra.mxu0 0.0
        %6309 = vmatprep.subr.mxu0 0.0
        %6310 = vmatpush2.msra.mxu0 0.0
        %6311 = vmatprep.subr.mxu0 0.0
        %6312 = vmatpush2.msra.mxu0 0.0
        %6313 = vmatprep.mubr.f32.mxu0 0.0
        %v6314 = vand.u32 %v6098, 4294901760
        %v6315 = vsub.f32 %v6098, %v6314
        %v6316 = vand.u32 %v6315, 4294901760
        %v6317 = vsub.f32 %v6315, %v6316
        %v6318 = vand.u32 %v6317, 4294901760
        %6319 = vmatmul.mubr.f32.gmra.mxu0 %v6318
        %v6320 = vpop.f32.mrf.mxu0
        %v6321 = vadd.f32 %v6096, %v6320
        %v6322 = vpop.f32.mrf.mxu0
        %6323 = vmatprep.mubr.f32.mxu0 0.0
        %v6324 = vand.u32 %v6101, 4294901760
        %v6325 = vsub.f32 %v6101, %v6324
        %v6326 = vand.u32 %v6325, 4294901760
        %v6327 = vsub.f32 %v6325, %v6326
        %v6328 = vand.u32 %v6327, 4294901760
        %6329 = vmatmul.mubr.f32.gmra.mxu0 %v6328
        %v6330 = vpop.f32.mrf.mxu0
        %v6331 = vadd.f32 %v6096, %v6330
        %v6332 = vpop.f32.mrf.mxu0
        %6333 = vmatprep.mubr.f32.mxu0 0.0
        %v6334 = vand.u32 %v6104, 4294901760
        %v6335 = vsub.f32 %v6104, %v6334
        %v6336 = vand.u32 %v6335, 4294901760
        %v6337 = vsub.f32 %v6335, %v6336
        %v6338 = vand.u32 %v6337, 4294901760
        %6339 = vmatmul.mubr.f32.gmra.mxu0 %v6338
        %v6340 = vpop.f32.mrf.mxu0
        %v6341 = vadd.f32 %v6096, %v6340
        %v6342 = vpop.f32.mrf.mxu0
        %6343 = vmatprep.mubr.f32.mxu0 0.0
        %v6344 = vand.u32 %v6107, 4294901760
        %v6345 = vsub.f32 %v6107, %v6344
        %v6346 = vand.u32 %v6345, 4294901760
        %v6347 = vsub.f32 %v6345, %v6346
        %v6348 = vand.u32 %v6347, 4294901760
        %6349 = vmatmul.mubr.f32.gmra.mxu0 %v6348
        %v6350 = vpop.f32.mrf.mxu0
        %v6351 = vadd.f32 %v6096, %v6350
        %v6352 = vpop.f32.mrf.mxu0
        %6353 = vmatprep.mubr.f32.mxu0 0.0
        %v6354 = vand.u32 %v6110, 4294901760
        %v6355 = vsub.f32 %v6110, %v6354
        %v6356 = vand.u32 %v6355, 4294901760
        %v6357 = vsub.f32 %v6355, %v6356
        %v6358 = vand.u32 %v6357, 4294901760
        %6359 = vmatmul.mubr.f32.gmra.mxu0 %v6358
        %v6360 = vpop.f32.mrf.mxu0
        %v6361 = vadd.f32 %v6096, %v6360
        %v6362 = vpop.f32.mrf.mxu0
        %6363 = vmatprep.mubr.f32.mxu0 0.0
        %v6364 = vand.u32 %v6113, 4294901760
        %v6365 = vsub.f32 %v6113, %v6364
        %v6366 = vand.u32 %v6365, 4294901760
        %v6367 = vsub.f32 %v6365, %v6366
        %v6368 = vand.u32 %v6367, 4294901760
        %6369 = vmatmul.mubr.f32.gmra.mxu0 %v6368
        %v6370 = vpop.f32.mrf.mxu0
        %v6371 = vadd.f32 %v6096, %v6370
        %v6372 = vpop.f32.mrf.mxu0
        %6373 = vmatprep.mubr.f32.mxu0 0.0
        %v6374 = vand.u32 %v6116, 4294901760
        %v6375 = vsub.f32 %v6116, %v6374
        %v6376 = vand.u32 %v6375, 4294901760
        %v6377 = vsub.f32 %v6375, %v6376
        %v6378 = vand.u32 %v6377, 4294901760
        %6379 = vmatmul.mubr.f32.gmra.mxu0 %v6378
        %v6380 = vpop.f32.mrf.mxu0
        %v6381 = vadd.f32 %v6096, %v6380
        %v6382 = vpop.f32.mrf.mxu0
        %6383 = vmatprep.mubr.f32.mxu0 0.0
        %v6384 = vand.u32 %v6119, 4294901760
        %v6385 = vsub.f32 %v6119, %v6384
        %v6386 = vand.u32 %v6385, 4294901760
        %v6387 = vsub.f32 %v6385, %v6386
        %v6388 = vand.u32 %v6387, 4294901760
        %6389 = vmatmul.mubr.f32.gmra.mxu0 %v6388
        %v6390 = vpop.f32.mrf.mxu0
        %v6391 = vadd.f32 %v6096, %v6390
        %v6392 = vpop.f32.mrf.mxu0
        %6393 = vmatprep.mubr.f32.mxu0 0.0
        %v6394 = vand.u32 %v6122, 4294901760
        %v6395 = vsub.f32 %v6122, %v6394
        %v6396 = vand.u32 %v6395, 4294901760
        %v6397 = vsub.f32 %v6395, %v6396
        %v6398 = vand.u32 %v6397, 4294901760
        %6399 = vmatmul.mubr.f32.gmra.mxu0 %v6398
        %v6400 = vpop.f32.mrf.mxu0
        %v6401 = vadd.f32 %v6096, %v6400
        %v6402 = vpop.f32.mrf.mxu0
        %6403 = vmatprep.mubr.f32.mxu0 0.0
        %v6404 = vand.u32 %v6125, 4294901760
        %v6405 = vsub.f32 %v6125, %v6404
        %v6406 = vand.u32 %v6405, 4294901760
        %v6407 = vsub.f32 %v6405, %v6406
        %v6408 = vand.u32 %v6407, 4294901760
        %6409 = vmatmul.mubr.f32.gmra.mxu0 %v6408
        %v6410 = vpop.f32.mrf.mxu0
        %v6411 = vadd.f32 %v6096, %v6410
        %v6412 = vpop.f32.mrf.mxu0
        %6413 = vmatprep.mubr.f32.mxu0 0.0
        %v6414 = vand.u32 %v6128, 4294901760
        %v6415 = vsub.f32 %v6128, %v6414
        %v6416 = vand.u32 %v6415, 4294901760
        %v6417 = vsub.f32 %v6415, %v6416
        %v6418 = vand.u32 %v6417, 4294901760
        %6419 = vmatmul.mubr.f32.gmra.mxu0 %v6418
        %v6420 = vpop.f32.mrf.mxu0
        %v6421 = vadd.f32 %v6096, %v6420
        %v6422 = vpop.f32.mrf.mxu0
        %6423 = vmatprep.mubr.f32.mxu0 0.0
        %v6424 = vand.u32 %v6131, 4294901760
        %v6425 = vsub.f32 %v6131, %v6424
        %v6426 = vand.u32 %v6425, 4294901760
        %v6427 = vsub.f32 %v6425, %v6426
        %v6428 = vand.u32 %v6427, 4294901760
        %6429 = vmatmul.mubr.f32.gmra.mxu0 %v6428
        %v6430 = vpop.f32.mrf.mxu0
        %v6431 = vadd.f32 %v6096, %v6430
        %v6432 = vpop.f32.mrf.mxu0
        %6433 = vmatprep.mubr.f32.mxu0 0.0
        %v6434 = vand.u32 %v6134, 4294901760
        %v6435 = vsub.f32 %v6134, %v6434
        %v6436 = vand.u32 %v6435, 4294901760
        %v6437 = vsub.f32 %v6435, %v6436
        %v6438 = vand.u32 %v6437, 4294901760
        %6439 = vmatmul.mubr.f32.gmra.mxu0 %v6438
        %v6440 = vpop.f32.mrf.mxu0
        %v6441 = vadd.f32 %v6096, %v6440
        %v6442 = vpop.f32.mrf.mxu0
        %6443 = vmatprep.mubr.f32.mxu0 0.0
        %v6444 = vand.u32 %v6137, 4294901760
        %v6445 = vsub.f32 %v6137, %v6444
        %v6446 = vand.u32 %v6445, 4294901760
        %v6447 = vsub.f32 %v6445, %v6446
        %v6448 = vand.u32 %v6447, 4294901760
        %6449 = vmatmul.mubr.f32.gmra.mxu0 %v6448
        %v6450 = vpop.f32.mrf.mxu0
        %v6451 = vadd.f32 %v6096, %v6450
        %v6452 = vpop.f32.mrf.mxu0
        %6453 = vmatprep.mubr.f32.mxu0 0.0
        %v6454 = vand.u32 %v6140, 4294901760
        %v6455 = vsub.f32 %v6140, %v6454
        %v6456 = vand.u32 %v6455, 4294901760
        %v6457 = vsub.f32 %v6455, %v6456
        %v6458 = vand.u32 %v6457, 4294901760
        %6459 = vmatmul.mubr.f32.gmra.mxu0 %v6458
        %v6460 = vpop.f32.mrf.mxu0
        %v6461 = vadd.f32 %v6096, %v6460
        %v6462 = vpop.f32.mrf.mxu0
        %6463 = vmatprep.mubr.f32.mxu0 0.0
        %v6464 = vand.u32 %v6143, 4294901760
        %v6465 = vsub.f32 %v6143, %v6464
        %v6466 = vand.u32 %v6465, 4294901760
        %v6467 = vsub.f32 %v6465, %v6466
        %v6468 = vand.u32 %v6467, 4294901760
        %6469 = vmatmul.mubr.f32.gmra.mxu0 %v6468
        %v6470 = vpop.f32.mrf.mxu0
        %v6471 = vadd.f32 %v6096, %v6470
        %v6472 = vpop.f32.mrf.mxu0
        %6473 = vmatprep.mubr.f32.mxu0 0.0
        %v6474 = vand.u32 %v6146, 4294901760
        %v6475 = vsub.f32 %v6146, %v6474
        %v6476 = vand.u32 %v6475, 4294901760
        %v6477 = vsub.f32 %v6475, %v6476
        %v6478 = vand.u32 %v6477, 4294901760
        %6479 = vmatmul.mubr.f32.gmra.mxu0 %v6478
        %v6480 = vpop.f32.mrf.mxu0
        %v6481 = vadd.f32 %v6096, %v6480
        %v6482 = vpop.f32.mrf.mxu0
        %6483 = vmatprep.mubr.f32.mxu0 0.0
        %v6484 = vand.u32 %v6149, 4294901760
        %v6485 = vsub.f32 %v6149, %v6484
        %v6486 = vand.u32 %v6485, 4294901760
        %v6487 = vsub.f32 %v6485, %v6486
        %v6488 = vand.u32 %v6487, 4294901760
        %6489 = vmatmul.mubr.f32.gmra.mxu0 %v6488
        %v6490 = vpop.f32.mrf.mxu0
        %v6491 = vadd.f32 %v6096, %v6490
        %v6492 = vpop.f32.mrf.mxu0
        %6493 = vmatprep.mubr.f32.mxu0 0.0
        %v6494 = vand.u32 %v6152, 4294901760
        %v6495 = vsub.f32 %v6152, %v6494
        %v6496 = vand.u32 %v6495, 4294901760
        %v6497 = vsub.f32 %v6495, %v6496
        %v6498 = vand.u32 %v6497, 4294901760
        %6499 = vmatmul.mubr.f32.gmra.mxu0 %v6498
        %v6500 = vpop.f32.mrf.mxu0
        %v6501 = vadd.f32 %v6096, %v6500
        %v6502 = vpop.f32.mrf.mxu0
        %6503 = vmatprep.mubr.f32.mxu0 0.0
        %v6504 = vand.u32 %v6155, 4294901760
        %v6505 = vsub.f32 %v6155, %v6504
        %v6506 = vand.u32 %v6505, 4294901760
        %v6507 = vsub.f32 %v6505, %v6506
        %v6508 = vand.u32 %v6507, 4294901760
        %6509 = vmatmul.mubr.f32.gmra.mxu0 %v6508
        %v6510 = vpop.f32.mrf.mxu0
        %v6511 = vadd.f32 %v6096, %v6510
        %v6512 = vpop.f32.mrf.mxu0
        %6513 = vmatprep.mubr.f32.mxu0 0.0
        %v6514 = vand.u32 %v6158, 4294901760
        %v6515 = vsub.f32 %v6158, %v6514
        %v6516 = vand.u32 %v6515, 4294901760
        %v6517 = vsub.f32 %v6515, %v6516
        %v6518 = vand.u32 %v6517, 4294901760
        %6519 = vmatmul.mubr.f32.gmra.mxu0 %v6518
        %v6520 = vpop.f32.mrf.mxu0
        %v6521 = vadd.f32 %v6096, %v6520
        %v6522 = vpop.f32.mrf.mxu0
        %6523 = vmatprep.mubr.f32.mxu0 0.0
        %v6524 = vand.u32 %v6161, 4294901760
        %v6525 = vsub.f32 %v6161, %v6524
        %v6526 = vand.u32 %v6525, 4294901760
        %v6527 = vsub.f32 %v6525, %v6526
        %v6528 = vand.u32 %v6527, 4294901760
        %6529 = vmatmul.mubr.f32.gmra.mxu0 %v6528
        %v6530 = vpop.f32.mrf.mxu0
        %v6531 = vadd.f32 %v6096, %v6530
        %v6532 = vpop.f32.mrf.mxu0
        %6533 = vmatprep.mubr.f32.mxu0 0.0
        %v6534 = vand.u32 %v6164, 4294901760
        %v6535 = vsub.f32 %v6164, %v6534
        %v6536 = vand.u32 %v6535, 4294901760
        %v6537 = vsub.f32 %v6535, %v6536
        %v6538 = vand.u32 %v6537, 4294901760
        %6539 = vmatmul.mubr.f32.gmra.mxu0 %v6538
        %v6540 = vpop.f32.mrf.mxu0
        %v6541 = vadd.f32 %v6096, %v6540
        %v6542 = vpop.f32.mrf.mxu0
        %6543 = vmatprep.mubr.f32.mxu0 0.0
        %v6544 = vand.u32 %v6167, 4294901760
        %v6545 = vsub.f32 %v6167, %v6544
        %v6546 = vand.u32 %v6545, 4294901760
        %v6547 = vsub.f32 %v6545, %v6546
        %v6548 = vand.u32 %v6547, 4294901760
        %6549 = vmatmul.mubr.f32.gmra.mxu0 %v6548
        %v6550 = vpop.f32.mrf.mxu0
        %v6551 = vadd.f32 %v6096, %v6550
        %v6552 = vpop.f32.mrf.mxu0
        %6553 = vmatprep.mubr.f32.mxu0 0.0
        %v6554 = vand.u32 %v6170, 4294901760
        %v6555 = vsub.f32 %v6170, %v6554
        %v6556 = vand.u32 %v6555, 4294901760
        %v6557 = vsub.f32 %v6555, %v6556
        %v6558 = vand.u32 %v6557, 4294901760
        %6559 = vmatmul.mubr.f32.gmra.mxu0 %v6558
        %v6560 = vpop.f32.mrf.mxu0
        %v6561 = vadd.f32 %v6096, %v6560
        %v6562 = vpop.f32.mrf.mxu0
        %6563 = vmatprep.mubr.f32.mxu0 0.0
        %v6564 = vand.u32 %v6173, 4294901760
        %v6565 = vsub.f32 %v6173, %v6564
        %v6566 = vand.u32 %v6565, 4294901760
        %v6567 = vsub.f32 %v6565, %v6566
        %v6568 = vand.u32 %v6567, 4294901760
        %6569 = vmatmul.mubr.f32.gmra.mxu0 %v6568
        %v6570 = vpop.f32.mrf.mxu0
        %v6571 = vadd.f32 %v6096, %v6570
        %v6572 = vpop.f32.mrf.mxu0
        %6573 = vmatprep.mubr.f32.mxu0 0.0
        %v6574 = vand.u32 %v6176, 4294901760
        %v6575 = vsub.f32 %v6176, %v6574
        %v6576 = vand.u32 %v6575, 4294901760
        %v6577 = vsub.f32 %v6575, %v6576
        %v6578 = vand.u32 %v6577, 4294901760
        %6579 = vmatmul.mubr.f32.gmra.mxu0 %v6578
        %v6580 = vpop.f32.mrf.mxu0
        %v6581 = vadd.f32 %v6096, %v6580
        %v6582 = vpop.f32.mrf.mxu0
        %6583 = vmatprep.mubr.f32.mxu0 0.0
        %v6584 = vand.u32 %v6179, 4294901760
        %v6585 = vsub.f32 %v6179, %v6584
        %v6586 = vand.u32 %v6585, 4294901760
        %v6587 = vsub.f32 %v6585, %v6586
        %v6588 = vand.u32 %v6587, 4294901760
        %6589 = vmatmul.mubr.f32.gmra.mxu0 %v6588
        %v6590 = vpop.f32.mrf.mxu0
        %v6591 = vadd.f32 %v6096, %v6590
        %v6592 = vpop.f32.mrf.mxu0
        %6593 = vmatprep.mubr.f32.mxu0 0.0
        %v6594 = vand.u32 %v6182, 4294901760
        %v6595 = vsub.f32 %v6182, %v6594
        %v6596 = vand.u32 %v6595, 4294901760
        %v6597 = vsub.f32 %v6595, %v6596
        %v6598 = vand.u32 %v6597, 4294901760
        %6599 = vmatmul.mubr.f32.gmra.mxu0 %v6598
        %v6600 = vpop.f32.mrf.mxu0
        %v6601 = vadd.f32 %v6096, %v6600
        %v6602 = vpop.f32.mrf.mxu0
        %6603 = vmatprep.mubr.f32.mxu0 0.0
        %v6604 = vand.u32 %v6185, 4294901760
        %v6605 = vsub.f32 %v6185, %v6604
        %v6606 = vand.u32 %v6605, 4294901760
        %v6607 = vsub.f32 %v6605, %v6606
        %v6608 = vand.u32 %v6607, 4294901760
        %6609 = vmatmul.mubr.f32.gmra.mxu0 %v6608
        %v6610 = vpop.f32.mrf.mxu0
        %v6611 = vadd.f32 %v6096, %v6610
        %v6612 = vpop.f32.mrf.mxu0
        %6613 = vmatprep.mubr.f32.mxu0 0.0
        %v6614 = vand.u32 %v6188, 4294901760
        %v6615 = vsub.f32 %v6188, %v6614
        %v6616 = vand.u32 %v6615, 4294901760
        %v6617 = vsub.f32 %v6615, %v6616
        %v6618 = vand.u32 %v6617, 4294901760
        %6619 = vmatmul.mubr.f32.gmra.mxu0 %v6618
        %v6620 = vpop.f32.mrf.mxu0
        %v6621 = vadd.f32 %v6096, %v6620
        %v6622 = vpop.f32.mrf.mxu0
        %6623 = vmatprep.mubr.f32.mxu0 0.0
        %v6624 = vand.u32 %v6191, 4294901760
        %v6625 = vsub.f32 %v6191, %v6624
        %v6626 = vand.u32 %v6625, 4294901760
        %v6627 = vsub.f32 %v6625, %v6626
        %v6628 = vand.u32 %v6627, 4294901760
        %6629 = vmatmul.mubr.f32.gmra.mxu0 %v6628
        %v6630 = vpop.f32.mrf.mxu0
        %v6631 = vadd.f32 %v6096, %v6630
        %v6632 = vpop.f32.mrf.mxu0
        %6633 = vmatprep.mubr.f32.mxu0 0.0
        %v6634 = vand.u32 %v6194, 4294901760
        %v6635 = vsub.f32 %v6194, %v6634
        %v6636 = vand.u32 %v6635, 4294901760
        %v6637 = vsub.f32 %v6635, %v6636
        %v6638 = vand.u32 %v6637, 4294901760
        %6639 = vmatmul.mubr.f32.gmra.mxu0 %v6638
        %v6640 = vpop.f32.mrf.mxu0
        %v6641 = vadd.f32 %v6096, %v6640
        %v6642 = vpop.f32.mrf.mxu0
        %6643 = vmatprep.mubr.f32.mxu0 0.0
        %v6644 = vand.u32 %v6197, 4294901760
        %v6645 = vsub.f32 %v6197, %v6644
        %v6646 = vand.u32 %v6645, 4294901760
        %v6647 = vsub.f32 %v6645, %v6646
        %v6648 = vand.u32 %v6647, 4294901760
        %6649 = vmatmul.mubr.f32.gmra.mxu0 %v6648
        %v6650 = vpop.f32.mrf.mxu0
        %v6651 = vadd.f32 %v6096, %v6650
        %v6652 = vpop.f32.mrf.mxu0
        %6653 = vmatprep.mubr.f32.mxu0 0.0
        %v6654 = vand.u32 %v6200, 4294901760
        %v6655 = vsub.f32 %v6200, %v6654
        %v6656 = vand.u32 %v6655, 4294901760
        %v6657 = vsub.f32 %v6655, %v6656
        %v6658 = vand.u32 %v6657, 4294901760
        %6659 = vmatmul.mubr.f32.gmra.mxu0 %v6658
        %v6660 = vpop.f32.mrf.mxu0
        %v6661 = vadd.f32 %v6096, %v6660
        %v6662 = vpop.f32.mrf.mxu0
        %6663 = vmatprep.mubr.f32.mxu0 0.0
        %v6664 = vand.u32 %v6203, 4294901760
        %v6665 = vsub.f32 %v6203, %v6664
        %v6666 = vand.u32 %v6665, 4294901760
        %v6667 = vsub.f32 %v6665, %v6666
        %v6668 = vand.u32 %v6667, 4294901760
        %6669 = vmatmul.mubr.f32.gmra.mxu0 %v6668
        %v6670 = vpop.f32.mrf.mxu0
        %v6671 = vadd.f32 %v6096, %v6670
        %v6672 = vpop.f32.mrf.mxu0
        %6673 = vmatprep.mubr.f32.mxu0 0.0
        %v6674 = vand.u32 %v6206, 4294901760
        %v6675 = vsub.f32 %v6206, %v6674
        %v6676 = vand.u32 %v6675, 4294901760
        %v6677 = vsub.f32 %v6675, %v6676
        %v6678 = vand.u32 %v6677, 4294901760
        %6679 = vmatmul.mubr.f32.gmra.mxu0 %v6678
        %v6680 = vpop.f32.mrf.mxu0
        %v6681 = vadd.f32 %v6096, %v6680
        %v6682 = vpop.f32.mrf.mxu0
        %6683 = vmatprep.mubr.f32.mxu0 0.0
        %v6684 = vand.u32 %v6209, 4294901760
        %v6685 = vsub.f32 %v6209, %v6684
        %v6686 = vand.u32 %v6685, 4294901760
        %v6687 = vsub.f32 %v6685, %v6686
        %v6688 = vand.u32 %v6687, 4294901760
        %6689 = vmatmul.mubr.f32.gmra.mxu0 %v6688
        %v6690 = vpop.f32.mrf.mxu0
        %v6691 = vadd.f32 %v6096, %v6690
        %v6692 = vpop.f32.mrf.mxu0
        %6693 = vmatprep.mubr.f32.mxu0 0.0
        %v6694 = vand.u32 %v6212, 4294901760
        %v6695 = vsub.f32 %v6212, %v6694
        %v6696 = vand.u32 %v6695, 4294901760
        %v6697 = vsub.f32 %v6695, %v6696
        %v6698 = vand.u32 %v6697, 4294901760
        %6699 = vmatmul.mubr.f32.gmra.mxu0 %v6698
        %v6700 = vpop.f32.mrf.mxu0
        %v6701 = vadd.f32 %v6096, %v6700
        %v6702 = vpop.f32.mrf.mxu0
        %6703 = vmatprep.mubr.f32.mxu0 0.0
        %v6704 = vand.u32 %v6215, 4294901760
        %v6705 = vsub.f32 %v6215, %v6704
        %v6706 = vand.u32 %v6705, 4294901760
        %v6707 = vsub.f32 %v6705, %v6706
        %v6708 = vand.u32 %v6707, 4294901760
        %6709 = vmatmul.mubr.f32.gmra.mxu0 %v6708
        %v6710 = vpop.f32.mrf.mxu0
        %v6711 = vadd.f32 %v6096, %v6710
        %v6712 = vpop.f32.mrf.mxu0
        %6713 = vmatprep.mubr.f32.mxu0 0.0
        %v6714 = vand.u32 %v6218, 4294901760
        %v6715 = vsub.f32 %v6218, %v6714
        %v6716 = vand.u32 %v6715, 4294901760
        %v6717 = vsub.f32 %v6715, %v6716
        %v6718 = vand.u32 %v6717, 4294901760
        %6719 = vmatmul.mubr.f32.gmra.mxu0 %v6718
        %v6720 = vpop.f32.mrf.mxu0
        %v6721 = vadd.f32 %v6096, %v6720
        %v6722 = vpop.f32.mrf.mxu0
        %6723 = vmatprep.mubr.f32.mxu0 0.0
        %v6724 = vand.u32 %v6221, 4294901760
        %v6725 = vsub.f32 %v6221, %v6724
        %v6726 = vand.u32 %v6725, 4294901760
        %v6727 = vsub.f32 %v6725, %v6726
        %v6728 = vand.u32 %v6727, 4294901760
        %6729 = vmatmul.mubr.f32.gmra.mxu0 %v6728
        %v6730 = vpop.f32.mrf.mxu0
        %v6731 = vadd.f32 %v6096, %v6730
        %v6732 = vpop.f32.mrf.mxu0
        %6733 = vmatprep.mubr.f32.mxu0 0.0
        %v6734 = vand.u32 %v6224, 4294901760
        %v6735 = vsub.f32 %v6224, %v6734
        %v6736 = vand.u32 %v6735, 4294901760
        %v6737 = vsub.f32 %v6735, %v6736
        %v6738 = vand.u32 %v6737, 4294901760
        %6739 = vmatmul.mubr.f32.gmra.mxu0 %v6738
        %v6740 = vpop.f32.mrf.mxu0
        %v6741 = vadd.f32 %v6096, %v6740
        %v6742 = vpop.f32.mrf.mxu0
        %6743 = vmatprep.mubr.f32.mxu0 0.0
        %v6744 = vand.u32 %v6227, 4294901760
        %v6745 = vsub.f32 %v6227, %v6744
        %v6746 = vand.u32 %v6745, 4294901760
        %v6747 = vsub.f32 %v6745, %v6746
        %v6748 = vand.u32 %v6747, 4294901760
        %6749 = vmatmul.mubr.f32.gmra.mxu0 %v6748
        %v6750 = vpop.f32.mrf.mxu0
        %v6751 = vadd.f32 %v6096, %v6750
        %v6752 = vpop.f32.mrf.mxu0
        %6753 = vmatprep.mubr.f32.mxu0 0.0
        %v6754 = vand.u32 %v6230, 4294901760
        %v6755 = vsub.f32 %v6230, %v6754
        %v6756 = vand.u32 %v6755, 4294901760
        %v6757 = vsub.f32 %v6755, %v6756
        %v6758 = vand.u32 %v6757, 4294901760
        %6759 = vmatmul.mubr.f32.gmra.mxu0 %v6758
        %v6760 = vpop.f32.mrf.mxu0
        %v6761 = vadd.f32 %v6096, %v6760
        %v6762 = vpop.f32.mrf.mxu0
        %6763 = vmatprep.mubr.f32.mxu0 0.0
        %v6764 = vand.u32 %v6233, 4294901760
        %v6765 = vsub.f32 %v6233, %v6764
        %v6766 = vand.u32 %v6765, 4294901760
        %v6767 = vsub.f32 %v6765, %v6766
        %v6768 = vand.u32 %v6767, 4294901760
        %6769 = vmatmul.mubr.f32.gmra.mxu0 %v6768
        %v6770 = vpop.f32.mrf.mxu0
        %v6771 = vadd.f32 %v6096, %v6770
        %v6772 = vpop.f32.mrf.mxu0
        %6773 = vmatprep.mubr.f32.mxu0 0.0
        %v6774 = vand.u32 %v6236, 4294901760
        %v6775 = vsub.f32 %v6236, %v6774
        %v6776 = vand.u32 %v6775, 4294901760
        %v6777 = vsub.f32 %v6775, %v6776
        %v6778 = vand.u32 %v6777, 4294901760
        %6779 = vmatmul.mubr.f32.gmra.mxu0 %v6778
        %v6780 = vpop.f32.mrf.mxu0
        %v6781 = vadd.f32 %v6096, %v6780
        %v6782 = vpop.f32.mrf.mxu0
        %6783 = vmatprep.mubr.f32.mxu0 0.0
        %v6784 = vand.u32 %v6239, 4294901760
        %v6785 = vsub.f32 %v6239, %v6784
        %v6786 = vand.u32 %v6785, 4294901760
        %v6787 = vsub.f32 %v6785, %v6786
        %v6788 = vand.u32 %v6787, 4294901760
        %6789 = vmatmul.mubr.f32.gmra.mxu0 %v6788
        %v6790 = vpop.f32.mrf.mxu0
        %v6791 = vadd.f32 %v6096, %v6790
        %v6792 = vpop.f32.mrf.mxu0
        %6793 = vdwg.mxu0
        %6794 = vmatprep.subr.mxu0 0.0
        %6795 = vmatpush1.msra.mxu0 0.0
        %6796 = vmatprep.subr.mxu0 0.0
        %6797 = vmatpush1.msra.mxu0 0.0
        %6798 = vmatprep.subr.mxu0 0.0
        %6799 = vmatpush1.msra.mxu0 0.0
        %6800 = vmatprep.subr.mxu0 0.0
        %6801 = vmatpush1.msra.mxu0 0.0
        %6802 = vmatprep.subr.mxu0 0.0
        %6803 = vmatpush1.msra.mxu0 0.0
        %6804 = vmatprep.subr.mxu0 0.0
        %6805 = vmatpush1.msra.mxu0 0.0
        %6806 = vmatprep.subr.mxu0 0.0
        %6807 = vmatpush1.msra.mxu0 0.0
        %6808 = vmatprep.subr.mxu0 0.0
        %6809 = vmatpush1.msra.mxu0 0.0
        %6810 = vmatprep.subr.mxu0 0.0
        %v6811 = vand.u32 %v633, 4294901760
        %v6812 = vsub.f32 %v633, %v6811
        %v6813 = vand.u32 %v6812, 4294901760
        %v6814 = vsub.f32 %v6812, %v6813
        %v6815 = vand.u32 %v6814, 4294901760
        %6816 = vmatpush1.msra.mxu0 %v6815
        %6817 = vmatprep.subr.mxu0 0.0
        %v6818 = vand.u32 %v632, 4294901760
        %v6819 = vsub.f32 %v632, %v6818
        %v6820 = vand.u32 %v6819, 4294901760
        %v6821 = vsub.f32 %v6819, %v6820
        %v6822 = vand.u32 %v6821, 4294901760
        %6823 = vmatpush1.msra.mxu0 %v6822
        %6824 = vmatprep.subr.mxu0 0.0
        %v6825 = vand.u32 %v631, 4294901760
        %v6826 = vsub.f32 %v631, %v6825
        %v6827 = vand.u32 %v6826, 4294901760
        %v6828 = vsub.f32 %v6826, %v6827
        %v6829 = vand.u32 %v6828, 4294901760
        %6830 = vmatpush1.msra.mxu0 %v6829
        %6831 = vmatprep.subr.mxu0 0.0
        %v6832 = vand.u32 %v630, 4294901760
        %v6833 = vsub.f32 %v630, %v6832
        %v6834 = vand.u32 %v6833, 4294901760
        %v6835 = vsub.f32 %v6833, %v6834
        %v6836 = vand.u32 %v6835, 4294901760
        %6837 = vmatpush1.msra.mxu0 %v6836
        %6838 = vmatprep.subr.mxu0 0.0
        %v6839 = vand.u32 %v629, 4294901760
        %v6840 = vsub.f32 %v629, %v6839
        %v6841 = vand.u32 %v6840, 4294901760
        %v6842 = vsub.f32 %v6840, %v6841
        %v6843 = vand.u32 %v6842, 4294901760
        %6844 = vmatpush1.msra.mxu0 %v6843
        %6845 = vmatprep.subr.mxu0 0.0
        %v6846 = vand.u32 %v628, 4294901760
        %v6847 = vsub.f32 %v628, %v6846
        %v6848 = vand.u32 %v6847, 4294901760
        %v6849 = vsub.f32 %v6847, %v6848
        %v6850 = vand.u32 %v6849, 4294901760
        %6851 = vmatpush1.msra.mxu0 %v6850
        %6852 = vmatprep.subr.mxu0 0.0
        %v6853 = vand.u32 %v627, 4294901760
        %v6854 = vsub.f32 %v627, %v6853
        %v6855 = vand.u32 %v6854, 4294901760
        %v6856 = vsub.f32 %v6854, %v6855
        %v6857 = vand.u32 %v6856, 4294901760
        %6858 = vmatpush1.msra.mxu0 %v6857
        %6859 = vmatprep.subr.mxu0 0.0
        %v6860 = vand.u32 %v626, 4294901760
        %v6861 = vsub.f32 %v626, %v6860
        %v6862 = vand.u32 %v6861, 4294901760
        %v6863 = vsub.f32 %v6861, %v6862
        %v6864 = vand.u32 %v6863, 4294901760
        %6865 = vmatpush1.msra.mxu0 %v6864
        %6866 = vmatprep.subr.mxu0 0.0
        %6867 = vmatpush2.msra.mxu0 0.0
        %6868 = vmatprep.subr.mxu0 0.0
        %6869 = vmatpush2.msra.mxu0 0.0
        %6870 = vmatprep.subr.mxu0 0.0
        %6871 = vmatpush2.msra.mxu0 0.0
        %6872 = vmatprep.subr.mxu0 0.0
        %6873 = vmatpush2.msra.mxu0 0.0
        %6874 = vmatprep.subr.mxu0 0.0
        %6875 = vmatpush2.msra.mxu0 0.0
        %6876 = vmatprep.subr.mxu0 0.0
        %6877 = vmatpush2.msra.mxu0 0.0
        %6878 = vmatprep.subr.mxu0 0.0
        %6879 = vmatpush2.msra.mxu0 0.0
        %6880 = vmatprep.subr.mxu0 0.0
        %6881 = vmatpush2.msra.mxu0 0.0
        %6882 = vmatprep.subr.mxu0 0.0
        %6883 = vmatpush2.msra.mxu0 0.0
        %6884 = vmatprep.subr.mxu0 0.0
        %6885 = vmatpush2.msra.mxu0 0.0
        %6886 = vmatprep.subr.mxu0 0.0
        %6887 = vmatpush2.msra.mxu0 0.0
        %6888 = vmatprep.subr.mxu0 0.0
        %6889 = vmatpush2.msra.mxu0 0.0
        %6890 = vmatprep.subr.mxu0 0.0
        %6891 = vmatpush2.msra.mxu0 0.0
        %6892 = vmatprep.subr.mxu0 0.0
        %6893 = vmatpush2.msra.mxu0 0.0
        %6894 = vmatprep.subr.mxu0 0.0
        %6895 = vmatpush2.msra.mxu0 0.0
        %6896 = vmatprep.subr.mxu0 0.0
        %6897 = vmatpush2.msra.mxu0 0.0
        %6898 = vmatprep.mubr.f32.mxu0 0.0
        %v6899 = vand.u32 %v6098, 4294901760
        %6900 = vmatmul.mubr.f32.gmra.mxu0 %v6899
        %v6901 = vpop.f32.mrf.mxu0
        %v6902 = vadd.f32 %v6321, %v6901
        %v6903 = vpop.f32.mrf.mxu0
        %6904 = vmatprep.mubr.f32.mxu0 0.0
        %v6905 = vand.u32 %v6101, 4294901760
        %6906 = vmatmul.mubr.f32.gmra.mxu0 %v6905
        %v6907 = vpop.f32.mrf.mxu0
        %v6908 = vadd.f32 %v6331, %v6907
        %v6909 = vpop.f32.mrf.mxu0
        %6910 = vmatprep.mubr.f32.mxu0 0.0
        %v6911 = vand.u32 %v6104, 4294901760
        %6912 = vmatmul.mubr.f32.gmra.mxu0 %v6911
        %v6913 = vpop.f32.mrf.mxu0
        %v6914 = vadd.f32 %v6341, %v6913
        %v6915 = vpop.f32.mrf.mxu0
        %6916 = vmatprep.mubr.f32.mxu0 0.0
        %v6917 = vand.u32 %v6107, 4294901760
        %6918 = vmatmul.mubr.f32.gmra.mxu0 %v6917
        %v6919 = vpop.f32.mrf.mxu0
        %v6920 = vadd.f32 %v6351, %v6919
        %v6921 = vpop.f32.mrf.mxu0
        %6922 = vmatprep.mubr.f32.mxu0 0.0
        %v6923 = vand.u32 %v6110, 4294901760
        %6924 = vmatmul.mubr.f32.gmra.mxu0 %v6923
        %v6925 = vpop.f32.mrf.mxu0
        %v6926 = vadd.f32 %v6361, %v6925
        %v6927 = vpop.f32.mrf.mxu0
        %6928 = vmatprep.mubr.f32.mxu0 0.0
        %v6929 = vand.u32 %v6113, 4294901760
        %6930 = vmatmul.mubr.f32.gmra.mxu0 %v6929
        %v6931 = vpop.f32.mrf.mxu0
        %v6932 = vadd.f32 %v6371, %v6931
        %v6933 = vpop.f32.mrf.mxu0
        %6934 = vmatprep.mubr.f32.mxu0 0.0
        %v6935 = vand.u32 %v6116, 4294901760
        %6936 = vmatmul.mubr.f32.gmra.mxu0 %v6935
        %v6937 = vpop.f32.mrf.mxu0
        %v6938 = vadd.f32 %v6381, %v6937
        %v6939 = vpop.f32.mrf.mxu0
        %6940 = vmatprep.mubr.f32.mxu0 0.0
        %v6941 = vand.u32 %v6119, 4294901760
        %6942 = vmatmul.mubr.f32.gmra.mxu0 %v6941
        %v6943 = vpop.f32.mrf.mxu0
        %v6944 = vadd.f32 %v6391, %v6943
        %v6945 = vpop.f32.mrf.mxu0
        %6946 = vmatprep.mubr.f32.mxu0 0.0
        %v6947 = vand.u32 %v6122, 4294901760
        %6948 = vmatmul.mubr.f32.gmra.mxu0 %v6947
        %v6949 = vpop.f32.mrf.mxu0
        %v6950 = vadd.f32 %v6401, %v6949
        %v6951 = vpop.f32.mrf.mxu0
        %6952 = vmatprep.mubr.f32.mxu0 0.0
        %v6953 = vand.u32 %v6125, 4294901760
        %6954 = vmatmul.mubr.f32.gmra.mxu0 %v6953
        %v6955 = vpop.f32.mrf.mxu0
        %v6956 = vadd.f32 %v6411, %v6955
        %v6957 = vpop.f32.mrf.mxu0
        %6958 = vmatprep.mubr.f32.mxu0 0.0
        %v6959 = vand.u32 %v6128, 4294901760
        %6960 = vmatmul.mubr.f32.gmra.mxu0 %v6959
        %v6961 = vpop.f32.mrf.mxu0
        %v6962 = vadd.f32 %v6421, %v6961
        %v6963 = vpop.f32.mrf.mxu0
        %6964 = vmatprep.mubr.f32.mxu0 0.0
        %v6965 = vand.u32 %v6131, 4294901760
        %6966 = vmatmul.mubr.f32.gmra.mxu0 %v6965
        %v6967 = vpop.f32.mrf.mxu0
        %v6968 = vadd.f32 %v6431, %v6967
        %v6969 = vpop.f32.mrf.mxu0
        %6970 = vmatprep.mubr.f32.mxu0 0.0
        %v6971 = vand.u32 %v6134, 4294901760
        %6972 = vmatmul.mubr.f32.gmra.mxu0 %v6971
        %v6973 = vpop.f32.mrf.mxu0
        %v6974 = vadd.f32 %v6441, %v6973
        %v6975 = vpop.f32.mrf.mxu0
        %6976 = vmatprep.mubr.f32.mxu0 0.0
        %v6977 = vand.u32 %v6137, 4294901760
        %6978 = vmatmul.mubr.f32.gmra.mxu0 %v6977
        %v6979 = vpop.f32.mrf.mxu0
        %v6980 = vadd.f32 %v6451, %v6979
        %v6981 = vpop.f32.mrf.mxu0
        %6982 = vmatprep.mubr.f32.mxu0 0.0
        %v6983 = vand.u32 %v6140, 4294901760
        %6984 = vmatmul.mubr.f32.gmra.mxu0 %v6983
        %v6985 = vpop.f32.mrf.mxu0
        %v6986 = vadd.f32 %v6461, %v6985
        %v6987 = vpop.f32.mrf.mxu0
        %6988 = vmatprep.mubr.f32.mxu0 0.0
        %v6989 = vand.u32 %v6143, 4294901760
        %6990 = vmatmul.mubr.f32.gmra.mxu0 %v6989
        %v6991 = vpop.f32.mrf.mxu0
        %v6992 = vadd.f32 %v6471, %v6991
        %v6993 = vpop.f32.mrf.mxu0
        %6994 = vmatprep.mubr.f32.mxu0 0.0
        %v6995 = vand.u32 %v6146, 4294901760
        %6996 = vmatmul.mubr.f32.gmra.mxu0 %v6995
        %v6997 = vpop.f32.mrf.mxu0
        %v6998 = vadd.f32 %v6481, %v6997
        %v6999 = vpop.f32.mrf.mxu0
        %7000 = vmatprep.mubr.f32.mxu0 0.0
        %v7001 = vand.u32 %v6149, 4294901760
        %7002 = vmatmul.mubr.f32.gmra.mxu0 %v7001
        %v7003 = vpop.f32.mrf.mxu0
        %v7004 = vadd.f32 %v6491, %v7003
        %v7005 = vpop.f32.mrf.mxu0
        %7006 = vmatprep.mubr.f32.mxu0 0.0
        %v7007 = vand.u32 %v6152, 4294901760
        %7008 = vmatmul.mubr.f32.gmra.mxu0 %v7007
        %v7009 = vpop.f32.mrf.mxu0
        %v7010 = vadd.f32 %v6501, %v7009
        %v7011 = vpop.f32.mrf.mxu0
        %7012 = vmatprep.mubr.f32.mxu0 0.0
        %v7013 = vand.u32 %v6155, 4294901760
        %7014 = vmatmul.mubr.f32.gmra.mxu0 %v7013
        %v7015 = vpop.f32.mrf.mxu0
        %v7016 = vadd.f32 %v6511, %v7015
        %v7017 = vpop.f32.mrf.mxu0
        %7018 = vmatprep.mubr.f32.mxu0 0.0
        %v7019 = vand.u32 %v6158, 4294901760
        %7020 = vmatmul.mubr.f32.gmra.mxu0 %v7019
        %v7021 = vpop.f32.mrf.mxu0
        %v7022 = vadd.f32 %v6521, %v7021
        %v7023 = vpop.f32.mrf.mxu0
        %7024 = vmatprep.mubr.f32.mxu0 0.0
        %v7025 = vand.u32 %v6161, 4294901760
        %7026 = vmatmul.mubr.f32.gmra.mxu0 %v7025
        %v7027 = vpop.f32.mrf.mxu0
        %v7028 = vadd.f32 %v6531, %v7027
        %v7029 = vpop.f32.mrf.mxu0
        %7030 = vmatprep.mubr.f32.mxu0 0.0
        %v7031 = vand.u32 %v6164, 4294901760
        %7032 = vmatmul.mubr.f32.gmra.mxu0 %v7031
        %v7033 = vpop.f32.mrf.mxu0
        %v7034 = vadd.f32 %v6541, %v7033
        %v7035 = vpop.f32.mrf.mxu0
        %7036 = vmatprep.mubr.f32.mxu0 0.0
        %v7037 = vand.u32 %v6167, 4294901760
        %7038 = vmatmul.mubr.f32.gmra.mxu0 %v7037
        %v7039 = vpop.f32.mrf.mxu0
        %v7040 = vadd.f32 %v6551, %v7039
        %v7041 = vpop.f32.mrf.mxu0
        %7042 = vmatprep.mubr.f32.mxu0 0.0
        %v7043 = vand.u32 %v6170, 4294901760
        %7044 = vmatmul.mubr.f32.gmra.mxu0 %v7043
        %v7045 = vpop.f32.mrf.mxu0
        %v7046 = vadd.f32 %v6561, %v7045
        %v7047 = vpop.f32.mrf.mxu0
        %7048 = vmatprep.mubr.f32.mxu0 0.0
        %v7049 = vand.u32 %v6173, 4294901760
        %7050 = vmatmul.mubr.f32.gmra.mxu0 %v7049
        %v7051 = vpop.f32.mrf.mxu0
        %v7052 = vadd.f32 %v6571, %v7051
        %v7053 = vpop.f32.mrf.mxu0
        %7054 = vmatprep.mubr.f32.mxu0 0.0
        %v7055 = vand.u32 %v6176, 4294901760
        %7056 = vmatmul.mubr.f32.gmra.mxu0 %v7055
        %v7057 = vpop.f32.mrf.mxu0
        %v7058 = vadd.f32 %v6581, %v7057
        %v7059 = vpop.f32.mrf.mxu0
        %7060 = vmatprep.mubr.f32.mxu0 0.0
        %v7061 = vand.u32 %v6179, 4294901760
        %7062 = vmatmul.mubr.f32.gmra.mxu0 %v7061
        %v7063 = vpop.f32.mrf.mxu0
        %v7064 = vadd.f32 %v6591, %v7063
        %v7065 = vpop.f32.mrf.mxu0
        %7066 = vmatprep.mubr.f32.mxu0 0.0
        %v7067 = vand.u32 %v6182, 4294901760
        %7068 = vmatmul.mubr.f32.gmra.mxu0 %v7067
        %v7069 = vpop.f32.mrf.mxu0
        %v7070 = vadd.f32 %v6601, %v7069
        %v7071 = vpop.f32.mrf.mxu0
        %7072 = vmatprep.mubr.f32.mxu0 0.0
        %v7073 = vand.u32 %v6185, 4294901760
        %7074 = vmatmul.mubr.f32.gmra.mxu0 %v7073
        %v7075 = vpop.f32.mrf.mxu0
        %v7076 = vadd.f32 %v6611, %v7075
        %v7077 = vpop.f32.mrf.mxu0
        %7078 = vmatprep.mubr.f32.mxu0 0.0
        %v7079 = vand.u32 %v6188, 4294901760
        %7080 = vmatmul.mubr.f32.gmra.mxu0 %v7079
        %v7081 = vpop.f32.mrf.mxu0
        %v7082 = vadd.f32 %v6621, %v7081
        %v7083 = vpop.f32.mrf.mxu0
        %7084 = vmatprep.mubr.f32.mxu0 0.0
        %v7085 = vand.u32 %v6191, 4294901760
        %7086 = vmatmul.mubr.f32.gmra.mxu0 %v7085
        %v7087 = vpop.f32.mrf.mxu0
        %v7088 = vadd.f32 %v6631, %v7087
        %v7089 = vpop.f32.mrf.mxu0
        %7090 = vmatprep.mubr.f32.mxu0 0.0
        %v7091 = vand.u32 %v6194, 4294901760
        %7092 = vmatmul.mubr.f32.gmra.mxu0 %v7091
        %v7093 = vpop.f32.mrf.mxu0
        %v7094 = vadd.f32 %v6641, %v7093
        %v7095 = vpop.f32.mrf.mxu0
        %7096 = vmatprep.mubr.f32.mxu0 0.0
        %v7097 = vand.u32 %v6197, 4294901760
        %7098 = vmatmul.mubr.f32.gmra.mxu0 %v7097
        %v7099 = vpop.f32.mrf.mxu0
        %v7100 = vadd.f32 %v6651, %v7099
        %v7101 = vpop.f32.mrf.mxu0
        %7102 = vmatprep.mubr.f32.mxu0 0.0
        %v7103 = vand.u32 %v6200, 4294901760
        %7104 = vmatmul.mubr.f32.gmra.mxu0 %v7103
        %v7105 = vpop.f32.mrf.mxu0
        %v7106 = vadd.f32 %v6661, %v7105
        %v7107 = vpop.f32.mrf.mxu0
        %7108 = vmatprep.mubr.f32.mxu0 0.0
        %v7109 = vand.u32 %v6203, 4294901760
        %7110 = vmatmul.mubr.f32.gmra.mxu0 %v7109
        %v7111 = vpop.f32.mrf.mxu0
        %v7112 = vadd.f32 %v6671, %v7111
        %v7113 = vpop.f32.mrf.mxu0
        %7114 = vmatprep.mubr.f32.mxu0 0.0
        %v7115 = vand.u32 %v6206, 4294901760
        %7116 = vmatmul.mubr.f32.gmra.mxu0 %v7115
        %v7117 = vpop.f32.mrf.mxu0
        %v7118 = vadd.f32 %v6681, %v7117
        %v7119 = vpop.f32.mrf.mxu0
        %7120 = vmatprep.mubr.f32.mxu0 0.0
        %v7121 = vand.u32 %v6209, 4294901760
        %7122 = vmatmul.mubr.f32.gmra.mxu0 %v7121
        %v7123 = vpop.f32.mrf.mxu0
        %v7124 = vadd.f32 %v6691, %v7123
        %v7125 = vpop.f32.mrf.mxu0
        %7126 = vmatprep.mubr.f32.mxu0 0.0
        %v7127 = vand.u32 %v6212, 4294901760
        %7128 = vmatmul.mubr.f32.gmra.mxu0 %v7127
        %v7129 = vpop.f32.mrf.mxu0
        %v7130 = vadd.f32 %v6701, %v7129
        %v7131 = vpop.f32.mrf.mxu0
        %7132 = vmatprep.mubr.f32.mxu0 0.0
        %v7133 = vand.u32 %v6215, 4294901760
        %7134 = vmatmul.mubr.f32.gmra.mxu0 %v7133
        %v7135 = vpop.f32.mrf.mxu0
        %v7136 = vadd.f32 %v6711, %v7135
        %v7137 = vpop.f32.mrf.mxu0
        %7138 = vmatprep.mubr.f32.mxu0 0.0
        %v7139 = vand.u32 %v6218, 4294901760
        %7140 = vmatmul.mubr.f32.gmra.mxu0 %v7139
        %v7141 = vpop.f32.mrf.mxu0
        %v7142 = vadd.f32 %v6721, %v7141
        %v7143 = vpop.f32.mrf.mxu0
        %7144 = vmatprep.mubr.f32.mxu0 0.0
        %v7145 = vand.u32 %v6221, 4294901760
        %7146 = vmatmul.mubr.f32.gmra.mxu0 %v7145
        %v7147 = vpop.f32.mrf.mxu0
        %v7148 = vadd.f32 %v6731, %v7147
        %v7149 = vpop.f32.mrf.mxu0
        %7150 = vmatprep.mubr.f32.mxu0 0.0
        %v7151 = vand.u32 %v6224, 4294901760
        %7152 = vmatmul.mubr.f32.gmra.mxu0 %v7151
        %v7153 = vpop.f32.mrf.mxu0
        %v7154 = vadd.f32 %v6741, %v7153
        %v7155 = vpop.f32.mrf.mxu0
        %7156 = vmatprep.mubr.f32.mxu0 0.0
        %v7157 = vand.u32 %v6227, 4294901760
        %7158 = vmatmul.mubr.f32.gmra.mxu0 %v7157
        %v7159 = vpop.f32.mrf.mxu0
        %v7160 = vadd.f32 %v6751, %v7159
        %v7161 = vpop.f32.mrf.mxu0
        %7162 = vmatprep.mubr.f32.mxu0 0.0
        %v7163 = vand.u32 %v6230, 4294901760
        %7164 = vmatmul.mubr.f32.gmra.mxu0 %v7163
        %v7165 = vpop.f32.mrf.mxu0
        %v7166 = vadd.f32 %v6761, %v7165
        %v7167 = vpop.f32.mrf.mxu0
        %7168 = vmatprep.mubr.f32.mxu0 0.0
        %v7169 = vand.u32 %v6233, 4294901760
        %7170 = vmatmul.mubr.f32.gmra.mxu0 %v7169
        %v7171 = vpop.f32.mrf.mxu0
        %v7172 = vadd.f32 %v6771, %v7171
        %v7173 = vpop.f32.mrf.mxu0
        %7174 = vmatprep.mubr.f32.mxu0 0.0
        %v7175 = vand.u32 %v6236, 4294901760
        %7176 = vmatmul.mubr.f32.gmra.mxu0 %v7175
        %v7177 = vpop.f32.mrf.mxu0
        %v7178 = vadd.f32 %v6781, %v7177
        %v7179 = vpop.f32.mrf.mxu0
        %7180 = vmatprep.mubr.f32.mxu0 0.0
        %v7181 = vand.u32 %v6239, 4294901760
        %7182 = vmatmul.mubr.f32.gmra.mxu0 %v7181
        %v7183 = vpop.f32.mrf.mxu0
        %v7184 = vadd.f32 %v6791, %v7183
        %v7185 = vpop.f32.mrf.mxu0
        %7186 = vdwg.mxu0
        %7187 = vmatprep.subr.mxu0 0.0
        %7188 = vmatpush1.msra.mxu0 0.0
        %7189 = vmatprep.subr.mxu0 0.0
        %7190 = vmatpush1.msra.mxu0 0.0
        %7191 = vmatprep.subr.mxu0 0.0
        %7192 = vmatpush1.msra.mxu0 0.0
        %7193 = vmatprep.subr.mxu0 0.0
        %7194 = vmatpush1.msra.mxu0 0.0
        %7195 = vmatprep.subr.mxu0 0.0
        %7196 = vmatpush1.msra.mxu0 0.0
        %7197 = vmatprep.subr.mxu0 0.0
        %7198 = vmatpush1.msra.mxu0 0.0
        %7199 = vmatprep.subr.mxu0 0.0
        %7200 = vmatpush1.msra.mxu0 0.0
        %7201 = vmatprep.subr.mxu0 0.0
        %7202 = vmatpush1.msra.mxu0 0.0
        %7203 = vmatprep.subr.mxu0 0.0
        %v7204 = vand.u32 %v633, 4294901760
        %v7205 = vsub.f32 %v633, %v7204
        %7206 = vmatpush1.msra.mxu0 %v7205
        %7207 = vmatprep.subr.mxu0 0.0
        %v7208 = vand.u32 %v632, 4294901760
        %v7209 = vsub.f32 %v632, %v7208
        %7210 = vmatpush1.msra.mxu0 %v7209
        %7211 = vmatprep.subr.mxu0 0.0
        %v7212 = vand.u32 %v631, 4294901760
        %v7213 = vsub.f32 %v631, %v7212
        %7214 = vmatpush1.msra.mxu0 %v7213
        %7215 = vmatprep.subr.mxu0 0.0
        %v7216 = vand.u32 %v630, 4294901760
        %v7217 = vsub.f32 %v630, %v7216
        %7218 = vmatpush1.msra.mxu0 %v7217
        %7219 = vmatprep.subr.mxu0 0.0
        %v7220 = vand.u32 %v629, 4294901760
        %v7221 = vsub.f32 %v629, %v7220
        %7222 = vmatpush1.msra.mxu0 %v7221
        %7223 = vmatprep.subr.mxu0 0.0
        %v7224 = vand.u32 %v628, 4294901760
        %v7225 = vsub.f32 %v628, %v7224
        %7226 = vmatpush1.msra.mxu0 %v7225
        %7227 = vmatprep.subr.mxu0 0.0
        %v7228 = vand.u32 %v627, 4294901760
        %v7229 = vsub.f32 %v627, %v7228
        %7230 = vmatpush1.msra.mxu0 %v7229
        %7231 = vmatprep.subr.mxu0 0.0
        %v7232 = vand.u32 %v626, 4294901760
        %v7233 = vsub.f32 %v626, %v7232
        %7234 = vmatpush1.msra.mxu0 %v7233
        %7235 = vmatprep.subr.mxu0 0.0
        %7236 = vmatpush2.msra.mxu0 0.0
        %7237 = vmatprep.subr.mxu0 0.0
        %7238 = vmatpush2.msra.mxu0 0.0
        %7239 = vmatprep.subr.mxu0 0.0
        %7240 = vmatpush2.msra.mxu0 0.0
        %7241 = vmatprep.subr.mxu0 0.0
        %7242 = vmatpush2.msra.mxu0 0.0
        %7243 = vmatprep.subr.mxu0 0.0
        %7244 = vmatpush2.msra.mxu0 0.0
        %7245 = vmatprep.subr.mxu0 0.0
        %7246 = vmatpush2.msra.mxu0 0.0
        %7247 = vmatprep.subr.mxu0 0.0
        %7248 = vmatpush2.msra.mxu0 0.0
        %7249 = vmatprep.subr.mxu0 0.0
        %7250 = vmatpush2.msra.mxu0 0.0
        %7251 = vmatprep.subr.mxu0 0.0
        %7252 = vmatpush2.msra.mxu0 0.0
        %7253 = vmatprep.subr.mxu0 0.0
        %7254 = vmatpush2.msra.mxu0 0.0
        %7255 = vmatprep.subr.mxu0 0.0
        %7256 = vmatpush2.msra.mxu0 0.0
        %7257 = vmatprep.subr.mxu0 0.0
        %7258 = vmatpush2.msra.mxu0 0.0
        %7259 = vmatprep.subr.mxu0 0.0
        %7260 = vmatpush2.msra.mxu0 0.0
        %7261 = vmatprep.subr.mxu0 0.0
        %7262 = vmatpush2.msra.mxu0 0.0
        %7263 = vmatprep.subr.mxu0 0.0
        %7264 = vmatpush2.msra.mxu0 0.0
        %7265 = vmatprep.subr.mxu0 0.0
        %7266 = vmatpush2.msra.mxu0 0.0
        %7267 = vmatprep.mubr.f32.mxu0 0.0
        %v7268 = vand.u32 %v6098, 4294901760
        %v7269 = vsub.f32 %v6098, %v7268
        %7270 = vmatmul.mubr.f32.gmra.mxu0 %v7269
        %v7271 = vpop.f32.mrf.mxu0
        %v7272 = vadd.f32 %v6902, %v7271
        %v7273 = vpop.f32.mrf.mxu0
        %7274 = vmatprep.mubr.f32.mxu0 0.0
        %v7275 = vand.u32 %v6101, 4294901760
        %v7276 = vsub.f32 %v6101, %v7275
        %7277 = vmatmul.mubr.f32.gmra.mxu0 %v7276
        %v7278 = vpop.f32.mrf.mxu0
        %v7279 = vadd.f32 %v6908, %v7278
        %v7280 = vpop.f32.mrf.mxu0
        %7281 = vmatprep.mubr.f32.mxu0 0.0
        %v7282 = vand.u32 %v6104, 4294901760
        %v7283 = vsub.f32 %v6104, %v7282
        %7284 = vmatmul.mubr.f32.gmra.mxu0 %v7283
        %v7285 = vpop.f32.mrf.mxu0
        %v7286 = vadd.f32 %v6914, %v7285
        %v7287 = vpop.f32.mrf.mxu0
        %7288 = vmatprep.mubr.f32.mxu0 0.0
        %v7289 = vand.u32 %v6107, 4294901760
        %v7290 = vsub.f32 %v6107, %v7289
        %7291 = vmatmul.mubr.f32.gmra.mxu0 %v7290
        %v7292 = vpop.f32.mrf.mxu0
        %v7293 = vadd.f32 %v6920, %v7292
        %v7294 = vpop.f32.mrf.mxu0
        %7295 = vmatprep.mubr.f32.mxu0 0.0
        %v7296 = vand.u32 %v6110, 4294901760
        %v7297 = vsub.f32 %v6110, %v7296
        %7298 = vmatmul.mubr.f32.gmra.mxu0 %v7297
        %v7299 = vpop.f32.mrf.mxu0
        %v7300 = vadd.f32 %v6926, %v7299
        %v7301 = vpop.f32.mrf.mxu0
        %7302 = vmatprep.mubr.f32.mxu0 0.0
        %v7303 = vand.u32 %v6113, 4294901760
        %v7304 = vsub.f32 %v6113, %v7303
        %7305 = vmatmul.mubr.f32.gmra.mxu0 %v7304
        %v7306 = vpop.f32.mrf.mxu0
        %v7307 = vadd.f32 %v6932, %v7306
        %v7308 = vpop.f32.mrf.mxu0
        %7309 = vmatprep.mubr.f32.mxu0 0.0
        %v7310 = vand.u32 %v6116, 4294901760
        %v7311 = vsub.f32 %v6116, %v7310
        %7312 = vmatmul.mubr.f32.gmra.mxu0 %v7311
        %v7313 = vpop.f32.mrf.mxu0
        %v7314 = vadd.f32 %v6938, %v7313
        %v7315 = vpop.f32.mrf.mxu0
        %7316 = vmatprep.mubr.f32.mxu0 0.0
        %v7317 = vand.u32 %v6119, 4294901760
        %v7318 = vsub.f32 %v6119, %v7317
        %7319 = vmatmul.mubr.f32.gmra.mxu0 %v7318
        %v7320 = vpop.f32.mrf.mxu0
        %v7321 = vadd.f32 %v6944, %v7320
        %v7322 = vpop.f32.mrf.mxu0
        %7323 = vmatprep.mubr.f32.mxu0 0.0
        %v7324 = vand.u32 %v6122, 4294901760
        %v7325 = vsub.f32 %v6122, %v7324
        %7326 = vmatmul.mubr.f32.gmra.mxu0 %v7325
        %v7327 = vpop.f32.mrf.mxu0
        %v7328 = vadd.f32 %v6950, %v7327
        %v7329 = vpop.f32.mrf.mxu0
        %7330 = vmatprep.mubr.f32.mxu0 0.0
        %v7331 = vand.u32 %v6125, 4294901760
        %v7332 = vsub.f32 %v6125, %v7331
        %7333 = vmatmul.mubr.f32.gmra.mxu0 %v7332
        %v7334 = vpop.f32.mrf.mxu0
        %v7335 = vadd.f32 %v6956, %v7334
        %v7336 = vpop.f32.mrf.mxu0
        %7337 = vmatprep.mubr.f32.mxu0 0.0
        %v7338 = vand.u32 %v6128, 4294901760
        %v7339 = vsub.f32 %v6128, %v7338
        %7340 = vmatmul.mubr.f32.gmra.mxu0 %v7339
        %v7341 = vpop.f32.mrf.mxu0
        %v7342 = vadd.f32 %v6962, %v7341
        %v7343 = vpop.f32.mrf.mxu0
        %7344 = vmatprep.mubr.f32.mxu0 0.0
        %v7345 = vand.u32 %v6131, 4294901760
        %v7346 = vsub.f32 %v6131, %v7345
        %7347 = vmatmul.mubr.f32.gmra.mxu0 %v7346
        %v7348 = vpop.f32.mrf.mxu0
        %v7349 = vadd.f32 %v6968, %v7348
        %v7350 = vpop.f32.mrf.mxu0
        %7351 = vmatprep.mubr.f32.mxu0 0.0
        %v7352 = vand.u32 %v6134, 4294901760
        %v7353 = vsub.f32 %v6134, %v7352
        %7354 = vmatmul.mubr.f32.gmra.mxu0 %v7353
        %v7355 = vpop.f32.mrf.mxu0
        %v7356 = vadd.f32 %v6974, %v7355
        %v7357 = vpop.f32.mrf.mxu0
        %7358 = vmatprep.mubr.f32.mxu0 0.0
        %v7359 = vand.u32 %v6137, 4294901760
        %v7360 = vsub.f32 %v6137, %v7359
        %7361 = vmatmul.mubr.f32.gmra.mxu0 %v7360
        %v7362 = vpop.f32.mrf.mxu0
        %v7363 = vadd.f32 %v6980, %v7362
        %v7364 = vpop.f32.mrf.mxu0
        %7365 = vmatprep.mubr.f32.mxu0 0.0
        %v7366 = vand.u32 %v6140, 4294901760
        %v7367 = vsub.f32 %v6140, %v7366
        %7368 = vmatmul.mubr.f32.gmra.mxu0 %v7367
        %v7369 = vpop.f32.mrf.mxu0
        %v7370 = vadd.f32 %v6986, %v7369
        %v7371 = vpop.f32.mrf.mxu0
        %7372 = vmatprep.mubr.f32.mxu0 0.0
        %v7373 = vand.u32 %v6143, 4294901760
        %v7374 = vsub.f32 %v6143, %v7373
        %7375 = vmatmul.mubr.f32.gmra.mxu0 %v7374
        %v7376 = vpop.f32.mrf.mxu0
        %v7377 = vadd.f32 %v6992, %v7376
        %v7378 = vpop.f32.mrf.mxu0
        %7379 = vmatprep.mubr.f32.mxu0 0.0
        %v7380 = vand.u32 %v6146, 4294901760
        %v7381 = vsub.f32 %v6146, %v7380
        %7382 = vmatmul.mubr.f32.gmra.mxu0 %v7381
        %v7383 = vpop.f32.mrf.mxu0
        %v7384 = vadd.f32 %v6998, %v7383
        %v7385 = vpop.f32.mrf.mxu0
        %7386 = vmatprep.mubr.f32.mxu0 0.0
        %v7387 = vand.u32 %v6149, 4294901760
        %v7388 = vsub.f32 %v6149, %v7387
        %7389 = vmatmul.mubr.f32.gmra.mxu0 %v7388
        %v7390 = vpop.f32.mrf.mxu0
        %v7391 = vadd.f32 %v7004, %v7390
        %v7392 = vpop.f32.mrf.mxu0
        %7393 = vmatprep.mubr.f32.mxu0 0.0
        %v7394 = vand.u32 %v6152, 4294901760
        %v7395 = vsub.f32 %v6152, %v7394
        %7396 = vmatmul.mubr.f32.gmra.mxu0 %v7395
        %v7397 = vpop.f32.mrf.mxu0
        %v7398 = vadd.f32 %v7010, %v7397
        %v7399 = vpop.f32.mrf.mxu0
        %7400 = vmatprep.mubr.f32.mxu0 0.0
        %v7401 = vand.u32 %v6155, 4294901760
        %v7402 = vsub.f32 %v6155, %v7401
        %7403 = vmatmul.mubr.f32.gmra.mxu0 %v7402
        %v7404 = vpop.f32.mrf.mxu0
        %v7405 = vadd.f32 %v7016, %v7404
        %v7406 = vpop.f32.mrf.mxu0
        %7407 = vmatprep.mubr.f32.mxu0 0.0
        %v7408 = vand.u32 %v6158, 4294901760
        %v7409 = vsub.f32 %v6158, %v7408
        %7410 = vmatmul.mubr.f32.gmra.mxu0 %v7409
        %v7411 = vpop.f32.mrf.mxu0
        %v7412 = vadd.f32 %v7022, %v7411
        %v7413 = vpop.f32.mrf.mxu0
        %7414 = vmatprep.mubr.f32.mxu0 0.0
        %v7415 = vand.u32 %v6161, 4294901760
        %v7416 = vsub.f32 %v6161, %v7415
        %7417 = vmatmul.mubr.f32.gmra.mxu0 %v7416
        %v7418 = vpop.f32.mrf.mxu0
        %v7419 = vadd.f32 %v7028, %v7418
        %v7420 = vpop.f32.mrf.mxu0
        %7421 = vmatprep.mubr.f32.mxu0 0.0
        %v7422 = vand.u32 %v6164, 4294901760
        %v7423 = vsub.f32 %v6164, %v7422
        %7424 = vmatmul.mubr.f32.gmra.mxu0 %v7423
        %v7425 = vpop.f32.mrf.mxu0
        %v7426 = vadd.f32 %v7034, %v7425
        %v7427 = vpop.f32.mrf.mxu0
        %7428 = vmatprep.mubr.f32.mxu0 0.0
        %v7429 = vand.u32 %v6167, 4294901760
        %v7430 = vsub.f32 %v6167, %v7429
        %7431 = vmatmul.mubr.f32.gmra.mxu0 %v7430
        %v7432 = vpop.f32.mrf.mxu0
        %v7433 = vadd.f32 %v7040, %v7432
        %v7434 = vpop.f32.mrf.mxu0
        %7435 = vmatprep.mubr.f32.mxu0 0.0
        %v7436 = vand.u32 %v6170, 4294901760
        %v7437 = vsub.f32 %v6170, %v7436
        %7438 = vmatmul.mubr.f32.gmra.mxu0 %v7437
        %v7439 = vpop.f32.mrf.mxu0
        %v7440 = vadd.f32 %v7046, %v7439
        %v7441 = vpop.f32.mrf.mxu0
        %7442 = vmatprep.mubr.f32.mxu0 0.0
        %v7443 = vand.u32 %v6173, 4294901760
        %v7444 = vsub.f32 %v6173, %v7443
        %7445 = vmatmul.mubr.f32.gmra.mxu0 %v7444
        %v7446 = vpop.f32.mrf.mxu0
        %v7447 = vadd.f32 %v7052, %v7446
        %v7448 = vpop.f32.mrf.mxu0
        %7449 = vmatprep.mubr.f32.mxu0 0.0
        %v7450 = vand.u32 %v6176, 4294901760
        %v7451 = vsub.f32 %v6176, %v7450
        %7452 = vmatmul.mubr.f32.gmra.mxu0 %v7451
        %v7453 = vpop.f32.mrf.mxu0
        %v7454 = vadd.f32 %v7058, %v7453
        %v7455 = vpop.f32.mrf.mxu0
        %7456 = vmatprep.mubr.f32.mxu0 0.0
        %v7457 = vand.u32 %v6179, 4294901760
        %v7458 = vsub.f32 %v6179, %v7457
        %7459 = vmatmul.mubr.f32.gmra.mxu0 %v7458
        %v7460 = vpop.f32.mrf.mxu0
        %v7461 = vadd.f32 %v7064, %v7460
        %v7462 = vpop.f32.mrf.mxu0
        %7463 = vmatprep.mubr.f32.mxu0 0.0
        %v7464 = vand.u32 %v6182, 4294901760
        %v7465 = vsub.f32 %v6182, %v7464
        %7466 = vmatmul.mubr.f32.gmra.mxu0 %v7465
        %v7467 = vpop.f32.mrf.mxu0
        %v7468 = vadd.f32 %v7070, %v7467
        %v7469 = vpop.f32.mrf.mxu0
        %7470 = vmatprep.mubr.f32.mxu0 0.0
        %v7471 = vand.u32 %v6185, 4294901760
        %v7472 = vsub.f32 %v6185, %v7471
        %7473 = vmatmul.mubr.f32.gmra.mxu0 %v7472
        %v7474 = vpop.f32.mrf.mxu0
        %v7475 = vadd.f32 %v7076, %v7474
        %v7476 = vpop.f32.mrf.mxu0
        %7477 = vmatprep.mubr.f32.mxu0 0.0
        %v7478 = vand.u32 %v6188, 4294901760
        %v7479 = vsub.f32 %v6188, %v7478
        %7480 = vmatmul.mubr.f32.gmra.mxu0 %v7479
        %v7481 = vpop.f32.mrf.mxu0
        %v7482 = vadd.f32 %v7082, %v7481
        %v7483 = vpop.f32.mrf.mxu0
        %7484 = vmatprep.mubr.f32.mxu0 0.0
        %v7485 = vand.u32 %v6191, 4294901760
        %v7486 = vsub.f32 %v6191, %v7485
        %7487 = vmatmul.mubr.f32.gmra.mxu0 %v7486
        %v7488 = vpop.f32.mrf.mxu0
        %v7489 = vadd.f32 %v7088, %v7488
        %v7490 = vpop.f32.mrf.mxu0
        %7491 = vmatprep.mubr.f32.mxu0 0.0
        %v7492 = vand.u32 %v6194, 4294901760
        %v7493 = vsub.f32 %v6194, %v7492
        %7494 = vmatmul.mubr.f32.gmra.mxu0 %v7493
        %v7495 = vpop.f32.mrf.mxu0
        %v7496 = vadd.f32 %v7094, %v7495
        %v7497 = vpop.f32.mrf.mxu0
        %7498 = vmatprep.mubr.f32.mxu0 0.0
        %v7499 = vand.u32 %v6197, 4294901760
        %v7500 = vsub.f32 %v6197, %v7499
        %7501 = vmatmul.mubr.f32.gmra.mxu0 %v7500
        %v7502 = vpop.f32.mrf.mxu0
        %v7503 = vadd.f32 %v7100, %v7502
        %v7504 = vpop.f32.mrf.mxu0
        %7505 = vmatprep.mubr.f32.mxu0 0.0
        %v7506 = vand.u32 %v6200, 4294901760
        %v7507 = vsub.f32 %v6200, %v7506
        %7508 = vmatmul.mubr.f32.gmra.mxu0 %v7507
        %v7509 = vpop.f32.mrf.mxu0
        %v7510 = vadd.f32 %v7106, %v7509
        %v7511 = vpop.f32.mrf.mxu0
        %7512 = vmatprep.mubr.f32.mxu0 0.0
        %v7513 = vand.u32 %v6203, 4294901760
        %v7514 = vsub.f32 %v6203, %v7513
        %7515 = vmatmul.mubr.f32.gmra.mxu0 %v7514
        %v7516 = vpop.f32.mrf.mxu0
        %v7517 = vadd.f32 %v7112, %v7516
        %v7518 = vpop.f32.mrf.mxu0
        %7519 = vmatprep.mubr.f32.mxu0 0.0
        %v7520 = vand.u32 %v6206, 4294901760
        %v7521 = vsub.f32 %v6206, %v7520
        %7522 = vmatmul.mubr.f32.gmra.mxu0 %v7521
        %v7523 = vpop.f32.mrf.mxu0
        %v7524 = vadd.f32 %v7118, %v7523
        %v7525 = vpop.f32.mrf.mxu0
        %7526 = vmatprep.mubr.f32.mxu0 0.0
        %v7527 = vand.u32 %v6209, 4294901760
        %v7528 = vsub.f32 %v6209, %v7527
        %7529 = vmatmul.mubr.f32.gmra.mxu0 %v7528
        %v7530 = vpop.f32.mrf.mxu0
        %v7531 = vadd.f32 %v7124, %v7530
        %v7532 = vpop.f32.mrf.mxu0
        %7533 = vmatprep.mubr.f32.mxu0 0.0
        %v7534 = vand.u32 %v6212, 4294901760
        %v7535 = vsub.f32 %v6212, %v7534
        %7536 = vmatmul.mubr.f32.gmra.mxu0 %v7535
        %v7537 = vpop.f32.mrf.mxu0
        %v7538 = vadd.f32 %v7130, %v7537
        %v7539 = vpop.f32.mrf.mxu0
        %7540 = vmatprep.mubr.f32.mxu0 0.0
        %v7541 = vand.u32 %v6215, 4294901760
        %v7542 = vsub.f32 %v6215, %v7541
        %7543 = vmatmul.mubr.f32.gmra.mxu0 %v7542
        %v7544 = vpop.f32.mrf.mxu0
        %v7545 = vadd.f32 %v7136, %v7544
        %v7546 = vpop.f32.mrf.mxu0
        %7547 = vmatprep.mubr.f32.mxu0 0.0
        %v7548 = vand.u32 %v6218, 4294901760
        %v7549 = vsub.f32 %v6218, %v7548
        %7550 = vmatmul.mubr.f32.gmra.mxu0 %v7549
        %v7551 = vpop.f32.mrf.mxu0
        %v7552 = vadd.f32 %v7142, %v7551
        %v7553 = vpop.f32.mrf.mxu0
        %7554 = vmatprep.mubr.f32.mxu0 0.0
        %v7555 = vand.u32 %v6221, 4294901760
        %v7556 = vsub.f32 %v6221, %v7555
        %7557 = vmatmul.mubr.f32.gmra.mxu0 %v7556
        %v7558 = vpop.f32.mrf.mxu0
        %v7559 = vadd.f32 %v7148, %v7558
        %v7560 = vpop.f32.mrf.mxu0
        %7561 = vmatprep.mubr.f32.mxu0 0.0
        %v7562 = vand.u32 %v6224, 4294901760
        %v7563 = vsub.f32 %v6224, %v7562
        %7564 = vmatmul.mubr.f32.gmra.mxu0 %v7563
        %v7565 = vpop.f32.mrf.mxu0
        %v7566 = vadd.f32 %v7154, %v7565
        %v7567 = vpop.f32.mrf.mxu0
        %7568 = vmatprep.mubr.f32.mxu0 0.0
        %v7569 = vand.u32 %v6227, 4294901760
        %v7570 = vsub.f32 %v6227, %v7569
        %7571 = vmatmul.mubr.f32.gmra.mxu0 %v7570
        %v7572 = vpop.f32.mrf.mxu0
        %v7573 = vadd.f32 %v7160, %v7572
        %v7574 = vpop.f32.mrf.mxu0
        %7575 = vmatprep.mubr.f32.mxu0 0.0
        %v7576 = vand.u32 %v6230, 4294901760
        %v7577 = vsub.f32 %v6230, %v7576
        %7578 = vmatmul.mubr.f32.gmra.mxu0 %v7577
        %v7579 = vpop.f32.mrf.mxu0
        %v7580 = vadd.f32 %v7166, %v7579
        %v7581 = vpop.f32.mrf.mxu0
        %7582 = vmatprep.mubr.f32.mxu0 0.0
        %v7583 = vand.u32 %v6233, 4294901760
        %v7584 = vsub.f32 %v6233, %v7583
        %7585 = vmatmul.mubr.f32.gmra.mxu0 %v7584
        %v7586 = vpop.f32.mrf.mxu0
        %v7587 = vadd.f32 %v7172, %v7586
        %v7588 = vpop.f32.mrf.mxu0
        %7589 = vmatprep.mubr.f32.mxu0 0.0
        %v7590 = vand.u32 %v6236, 4294901760
        %v7591 = vsub.f32 %v6236, %v7590
        %7592 = vmatmul.mubr.f32.gmra.mxu0 %v7591
        %v7593 = vpop.f32.mrf.mxu0
        %v7594 = vadd.f32 %v7178, %v7593
        %v7595 = vpop.f32.mrf.mxu0
        %7596 = vmatprep.mubr.f32.mxu0 0.0
        %v7597 = vand.u32 %v6239, 4294901760
        %v7598 = vsub.f32 %v6239, %v7597
        %7599 = vmatmul.mubr.f32.gmra.mxu0 %v7598
        %v7600 = vpop.f32.mrf.mxu0
        %v7601 = vadd.f32 %v7184, %v7600
        %v7602 = vpop.f32.mrf.mxu0
        %7603 = vdwg.mxu0
        %7604 = vmatprep.subr.mxu0 0.0
        %7605 = vmatpush1.msra.mxu0 0.0
        %7606 = vmatprep.subr.mxu0 0.0
        %7607 = vmatpush1.msra.mxu0 0.0
        %7608 = vmatprep.subr.mxu0 0.0
        %7609 = vmatpush1.msra.mxu0 0.0
        %7610 = vmatprep.subr.mxu0 0.0
        %7611 = vmatpush1.msra.mxu0 0.0
        %7612 = vmatprep.subr.mxu0 0.0
        %7613 = vmatpush1.msra.mxu0 0.0
        %7614 = vmatprep.subr.mxu0 0.0
        %7615 = vmatpush1.msra.mxu0 0.0
        %7616 = vmatprep.subr.mxu0 0.0
        %7617 = vmatpush1.msra.mxu0 0.0
        %7618 = vmatprep.subr.mxu0 0.0
        %7619 = vmatpush1.msra.mxu0 0.0
        %7620 = vmatprep.subr.mxu0 0.0
        %v7621 = vand.u32 %v633, 4294901760
        %7622 = vmatpush1.msra.mxu0 %v7621
        %7623 = vmatprep.subr.mxu0 0.0
        %v7624 = vand.u32 %v632, 4294901760
        %7625 = vmatpush1.msra.mxu0 %v7624
        %7626 = vmatprep.subr.mxu0 0.0
        %v7627 = vand.u32 %v631, 4294901760
        %7628 = vmatpush1.msra.mxu0 %v7627
        %7629 = vmatprep.subr.mxu0 0.0
        %v7630 = vand.u32 %v630, 4294901760
        %7631 = vmatpush1.msra.mxu0 %v7630
        %7632 = vmatprep.subr.mxu0 0.0
        %v7633 = vand.u32 %v629, 4294901760
        %7634 = vmatpush1.msra.mxu0 %v7633
        %7635 = vmatprep.subr.mxu0 0.0
        %v7636 = vand.u32 %v628, 4294901760
        %7637 = vmatpush1.msra.mxu0 %v7636
        %7638 = vmatprep.subr.mxu0 0.0
        %v7639 = vand.u32 %v627, 4294901760
        %7640 = vmatpush1.msra.mxu0 %v7639
        %7641 = vmatprep.subr.mxu0 0.0
        %v7642 = vand.u32 %v626, 4294901760
        %7643 = vmatpush1.msra.mxu0 %v7642
        %7644 = vmatprep.subr.mxu0 0.0
        %7645 = vmatpush2.msra.mxu0 0.0
        %7646 = vmatprep.subr.mxu0 0.0
        %7647 = vmatpush2.msra.mxu0 0.0
        %7648 = vmatprep.subr.mxu0 0.0
        %7649 = vmatpush2.msra.mxu0 0.0
        %7650 = vmatprep.subr.mxu0 0.0
        %7651 = vmatpush2.msra.mxu0 0.0
        %7652 = vmatprep.subr.mxu0 0.0
        %7653 = vmatpush2.msra.mxu0 0.0
        %7654 = vmatprep.subr.mxu0 0.0
        %7655 = vmatpush2.msra.mxu0 0.0
        %7656 = vmatprep.subr.mxu0 0.0
        %7657 = vmatpush2.msra.mxu0 0.0
        %7658 = vmatprep.subr.mxu0 0.0
        %7659 = vmatpush2.msra.mxu0 0.0
        %7660 = vmatprep.subr.mxu0 0.0
        %7661 = vmatpush2.msra.mxu0 0.0
        %7662 = vmatprep.subr.mxu0 0.0
        %7663 = vmatpush2.msra.mxu0 0.0
        %7664 = vmatprep.subr.mxu0 0.0
        %7665 = vmatpush2.msra.mxu0 0.0
        %7666 = vmatprep.subr.mxu0 0.0
        %7667 = vmatpush2.msra.mxu0 0.0
        %7668 = vmatprep.subr.mxu0 0.0
        %7669 = vmatpush2.msra.mxu0 0.0
        %7670 = vmatprep.subr.mxu0 0.0
        %7671 = vmatpush2.msra.mxu0 0.0
        %7672 = vmatprep.subr.mxu0 0.0
        %7673 = vmatpush2.msra.mxu0 0.0
        %7674 = vmatprep.subr.mxu0 0.0
        %7675 = vmatpush2.msra.mxu0 0.0
        %7676 = vmatprep.mubr.f32.mxu0 0.0
        %v7677 = vand.u32 %v6098, 4294901760
        %v7678 = vsub.f32 %v6098, %v7677
        %v7679 = vand.u32 %v7678, 4294901760
        %7680 = vmatmul.mubr.f32.gmra.mxu0 %v7679
        %v7681 = vpop.f32.mrf.mxu0
        %v7682 = vadd.f32 %v7272, %v7681
        %v7683 = vpop.f32.mrf.mxu0
        %7684 = vmatprep.mubr.f32.mxu0 0.0
        %v7685 = vand.u32 %v6101, 4294901760
        %v7686 = vsub.f32 %v6101, %v7685
        %v7687 = vand.u32 %v7686, 4294901760
        %7688 = vmatmul.mubr.f32.gmra.mxu0 %v7687
        %v7689 = vpop.f32.mrf.mxu0
        %v7690 = vadd.f32 %v7279, %v7689
        %v7691 = vpop.f32.mrf.mxu0
        %7692 = vmatprep.mubr.f32.mxu0 0.0
        %v7693 = vand.u32 %v6104, 4294901760
        %v7694 = vsub.f32 %v6104, %v7693
        %v7695 = vand.u32 %v7694, 4294901760
        %7696 = vmatmul.mubr.f32.gmra.mxu0 %v7695
        %v7697 = vpop.f32.mrf.mxu0
        %v7698 = vadd.f32 %v7286, %v7697
        %v7699 = vpop.f32.mrf.mxu0
        %7700 = vmatprep.mubr.f32.mxu0 0.0
        %v7701 = vand.u32 %v6107, 4294901760
        %v7702 = vsub.f32 %v6107, %v7701
        %v7703 = vand.u32 %v7702, 4294901760
        %7704 = vmatmul.mubr.f32.gmra.mxu0 %v7703
        %v7705 = vpop.f32.mrf.mxu0
        %v7706 = vadd.f32 %v7293, %v7705
        %v7707 = vpop.f32.mrf.mxu0
        %7708 = vmatprep.mubr.f32.mxu0 0.0
        %v7709 = vand.u32 %v6110, 4294901760
        %v7710 = vsub.f32 %v6110, %v7709
        %v7711 = vand.u32 %v7710, 4294901760
        %7712 = vmatmul.mubr.f32.gmra.mxu0 %v7711
        %v7713 = vpop.f32.mrf.mxu0
        %v7714 = vadd.f32 %v7300, %v7713
        %v7715 = vpop.f32.mrf.mxu0
        %7716 = vmatprep.mubr.f32.mxu0 0.0
        %v7717 = vand.u32 %v6113, 4294901760
        %v7718 = vsub.f32 %v6113, %v7717
        %v7719 = vand.u32 %v7718, 4294901760
        %7720 = vmatmul.mubr.f32.gmra.mxu0 %v7719
        %v7721 = vpop.f32.mrf.mxu0
        %v7722 = vadd.f32 %v7307, %v7721
        %v7723 = vpop.f32.mrf.mxu0
        %7724 = vmatprep.mubr.f32.mxu0 0.0
        %v7725 = vand.u32 %v6116, 4294901760
        %v7726 = vsub.f32 %v6116, %v7725
        %v7727 = vand.u32 %v7726, 4294901760
        %7728 = vmatmul.mubr.f32.gmra.mxu0 %v7727
        %v7729 = vpop.f32.mrf.mxu0
        %v7730 = vadd.f32 %v7314, %v7729
        %v7731 = vpop.f32.mrf.mxu0
        %7732 = vmatprep.mubr.f32.mxu0 0.0
        %v7733 = vand.u32 %v6119, 4294901760
        %v7734 = vsub.f32 %v6119, %v7733
        %v7735 = vand.u32 %v7734, 4294901760
        %7736 = vmatmul.mubr.f32.gmra.mxu0 %v7735
        %v7737 = vpop.f32.mrf.mxu0
        %v7738 = vadd.f32 %v7321, %v7737
        %v7739 = vpop.f32.mrf.mxu0
        %7740 = vmatprep.mubr.f32.mxu0 0.0
        %v7741 = vand.u32 %v6122, 4294901760
        %v7742 = vsub.f32 %v6122, %v7741
        %v7743 = vand.u32 %v7742, 4294901760
        %7744 = vmatmul.mubr.f32.gmra.mxu0 %v7743
        %v7745 = vpop.f32.mrf.mxu0
        %v7746 = vadd.f32 %v7328, %v7745
        %v7747 = vpop.f32.mrf.mxu0
        %7748 = vmatprep.mubr.f32.mxu0 0.0
        %v7749 = vand.u32 %v6125, 4294901760
        %v7750 = vsub.f32 %v6125, %v7749
        %v7751 = vand.u32 %v7750, 4294901760
        %7752 = vmatmul.mubr.f32.gmra.mxu0 %v7751
        %v7753 = vpop.f32.mrf.mxu0
        %v7754 = vadd.f32 %v7335, %v7753
        %v7755 = vpop.f32.mrf.mxu0
        %7756 = vmatprep.mubr.f32.mxu0 0.0
        %v7757 = vand.u32 %v6128, 4294901760
        %v7758 = vsub.f32 %v6128, %v7757
        %v7759 = vand.u32 %v7758, 4294901760
        %7760 = vmatmul.mubr.f32.gmra.mxu0 %v7759
        %v7761 = vpop.f32.mrf.mxu0
        %v7762 = vadd.f32 %v7342, %v7761
        %v7763 = vpop.f32.mrf.mxu0
        %7764 = vmatprep.mubr.f32.mxu0 0.0
        %v7765 = vand.u32 %v6131, 4294901760
        %v7766 = vsub.f32 %v6131, %v7765
        %v7767 = vand.u32 %v7766, 4294901760
        %7768 = vmatmul.mubr.f32.gmra.mxu0 %v7767
        %v7769 = vpop.f32.mrf.mxu0
        %v7770 = vadd.f32 %v7349, %v7769
        %v7771 = vpop.f32.mrf.mxu0
        %7772 = vmatprep.mubr.f32.mxu0 0.0
        %v7773 = vand.u32 %v6134, 4294901760
        %v7774 = vsub.f32 %v6134, %v7773
        %v7775 = vand.u32 %v7774, 4294901760
        %7776 = vmatmul.mubr.f32.gmra.mxu0 %v7775
        %v7777 = vpop.f32.mrf.mxu0
        %v7778 = vadd.f32 %v7356, %v7777
        %v7779 = vpop.f32.mrf.mxu0
        %7780 = vmatprep.mubr.f32.mxu0 0.0
        %v7781 = vand.u32 %v6137, 4294901760
        %v7782 = vsub.f32 %v6137, %v7781
        %v7783 = vand.u32 %v7782, 4294901760
        %7784 = vmatmul.mubr.f32.gmra.mxu0 %v7783
        %v7785 = vpop.f32.mrf.mxu0
        %v7786 = vadd.f32 %v7363, %v7785
        %v7787 = vpop.f32.mrf.mxu0
        %7788 = vmatprep.mubr.f32.mxu0 0.0
        %v7789 = vand.u32 %v6140, 4294901760
        %v7790 = vsub.f32 %v6140, %v7789
        %v7791 = vand.u32 %v7790, 4294901760
        %7792 = vmatmul.mubr.f32.gmra.mxu0 %v7791
        %v7793 = vpop.f32.mrf.mxu0
        %v7794 = vadd.f32 %v7370, %v7793
        %v7795 = vpop.f32.mrf.mxu0
        %7796 = vmatprep.mubr.f32.mxu0 0.0
        %v7797 = vand.u32 %v6143, 4294901760
        %v7798 = vsub.f32 %v6143, %v7797
        %v7799 = vand.u32 %v7798, 4294901760
        %7800 = vmatmul.mubr.f32.gmra.mxu0 %v7799
        %v7801 = vpop.f32.mrf.mxu0
        %v7802 = vadd.f32 %v7377, %v7801
        %v7803 = vpop.f32.mrf.mxu0
        %7804 = vmatprep.mubr.f32.mxu0 0.0
        %v7805 = vand.u32 %v6146, 4294901760
        %v7806 = vsub.f32 %v6146, %v7805
        %v7807 = vand.u32 %v7806, 4294901760
        %7808 = vmatmul.mubr.f32.gmra.mxu0 %v7807
        %v7809 = vpop.f32.mrf.mxu0
        %v7810 = vadd.f32 %v7384, %v7809
        %v7811 = vpop.f32.mrf.mxu0
        %7812 = vmatprep.mubr.f32.mxu0 0.0
        %v7813 = vand.u32 %v6149, 4294901760
        %v7814 = vsub.f32 %v6149, %v7813
        %v7815 = vand.u32 %v7814, 4294901760
        %7816 = vmatmul.mubr.f32.gmra.mxu0 %v7815
        %v7817 = vpop.f32.mrf.mxu0
        %v7818 = vadd.f32 %v7391, %v7817
        %v7819 = vpop.f32.mrf.mxu0
        %7820 = vmatprep.mubr.f32.mxu0 0.0
        %v7821 = vand.u32 %v6152, 4294901760
        %v7822 = vsub.f32 %v6152, %v7821
        %v7823 = vand.u32 %v7822, 4294901760
        %7824 = vmatmul.mubr.f32.gmra.mxu0 %v7823
        %v7825 = vpop.f32.mrf.mxu0
        %v7826 = vadd.f32 %v7398, %v7825
        %v7827 = vpop.f32.mrf.mxu0
        %7828 = vmatprep.mubr.f32.mxu0 0.0
        %v7829 = vand.u32 %v6155, 4294901760
        %v7830 = vsub.f32 %v6155, %v7829
        %v7831 = vand.u32 %v7830, 4294901760
        %7832 = vmatmul.mubr.f32.gmra.mxu0 %v7831
        %v7833 = vpop.f32.mrf.mxu0
        %v7834 = vadd.f32 %v7405, %v7833
        %v7835 = vpop.f32.mrf.mxu0
        %7836 = vmatprep.mubr.f32.mxu0 0.0
        %v7837 = vand.u32 %v6158, 4294901760
        %v7838 = vsub.f32 %v6158, %v7837
        %v7839 = vand.u32 %v7838, 4294901760
        %7840 = vmatmul.mubr.f32.gmra.mxu0 %v7839
        %v7841 = vpop.f32.mrf.mxu0
        %v7842 = vadd.f32 %v7412, %v7841
        %v7843 = vpop.f32.mrf.mxu0
        %7844 = vmatprep.mubr.f32.mxu0 0.0
        %v7845 = vand.u32 %v6161, 4294901760
        %v7846 = vsub.f32 %v6161, %v7845
        %v7847 = vand.u32 %v7846, 4294901760
        %7848 = vmatmul.mubr.f32.gmra.mxu0 %v7847
        %v7849 = vpop.f32.mrf.mxu0
        %v7850 = vadd.f32 %v7419, %v7849
        %v7851 = vpop.f32.mrf.mxu0
        %7852 = vmatprep.mubr.f32.mxu0 0.0
        %v7853 = vand.u32 %v6164, 4294901760
        %v7854 = vsub.f32 %v6164, %v7853
        %v7855 = vand.u32 %v7854, 4294901760
        %7856 = vmatmul.mubr.f32.gmra.mxu0 %v7855
        %v7857 = vpop.f32.mrf.mxu0
        %v7858 = vadd.f32 %v7426, %v7857
        %v7859 = vpop.f32.mrf.mxu0
        %7860 = vmatprep.mubr.f32.mxu0 0.0
        %v7861 = vand.u32 %v6167, 4294901760
        %v7862 = vsub.f32 %v6167, %v7861
        %v7863 = vand.u32 %v7862, 4294901760
        %7864 = vmatmul.mubr.f32.gmra.mxu0 %v7863
        %v7865 = vpop.f32.mrf.mxu0
        %v7866 = vadd.f32 %v7433, %v7865
        %v7867 = vpop.f32.mrf.mxu0
        %7868 = vmatprep.mubr.f32.mxu0 0.0
        %v7869 = vand.u32 %v6170, 4294901760
        %v7870 = vsub.f32 %v6170, %v7869
        %v7871 = vand.u32 %v7870, 4294901760
        %7872 = vmatmul.mubr.f32.gmra.mxu0 %v7871
        %v7873 = vpop.f32.mrf.mxu0
        %v7874 = vadd.f32 %v7440, %v7873
        %v7875 = vpop.f32.mrf.mxu0
        %7876 = vmatprep.mubr.f32.mxu0 0.0
        %v7877 = vand.u32 %v6173, 4294901760
        %v7878 = vsub.f32 %v6173, %v7877
        %v7879 = vand.u32 %v7878, 4294901760
        %7880 = vmatmul.mubr.f32.gmra.mxu0 %v7879
        %v7881 = vpop.f32.mrf.mxu0
        %v7882 = vadd.f32 %v7447, %v7881
        %v7883 = vpop.f32.mrf.mxu0
        %7884 = vmatprep.mubr.f32.mxu0 0.0
        %v7885 = vand.u32 %v6176, 4294901760
        %v7886 = vsub.f32 %v6176, %v7885
        %v7887 = vand.u32 %v7886, 4294901760
        %7888 = vmatmul.mubr.f32.gmra.mxu0 %v7887
        %v7889 = vpop.f32.mrf.mxu0
        %v7890 = vadd.f32 %v7454, %v7889
        %v7891 = vpop.f32.mrf.mxu0
        %7892 = vmatprep.mubr.f32.mxu0 0.0
        %v7893 = vand.u32 %v6179, 4294901760
        %v7894 = vsub.f32 %v6179, %v7893
        %v7895 = vand.u32 %v7894, 4294901760
        %7896 = vmatmul.mubr.f32.gmra.mxu0 %v7895
        %v7897 = vpop.f32.mrf.mxu0
        %v7898 = vadd.f32 %v7461, %v7897
        %v7899 = vpop.f32.mrf.mxu0
        %7900 = vmatprep.mubr.f32.mxu0 0.0
        %v7901 = vand.u32 %v6182, 4294901760
        %v7902 = vsub.f32 %v6182, %v7901
        %v7903 = vand.u32 %v7902, 4294901760
        %7904 = vmatmul.mubr.f32.gmra.mxu0 %v7903
        %v7905 = vpop.f32.mrf.mxu0
        %v7906 = vadd.f32 %v7468, %v7905
        %v7907 = vpop.f32.mrf.mxu0
        %7908 = vmatprep.mubr.f32.mxu0 0.0
        %v7909 = vand.u32 %v6185, 4294901760
        %v7910 = vsub.f32 %v6185, %v7909
        %v7911 = vand.u32 %v7910, 4294901760
        %7912 = vmatmul.mubr.f32.gmra.mxu0 %v7911
        %v7913 = vpop.f32.mrf.mxu0
        %v7914 = vadd.f32 %v7475, %v7913
        %v7915 = vpop.f32.mrf.mxu0
        %7916 = vmatprep.mubr.f32.mxu0 0.0
        %v7917 = vand.u32 %v6188, 4294901760
        %v7918 = vsub.f32 %v6188, %v7917
        %v7919 = vand.u32 %v7918, 4294901760
        %7920 = vmatmul.mubr.f32.gmra.mxu0 %v7919
        %v7921 = vpop.f32.mrf.mxu0
        %v7922 = vadd.f32 %v7482, %v7921
        %v7923 = vpop.f32.mrf.mxu0
        %7924 = vmatprep.mubr.f32.mxu0 0.0
        %v7925 = vand.u32 %v6191, 4294901760
        %v7926 = vsub.f32 %v6191, %v7925
        %v7927 = vand.u32 %v7926, 4294901760
        %7928 = vmatmul.mubr.f32.gmra.mxu0 %v7927
        %v7929 = vpop.f32.mrf.mxu0
        %v7930 = vadd.f32 %v7489, %v7929
        %v7931 = vpop.f32.mrf.mxu0
        %7932 = vmatprep.mubr.f32.mxu0 0.0
        %v7933 = vand.u32 %v6194, 4294901760
        %v7934 = vsub.f32 %v6194, %v7933
        %v7935 = vand.u32 %v7934, 4294901760
        %7936 = vmatmul.mubr.f32.gmra.mxu0 %v7935
        %v7937 = vpop.f32.mrf.mxu0
        %v7938 = vadd.f32 %v7496, %v7937
        %v7939 = vpop.f32.mrf.mxu0
        %7940 = vmatprep.mubr.f32.mxu0 0.0
        %v7941 = vand.u32 %v6197, 4294901760
        %v7942 = vsub.f32 %v6197, %v7941
        %v7943 = vand.u32 %v7942, 4294901760
        %7944 = vmatmul.mubr.f32.gmra.mxu0 %v7943
        %v7945 = vpop.f32.mrf.mxu0
        %v7946 = vadd.f32 %v7503, %v7945
        %v7947 = vpop.f32.mrf.mxu0
        %7948 = vmatprep.mubr.f32.mxu0 0.0
        %v7949 = vand.u32 %v6200, 4294901760
        %v7950 = vsub.f32 %v6200, %v7949
        %v7951 = vand.u32 %v7950, 4294901760
        %7952 = vmatmul.mubr.f32.gmra.mxu0 %v7951
        %v7953 = vpop.f32.mrf.mxu0
        %v7954 = vadd.f32 %v7510, %v7953
        %v7955 = vpop.f32.mrf.mxu0
        %7956 = vmatprep.mubr.f32.mxu0 0.0
        %v7957 = vand.u32 %v6203, 4294901760
        %v7958 = vsub.f32 %v6203, %v7957
        %v7959 = vand.u32 %v7958, 4294901760
        %7960 = vmatmul.mubr.f32.gmra.mxu0 %v7959
        %v7961 = vpop.f32.mrf.mxu0
        %v7962 = vadd.f32 %v7517, %v7961
        %v7963 = vpop.f32.mrf.mxu0
        %7964 = vmatprep.mubr.f32.mxu0 0.0
        %v7965 = vand.u32 %v6206, 4294901760
        %v7966 = vsub.f32 %v6206, %v7965
        %v7967 = vand.u32 %v7966, 4294901760
        %7968 = vmatmul.mubr.f32.gmra.mxu0 %v7967
        %v7969 = vpop.f32.mrf.mxu0
        %v7970 = vadd.f32 %v7524, %v7969
        %v7971 = vpop.f32.mrf.mxu0
        %7972 = vmatprep.mubr.f32.mxu0 0.0
        %v7973 = vand.u32 %v6209, 4294901760
        %v7974 = vsub.f32 %v6209, %v7973
        %v7975 = vand.u32 %v7974, 4294901760
        %7976 = vmatmul.mubr.f32.gmra.mxu0 %v7975
        %v7977 = vpop.f32.mrf.mxu0
        %v7978 = vadd.f32 %v7531, %v7977
        %v7979 = vpop.f32.mrf.mxu0
        %7980 = vmatprep.mubr.f32.mxu0 0.0
        %v7981 = vand.u32 %v6212, 4294901760
        %v7982 = vsub.f32 %v6212, %v7981
        %v7983 = vand.u32 %v7982, 4294901760
        %7984 = vmatmul.mubr.f32.gmra.mxu0 %v7983
        %v7985 = vpop.f32.mrf.mxu0
        %v7986 = vadd.f32 %v7538, %v7985
        %v7987 = vpop.f32.mrf.mxu0
        %7988 = vmatprep.mubr.f32.mxu0 0.0
        %v7989 = vand.u32 %v6215, 4294901760
        %v7990 = vsub.f32 %v6215, %v7989
        %v7991 = vand.u32 %v7990, 4294901760
        %7992 = vmatmul.mubr.f32.gmra.mxu0 %v7991
        %v7993 = vpop.f32.mrf.mxu0
        %v7994 = vadd.f32 %v7545, %v7993
        %v7995 = vpop.f32.mrf.mxu0
        %7996 = vmatprep.mubr.f32.mxu0 0.0
        %v7997 = vand.u32 %v6218, 4294901760
        %v7998 = vsub.f32 %v6218, %v7997
        %v7999 = vand.u32 %v7998, 4294901760
        %8000 = vmatmul.mubr.f32.gmra.mxu0 %v7999
        %v8001 = vpop.f32.mrf.mxu0
        %v8002 = vadd.f32 %v7552, %v8001
        %v8003 = vpop.f32.mrf.mxu0
        %8004 = vmatprep.mubr.f32.mxu0 0.0
        %v8005 = vand.u32 %v6221, 4294901760
        %v8006 = vsub.f32 %v6221, %v8005
        %v8007 = vand.u32 %v8006, 4294901760
        %8008 = vmatmul.mubr.f32.gmra.mxu0 %v8007
        %v8009 = vpop.f32.mrf.mxu0
        %v8010 = vadd.f32 %v7559, %v8009
        %v8011 = vpop.f32.mrf.mxu0
        %8012 = vmatprep.mubr.f32.mxu0 0.0
        %v8013 = vand.u32 %v6224, 4294901760
        %v8014 = vsub.f32 %v6224, %v8013
        %v8015 = vand.u32 %v8014, 4294901760
        %8016 = vmatmul.mubr.f32.gmra.mxu0 %v8015
        %v8017 = vpop.f32.mrf.mxu0
        %v8018 = vadd.f32 %v7566, %v8017
        %v8019 = vpop.f32.mrf.mxu0
        %8020 = vmatprep.mubr.f32.mxu0 0.0
        %v8021 = vand.u32 %v6227, 4294901760
        %v8022 = vsub.f32 %v6227, %v8021
        %v8023 = vand.u32 %v8022, 4294901760
        %8024 = vmatmul.mubr.f32.gmra.mxu0 %v8023
        %v8025 = vpop.f32.mrf.mxu0
        %v8026 = vadd.f32 %v7573, %v8025
        %v8027 = vpop.f32.mrf.mxu0
        %8028 = vmatprep.mubr.f32.mxu0 0.0
        %v8029 = vand.u32 %v6230, 4294901760
        %v8030 = vsub.f32 %v6230, %v8029
        %v8031 = vand.u32 %v8030, 4294901760
        %8032 = vmatmul.mubr.f32.gmra.mxu0 %v8031
        %v8033 = vpop.f32.mrf.mxu0
        %v8034 = vadd.f32 %v7580, %v8033
        %v8035 = vpop.f32.mrf.mxu0
        %8036 = vmatprep.mubr.f32.mxu0 0.0
        %v8037 = vand.u32 %v6233, 4294901760
        %v8038 = vsub.f32 %v6233, %v8037
        %v8039 = vand.u32 %v8038, 4294901760
        %8040 = vmatmul.mubr.f32.gmra.mxu0 %v8039
        %v8041 = vpop.f32.mrf.mxu0
        %v8042 = vadd.f32 %v7587, %v8041
        %v8043 = vpop.f32.mrf.mxu0
        %8044 = vmatprep.mubr.f32.mxu0 0.0
        %v8045 = vand.u32 %v6236, 4294901760
        %v8046 = vsub.f32 %v6236, %v8045
        %v8047 = vand.u32 %v8046, 4294901760
        %8048 = vmatmul.mubr.f32.gmra.mxu0 %v8047
        %v8049 = vpop.f32.mrf.mxu0
        %v8050 = vadd.f32 %v7594, %v8049
        %v8051 = vpop.f32.mrf.mxu0
        %8052 = vmatprep.mubr.f32.mxu0 0.0
        %v8053 = vand.u32 %v6239, 4294901760
        %v8054 = vsub.f32 %v6239, %v8053
        %v8055 = vand.u32 %v8054, 4294901760
        %8056 = vmatmul.mubr.f32.gmra.mxu0 %v8055
        %v8057 = vpop.f32.mrf.mxu0
        %v8058 = vadd.f32 %v7601, %v8057
        %v8059 = vpop.f32.mrf.mxu0
        %8060 = vdwg.mxu0
        %8061 = vmatprep.subr.mxu0 0.0
        %8062 = vmatpush1.msra.mxu0 0.0
        %8063 = vmatprep.subr.mxu0 0.0
        %8064 = vmatpush1.msra.mxu0 0.0
        %8065 = vmatprep.subr.mxu0 0.0
        %8066 = vmatpush1.msra.mxu0 0.0
        %8067 = vmatprep.subr.mxu0 0.0
        %8068 = vmatpush1.msra.mxu0 0.0
        %8069 = vmatprep.subr.mxu0 0.0
        %8070 = vmatpush1.msra.mxu0 0.0
        %8071 = vmatprep.subr.mxu0 0.0
        %8072 = vmatpush1.msra.mxu0 0.0
        %8073 = vmatprep.subr.mxu0 0.0
        %8074 = vmatpush1.msra.mxu0 0.0
        %8075 = vmatprep.subr.mxu0 0.0
        %8076 = vmatpush1.msra.mxu0 0.0
        %8077 = vmatprep.subr.mxu0 0.0
        %v8078 = vand.u32 %v633, 4294901760
        %v8079 = vsub.f32 %v633, %v8078
        %v8080 = vand.u32 %v8079, 4294901760
        %8081 = vmatpush1.msra.mxu0 %v8080
        %8082 = vmatprep.subr.mxu0 0.0
        %v8083 = vand.u32 %v632, 4294901760
        %v8084 = vsub.f32 %v632, %v8083
        %v8085 = vand.u32 %v8084, 4294901760
        %8086 = vmatpush1.msra.mxu0 %v8085
        %8087 = vmatprep.subr.mxu0 0.0
        %v8088 = vand.u32 %v631, 4294901760
        %v8089 = vsub.f32 %v631, %v8088
        %v8090 = vand.u32 %v8089, 4294901760
        %8091 = vmatpush1.msra.mxu0 %v8090
        %8092 = vmatprep.subr.mxu0 0.0
        %v8093 = vand.u32 %v630, 4294901760
        %v8094 = vsub.f32 %v630, %v8093
        %v8095 = vand.u32 %v8094, 4294901760
        %8096 = vmatpush1.msra.mxu0 %v8095
        %8097 = vmatprep.subr.mxu0 0.0
        %v8098 = vand.u32 %v629, 4294901760
        %v8099 = vsub.f32 %v629, %v8098
        %v8100 = vand.u32 %v8099, 4294901760
        %8101 = vmatpush1.msra.mxu0 %v8100
        %8102 = vmatprep.subr.mxu0 0.0
        %v8103 = vand.u32 %v628, 4294901760
        %v8104 = vsub.f32 %v628, %v8103
        %v8105 = vand.u32 %v8104, 4294901760
        %8106 = vmatpush1.msra.mxu0 %v8105
        %8107 = vmatprep.subr.mxu0 0.0
        %v8108 = vand.u32 %v627, 4294901760
        %v8109 = vsub.f32 %v627, %v8108
        %v8110 = vand.u32 %v8109, 4294901760
        %8111 = vmatpush1.msra.mxu0 %v8110
        %8112 = vmatprep.subr.mxu0 0.0
        %v8113 = vand.u32 %v626, 4294901760
        %v8114 = vsub.f32 %v626, %v8113
        %v8115 = vand.u32 %v8114, 4294901760
        %8116 = vmatpush1.msra.mxu0 %v8115
        %8117 = vmatprep.subr.mxu0 0.0
        %8118 = vmatpush2.msra.mxu0 0.0
        %8119 = vmatprep.subr.mxu0 0.0
        %8120 = vmatpush2.msra.mxu0 0.0
        %8121 = vmatprep.subr.mxu0 0.0
        %8122 = vmatpush2.msra.mxu0 0.0
        %8123 = vmatprep.subr.mxu0 0.0
        %8124 = vmatpush2.msra.mxu0 0.0
        %8125 = vmatprep.subr.mxu0 0.0
        %8126 = vmatpush2.msra.mxu0 0.0
        %8127 = vmatprep.subr.mxu0 0.0
        %8128 = vmatpush2.msra.mxu0 0.0
        %8129 = vmatprep.subr.mxu0 0.0
        %8130 = vmatpush2.msra.mxu0 0.0
        %8131 = vmatprep.subr.mxu0 0.0
        %8132 = vmatpush2.msra.mxu0 0.0
        %8133 = vmatprep.subr.mxu0 0.0
        %8134 = vmatpush2.msra.mxu0 0.0
        %8135 = vmatprep.subr.mxu0 0.0
        %8136 = vmatpush2.msra.mxu0 0.0
        %8137 = vmatprep.subr.mxu0 0.0
        %8138 = vmatpush2.msra.mxu0 0.0
        %8139 = vmatprep.subr.mxu0 0.0
        %8140 = vmatpush2.msra.mxu0 0.0
        %8141 = vmatprep.subr.mxu0 0.0
        %8142 = vmatpush2.msra.mxu0 0.0
        %8143 = vmatprep.subr.mxu0 0.0
        %8144 = vmatpush2.msra.mxu0 0.0
        %8145 = vmatprep.subr.mxu0 0.0
        %8146 = vmatpush2.msra.mxu0 0.0
        %8147 = vmatprep.subr.mxu0 0.0
        %8148 = vmatpush2.msra.mxu0 0.0
        %8149 = vmatprep.mubr.f32.mxu0 0.0
        %v8150 = vand.u32 %v6098, 4294901760
        %8151 = vmatmul.mubr.f32.gmra.mxu0 %v8150
        %v8152 = vpop.f32.mrf.mxu0
        %v8153 = vadd.f32 %v7682, %v8152
        %v8154 = vpop.f32.mrf.mxu0
        %8155 = vmatprep.mubr.f32.mxu0 0.0
        %v8156 = vand.u32 %v6101, 4294901760
        %8157 = vmatmul.mubr.f32.gmra.mxu0 %v8156
        %v8158 = vpop.f32.mrf.mxu0
        %v8159 = vadd.f32 %v7690, %v8158
        %v8160 = vpop.f32.mrf.mxu0
        %8161 = vmatprep.mubr.f32.mxu0 0.0
        %v8162 = vand.u32 %v6104, 4294901760
        %8163 = vmatmul.mubr.f32.gmra.mxu0 %v8162
        %v8164 = vpop.f32.mrf.mxu0
        %v8165 = vadd.f32 %v7698, %v8164
        %v8166 = vpop.f32.mrf.mxu0
        %8167 = vmatprep.mubr.f32.mxu0 0.0
        %v8168 = vand.u32 %v6107, 4294901760
        %8169 = vmatmul.mubr.f32.gmra.mxu0 %v8168
        %v8170 = vpop.f32.mrf.mxu0
        %v8171 = vadd.f32 %v7706, %v8170
        %v8172 = vpop.f32.mrf.mxu0
        %8173 = vmatprep.mubr.f32.mxu0 0.0
        %v8174 = vand.u32 %v6110, 4294901760
        %8175 = vmatmul.mubr.f32.gmra.mxu0 %v8174
        %v8176 = vpop.f32.mrf.mxu0
        %v8177 = vadd.f32 %v7714, %v8176
        %v8178 = vpop.f32.mrf.mxu0
        %8179 = vmatprep.mubr.f32.mxu0 0.0
        %v8180 = vand.u32 %v6113, 4294901760
        %8181 = vmatmul.mubr.f32.gmra.mxu0 %v8180
        %v8182 = vpop.f32.mrf.mxu0
        %v8183 = vadd.f32 %v7722, %v8182
        %v8184 = vpop.f32.mrf.mxu0
        %8185 = vmatprep.mubr.f32.mxu0 0.0
        %v8186 = vand.u32 %v6116, 4294901760
        %8187 = vmatmul.mubr.f32.gmra.mxu0 %v8186
        %v8188 = vpop.f32.mrf.mxu0
        %v8189 = vadd.f32 %v7730, %v8188
        %v8190 = vpop.f32.mrf.mxu0
        %8191 = vmatprep.mubr.f32.mxu0 0.0
        %v8192 = vand.u32 %v6119, 4294901760
        %8193 = vmatmul.mubr.f32.gmra.mxu0 %v8192
        %v8194 = vpop.f32.mrf.mxu0
        %v8195 = vadd.f32 %v7738, %v8194
        %v8196 = vpop.f32.mrf.mxu0
        %8197 = vmatprep.mubr.f32.mxu0 0.0
        %v8198 = vand.u32 %v6122, 4294901760
        %8199 = vmatmul.mubr.f32.gmra.mxu0 %v8198
        %v8200 = vpop.f32.mrf.mxu0
        %v8201 = vadd.f32 %v7746, %v8200
        %v8202 = vpop.f32.mrf.mxu0
        %8203 = vmatprep.mubr.f32.mxu0 0.0
        %v8204 = vand.u32 %v6125, 4294901760
        %8205 = vmatmul.mubr.f32.gmra.mxu0 %v8204
        %v8206 = vpop.f32.mrf.mxu0
        %v8207 = vadd.f32 %v7754, %v8206
        %v8208 = vpop.f32.mrf.mxu0
        %8209 = vmatprep.mubr.f32.mxu0 0.0
        %v8210 = vand.u32 %v6128, 4294901760
        %8211 = vmatmul.mubr.f32.gmra.mxu0 %v8210
        %v8212 = vpop.f32.mrf.mxu0
        %v8213 = vadd.f32 %v7762, %v8212
        %v8214 = vpop.f32.mrf.mxu0
        %8215 = vmatprep.mubr.f32.mxu0 0.0
        %v8216 = vand.u32 %v6131, 4294901760
        %8217 = vmatmul.mubr.f32.gmra.mxu0 %v8216
        %v8218 = vpop.f32.mrf.mxu0
        %v8219 = vadd.f32 %v7770, %v8218
        %v8220 = vpop.f32.mrf.mxu0
        %8221 = vmatprep.mubr.f32.mxu0 0.0
        %v8222 = vand.u32 %v6134, 4294901760
        %8223 = vmatmul.mubr.f32.gmra.mxu0 %v8222
        %v8224 = vpop.f32.mrf.mxu0
        %v8225 = vadd.f32 %v7778, %v8224
        %v8226 = vpop.f32.mrf.mxu0
        %8227 = vmatprep.mubr.f32.mxu0 0.0
        %v8228 = vand.u32 %v6137, 4294901760
        %8229 = vmatmul.mubr.f32.gmra.mxu0 %v8228
        %v8230 = vpop.f32.mrf.mxu0
        %v8231 = vadd.f32 %v7786, %v8230
        %v8232 = vpop.f32.mrf.mxu0
        %8233 = vmatprep.mubr.f32.mxu0 0.0
        %v8234 = vand.u32 %v6140, 4294901760
        %8235 = vmatmul.mubr.f32.gmra.mxu0 %v8234
        %v8236 = vpop.f32.mrf.mxu0
        %v8237 = vadd.f32 %v7794, %v8236
        %v8238 = vpop.f32.mrf.mxu0
        %8239 = vmatprep.mubr.f32.mxu0 0.0
        %v8240 = vand.u32 %v6143, 4294901760
        %8241 = vmatmul.mubr.f32.gmra.mxu0 %v8240
        %v8242 = vpop.f32.mrf.mxu0
        %v8243 = vadd.f32 %v7802, %v8242
        %v8244 = vpop.f32.mrf.mxu0
        %8245 = vmatprep.mubr.f32.mxu0 0.0
        %v8246 = vand.u32 %v6146, 4294901760
        %8247 = vmatmul.mubr.f32.gmra.mxu0 %v8246
        %v8248 = vpop.f32.mrf.mxu0
        %v8249 = vadd.f32 %v7810, %v8248
        %v8250 = vpop.f32.mrf.mxu0
        %8251 = vmatprep.mubr.f32.mxu0 0.0
        %v8252 = vand.u32 %v6149, 4294901760
        %8253 = vmatmul.mubr.f32.gmra.mxu0 %v8252
        %v8254 = vpop.f32.mrf.mxu0
        %v8255 = vadd.f32 %v7818, %v8254
        %v8256 = vpop.f32.mrf.mxu0
        %8257 = vmatprep.mubr.f32.mxu0 0.0
        %v8258 = vand.u32 %v6152, 4294901760
        %8259 = vmatmul.mubr.f32.gmra.mxu0 %v8258
        %v8260 = vpop.f32.mrf.mxu0
        %v8261 = vadd.f32 %v7826, %v8260
        %v8262 = vpop.f32.mrf.mxu0
        %8263 = vmatprep.mubr.f32.mxu0 0.0
        %v8264 = vand.u32 %v6155, 4294901760
        %8265 = vmatmul.mubr.f32.gmra.mxu0 %v8264
        %v8266 = vpop.f32.mrf.mxu0
        %v8267 = vadd.f32 %v7834, %v8266
        %v8268 = vpop.f32.mrf.mxu0
        %8269 = vmatprep.mubr.f32.mxu0 0.0
        %v8270 = vand.u32 %v6158, 4294901760
        %8271 = vmatmul.mubr.f32.gmra.mxu0 %v8270
        %v8272 = vpop.f32.mrf.mxu0
        %v8273 = vadd.f32 %v7842, %v8272
        %v8274 = vpop.f32.mrf.mxu0
        %8275 = vmatprep.mubr.f32.mxu0 0.0
        %v8276 = vand.u32 %v6161, 4294901760
        %8277 = vmatmul.mubr.f32.gmra.mxu0 %v8276
        %v8278 = vpop.f32.mrf.mxu0
        %v8279 = vadd.f32 %v7850, %v8278
        %v8280 = vpop.f32.mrf.mxu0
        %8281 = vmatprep.mubr.f32.mxu0 0.0
        %v8282 = vand.u32 %v6164, 4294901760
        %8283 = vmatmul.mubr.f32.gmra.mxu0 %v8282
        %v8284 = vpop.f32.mrf.mxu0
        %v8285 = vadd.f32 %v7858, %v8284
        %v8286 = vpop.f32.mrf.mxu0
        %8287 = vmatprep.mubr.f32.mxu0 0.0
        %v8288 = vand.u32 %v6167, 4294901760
        %8289 = vmatmul.mubr.f32.gmra.mxu0 %v8288
        %v8290 = vpop.f32.mrf.mxu0
        %v8291 = vadd.f32 %v7866, %v8290
        %v8292 = vpop.f32.mrf.mxu0
        %8293 = vmatprep.mubr.f32.mxu0 0.0
        %v8294 = vand.u32 %v6170, 4294901760
        %8295 = vmatmul.mubr.f32.gmra.mxu0 %v8294
        %v8296 = vpop.f32.mrf.mxu0
        %v8297 = vadd.f32 %v7874, %v8296
        %v8298 = vpop.f32.mrf.mxu0
        %8299 = vmatprep.mubr.f32.mxu0 0.0
        %v8300 = vand.u32 %v6173, 4294901760
        %8301 = vmatmul.mubr.f32.gmra.mxu0 %v8300
        %v8302 = vpop.f32.mrf.mxu0
        %v8303 = vadd.f32 %v7882, %v8302
        %v8304 = vpop.f32.mrf.mxu0
        %8305 = vmatprep.mubr.f32.mxu0 0.0
        %v8306 = vand.u32 %v6176, 4294901760
        %8307 = vmatmul.mubr.f32.gmra.mxu0 %v8306
        %v8308 = vpop.f32.mrf.mxu0
        %v8309 = vadd.f32 %v7890, %v8308
        %v8310 = vpop.f32.mrf.mxu0
        %8311 = vmatprep.mubr.f32.mxu0 0.0
        %v8312 = vand.u32 %v6179, 4294901760
        %8313 = vmatmul.mubr.f32.gmra.mxu0 %v8312
        %v8314 = vpop.f32.mrf.mxu0
        %v8315 = vadd.f32 %v7898, %v8314
        %v8316 = vpop.f32.mrf.mxu0
        %8317 = vmatprep.mubr.f32.mxu0 0.0
        %v8318 = vand.u32 %v6182, 4294901760
        %8319 = vmatmul.mubr.f32.gmra.mxu0 %v8318
        %v8320 = vpop.f32.mrf.mxu0
        %v8321 = vadd.f32 %v7906, %v8320
        %v8322 = vpop.f32.mrf.mxu0
        %8323 = vmatprep.mubr.f32.mxu0 0.0
        %v8324 = vand.u32 %v6185, 4294901760
        %8325 = vmatmul.mubr.f32.gmra.mxu0 %v8324
        %v8326 = vpop.f32.mrf.mxu0
        %v8327 = vadd.f32 %v7914, %v8326
        %v8328 = vpop.f32.mrf.mxu0
        %8329 = vmatprep.mubr.f32.mxu0 0.0
        %v8330 = vand.u32 %v6188, 4294901760
        %8331 = vmatmul.mubr.f32.gmra.mxu0 %v8330
        %v8332 = vpop.f32.mrf.mxu0
        %v8333 = vadd.f32 %v7922, %v8332
        %v8334 = vpop.f32.mrf.mxu0
        %8335 = vmatprep.mubr.f32.mxu0 0.0
        %v8336 = vand.u32 %v6191, 4294901760
        %8337 = vmatmul.mubr.f32.gmra.mxu0 %v8336
        %v8338 = vpop.f32.mrf.mxu0
        %v8339 = vadd.f32 %v7930, %v8338
        %v8340 = vpop.f32.mrf.mxu0
        %8341 = vmatprep.mubr.f32.mxu0 0.0
        %v8342 = vand.u32 %v6194, 4294901760
        %8343 = vmatmul.mubr.f32.gmra.mxu0 %v8342
        %v8344 = vpop.f32.mrf.mxu0
        %v8345 = vadd.f32 %v7938, %v8344
        %v8346 = vpop.f32.mrf.mxu0
        %8347 = vmatprep.mubr.f32.mxu0 0.0
        %v8348 = vand.u32 %v6197, 4294901760
        %8349 = vmatmul.mubr.f32.gmra.mxu0 %v8348
        %v8350 = vpop.f32.mrf.mxu0
        %v8351 = vadd.f32 %v7946, %v8350
        %v8352 = vpop.f32.mrf.mxu0
        %8353 = vmatprep.mubr.f32.mxu0 0.0
        %v8354 = vand.u32 %v6200, 4294901760
        %8355 = vmatmul.mubr.f32.gmra.mxu0 %v8354
        %v8356 = vpop.f32.mrf.mxu0
        %v8357 = vadd.f32 %v7954, %v8356
        %v8358 = vpop.f32.mrf.mxu0
        %8359 = vmatprep.mubr.f32.mxu0 0.0
        %v8360 = vand.u32 %v6203, 4294901760
        %8361 = vmatmul.mubr.f32.gmra.mxu0 %v8360
        %v8362 = vpop.f32.mrf.mxu0
        %v8363 = vadd.f32 %v7962, %v8362
        %v8364 = vpop.f32.mrf.mxu0
        %8365 = vmatprep.mubr.f32.mxu0 0.0
        %v8366 = vand.u32 %v6206, 4294901760
        %8367 = vmatmul.mubr.f32.gmra.mxu0 %v8366
        %v8368 = vpop.f32.mrf.mxu0
        %v8369 = vadd.f32 %v7970, %v8368
        %v8370 = vpop.f32.mrf.mxu0
        %8371 = vmatprep.mubr.f32.mxu0 0.0
        %v8372 = vand.u32 %v6209, 4294901760
        %8373 = vmatmul.mubr.f32.gmra.mxu0 %v8372
        %v8374 = vpop.f32.mrf.mxu0
        %v8375 = vadd.f32 %v7978, %v8374
        %v8376 = vpop.f32.mrf.mxu0
        %8377 = vmatprep.mubr.f32.mxu0 0.0
        %v8378 = vand.u32 %v6212, 4294901760
        %8379 = vmatmul.mubr.f32.gmra.mxu0 %v8378
        %v8380 = vpop.f32.mrf.mxu0
        %v8381 = vadd.f32 %v7986, %v8380
        %v8382 = vpop.f32.mrf.mxu0
        %8383 = vmatprep.mubr.f32.mxu0 0.0
        %v8384 = vand.u32 %v6215, 4294901760
        %8385 = vmatmul.mubr.f32.gmra.mxu0 %v8384
        %v8386 = vpop.f32.mrf.mxu0
        %v8387 = vadd.f32 %v7994, %v8386
        %v8388 = vpop.f32.mrf.mxu0
        %8389 = vmatprep.mubr.f32.mxu0 0.0
        %v8390 = vand.u32 %v6218, 4294901760
        %8391 = vmatmul.mubr.f32.gmra.mxu0 %v8390
        %v8392 = vpop.f32.mrf.mxu0
        %v8393 = vadd.f32 %v8002, %v8392
        %v8394 = vpop.f32.mrf.mxu0
        %8395 = vmatprep.mubr.f32.mxu0 0.0
        %v8396 = vand.u32 %v6221, 4294901760
        %8397 = vmatmul.mubr.f32.gmra.mxu0 %v8396
        %v8398 = vpop.f32.mrf.mxu0
        %v8399 = vadd.f32 %v8010, %v8398
        %v8400 = vpop.f32.mrf.mxu0
        %8401 = vmatprep.mubr.f32.mxu0 0.0
        %v8402 = vand.u32 %v6224, 4294901760
        %8403 = vmatmul.mubr.f32.gmra.mxu0 %v8402
        %v8404 = vpop.f32.mrf.mxu0
        %v8405 = vadd.f32 %v8018, %v8404
        %v8406 = vpop.f32.mrf.mxu0
        %8407 = vmatprep.mubr.f32.mxu0 0.0
        %v8408 = vand.u32 %v6227, 4294901760
        %8409 = vmatmul.mubr.f32.gmra.mxu0 %v8408
        %v8410 = vpop.f32.mrf.mxu0
        %v8411 = vadd.f32 %v8026, %v8410
        %v8412 = vpop.f32.mrf.mxu0
        %8413 = vmatprep.mubr.f32.mxu0 0.0
        %v8414 = vand.u32 %v6230, 4294901760
        %8415 = vmatmul.mubr.f32.gmra.mxu0 %v8414
        %v8416 = vpop.f32.mrf.mxu0
        %v8417 = vadd.f32 %v8034, %v8416
        %v8418 = vpop.f32.mrf.mxu0
        %8419 = vmatprep.mubr.f32.mxu0 0.0
        %v8420 = vand.u32 %v6233, 4294901760
        %8421 = vmatmul.mubr.f32.gmra.mxu0 %v8420
        %v8422 = vpop.f32.mrf.mxu0
        %v8423 = vadd.f32 %v8042, %v8422
        %v8424 = vpop.f32.mrf.mxu0
        %8425 = vmatprep.mubr.f32.mxu0 0.0
        %v8426 = vand.u32 %v6236, 4294901760
        %8427 = vmatmul.mubr.f32.gmra.mxu0 %v8426
        %v8428 = vpop.f32.mrf.mxu0
        %v8429 = vadd.f32 %v8050, %v8428
        %v8430 = vpop.f32.mrf.mxu0
        %8431 = vmatprep.mubr.f32.mxu0 0.0
        %v8432 = vand.u32 %v6239, 4294901760
        %8433 = vmatmul.mubr.f32.gmra.mxu0 %v8432
        %v8434 = vpop.f32.mrf.mxu0
        %v8435 = vadd.f32 %v8058, %v8434
        %v8436 = vpop.f32.mrf.mxu0
        %8437 = vdwg.mxu0
        %8438 = vmatprep.subr.mxu0 0.0
        %8439 = vmatpush1.msra.mxu0 0.0
        %8440 = vmatprep.subr.mxu0 0.0
        %8441 = vmatpush1.msra.mxu0 0.0
        %8442 = vmatprep.subr.mxu0 0.0
        %8443 = vmatpush1.msra.mxu0 0.0
        %8444 = vmatprep.subr.mxu0 0.0
        %8445 = vmatpush1.msra.mxu0 0.0
        %8446 = vmatprep.subr.mxu0 0.0
        %8447 = vmatpush1.msra.mxu0 0.0
        %8448 = vmatprep.subr.mxu0 0.0
        %8449 = vmatpush1.msra.mxu0 0.0
        %8450 = vmatprep.subr.mxu0 0.0
        %8451 = vmatpush1.msra.mxu0 0.0
        %8452 = vmatprep.subr.mxu0 0.0
        %8453 = vmatpush1.msra.mxu0 0.0
        %8454 = vmatprep.subr.mxu0 0.0
        %v8455 = vand.u32 %v633, 4294901760
        %8456 = vmatpush1.msra.mxu0 %v8455
        %8457 = vmatprep.subr.mxu0 0.0
        %v8458 = vand.u32 %v632, 4294901760
        %8459 = vmatpush1.msra.mxu0 %v8458
        %8460 = vmatprep.subr.mxu0 0.0
        %v8461 = vand.u32 %v631, 4294901760
        %8462 = vmatpush1.msra.mxu0 %v8461
        %8463 = vmatprep.subr.mxu0 0.0
        %v8464 = vand.u32 %v630, 4294901760
        %8465 = vmatpush1.msra.mxu0 %v8464
        %8466 = vmatprep.subr.mxu0 0.0
        %v8467 = vand.u32 %v629, 4294901760
        %8468 = vmatpush1.msra.mxu0 %v8467
        %8469 = vmatprep.subr.mxu0 0.0
        %v8470 = vand.u32 %v628, 4294901760
        %8471 = vmatpush1.msra.mxu0 %v8470
        %8472 = vmatprep.subr.mxu0 0.0
        %v8473 = vand.u32 %v627, 4294901760
        %8474 = vmatpush1.msra.mxu0 %v8473
        %8475 = vmatprep.subr.mxu0 0.0
        %v8476 = vand.u32 %v626, 4294901760
        %8477 = vmatpush1.msra.mxu0 %v8476
        %8478 = vmatprep.subr.mxu0 0.0
        %8479 = vmatpush2.msra.mxu0 0.0
        %8480 = vmatprep.subr.mxu0 0.0
        %8481 = vmatpush2.msra.mxu0 0.0
        %8482 = vmatprep.subr.mxu0 0.0
        %8483 = vmatpush2.msra.mxu0 0.0
        %8484 = vmatprep.subr.mxu0 0.0
        %8485 = vmatpush2.msra.mxu0 0.0
        %8486 = vmatprep.subr.mxu0 0.0
        %8487 = vmatpush2.msra.mxu0 0.0
        %8488 = vmatprep.subr.mxu0 0.0
        %8489 = vmatpush2.msra.mxu0 0.0
        %8490 = vmatprep.subr.mxu0 0.0
        %8491 = vmatpush2.msra.mxu0 0.0
        %8492 = vmatprep.subr.mxu0 0.0
        %8493 = vmatpush2.msra.mxu0 0.0
        %8494 = vmatprep.subr.mxu0 0.0
        %8495 = vmatpush2.msra.mxu0 0.0
        %8496 = vmatprep.subr.mxu0 0.0
        %8497 = vmatpush2.msra.mxu0 0.0
        %8498 = vmatprep.subr.mxu0 0.0
        %8499 = vmatpush2.msra.mxu0 0.0
        %8500 = vmatprep.subr.mxu0 0.0
        %8501 = vmatpush2.msra.mxu0 0.0
        %8502 = vmatprep.subr.mxu0 0.0
        %8503 = vmatpush2.msra.mxu0 0.0
        %8504 = vmatprep.subr.mxu0 0.0
        %8505 = vmatpush2.msra.mxu0 0.0
        %8506 = vmatprep.subr.mxu0 0.0
        %8507 = vmatpush2.msra.mxu0 0.0
        %8508 = vmatprep.subr.mxu0 0.0
        %8509 = vmatpush2.msra.mxu0 0.0
        %8510 = vmatprep.mubr.f32.mxu0 0.0
        %v8511 = vand.u32 %v6098, 4294901760
        %8512 = vmatmul.mubr.f32.gmra.mxu0 %v8511
        %v8513 = vpop.f32.mrf.mxu0
        %v8514 = vadd.f32 %v8153, %v8513
        %v8515 = vpop.f32.mrf.mxu0
        %8516 = vmatprep.mubr.f32.mxu0 0.0
        %v8517 = vand.u32 %v6101, 4294901760
        %8518 = vmatmul.mubr.f32.gmra.mxu0 %v8517
        %v8519 = vpop.f32.mrf.mxu0
        %v8520 = vadd.f32 %v8159, %v8519
        %v8521 = vpop.f32.mrf.mxu0
        %8522 = vmatprep.mubr.f32.mxu0 0.0
        %v8523 = vand.u32 %v6104, 4294901760
        %8524 = vmatmul.mubr.f32.gmra.mxu0 %v8523
        %v8525 = vpop.f32.mrf.mxu0
        %v8526 = vadd.f32 %v8165, %v8525
        %v8527 = vpop.f32.mrf.mxu0
        %8528 = vmatprep.mubr.f32.mxu0 0.0
        %v8529 = vand.u32 %v6107, 4294901760
        %8530 = vmatmul.mubr.f32.gmra.mxu0 %v8529
        %v8531 = vpop.f32.mrf.mxu0
        %v8532 = vadd.f32 %v8171, %v8531
        %v8533 = vpop.f32.mrf.mxu0
        %8534 = vmatprep.mubr.f32.mxu0 0.0
        %v8535 = vand.u32 %v6110, 4294901760
        %8536 = vmatmul.mubr.f32.gmra.mxu0 %v8535
        %v8537 = vpop.f32.mrf.mxu0
        %v8538 = vadd.f32 %v8177, %v8537
        %v8539 = vpop.f32.mrf.mxu0
        %8540 = vmatprep.mubr.f32.mxu0 0.0
        %v8541 = vand.u32 %v6113, 4294901760
        %8542 = vmatmul.mubr.f32.gmra.mxu0 %v8541
        %v8543 = vpop.f32.mrf.mxu0
        %v8544 = vadd.f32 %v8183, %v8543
        %v8545 = vpop.f32.mrf.mxu0
        %8546 = vmatprep.mubr.f32.mxu0 0.0
        %v8547 = vand.u32 %v6116, 4294901760
        %8548 = vmatmul.mubr.f32.gmra.mxu0 %v8547
        %v8549 = vpop.f32.mrf.mxu0
        %v8550 = vadd.f32 %v8189, %v8549
        %v8551 = vpop.f32.mrf.mxu0
        %8552 = vmatprep.mubr.f32.mxu0 0.0
        %v8553 = vand.u32 %v6119, 4294901760
        %8554 = vmatmul.mubr.f32.gmra.mxu0 %v8553
        %v8555 = vpop.f32.mrf.mxu0
        %v8556 = vadd.f32 %v8195, %v8555
        %v8557 = vpop.f32.mrf.mxu0
        %8558 = vmatprep.mubr.f32.mxu0 0.0
        %v8559 = vand.u32 %v6122, 4294901760
        %8560 = vmatmul.mubr.f32.gmra.mxu0 %v8559
        %v8561 = vpop.f32.mrf.mxu0
        %v8562 = vadd.f32 %v8201, %v8561
        %v8563 = vpop.f32.mrf.mxu0
        %8564 = vmatprep.mubr.f32.mxu0 0.0
        %v8565 = vand.u32 %v6125, 4294901760
        %8566 = vmatmul.mubr.f32.gmra.mxu0 %v8565
        %v8567 = vpop.f32.mrf.mxu0
        %v8568 = vadd.f32 %v8207, %v8567
        %v8569 = vpop.f32.mrf.mxu0
        %8570 = vmatprep.mubr.f32.mxu0 0.0
        %v8571 = vand.u32 %v6128, 4294901760
        %8572 = vmatmul.mubr.f32.gmra.mxu0 %v8571
        %v8573 = vpop.f32.mrf.mxu0
        %v8574 = vadd.f32 %v8213, %v8573
        %v8575 = vpop.f32.mrf.mxu0
        %8576 = vmatprep.mubr.f32.mxu0 0.0
        %v8577 = vand.u32 %v6131, 4294901760
        %8578 = vmatmul.mubr.f32.gmra.mxu0 %v8577
        %v8579 = vpop.f32.mrf.mxu0
        %v8580 = vadd.f32 %v8219, %v8579
        %v8581 = vpop.f32.mrf.mxu0
        %8582 = vmatprep.mubr.f32.mxu0 0.0
        %v8583 = vand.u32 %v6134, 4294901760
        %8584 = vmatmul.mubr.f32.gmra.mxu0 %v8583
        %v8585 = vpop.f32.mrf.mxu0
        %v8586 = vadd.f32 %v8225, %v8585
        %v8587 = vpop.f32.mrf.mxu0
        %8588 = vmatprep.mubr.f32.mxu0 0.0
        %v8589 = vand.u32 %v6137, 4294901760
        %8590 = vmatmul.mubr.f32.gmra.mxu0 %v8589
        %v8591 = vpop.f32.mrf.mxu0
        %v8592 = vadd.f32 %v8231, %v8591
        %v8593 = vpop.f32.mrf.mxu0
        %8594 = vmatprep.mubr.f32.mxu0 0.0
        %v8595 = vand.u32 %v6140, 4294901760
        %8596 = vmatmul.mubr.f32.gmra.mxu0 %v8595
        %v8597 = vpop.f32.mrf.mxu0
        %v8598 = vadd.f32 %v8237, %v8597
        %v8599 = vpop.f32.mrf.mxu0
        %8600 = vmatprep.mubr.f32.mxu0 0.0
        %v8601 = vand.u32 %v6143, 4294901760
        %8602 = vmatmul.mubr.f32.gmra.mxu0 %v8601
        %v8603 = vpop.f32.mrf.mxu0
        %v8604 = vadd.f32 %v8243, %v8603
        %v8605 = vpop.f32.mrf.mxu0
        %8606 = vmatprep.mubr.f32.mxu0 0.0
        %v8607 = vand.u32 %v6146, 4294901760
        %8608 = vmatmul.mubr.f32.gmra.mxu0 %v8607
        %v8609 = vpop.f32.mrf.mxu0
        %v8610 = vadd.f32 %v8249, %v8609
        %v8611 = vpop.f32.mrf.mxu0
        %8612 = vmatprep.mubr.f32.mxu0 0.0
        %v8613 = vand.u32 %v6149, 4294901760
        %8614 = vmatmul.mubr.f32.gmra.mxu0 %v8613
        %v8615 = vpop.f32.mrf.mxu0
        %v8616 = vadd.f32 %v8255, %v8615
        %v8617 = vpop.f32.mrf.mxu0
        %8618 = vmatprep.mubr.f32.mxu0 0.0
        %v8619 = vand.u32 %v6152, 4294901760
        %8620 = vmatmul.mubr.f32.gmra.mxu0 %v8619
        %v8621 = vpop.f32.mrf.mxu0
        %v8622 = vadd.f32 %v8261, %v8621
        %v8623 = vpop.f32.mrf.mxu0
        %8624 = vmatprep.mubr.f32.mxu0 0.0
        %v8625 = vand.u32 %v6155, 4294901760
        %8626 = vmatmul.mubr.f32.gmra.mxu0 %v8625
        %v8627 = vpop.f32.mrf.mxu0
        %v8628 = vadd.f32 %v8267, %v8627
        %v8629 = vpop.f32.mrf.mxu0
        %8630 = vmatprep.mubr.f32.mxu0 0.0
        %v8631 = vand.u32 %v6158, 4294901760
        %8632 = vmatmul.mubr.f32.gmra.mxu0 %v8631
        %v8633 = vpop.f32.mrf.mxu0
        %v8634 = vadd.f32 %v8273, %v8633
        %v8635 = vpop.f32.mrf.mxu0
        %8636 = vmatprep.mubr.f32.mxu0 0.0
        %v8637 = vand.u32 %v6161, 4294901760
        %8638 = vmatmul.mubr.f32.gmra.mxu0 %v8637
        %v8639 = vpop.f32.mrf.mxu0
        %v8640 = vadd.f32 %v8279, %v8639
        %v8641 = vpop.f32.mrf.mxu0
        %8642 = vmatprep.mubr.f32.mxu0 0.0
        %v8643 = vand.u32 %v6164, 4294901760
        %8644 = vmatmul.mubr.f32.gmra.mxu0 %v8643
        %v8645 = vpop.f32.mrf.mxu0
        %v8646 = vadd.f32 %v8285, %v8645
        %v8647 = vpop.f32.mrf.mxu0
        %8648 = vmatprep.mubr.f32.mxu0 0.0
        %v8649 = vand.u32 %v6167, 4294901760
        %8650 = vmatmul.mubr.f32.gmra.mxu0 %v8649
        %v8651 = vpop.f32.mrf.mxu0
        %v8652 = vadd.f32 %v8291, %v8651
        %v8653 = vpop.f32.mrf.mxu0
        %8654 = vmatprep.mubr.f32.mxu0 0.0
        %v8655 = vand.u32 %v6170, 4294901760
        %8656 = vmatmul.mubr.f32.gmra.mxu0 %v8655
        %v8657 = vpop.f32.mrf.mxu0
        %v8658 = vadd.f32 %v8297, %v8657
        %v8659 = vpop.f32.mrf.mxu0
        %8660 = vmatprep.mubr.f32.mxu0 0.0
        %v8661 = vand.u32 %v6173, 4294901760
        %8662 = vmatmul.mubr.f32.gmra.mxu0 %v8661
        %v8663 = vpop.f32.mrf.mxu0
        %v8664 = vadd.f32 %v8303, %v8663
        %v8665 = vpop.f32.mrf.mxu0
        %8666 = vmatprep.mubr.f32.mxu0 0.0
        %v8667 = vand.u32 %v6176, 4294901760
        %8668 = vmatmul.mubr.f32.gmra.mxu0 %v8667
        %v8669 = vpop.f32.mrf.mxu0
        %v8670 = vadd.f32 %v8309, %v8669
        %v8671 = vpop.f32.mrf.mxu0
        %8672 = vmatprep.mubr.f32.mxu0 0.0
        %v8673 = vand.u32 %v6179, 4294901760
        %8674 = vmatmul.mubr.f32.gmra.mxu0 %v8673
        %v8675 = vpop.f32.mrf.mxu0
        %v8676 = vadd.f32 %v8315, %v8675
        %v8677 = vpop.f32.mrf.mxu0
        %8678 = vmatprep.mubr.f32.mxu0 0.0
        %v8679 = vand.u32 %v6182, 4294901760
        %8680 = vmatmul.mubr.f32.gmra.mxu0 %v8679
        %v8681 = vpop.f32.mrf.mxu0
        %v8682 = vadd.f32 %v8321, %v8681
        %v8683 = vpop.f32.mrf.mxu0
        %8684 = vmatprep.mubr.f32.mxu0 0.0
        %v8685 = vand.u32 %v6185, 4294901760
        %8686 = vmatmul.mubr.f32.gmra.mxu0 %v8685
        %v8687 = vpop.f32.mrf.mxu0
        %v8688 = vadd.f32 %v8327, %v8687
        %v8689 = vpop.f32.mrf.mxu0
        %8690 = vmatprep.mubr.f32.mxu0 0.0
        %v8691 = vand.u32 %v6188, 4294901760
        %8692 = vmatmul.mubr.f32.gmra.mxu0 %v8691
        %v8693 = vpop.f32.mrf.mxu0
        %v8694 = vadd.f32 %v8333, %v8693
        %v8695 = vpop.f32.mrf.mxu0
        %8696 = vmatprep.mubr.f32.mxu0 0.0
        %v8697 = vand.u32 %v6191, 4294901760
        %8698 = vmatmul.mubr.f32.gmra.mxu0 %v8697
        %v8699 = vpop.f32.mrf.mxu0
        %v8700 = vadd.f32 %v8339, %v8699
        %v8701 = vpop.f32.mrf.mxu0
        %8702 = vmatprep.mubr.f32.mxu0 0.0
        %v8703 = vand.u32 %v6194, 4294901760
        %8704 = vmatmul.mubr.f32.gmra.mxu0 %v8703
        %v8705 = vpop.f32.mrf.mxu0
        %v8706 = vadd.f32 %v8345, %v8705
        %v8707 = vpop.f32.mrf.mxu0
        %8708 = vmatprep.mubr.f32.mxu0 0.0
        %v8709 = vand.u32 %v6197, 4294901760
        %8710 = vmatmul.mubr.f32.gmra.mxu0 %v8709
        %v8711 = vpop.f32.mrf.mxu0
        %v8712 = vadd.f32 %v8351, %v8711
        %v8713 = vpop.f32.mrf.mxu0
        %8714 = vmatprep.mubr.f32.mxu0 0.0
        %v8715 = vand.u32 %v6200, 4294901760
        %8716 = vmatmul.mubr.f32.gmra.mxu0 %v8715
        %v8717 = vpop.f32.mrf.mxu0
        %v8718 = vadd.f32 %v8357, %v8717
        %v8719 = vpop.f32.mrf.mxu0
        %8720 = vmatprep.mubr.f32.mxu0 0.0
        %v8721 = vand.u32 %v6203, 4294901760
        %8722 = vmatmul.mubr.f32.gmra.mxu0 %v8721
        %v8723 = vpop.f32.mrf.mxu0
        %v8724 = vadd.f32 %v8363, %v8723
        %v8725 = vpop.f32.mrf.mxu0
        %8726 = vmatprep.mubr.f32.mxu0 0.0
        %v8727 = vand.u32 %v6206, 4294901760
        %8728 = vmatmul.mubr.f32.gmra.mxu0 %v8727
        %v8729 = vpop.f32.mrf.mxu0
        %v8730 = vadd.f32 %v8369, %v8729
        %v8731 = vpop.f32.mrf.mxu0
        %8732 = vmatprep.mubr.f32.mxu0 0.0
        %v8733 = vand.u32 %v6209, 4294901760
        %8734 = vmatmul.mubr.f32.gmra.mxu0 %v8733
        %v8735 = vpop.f32.mrf.mxu0
        %v8736 = vadd.f32 %v8375, %v8735
        %v8737 = vpop.f32.mrf.mxu0
        %8738 = vmatprep.mubr.f32.mxu0 0.0
        %v8739 = vand.u32 %v6212, 4294901760
        %8740 = vmatmul.mubr.f32.gmra.mxu0 %v8739
        %v8741 = vpop.f32.mrf.mxu0
        %v8742 = vadd.f32 %v8381, %v8741
        %v8743 = vpop.f32.mrf.mxu0
        %8744 = vmatprep.mubr.f32.mxu0 0.0
        %v8745 = vand.u32 %v6215, 4294901760
        %8746 = vmatmul.mubr.f32.gmra.mxu0 %v8745
        %v8747 = vpop.f32.mrf.mxu0
        %v8748 = vadd.f32 %v8387, %v8747
        %v8749 = vpop.f32.mrf.mxu0
        %8750 = vmatprep.mubr.f32.mxu0 0.0
        %v8751 = vand.u32 %v6218, 4294901760
        %8752 = vmatmul.mubr.f32.gmra.mxu0 %v8751
        %v8753 = vpop.f32.mrf.mxu0
        %v8754 = vadd.f32 %v8393, %v8753
        %v8755 = vpop.f32.mrf.mxu0
        %8756 = vmatprep.mubr.f32.mxu0 0.0
        %v8757 = vand.u32 %v6221, 4294901760
        %8758 = vmatmul.mubr.f32.gmra.mxu0 %v8757
        %v8759 = vpop.f32.mrf.mxu0
        %v8760 = vadd.f32 %v8399, %v8759
        %v8761 = vpop.f32.mrf.mxu0
        %8762 = vmatprep.mubr.f32.mxu0 0.0
        %v8763 = vand.u32 %v6224, 4294901760
        %8764 = vmatmul.mubr.f32.gmra.mxu0 %v8763
        %v8765 = vpop.f32.mrf.mxu0
        %v8766 = vadd.f32 %v8405, %v8765
        %v8767 = vpop.f32.mrf.mxu0
        %8768 = vmatprep.mubr.f32.mxu0 0.0
        %v8769 = vand.u32 %v6227, 4294901760
        %8770 = vmatmul.mubr.f32.gmra.mxu0 %v8769
        %v8771 = vpop.f32.mrf.mxu0
        %v8772 = vadd.f32 %v8411, %v8771
        %v8773 = vpop.f32.mrf.mxu0
        %8774 = vmatprep.mubr.f32.mxu0 0.0
        %v8775 = vand.u32 %v6230, 4294901760
        %8776 = vmatmul.mubr.f32.gmra.mxu0 %v8775
        %v8777 = vpop.f32.mrf.mxu0
        %v8778 = vadd.f32 %v8417, %v8777
        %v8779 = vpop.f32.mrf.mxu0
        %8780 = vmatprep.mubr.f32.mxu0 0.0
        %v8781 = vand.u32 %v6233, 4294901760
        %8782 = vmatmul.mubr.f32.gmra.mxu0 %v8781
        %v8783 = vpop.f32.mrf.mxu0
        %v8784 = vadd.f32 %v8423, %v8783
        %v8785 = vpop.f32.mrf.mxu0
        %8786 = vmatprep.mubr.f32.mxu0 0.0
        %v8787 = vand.u32 %v6236, 4294901760
        %8788 = vmatmul.mubr.f32.gmra.mxu0 %v8787
        %v8789 = vpop.f32.mrf.mxu0
        %v8790 = vadd.f32 %v8429, %v8789
        %v8791 = vpop.f32.mrf.mxu0
        %8792 = vmatprep.mubr.f32.mxu0 0.0
        %v8793 = vand.u32 %v6239, 4294901760
        %8794 = vmatmul.mubr.f32.gmra.mxu0 %v8793
        %v8795 = vpop.f32.mrf.mxu0
        %v8796 = vadd.f32 %v8435, %v8795
        %v8797 = vpop.f32.mrf.mxu0
        %8798 = vdwg.mxu0
        %v8799 = vsub.f32 %v8610, %v8514
        %v8800 = vsub.f32 %v8616, %v8520
        %v8801 = vsub.f32 %v8622, %v8526
        %v8802 = vsub.f32 %v8628, %v8532
        %v8803 = vsub.f32 %v8634, %v8538
        %v8804 = vsub.f32 %v8640, %v8544
        %v8805 = vsub.f32 %v8646, %v8550
        %v8806 = vsub.f32 %v8652, %v8556
        %v8807 = vsub.f32 %v8658, %v8562
        %v8808 = vsub.f32 %v8664, %v8568
        %v8809 = vsub.f32 %v8670, %v8574
        %v8810 = vsub.f32 %v8676, %v8580
        %v8811 = vsub.f32 %v8682, %v8586
        %v8812 = vsub.f32 %v8688, %v8592
        %v8813 = vsub.f32 %v8694, %v8598
        %v8814 = vsub.f32 %v8700, %v8604
        %v8815 = vsub.f32 %v8706, %v8514
        %v8816 = vsub.f32 %v8712, %v8520
        %v8817 = vsub.f32 %v8718, %v8526
        %v8818 = vsub.f32 %v8724, %v8532
        %v8819 = vsub.f32 %v8730, %v8538
        %v8820 = vsub.f32 %v8736, %v8544
        %v8821 = vsub.f32 %v8742, %v8550
        %v8822 = vsub.f32 %v8748, %v8556
        %v8823 = vsub.f32 %v8754, %v8562
        %v8824 = vsub.f32 %v8760, %v8568
        %v8825 = vsub.f32 %v8766, %v8574
        %v8826 = vsub.f32 %v8772, %v8580
        %v8827 = vsub.f32 %v8778, %v8586
        %v8828 = vsub.f32 %v8784, %v8592
        %v8829 = vsub.f32 %v8790, %v8598
        %v8830 = vsub.f32 %v8796, %v8604
        %v8831 = vmul.f32 %v8799, %v480
        %v8832 = vmul.f32 %v8800, %v481
        %v8833 = vmul.f32 %v8801, %v482
        %v8834 = vmul.f32 %v8802, %v483
        %v8835 = vmul.f32 %v8803, %v484
        %v8836 = vmul.f32 %v8804, %v485
        %v8837 = vmul.f32 %v8805, %v486
        %v8838 = vmul.f32 %v8806, %v487
        %v8839 = vmul.f32 %v8807, %v488
        %v8840 = vmul.f32 %v8808, %v489
        %v8841 = vmul.f32 %v8809, %v490
        %v8842 = vmul.f32 %v8810, %v491
        %v8843 = vmul.f32 %v8811, %v492
        %v8844 = vmul.f32 %v8812, %v493
        %v8845 = vmul.f32 %v8813, %v494
        %v8846 = vmul.f32 %v8814, %v495
        %v8847 = vmul.f32 %v8815, %v496
        %v8848 = vmul.f32 %v8816, %v497
        %v8849 = vmul.f32 %v8817, %v498
        %v8850 = vmul.f32 %v8818, %v499
        %v8851 = vmul.f32 %v8819, %v500
        %v8852 = vmul.f32 %v8820, %v501
        %v8853 = vmul.f32 %v8821, %v502
        %v8854 = vmul.f32 %v8822, %v503
        %v8855 = vmul.f32 %v8823, %v504
        %v8856 = vmul.f32 %v8824, %v505
        %v8857 = vmul.f32 %v8825, %v506
        %v8858 = vmul.f32 %v8826, %v507
        %v8859 = vmul.f32 %v8827, %v508
        %v8860 = vmul.f32 %v8828, %v509
        %v8861 = vmul.f32 %v8829, %v510
        %v8862 = vmul.f32 %v8830, %v511
        %v8863 = vsel %vm639, %v8831, 0.0
        %8864 = vadd.xlane.f32.xlu0 %v8863
        %v8865 = vpop.xlane.xlu0 %8864
        %v8866 = vsel %vm639, %v8832, 0.0
        %8867 = vadd.xlane.f32.xlu0 %v8866
        %v8868 = vpop.xlane.xlu0 %8867
        %v8869 = vsel %vm639, %v8833, 0.0
        %8870 = vadd.xlane.f32.xlu0 %v8869
        %v8871 = vpop.xlane.xlu0 %8870
        %v8872 = vsel %vm639, %v8834, 0.0
        %8873 = vadd.xlane.f32.xlu0 %v8872
        %v8874 = vpop.xlane.xlu0 %8873
        %v8875 = vsel %vm639, %v8835, 0.0
        %8876 = vadd.xlane.f32.xlu0 %v8875
        %v8877 = vpop.xlane.xlu0 %8876
        %v8878 = vsel %vm639, %v8836, 0.0
        %8879 = vadd.xlane.f32.xlu0 %v8878
        %v8880 = vpop.xlane.xlu0 %8879
        %v8881 = vsel %vm639, %v8837, 0.0
        %8882 = vadd.xlane.f32.xlu0 %v8881
        %v8883 = vpop.xlane.xlu0 %8882
        %v8884 = vsel %vm639, %v8838, 0.0
        %8885 = vadd.xlane.f32.xlu0 %v8884
        %v8886 = vpop.xlane.xlu0 %8885
        %v8887 = vsel %vm639, %v8839, 0.0
        %8888 = vadd.xlane.f32.xlu0 %v8887
        %v8889 = vpop.xlane.xlu0 %8888
        %v8890 = vsel %vm639, %v8840, 0.0
        %8891 = vadd.xlane.f32.xlu0 %v8890
        %v8892 = vpop.xlane.xlu0 %8891
        %v8893 = vsel %vm639, %v8841, 0.0
        %8894 = vadd.xlane.f32.xlu0 %v8893
        %v8895 = vpop.xlane.xlu0 %8894
        %v8896 = vsel %vm639, %v8842, 0.0
        %8897 = vadd.xlane.f32.xlu0 %v8896
        %v8898 = vpop.xlane.xlu0 %8897
        %v8899 = vsel %vm639, %v8843, 0.0
        %8900 = vadd.xlane.f32.xlu0 %v8899
        %v8901 = vpop.xlane.xlu0 %8900
        %v8902 = vsel %vm639, %v8844, 0.0
        %8903 = vadd.xlane.f32.xlu0 %v8902
        %v8904 = vpop.xlane.xlu0 %8903
        %v8905 = vsel %vm639, %v8845, 0.0
        %8906 = vadd.xlane.f32.xlu0 %v8905
        %v8907 = vpop.xlane.xlu0 %8906
        %v8908 = vsel %vm639, %v8846, 0.0
        %8909 = vadd.xlane.f32.xlu0 %v8908
        %v8910 = vpop.xlane.xlu0 %8909
        %v8911 = vsel %vm639, %v8847, 0.0
        %8912 = vadd.xlane.f32.xlu0 %v8911
        %v8913 = vpop.xlane.xlu0 %8912
        %v8914 = vsel %vm639, %v8848, 0.0
        %8915 = vadd.xlane.f32.xlu0 %v8914
        %v8916 = vpop.xlane.xlu0 %8915
        %v8917 = vsel %vm639, %v8849, 0.0
        %8918 = vadd.xlane.f32.xlu0 %v8917
        %v8919 = vpop.xlane.xlu0 %8918
        %v8920 = vsel %vm639, %v8850, 0.0
        %8921 = vadd.xlane.f32.xlu0 %v8920
        %v8922 = vpop.xlane.xlu0 %8921
        %v8923 = vsel %vm639, %v8851, 0.0
        %8924 = vadd.xlane.f32.xlu0 %v8923
        %v8925 = vpop.xlane.xlu0 %8924
        %v8926 = vsel %vm639, %v8852, 0.0
        %8927 = vadd.xlane.f32.xlu0 %v8926
        %v8928 = vpop.xlane.xlu0 %8927
        %v8929 = vsel %vm639, %v8853, 0.0
        %8930 = vadd.xlane.f32.xlu0 %v8929
        %v8931 = vpop.xlane.xlu0 %8930
        %v8932 = vsel %vm639, %v8854, 0.0
        %8933 = vadd.xlane.f32.xlu0 %v8932
        %v8934 = vpop.xlane.xlu0 %8933
        %v8935 = vsel %vm639, %v8855, 0.0
        %8936 = vadd.xlane.f32.xlu0 %v8935
        %v8937 = vpop.xlane.xlu0 %8936
        %v8938 = vsel %vm639, %v8856, 0.0
        %8939 = vadd.xlane.f32.xlu0 %v8938
        %v8940 = vpop.xlane.xlu0 %8939
        %v8941 = vsel %vm639, %v8857, 0.0
        %8942 = vadd.xlane.f32.xlu0 %v8941
        %v8943 = vpop.xlane.xlu0 %8942
        %v8944 = vsel %vm639, %v8858, 0.0
        %8945 = vadd.xlane.f32.xlu0 %v8944
        %v8946 = vpop.xlane.xlu0 %8945
        %v8947 = vsel %vm639, %v8859, 0.0
        %8948 = vadd.xlane.f32.xlu0 %v8947
        %v8949 = vpop.xlane.xlu0 %8948
        %v8950 = vsel %vm639, %v8860, 0.0
        %8951 = vadd.xlane.f32.xlu0 %v8950
        %v8952 = vpop.xlane.xlu0 %8951
        %v8953 = vsel %vm639, %v8861, 0.0
        %8954 = vadd.xlane.f32.xlu0 %v8953
        %v8955 = vpop.xlane.xlu0 %8954
        %v8956 = vsel %vm639, %v8862, 0.0
        %8957 = vadd.xlane.f32.xlu0 %v8956
        %v8958 = vpop.xlane.xlu0 %8957
        %v8959 = vadd.f32 %v8865, %v8913
        %v8960 = vadd.f32 %v8868, %v8916
        %v8961 = vadd.f32 %v8871, %v8919
        %v8962 = vadd.f32 %v8874, %v8922
        %v8963 = vadd.f32 %v8877, %v8925
        %v8964 = vadd.f32 %v8880, %v8928
        %v8965 = vadd.f32 %v8883, %v8931
        %v8966 = vadd.f32 %v8886, %v8934
        %v8967 = vadd.f32 %v8889, %v8937
        %v8968 = vadd.f32 %v8892, %v8940
        %v8969 = vadd.f32 %v8895, %v8943
        %v8970 = vadd.f32 %v8898, %v8946
        %v8971 = vadd.f32 %v8901, %v8949
        %v8972 = vadd.f32 %v8904, %v8952
        %v8973 = vadd.f32 %v8907, %v8955
        %v8974 = vadd.f32 %v8910, %v8958
        %v8975 = vmul.f32 %v8959, -282.8427
        %v8976 = vmul.f32 %v8960, -282.8427
        %v8977 = vmul.f32 %v8961, -282.8427
        %v8978 = vmul.f32 %v8962, -282.8427
        %v8979 = vmul.f32 %v8963, -282.8427
        %v8980 = vmul.f32 %v8964, -282.8427
        %v8981 = vmul.f32 %v8965, -282.8427
        %v8982 = vmul.f32 %v8966, -282.8427
        %v8983 = vmul.f32 %v8967, -282.8427
        %v8984 = vmul.f32 %v8968, -282.8427
        %v8985 = vmul.f32 %v8969, -282.8427
        %v8986 = vmul.f32 %v8970, -282.8427
        %v8987 = vmul.f32 %v8971, -282.8427
        %v8988 = vmul.f32 %v8972, -282.8427
        %v8989 = vmul.f32 %v8973, -282.8427
        %v8990 = vmul.f32 %v8974, -282.8427
        %v8991 = vsel %vm3342, %v8514, 0.0
        %v8992 = vsel %vm3342, %v8520, 0.0
        %v8993 = vsel %vm3342, %v8526, 0.0
        %v8994 = vsel %vm3342, %v8532, 0.0
        %v8995 = vsel %vm3342, %v8538, 0.0
        %v8996 = vsel %vm3342, %v8544, 0.0
        %v8997 = vsel %vm3342, %v8550, 0.0
        %v8998 = vsel %vm3342, %v8556, 0.0
        %v8999 = vsel %vm3342, %v8562, 0.0
        %v9000 = vsel %vm3342, %v8568, 0.0
        %v9001 = vsel %vm3342, %v8574, 0.0
        %v9002 = vsel %vm3342, %v8580, 0.0
        %v9003 = vsel %vm3342, %v8586, 0.0
        %v9004 = vsel %vm3342, %v8592, 0.0
        %v9005 = vsel %vm3342, %v8598, 0.0
        %v9006 = vsel %vm3342, %v8604, 0.0
        %v9007 = vlaneseq
        %v9008 = vand.u32 %v9007, 127
        %vm9009 = vcmp.eq.s32.totalorder %v9008, 32
        %v9010 = vsel %vm9009, %v8975, %v8991
        %v9011 = vsel %vm9009, %v8976, %v8992
        %v9012 = vsel %vm9009, %v8977, %v8993
        %v9013 = vsel %vm9009, %v8978, %v8994
        %v9014 = vsel %vm9009, %v8979, %v8995
        %v9015 = vsel %vm9009, %v8980, %v8996
        %v9016 = vsel %vm9009, %v8981, %v8997
        %v9017 = vsel %vm9009, %v8982, %v8998
        %v9018 = vsel %vm9009, %v8983, %v8999
        %v9019 = vsel %vm9009, %v8984, %v9000
        %v9020 = vsel %vm9009, %v8985, %v9001
        %v9021 = vsel %vm9009, %v8986, %v9002
        %v9022 = vsel %vm9009, %v8987, %v9003
        %v9023 = vsel %vm9009, %v8988, %v9004
        %v9024 = vsel %vm9009, %v8989, %v9005
        %v9025 = vsel %vm9009, %v8990, %v9006
        %9026 = vst [vmem:[%s445] sm:$0xff] %v9010
        %9027 = vst [vmem:[%s445 + $0x8] sm:$0xff] %v9011
        %9028 = vst [vmem:[%s445 + $0x10] sm:$0xff] %v9012
        %9029 = vst [vmem:[%s445 + $0x18] sm:$0xff] %v9013
        %9030 = vst [vmem:[%s445 + $0x20] sm:$0xff] %v9014
        %9031 = vst [vmem:[%s445 + $0x28] sm:$0xff] %v9015
        %9032 = vst [vmem:[%s445 + $0x30] sm:$0xff] %v9016
        %9033 = vst [vmem:[%s445 + $0x38] sm:$0xff] %v9017
        %9034 = vst [vmem:[%s445 + $0x40] sm:$0xff] %v9018
        %9035 = vst [vmem:[%s445 + $0x48] sm:$0xff] %v9019
        %9036 = vst [vmem:[%s445 + $0x50] sm:$0xff] %v9020
        %9037 = vst [vmem:[%s445 + $0x58] sm:$0xff] %v9021
        %9038 = vst [vmem:[%s445 + $0x60] sm:$0xff] %v9022
        %9039 = vst [vmem:[%s445 + $0x68] sm:$0xff] %v9023
        %9040 = vst [vmem:[%s445 + $0x70] sm:$0xff] %v9024
        %9041 = vst [vmem:[%s445 + $0x78] sm:$0xff] %v9025
        %s9042 = smul.u32 16, %s16
        %p9043 = scmp.lt.s32.totalorder %s9042, 31
        %s9044 = scalar_select %p9043, %s9042, 31
        %s9045 = smul.addr %s9044, 8
        %s9046 = scalar_lea.vmem %s4, %s9045
        // Predicated region
        $region75: #{odefunc_forward.1} parent=69 // pred_check
          %p9047 = pneg %p128
        $region76: #{odefunc_forward.1} parent=69 // pred_check_branch
          %9049 = sbr.rel (%p9047) target = $region78
        $region77: #{odefunc_forward.1} parent=69 // pred_region
          %s9050 = smul.u32 16, %s16
        $region78: #{odefunc_forward.1} parent=69 // pred_fallthru
          _
      $region70: #{odefunc_forward.1} parent=5 // pred_fallthru
        _
      %p9051 = scmp.le.s32.totalorder 2, %s11
      // Predicated region
      $region79: #{odefunc_forward.1} parent=5 // pred_check
        %p9052 = pneg %p9051
      $region80: #{odefunc_forward.1} parent=5 // pred_check_branch
        %9054 = sbr.rel (%p9052) target = $region82
      $region81: #{odefunc_forward.1} parent=5 // pred_region
        %s9055 = ssub.s32 %s11, 2
        // Predicated region
        $region83: #{odefunc_forward.1} parent=81 // pred_check
          %p9056 = pneg %p134
        $region84: #{odefunc_forward.1} parent=81 // pred_check_branch
          %9058 = sbr.rel (%p9056) target = $region86
        $region85: #{odefunc_forward.1} parent=81 // pred_region
          %s9059 = smul.u32 16, %s17
          %p9060 = scmp.lt.s32.totalorder %s9059, 31
          %s9061 = scalar_select %p9060, %s9059, 31
          %s9062 = smul.addr %s9061, 8
          %s9063 = scalar_lea.vmem %s4, %s9062
        $region86: #{odefunc_forward.1} parent=81 // pred_fallthru
          _
      $region82: #{odefunc_forward.1} parent=5 // pred_fallthru
        _
    $region6: #{odefunc_forward.1} parent=1 // loop_footer
      %s15 = sadd.s32 1, %s11
    $region7: #{odefunc_forward.1} parent=1 // loop_footer_branch
      %10 = sbr.rel target = $region3
    $region8: #{odefunc_forward.1} parent=1 // loop_exit
      _

</llo_original>
